<compile_context>
chip_gen: v7x
topology: tpu7x:2x2x1
jax: 0.10.0
libtpu: 0.0.40
codegen_flags: <defaults>
</compile_context>

<pallas_src>
import functools

import jax
import jax.numpy as jnp
from jax.experimental import pallas as pl
from jax.experimental.pallas import tpu as pltpu


# ---------------- helpers ----------------

def _round_up(x, m):
    return (x + m - 1) // m * m


def _pick_spatial_tile(total, cap=2048):
    """Largest lane tile that is the full axis or a multiple-of-128 divisor of it."""
    if total <= cap:
        return total
    for t in (2048, 1024, 512, 256, 128):
        if total % t == 0:
            return t
    # TODO(synk): pad the spatial axis so a multiple-of-128 tile always divides it.
    return total


# ---------------- Pallas kernels ----------------

def _make_convt_kernel(offsets, L, out_dtype):
    """Phase-decomposed transposed conv: per sample, all phases/taps, in-kernel patch slicing.

    x_ref: (1, Cin, SpPad)    padded + flattened input sample (VMEM resident)
    w_ref: (P, T^3, Cout, Cin) all phase/tap weights (resident across the whole grid)
    o_ref: (1, P, Cout, L)     per-phase output rows (over-computed, lane-dense, bf16/f32)
    """
    P = len(offsets)
    T3 = len(offsets[0])

    def kernel(x_ref, w_ref, o_ref):
        for p in range(P):                         # static unroll: offsets stay Python ints
            acc = None
            for t in range(T3):
                off = offsets[p][t]
                xs = x_ref[0, :, off:off + L]      # (Cin, L) static lane-offset slice, no copy to HBM
                term = jnp.dot(w_ref[p, t], xs, preferred_element_type=jnp.float32)
                acc = term if acc is None else acc + term
            o_ref[0, p] = acc.astype(out_dtype)

    return kernel


def _bn_stats_kernel(y_ref, s1_ref, s2_ref):
    """Pass A: per-channel sum / sum-of-squares partials for batch statistics."""
    y = y_ref[0, 0].astype(jnp.float32)            # (Cout, tS)
    s1_ref[0, 0, 0] = jnp.sum(y, axis=-1, keepdims=True)
    s2_ref[0, 0, 0] = jnp.sum(y * y, axis=-1, keepdims=True)


def _bn_relu_pool_kernel(y_ref, sc_ref, sh_ref, o_ref):
    """Pass B: normalize + ReLU, accumulate SE global-average-pool partials."""
    y = y_ref[0, 0].astype(jnp.float32)            # (Cout, tS)
    z = jnp.maximum(y * sc_ref[...] + sh_ref[...], 0.0)
    o_ref[0, 0, 0] = jnp.sum(z, axis=-1, keepdims=True)


def _se_gate_kernel(pool_ref, w1t_ref, b1_ref, w2t_ref, b2_ref, o_ref):
    """Tiny SE excitation MLP on the pooled (N, C) vector: fc1 -> ReLU -> fc2 -> sigmoid."""
    h = jnp.dot(pool_ref[...], w1t_ref[...], preferred_element_type=jnp.float32) + b1_ref[...]
    h = jnp.maximum(h, 0.0)
    z = jnp.dot(h, w2t_ref[...], preferred_element_type=jnp.float32) + b2_ref[...]
    o_ref[...] = 1.0 / (1.0 + jnp.exp(-z))


def _bn_relu_gate_kernel(y_ref, sc_ref, sh_ref, g_ref, o_ref):
    """Pass C: recompute normalize + ReLU and apply the per-(n, c) SE gate."""
    y = y_ref[0, 0].astype(jnp.float32)            # (Cout, tS)
    z = jnp.maximum(y * sc_ref[...] + sh_ref[...], 0.0)
    o_ref[0, 0] = z * g_ref[0]                     # g_ref[0]: (Cout, 1)


# ---------------- Wrapper ----------------

def trans_conv3d_for_g(x, params, *, stride, padding, conv_dtype=jnp.bfloat16):
    """x: (N, C_in, D, H, W) float32 -> (N, C_out, OD, OH, OW) float32."""
    wt = params["convt_w"]                         # (Cin, Cout, K, K, K)
    N, Cin, D, H, W = x.shape
    _, Cout, K, _, _ = wt.shape
    s = stride
    OD = (D - 1) * s - 2 * padding + K
    OH = (H - 1) * s - 2 * padding + K
    OW = (W - 1) * s - 2 * padding + K
    # TODO(synk): K % stride != 0 (non-uniform taps per phase) not implemented; the canonical
    # upsampling config (K=4, stride=2, padding=1) satisfies these assertions.
    assert K % s == 0 and (K - 2 * padding) % s == 0, \
        "phase decomposition assumes K % stride == 0 and OD % stride == 0"
    T = K // s
    T3 = T * T * T
    ODs, OHs, OWs = OD // s, OH // s, OW // s
    P = s ** 3

    # Per-residue geometry: output od = s*a + r reads input id = a + c[r] - j, kernel tap rho[r]+s*j.
    rho = [(r + padding) % s for r in range(s)]
    c = [(r + padding - rho[r]) // s for r in range(s)]
    padl = max(0, (T - 1) - min(c))
    padr_d = max(0, max(c) + ODs - 1 - (D - 1))
    padr_h = max(0, max(c) + OHs - 1 - (H - 1))
    padr_w = max(0, max(c) + OWs - 1 - (W - 1))
    Dp, Hp, Wp = D + padl + padr_d, H + padl + padr_h, W + padl + padr_w

    # Flattened-spatial trick: with the padded sample flattened to (Cin, Dp*Hp*Wp), every
    # (phase, tap) operand is a *contiguous* lane slice at a static offset; valid outputs live at
    # q = a_d*Hp*Wp + a_h*Wp + a_w (the in-between lanes are junk and are discarded by XLA).
    Lfull = ODs * Hp * Wp
    L = _round_up(Lfull, 128)                      # lane-dense, unmasked stores
    offsets = []
    for rd in range(s):
        for rh in range(s):
            for rw in range(s):
                offs_p = []
                for jd in range(T):
                    for jh in range(T):
                        for jw in range(T):
                            dd = c[rd] - jd + padl
                            dh = c[rh] - jh + padl
                            dw = c[rw] - jw + padl
                            offs_p.append(dd * Hp * Wp + dh * Wp + dw)
                offsets.append(offs_p)
    max_off = max(max(o) for o in offsets)

    # Pad + flatten the input once (no im2col duplication; taps are sliced in-kernel from VMEM).
    x_pad = jnp.pad(x, ((0, 0), (0, 0), (padl, padr_d), (padl, padr_h), (padl, padr_w)))
    Sp = Dp * Hp * Wp
    SpPad = max(Sp, max_off + L)
    x_flat = x_pad.reshape(N, Cin, Sp)
    if SpPad > Sp:
        x_flat = jnp.pad(x_flat, ((0, 0), (0, 0), (0, SpPad - Sp)))
    x_flat = x_flat.astype(conv_dtype)

    # Per-(phase, tap) 2-D weights: w_all[p, t, co, ci] = wt[ci, co, rho_d + s*jd, ...].
    w_list = []
    for rd in range(s):
        for rh in range(s):
            for rw in range(s):
                wp = wt[:, :, rho[rd]::s, rho[rh]::s, rho[rw]::s]            # (Cin, Cout, T, T, T)
                w_list.append(wp.transpose(2, 3, 4, 1, 0).reshape(T3, Cout, Cin))
    w_all = jnp.stack(w_list, axis=0).astype(conv_dtype)                     # (P, T3, Cout, Cin)
    # NOTE: the ConvTranspose bias is intentionally dropped -- a per-channel constant added before
    # train-mode BatchNorm is exactly removed by the batch-mean subtraction.

    itemsize = jnp.dtype(conv_dtype).itemsize
    conv_cost = pl.CostEstimate(
        flops=2 * N * P * T3 * Cout * Cin * L,
        transcendentals=0,
        bytes_accessed=int(x_flat.size) * itemsize + int(w_all.size) * itemsize
        + N * P * Cout * L * itemsize,
    )

    y_over = pl.pallas_call(
        _make_convt_kernel(offsets, L, conv_dtype),
        out_shape=jax.ShapeDtypeStruct((N, P, Cout, L), conv_dtype),
        grid=(N,),
        in_specs=[
            pl.BlockSpec((1, Cin, SpPad), lambda n: (n, 0, 0)),              # sample resident
            pl.BlockSpec((P, T3, Cout, Cin), lambda n: (0, 0, 0, 0)),        # all weights resident
        ],
        out_specs=pl.BlockSpec((1, P, Cout, L), lambda n: (n, 0, 0, 0)),
        compiler_params=pltpu.CompilerParams(
            dimension_semantics=("parallel",),
            vmem_limit_bytes=48 * 1024 * 1024),
        cost_estimate=conv_cost,
    )(x_flat, w_all)

    # Extract the valid lanes (XLA strided slice; no transpose).  Layout stays phase-major:
    # (N, P, Cout, Ss) -- BN stats and the SE pool are permutation-invariant over spatial.
    Ss = ODs * OHs * OWs
    y2 = (y_over[..., :Lfull]
          .reshape(N, P, Cout, ODs, Hp, Wp)[..., :OHs, :OWs]
          .reshape(N, P, Cout, Ss))

    tS = _pick_spatial_tile(Ss)
    nS = Ss // tS
    grid3 = (N, P, nS)
    y_spec = pl.BlockSpec((1, 1, Cout, tS), lambda n, p, si: (n, p, 0, si))
    part_spec = pl.BlockSpec((1, 1, 1, Cout, 1), lambda n, p, si: (n, p, si, 0, 0))
    cs_spec = pl.BlockSpec((Cout, 1), lambda n, p, si: (0, 0))
    par3 = pltpu.CompilerParams(
        dimension_semantics=("parallel", "parallel", "parallel"))

    # Pass A: per-channel sum / sum-of-squares partials.
    stats_s1, stats_s2 = pl.pallas_call(
        _bn_stats_kernel,
        out_shape=(jax.ShapeDtypeStruct((N, P, nS, Cout, 1), jnp.float32),
                   jax.ShapeDtypeStruct((N, P, nS, Cout, 1), jnp.float32)),
        grid=grid3,
        in_specs=[y_spec],
        out_specs=[part_spec, part_spec],
        compiler_params=par3,
    )(y2)

    cnt = float(N * P * Ss)                         # = N * OD * OH * OW
    s1 = jnp.sum(stats_s1, axis=(0, 1, 2))[:, 0]
    s2 = jnp.sum(stats_s2, axis=(0, 1, 2))[:, 0]
    mean = s1 / cnt
    # TODO(synk): for real activation scales use a shifted / two-pass variance to avoid
    # cancellation in E[x^2] - E[x]^2.
    var = s2 / cnt - mean * mean                    # biased batch variance (BN train-mode)
    eps = 1e-5
    inv_std = jax.lax.rsqrt(var + eps)
    scale_v = params["bn_gamma"].astype(jnp.float32) * inv_std
    shift_v = params["bn_beta"].astype(jnp.float32) - mean * scale_v
    scale = scale_v.reshape(Cout, 1)
    shift = shift_v.reshape(Cout, 1)

    # Pass B: normalize + ReLU, accumulate the SE global-average-pool partials.
    pool_part = pl.pallas_call(
        _bn_relu_pool_kernel,
        out_shape=jax.ShapeDtypeStruct((N, P, nS, Cout, 1), jnp.float32),
        grid=grid3,
        in_specs=[y_spec, cs_spec, cs_spec],
        out_specs=part_spec,
        compiler_params=par3,
    )(y2, scale, shift)
    pool = jnp.sum(pool_part, axis=(1, 2))[..., 0] / float(P * Ss)          # (N, Cout)

    # SE excitation MLP (tiny).
    cr = params["fc1_w"].shape[0]
    vmem = pl.BlockSpec(memory_space=pltpu.MemorySpace.VMEM)
    gate = pl.pallas_call(
        _se_gate_kernel,
        out_shape=jax.ShapeDtypeStruct((N, Cout), jnp.float32),
        in_specs=[vmem] * 5,
        out_specs=vmem,
    )(pool,
      params["fc1_w"].T.astype(jnp.float32),
      params["fc1_b"].reshape(1, cr).astype(jnp.float32),
      params["fc2_w"].T.astype(jnp.float32),
      params["fc2_b"].reshape(1, Cout).astype(jnp.float32))
    gate3 = gate[:, :, None]                                                # (N, Cout, 1)

    # Pass C: recompute normalize + ReLU and apply the SE channel gate (phase-major layout).
    out_phase = pl.pallas_call(
        _bn_relu_gate_kernel,
        out_shape=jax.ShapeDtypeStruct((N, P, Cout, Ss), jnp.float32),
        grid=grid3,
        in_specs=[y_spec, cs_spec, cs_spec,
                  pl.BlockSpec((1, Cout, 1), lambda n, p, si: (n, 0, 0))],
        out_specs=pl.BlockSpec((1, 1, Cout, tS), lambda n, p, si: (n, p, 0, si)),
        compiler_params=par3,
    )(y2, scale, shift, gate3)

    # Single phase-interleave transpose to (N, Cout, OD, OH, OW): od = s*a_d + rd, etc.
    out8 = out_phase.reshape(N, s, s, s, Cout, ODs, OHs, OWs)
    out = out8.transpose(0, 4, 5, 1, 6, 2, 7, 3).reshape(N, Cout, OD, OH, OW)
    return out


# ---------------- Pure-JAX reference (zero-insert + flipped-kernel conv) ----------------

def reference_forward(x, params, *, stride, padding):
    wt = params["convt_w"]
    cb = params["convt_b"]
    N, Cin, D, H, W = x.shape
    _, Cout, K, _, _ = wt.shape
    OD = (D - 1) * stride - 2 * padding + K
    OH = (H - 1) * stride - 2 * padding + K
    OW = (W - 1) * stride - 2 * padding + K
    Du, Hu, Wu = (D - 1) * stride + 1, (H - 1) * stride + 1, (W - 1) * stride + 1
    xu = jnp.zeros((N, Cin, Du, Hu, Wu), x.dtype)
    xu = xu.at[:, :, ::stride, ::stride, ::stride].set(x)
    pad = K - 1 - padding
    xp = jnp.pad(xu, ((0, 0), (0, 0), (pad, pad), (pad, pad), (pad, pad)))
    wf = wt[:, :, ::-1, ::-1, ::-1]
    y = jnp.zeros((N, Cout, OD, OH, OW), jnp.float32)
    for kd in range(K):
        for kh in range(K):
            for kw in range(K):
                y = y + jnp.einsum("ncdhw,cf->nfdhw",
                                   xp[:, :, kd:kd + OD, kh:kh + OH, kw:kw + OW],
                                   wf[:, :, kd, kh, kw])
    y = y + cb[None, :, None, None, None]
    mean = y.mean(axis=(0, 2, 3, 4), keepdims=True)
    var = ((y - mean) ** 2).mean(axis=(0, 2, 3, 4), keepdims=True)
    yb = (y - mean) / jnp.sqrt(var + 1e-5)
    yb = yb * params["bn_gamma"].reshape(1, -1, 1, 1, 1) + params["bn_beta"].reshape(1, -1, 1, 1, 1)
    yr = jnp.maximum(yb, 0.0)
    pool = yr.mean(axis=(2, 3, 4))
    h = jnp.maximum(pool @ params["fc1_w"].T + params["fc1_b"], 0.0)
    gate = 1.0 / (1.0 + jnp.exp(-(h @ params["fc2_w"].T + params["fc2_b"])))
    return yr * gate[:, :, None, None, None]


# ---------------- Deterministic parameter init & example run ----------------

def init_params(key, in_channels, out_channels, kernel_size, reduction_ratio=16):
    ks = jax.random.split(key, 6)
    cr = out_channels // reduction_ratio
    return {
        # ConvTranspose3d weight layout: (C_in, C_out, kD, kH, kW)
        "convt_w": 0.1 * jax.random.normal(
            ks[0], (in_channels, out_channels, kernel_size, kernel_size, kernel_size),
            dtype=jnp.float32),
        "convt_b": 0.1 * jax.random.normal(ks[1], (out_channels,), dtype=jnp.float32),
        # BatchNorm3d affine params (PyTorch init: gamma=1, beta=0)
        "bn_gamma": jnp.ones((out_channels,), jnp.float32),
        "bn_beta": jnp.zeros((out_channels,), jnp.float32),
        # SE fc1: Linear(C -> C//r), fc2: Linear(C//r -> C); PyTorch weight is (out, in)
        "fc1_w": 0.1 * jax.random.normal(ks[2], (cr, out_channels), dtype=jnp.float32),
        "fc1_b": 0.1 * jax.random.normal(ks[3], (cr,), dtype=jnp.float32),
        "fc2_w": 0.1 * jax.random.normal(ks[4], (out_channels, cr), dtype=jnp.float32),
        "fc2_b": 0.1 * jax.random.normal(ks[5], (out_channels,), dtype=jnp.float32),
    }


if __name__ == "__main__":
    # Small shapes consistent with the module: N=2, C_in=8, C_out=16, D=H=W=4, k=4, stride=2, pad=1
    key = jax.random.PRNGKey(0)
    kx, kp = jax.random.split(key)
    N, Cin, Cout, D, K, STRIDE, PAD = 2, 8, 16, 4, 4, 2, 1

    x = jax.random.normal(kx, (N, Cin, D, D, D), dtype=jnp.float32)
    params = init_params(kp, Cin, Cout, K)

    expected_od = (D - 1) * STRIDE - 2 * PAD + K
    ref = reference_forward(x, params, stride=STRIDE, padding=PAD)

    # f32-operand path: must match the pure-JAX reference closely.
    out_f32 = jax.jit(functools.partial(
        trans_conv3d_for_g, stride=STRIDE, padding=PAD, conv_dtype=jnp.float32))(x, params)
    out_f32 = jax.block_until_ready(out_f32)
    assert out_f32.shape == (N, Cout, expected_od, expected_od, expected_od), out_f32.shape
    assert bool(jnp.allclose(out_f32, ref, atol=3e-3, rtol=3e-3)), \
        float(jnp.max(jnp.abs(out_f32 - ref)))

    # Default bf16 path (bf16 operands + bf16 conv output, f32 accumulation / statistics).
    out = jax.jit(functools.partial(
        trans_conv3d_for_g, stride=STRIDE, padding=PAD))(x, params)
    out = jax.block_until_ready(out)
    assert out.shape == (N, Cout, expected_od, expected_od, expected_od), out.shape
    assert bool(jnp.all(jnp.isfinite(out)))
    assert float(jnp.max(jnp.abs(out - ref))) < 0.25

    print("KERNEL_OK")
</pallas_src>

<mosaic_0001>
module attributes {stable_mosaic.version = 11 : i64} {
  func.func @kernel(%arg0: i32, %arg1: memref<1x8x342xf32, #tpu.memory_space<vmem>>, %arg2: memref<8x8x16x8xf32, #tpu.memory_space<vmem>>, %arg3: memref<1x8x16x256xf32, #tpu.memory_space<vmem>>) attributes {dimension_semantics = [#tpu.dimension_semantics<parallel>], iteration_bounds = array<i64: 2>, scalar_prefetch = 0 : i64, scratch_operands = 0 : i64, tpu.core_type = #tpu.core_type<tc>, window_params = [{transform_indices = @transform_0, window_bounds = array<i64: 1, 8, 342>}, {pipeline_mode = #tpu.pipeline_mode<synchronous>, transform_indices = @transform_1, window_bounds = array<i64: 8, 8, 16, 8>}, {transform_indices = @transform_2, window_bounds = array<i64: 1, 8, 16, 256>}]} {
    %c0 = arith.constant 0 : index
    %c0_0 = arith.constant 0 : index
    %c43 = arith.constant 43 : index
    %0 = vector.load %arg1[%c0, %c0_0, %c43] : memref<1x8x342xf32, #tpu.memory_space<vmem>>, vector<1x8x256xf32>
    %1 = vector.shape_cast %0 : vector<1x8x256xf32> to vector<8x256xf32>
    %c0_1 = arith.constant 0 : index
    %c0_2 = arith.constant 0 : index
    %c0_3 = arith.constant 0 : index
    %c0_4 = arith.constant 0 : index
    %2 = vector.load %arg2[%c0_1, %c0_2, %c0_3, %c0_4] : memref<8x8x16x8xf32, #tpu.memory_space<vmem>>, vector<1x1x16x8xf32>
    %3 = vector.shape_cast %2 : vector<1x1x16x8xf32> to vector<16x8xf32>
    %cst = arith.constant dense<0.000000e+00> : vector<16x256xf32>
    %4 = tpu.matmul %3, %1, %cst {dimension_numbers = #tpu.dot_dimension_numbers<[1], [0], [0], [1], [0, 0, 1, 1], [], []>} : vector<16x8xf32>, vector<8x256xf32>, vector<16x256xf32> -> vector<16x256xf32>
    %c0_5 = arith.constant 0 : index
    %c0_6 = arith.constant 0 : index
    %c42 = arith.constant 42 : index
    %5 = vector.load %arg1[%c0_5, %c0_6, %c42] : memref<1x8x342xf32, #tpu.memory_space<vmem>>, vector<1x8x256xf32>
    %6 = vector.shape_cast %5 : vector<1x8x256xf32> to vector<8x256xf32>
    %c0_7 = arith.constant 0 : index
    %c1 = arith.constant 1 : index
    %c0_8 = arith.constant 0 : index
    %c0_9 = arith.constant 0 : index
    %7 = vector.load %arg2[%c0_7, %c1, %c0_8, %c0_9] : memref<8x8x16x8xf32, #tpu.memory_space<vmem>>, vector<1x1x16x8xf32>
    %8 = vector.shape_cast %7 : vector<1x1x16x8xf32> to vector<16x8xf32>
    %cst_10 = arith.constant dense<0.000000e+00> : vector<16x256xf32>
    %9 = tpu.matmul %8, %6, %cst_10 {dimension_numbers = #tpu.dot_dimension_numbers<[1], [0], [0], [1], [0, 0, 1, 1], [], []>} : vector<16x8xf32>, vector<8x256xf32>, vector<16x256xf32> -> vector<16x256xf32>
    %10 = arith.addf %4, %9 : vector<16x256xf32>
    %c0_11 = arith.constant 0 : index
    %c0_12 = arith.constant 0 : index
    %c37 = arith.constant 37 : index
    %11 = vector.load %arg1[%c0_11, %c0_12, %c37] : memref<1x8x342xf32, #tpu.memory_space<vmem>>, vector<1x8x256xf32>
    %12 = vector.shape_cast %11 : vector<1x8x256xf32> to vector<8x256xf32>
    %c0_13 = arith.constant 0 : index
    %c2 = arith.constant 2 : index
    %c0_14 = arith.constant 0 : index
    %c0_15 = arith.constant 0 : index
    %13 = vector.load %arg2[%c0_13, %c2, %c0_14, %c0_15] : memref<8x8x16x8xf32, #tpu.memory_space<vmem>>, vector<1x1x16x8xf32>
    %14 = vector.shape_cast %13 : vector<1x1x16x8xf32> to vector<16x8xf32>
    %cst_16 = arith.constant dense<0.000000e+00> : vector<16x256xf32>
    %15 = tpu.matmul %14, %12, %cst_16 {dimension_numbers = #tpu.dot_dimension_numbers<[1], [0], [0], [1], [0, 0, 1, 1], [], []>} : vector<16x8xf32>, vector<8x256xf32>, vector<16x256xf32> -> vector<16x256xf32>
    %16 = arith.addf %10, %15 : vector<16x256xf32>
    %c0_17 = arith.constant 0 : index
    %c0_18 = arith.constant 0 : index
    %c36 = arith.constant 36 : index
    %17 = vector.load %arg1[%c0_17, %c0_18, %c36] : memref<1x8x342xf32, #tpu.memory_space<vmem>>, vector<1x8x256xf32>
    %18 = vector.shape_cast %17 : vector<1x8x256xf32> to vector<8x256xf32>
    %c0_19 = arith.constant 0 : index
    %c3 = arith.constant 3 : index
    %c0_20 = arith.constant 0 : index
    %c0_21 = arith.constant 0 : index
    %19 = vector.load %arg2[%c0_19, %c3, %c0_20, %c0_21] : memref<8x8x16x8xf32, #tpu.memory_space<vmem>>, vector<1x1x16x8xf32>
    %20 = vector.shape_cast %19 : vector<1x1x16x8xf32> to vector<16x8xf32>
    %cst_22 = arith.constant dense<0.000000e+00> : vector<16x256xf32>
    %21 = tpu.matmul %20, %18, %cst_22 {dimension_numbers = #tpu.dot_dimension_numbers<[1], [0], [0], [1], [0, 0, 1, 1], [], []>} : vector<16x8xf32>, vector<8x256xf32>, vector<16x256xf32> -> vector<16x256xf32>
    %22 = arith.addf %16, %21 : vector<16x256xf32>
    %c0_23 = arith.constant 0 : index
    %c0_24 = arith.constant 0 : index
    %c7 = arith.constant 7 : index
    %23 = vector.load %arg1[%c0_23, %c0_24, %c7] : memref<1x8x342xf32, #tpu.memory_space<vmem>>, vector<1x8x256xf32>
    %24 = vector.shape_cast %23 : vector<1x8x256xf32> to vector<8x256xf32>
    %c0_25 = arith.constant 0 : index
    %c4 = arith.constant 4 : index
    %c0_26 = arith.constant 0 : index
    %c0_27 = arith.constant 0 : index
    %25 = vector.load %arg2[%c0_25, %c4, %c0_26, %c0_27] : memref<8x8x16x8xf32, #tpu.memory_space<vmem>>, vector<1x1x16x8xf32>
    %26 = vector.shape_cast %25 : vector<1x1x16x8xf32> to vector<16x8xf32>
    %cst_28 = arith.constant dense<0.000000e+00> : vector<16x256xf32>
    %27 = tpu.matmul %26, %24, %cst_28 {dimension_numbers = #tpu.dot_dimension_numbers<[1], [0], [0], [1], [0, 0, 1, 1], [], []>} : vector<16x8xf32>, vector<8x256xf32>, vector<16x256xf32> -> vector<16x256xf32>
    %28 = arith.addf %22, %27 : vector<16x256xf32>
    %c0_29 = arith.constant 0 : index
    %c0_30 = arith.constant 0 : index
    %c6 = arith.constant 6 : index
    %29 = vector.load %arg1[%c0_29, %c0_30, %c6] : memref<1x8x342xf32, #tpu.memory_space<vmem>>, vector<1x8x256xf32>
    %30 = vector.shape_cast %29 : vector<1x8x256xf32> to vector<8x256xf32>
    %c0_31 = arith.constant 0 : index
    %c5 = arith.constant 5 : index
    %c0_32 = arith.constant 0 : index
    %c0_33 = arith.constant 0 : index
    %31 = vector.load %arg2[%c0_31, %c5, %c0_32, %c0_33] : memref<8x8x16x8xf32, #tpu.memory_space<vmem>>, vector<1x1x16x8xf32>
    %32 = vector.shape_cast %31 : vector<1x1x16x8xf32> to vector<16x8xf32>
    %cst_34 = arith.constant dense<0.000000e+00> : vector<16x256xf32>
    %33 = tpu.matmul %32, %30, %cst_34 {dimension_numbers = #tpu.dot_dimension_numbers<[1], [0], [0], [1], [0, 0, 1, 1], [], []>} : vector<16x8xf32>, vector<8x256xf32>, vector<16x256xf32> -> vector<16x256xf32>
    %34 = arith.addf %28, %33 : vector<16x256xf32>
    %c0_35 = arith.constant 0 : index
    %c0_36 = arith.constant 0 : index
    %c1_37 = arith.constant 1 : index
    %35 = vector.load %arg1[%c0_35, %c0_36, %c1_37] : memref<1x8x342xf32, #tpu.memory_space<vmem>>, vector<1x8x256xf32>
    %36 = vector.shape_cast %35 : vector<1x8x256xf32> to vector<8x256xf32>
    %c0_38 = arith.constant 0 : index
    %c6_39 = arith.constant 6 : index
    %c0_40 = arith.constant 0 : index
    %c0_41 = arith.constant 0 : index
    %37 = vector.load %arg2[%c0_38, %c6_39, %c0_40, %c0_41] : memref<8x8x16x8xf32, #tpu.memory_space<vmem>>, vector<1x1x16x8xf32>
    %38 = vector.shape_cast %37 : vector<1x1x16x8xf32> to vector<16x8xf32>
    %cst_42 = arith.constant dense<0.000000e+00> : vector<16x256xf32>
    %39 = tpu.matmul %38, %36, %cst_42 {dimension_numbers = #tpu.dot_dimension_numbers<[1], [0], [0], [1], [0, 0, 1, 1], [], []>} : vector<16x8xf32>, vector<8x256xf32>, vector<16x256xf32> -> vector<16x256xf32>
    %40 = arith.addf %34, %39 : vector<16x256xf32>
    %c0_43 = arith.constant 0 : index
    %c0_44 = arith.constant 0 : index
    %c0_45 = arith.constant 0 : index
    %41 = vector.load %arg1[%c0_43, %c0_44, %c0_45] : memref<1x8x342xf32, #tpu.memory_space<vmem>>, vector<1x8x256xf32>
    %42 = vector.shape_cast %41 : vector<1x8x256xf32> to vector<8x256xf32>
    %c0_46 = arith.constant 0 : index
    %c7_47 = arith.constant 7 : index
    %c0_48 = arith.constant 0 : index
    %c0_49 = arith.constant 0 : index
    %43 = vector.load %arg2[%c0_46, %c7_47, %c0_48, %c0_49] : memref<8x8x16x8xf32, #tpu.memory_space<vmem>>, vector<1x1x16x8xf32>
    %44 = vector.shape_cast %43 : vector<1x1x16x8xf32> to vector<16x8xf32>
    %cst_50 = arith.constant dense<0.000000e+00> : vector<16x256xf32>
    %45 = tpu.matmul %44, %42, %cst_50 {dimension_numbers = #tpu.dot_dimension_numbers<[1], [0], [0], [1], [0, 0, 1, 1], [], []>} : vector<16x8xf32>, vector<8x256xf32>, vector<16x256xf32> -> vector<16x256xf32>
    %46 = arith.addf %40, %45 : vector<16x256xf32>
    %c0_51 = arith.constant 0 : index
    %c0_52 = arith.constant 0 : index
    %c0_53 = arith.constant 0 : index
    %c0_54 = arith.constant 0 : index
    %47 = vector.load %arg3[%c0_51, %c0_52, %c0_53, %c0_54] : memref<1x8x16x256xf32, #tpu.memory_space<vmem>>, vector<1x1x16x256xf32>
    %48 = vector.shape_cast %47 : vector<1x1x16x256xf32> to vector<16x256xf32>
    %49 = vector.shape_cast %46 : vector<16x256xf32> to vector<1x1x16x256xf32>
    tpu.vector_store %arg3[%c0_51, %c0_52, %c0_53, %c0_54], %49 {strides = array<i32>} : memref<1x8x16x256xf32, #tpu.memory_space<vmem>>, vector<1x1x16x256xf32>,
    %c0_55 = arith.constant 0 : index
    %c0_56 = arith.constant 0 : index
    %c44 = arith.constant 44 : index
    %50 = vector.load %arg1[%c0_55, %c0_56, %c44] : memref<1x8x342xf32, #tpu.memory_space<vmem>>, vector<1x8x256xf32>
    %51 = vector.shape_cast %50 : vector<1x8x256xf32> to vector<8x256xf32>
    %c1_57 = arith.constant 1 : index
    %c0_58 = arith.constant 0 : index
    %c0_59 = arith.constant 0 : index
    %c0_60 = arith.constant 0 : index
    %52 = vector.load %arg2[%c1_57, %c0_58, %c0_59, %c0_60] : memref<8x8x16x8xf32, #tpu.memory_space<vmem>>, vector<1x1x16x8xf32>
    %53 = vector.shape_cast %52 : vector<1x1x16x8xf32> to vector<16x8xf32>
    %cst_61 = arith.constant dense<0.000000e+00> : vector<16x256xf32>
    %54 = tpu.matmul %53, %51, %cst_61 {dimension_numbers = #tpu.dot_dimension_numbers<[1], [0], [0], [1], [0, 0, 1, 1], [], []>} : vector<16x8xf32>, vector<8x256xf32>, vector<16x256xf32> -> vector<16x256xf32>
    %c0_62 = arith.constant 0 : index
    %c0_63 = arith.constant 0 : index
    %c43_64 = arith.constant 43 : index
    %55 = vector.load %arg1[%c0_62, %c0_63, %c43_64] : memref<1x8x342xf32, #tpu.memory_space<vmem>>, vector<1x8x256xf32>
    %56 = vector.shape_cast %55 : vector<1x8x256xf32> to vector<8x256xf32>
    %c1_65 = arith.constant 1 : index
    %c1_66 = arith.constant 1 : index
    %c0_67 = arith.constant 0 : index
    %c0_68 = arith.constant 0 : index
    %57 = vector.load %arg2[%c1_65, %c1_66, %c0_67, %c0_68] : memref<8x8x16x8xf32, #tpu.memory_space<vmem>>, vector<1x1x16x8xf32>
    %58 = vector.shape_cast %57 : vector<1x1x16x8xf32> to vector<16x8xf32>
    %cst_69 = arith.constant dense<0.000000e+00> : vector<16x256xf32>
    %59 = tpu.matmul %58, %56, %cst_69 {dimension_numbers = #tpu.dot_dimension_numbers<[1], [0], [0], [1], [0, 0, 1, 1], [], []>} : vector<16x8xf32>, vector<8x256xf32>, vector<16x256xf32> -> vector<16x256xf32>
    %60 = arith.addf %54, %59 : vector<16x256xf32>
    %c0_70 = arith.constant 0 : index
    %c0_71 = arith.constant 0 : index
    %c38 = arith.constant 38 : index
    %61 = vector.load %arg1[%c0_70, %c0_71, %c38] : memref<1x8x342xf32, #tpu.memory_space<vmem>>, vector<1x8x256xf32>
    %62 = vector.shape_cast %61 : vector<1x8x256xf32> to vector<8x256xf32>
    %c1_72 = arith.constant 1 : index
    %c2_73 = arith.constant 2 : index
    %c0_74 = arith.constant 0 : index
    %c0_75 = arith.constant 0 : index
    %63 = vector.load %arg2[%c1_72, %c2_73, %c0_74, %c0_75] : memref<8x8x16x8xf32, #tpu.memory_space<vmem>>, vector<1x1x16x8xf32>
    %64 = vector.shape_cast %63 : vector<1x1x16x8xf32> to vector<16x8xf32>
    %cst_76 = arith.constant dense<0.000000e+00> : vector<16x256xf32>
    %65 = tpu.matmul %64, %62, %cst_76 {dimension_numbers = #tpu.dot_dimension_numbers<[1], [0], [0], [1], [0, 0, 1, 1], [], []>} : vector<16x8xf32>, vector<8x256xf32>, vector<16x256xf32> -> vector<16x256xf32>
    %66 = arith.addf %60, %65 : vector<16x256xf32>
    %c0_77 = arith.constant 0 : index
    %c0_78 = arith.constant 0 : index
    %c37_79 = arith.constant 37 : index
    %67 = vector.load %arg1[%c0_77, %c0_78, %c37_79] : memref<1x8x342xf32, #tpu.memory_space<vmem>>, vector<1x8x256xf32>
    %68 = vector.shape_cast %67 : vector<1x8x256xf32> to vector<8x256xf32>
    %c1_80 = arith.constant 1 : index
    %c3_81 = arith.constant 3 : index
    %c0_82 = arith.constant 0 : index
    %c0_83 = arith.constant 0 : index
    %69 = vector.load %arg2[%c1_80, %c3_81, %c0_82, %c0_83] : memref<8x8x16x8xf32, #tpu.memory_space<vmem>>, vector<1x1x16x8xf32>
    %70 = vector.shape_cast %69 : vector<1x1x16x8xf32> to vector<16x8xf32>
    %cst_84 = arith.constant dense<0.000000e+00> : vector<16x256xf32>
    %71 = tpu.matmul %70, %68, %cst_84 {dimension_numbers = #tpu.dot_dimension_numbers<[1], [0], [0], [1], [0, 0, 1, 1], [], []>} : vector<16x8xf32>, vector<8x256xf32>, vector<16x256xf32> -> vector<16x256xf32>
    %72 = arith.addf %66, %71 : vector<16x256xf32>
    %c0_85 = arith.constant 0 : index
    %c0_86 = arith.constant 0 : index
    %c8 = arith.constant 8 : index
    %73 = vector.load %arg1[%c0_85, %c0_86, %c8] : memref<1x8x342xf32, #tpu.memory_space<vmem>>, vector<1x8x256xf32>
    %74 = vector.shape_cast %73 : vector<1x8x256xf32> to vector<8x256xf32>
    %c1_87 = arith.constant 1 : index
    %c4_88 = arith.constant 4 : index
    %c0_89 = arith.constant 0 : index
    %c0_90 = arith.constant 0 : index
    %75 = vector.load %arg2[%c1_87, %c4_88, %c0_89, %c0_90] : memref<8x8x16x8xf32, #tpu.memory_space<vmem>>, vector<1x1x16x8xf32>
    %76 = vector.shape_cast %75 : vector<1x1x16x8xf32> to vector<16x8xf32>
    %cst_91 = arith.constant dense<0.000000e+00> : vector<16x256xf32>
    %77 = tpu.matmul %76, %74, %cst_91 {dimension_numbers = #tpu.dot_dimension_numbers<[1], [0], [0], [1], [0, 0, 1, 1], [], []>} : vector<16x8xf32>, vector<8x256xf32>, vector<16x256xf32> -> vector<16x256xf32>
    %78 = arith.addf %72, %77 : vector<16x256xf32>
    %c0_92 = arith.constant 0 : index
    %c0_93 = arith.constant 0 : index
    %c7_94 = arith.constant 7 : index
    %79 = vector.load %arg1[%c0_92, %c0_93, %c7_94] : memref<1x8x342xf32, #tpu.memory_space<vmem>>, vector<1x8x256xf32>
    %80 = vector.shape_cast %79 : vector<1x8x256xf32> to vector<8x256xf32>
    %c1_95 = arith.constant 1 : index
    %c5_96 = arith.constant 5 : index
    %c0_97 = arith.constant 0 : index
    %c0_98 = arith.constant 0 : index
    %81 = vector.load %arg2[%c1_95, %c5_96, %c0_97, %c0_98] : memref<8x8x16x8xf32, #tpu.memory_space<vmem>>, vector<1x1x16x8xf32>
    %82 = vector.shape_cast %81 : vector<1x1x16x8xf32> to vector<16x8xf32>
    %cst_99 = arith.constant dense<0.000000e+00> : vector<16x256xf32>
    %83 = tpu.matmul %82, %80, %cst_99 {dimension_numbers = #tpu.dot_dimension_numbers<[1], [0], [0], [1], [0, 0, 1, 1], [], []>} : vector<16x8xf32>, vector<8x256xf32>, vector<16x256xf32> -> vector<16x256xf32>
    %84 = arith.addf %78, %83 : vector<16x256xf32>
    %c0_100 = arith.constant 0 : index
    %c0_101 = arith.constant 0 : index
    %c2_102 = arith.constant 2 : index
    %85 = vector.load %arg1[%c0_100, %c0_101, %c2_102] : memref<1x8x342xf32, #tpu.memory_space<vmem>>, vector<1x8x256xf32>
    %86 = vector.shape_cast %85 : vector<1x8x256xf32> to vector<8x256xf32>
    %c1_103 = arith.constant 1 : index
    %c6_104 = arith.constant 6 : index
    %c0_105 = arith.constant 0 : index
    %c0_106 = arith.constant 0 : index
    %87 = vector.load %arg2[%c1_103, %c6_104, %c0_105, %c0_106] : memref<8x8x16x8xf32, #tpu.memory_space<vmem>>, vector<1x1x16x8xf32>
    %88 = vector.shape_cast %87 : vector<1x1x16x8xf32> to vector<16x8xf32>
    %cst_107 = arith.constant dense<0.000000e+00> : vector<16x256xf32>
    %89 = tpu.matmul %88, %86, %cst_107 {dimension_numbers = #tpu.dot_dimension_numbers<[1], [0], [0], [1], [0, 0, 1, 1], [], []>} : vector<16x8xf32>, vector<8x256xf32>, vector<16x256xf32> -> vector<16x256xf32>
    %90 = arith.addf %84, %89 : vector<16x256xf32>
    %c0_108 = arith.constant 0 : index
    %c0_109 = arith.constant 0 : index
    %c1_110 = arith.constant 1 : index
    %91 = vector.load %arg1[%c0_108, %c0_109, %c1_110] : memref<1x8x342xf32, #tpu.memory_space<vmem>>, vector<1x8x256xf32>
    %92 = vector.shape_cast %91 : vector<1x8x256xf32> to vector<8x256xf32>
    %c1_111 = arith.constant 1 : index
    %c7_112 = arith.constant 7 : index
    %c0_113 = arith.constant 0 : index
    %c0_114 = arith.constant 0 : index
    %93 = vector.load %arg2[%c1_111, %c7_112, %c0_113, %c0_114] : memref<8x8x16x8xf32, #tpu.memory_space<vmem>>, vector<1x1x16x8xf32>
    %94 = vector.shape_cast %93 : vector<1x1x16x8xf32> to vector<16x8xf32>
    %cst_115 = arith.constant dense<0.000000e+00> : vector<16x256xf32>
    %95 = tpu.matmul %94, %92, %cst_115 {dimension_numbers = #tpu.dot_dimension_numbers<[1], [0], [0], [1], [0, 0, 1, 1], [], []>} : vector<16x8xf32>, vector<8x256xf32>, vector<16x256xf32> -> vector<16x256xf32>
    %96 = arith.addf %90, %95 : vector<16x256xf32>
    %c0_116 = arith.constant 0 : index
    %c1_117 = arith.constant 1 : index
    %c0_118 = arith.constant 0 : index
    %c0_119 = arith.constant 0 : index
    %97 = vector.load %arg3[%c0_116, %c1_117, %c0_118, %c0_119] : memref<1x8x16x256xf32, #tpu.memory_space<vmem>>, vector<1x1x16x256xf32>
    %98 = vector.shape_cast %97 : vector<1x1x16x256xf32> to vector<16x256xf32>
    %99 = vector.shape_cast %96 : vector<16x256xf32> to vector<1x1x16x256xf32>
    tpu.vector_store %arg3[%c0_116, %c1_117, %c0_118, %c0_119], %99 {strides = array<i32>} : memref<1x8x16x256xf32, #tpu.memory_space<vmem>>, vector<1x1x16x256xf32>,
    %c0_120 = arith.constant 0 : index
    %c0_121 = arith.constant 0 : index
    %c49 = arith.constant 49 : index
    %100 = vector.load %arg1[%c0_120, %c0_121, %c49] : memref<1x8x342xf32, #tpu.memory_space<vmem>>, vector<1x8x256xf32>
    %101 = vector.shape_cast %100 : vector<1x8x256xf32> to vector<8x256xf32>
    %c2_122 = arith.constant 2 : index
    %c0_123 = arith.constant 0 : index
    %c0_124 = arith.constant 0 : index
    %c0_125 = arith.constant 0 : index
    %102 = vector.load %arg2[%c2_122, %c0_123, %c0_124, %c0_125] : memref<8x8x16x8xf32, #tpu.memory_space<vmem>>, vector<1x1x16x8xf32>
    %103 = vector.shape_cast %102 : vector<1x1x16x8xf32> to vector<16x8xf32>
    %cst_126 = arith.constant dense<0.000000e+00> : vector<16x256xf32>
    %104 = tpu.matmul %103, %101, %cst_126 {dimension_numbers = #tpu.dot_dimension_numbers<[1], [0], [0], [1], [0, 0, 1, 1], [], []>} : vector<16x8xf32>, vector<8x256xf32>, vector<16x256xf32> -> vector<16x256xf32>
    %c0_127 = arith.constant 0 : index
    %c0_128 = arith.constant 0 : index
    %c48 = arith.constant 48 : index
    %105 = vector.load %arg1[%c0_127, %c0_128, %c48] : memref<1x8x342xf32, #tpu.memory_space<vmem>>, vector<1x8x256xf32>
    %106 = vector.shape_cast %105 : vector<1x8x256xf32> to vector<8x256xf32>
    %c2_129 = arith.constant 2 : index
    %c1_130 = arith.constant 1 : index
    %c0_131 = arith.constant 0 : index
    %c0_132 = arith.constant 0 : index
    %107 = vector.load %arg2[%c2_129, %c1_130, %c0_131, %c0_132] : memref<8x8x16x8xf32, #tpu.memory_space<vmem>>, vector<1x1x16x8xf32>
    %108 = vector.shape_cast %107 : vector<1x1x16x8xf32> to vector<16x8xf32>
    %cst_133 = arith.constant dense<0.000000e+00> : vector<16x256xf32>
    %109 = tpu.matmul %108, %106, %cst_133 {dimension_numbers = #tpu.dot_dimension_numbers<[1], [0], [0], [1], [0, 0, 1, 1], [], []>} : vector<16x8xf32>, vector<8x256xf32>, vector<16x256xf32> -> vector<16x256xf32>
    %110 = arith.addf %104, %109 : vector<16x256xf32>
    %c0_134 = arith.constant 0 : index
    %c0_135 = arith.constant 0 : index
    %c43_136 = arith.constant 43 : index
    %111 = vector.load %arg1[%c0_134, %c0_135, %c43_136] : memref<1x8x342xf32, #tpu.memory_space<vmem>>, vector<1x8x256xf32>
    %112 = vector.shape_cast %111 : vector<1x8x256xf32> to vector<8x256xf32>
    %c2_137 = arith.constant 2 : index
    %c2_138 = arith.constant 2 : index
    %c0_139 = arith.constant 0 : index
    %c0_140 = arith.constant 0 : index
    %113 = vector.load %arg2[%c2_137, %c2_138, %c0_139, %c0_140] : memref<8x8x16x8xf32, #tpu.memory_space<vmem>>, vector<1x1x16x8xf32>
    %114 = vector.shape_cast %113 : vector<1x1x16x8xf32> to vector<16x8xf32>
    %cst_141 = arith.constant dense<0.000000e+00> : vector<16x256xf32>
    %115 = tpu.matmul %114, %112, %cst_141 {dimension_numbers = #tpu.dot_dimension_numbers<[1], [0], [0], [1], [0, 0, 1, 1], [], []>} : vector<16x8xf32>, vector<8x256xf32>, vector<16x256xf32> -> vector<16x256xf32>
    %116 = arith.addf %110, %115 : vector<16x256xf32>
    %c0_142 = arith.constant 0 : index
    %c0_143 = arith.constant 0 : index
    %c42_144 = arith.constant 42 : index
    %117 = vector.load %arg1[%c0_142, %c0_143, %c42_144] : memref<1x8x342xf32, #tpu.memory_space<vmem>>, vector<1x8x256xf32>
    %118 = vector.shape_cast %117 : vector<1x8x256xf32> to vector<8x256xf32>
    %c2_145 = arith.constant 2 : index
    %c3_146 = arith.constant 3 : index
    %c0_147 = arith.constant 0 : index
    %c0_148 = arith.constant 0 : index
    %119 = vector.load %arg2[%c2_145, %c3_146, %c0_147, %c0_148] : memref<8x8x16x8xf32, #tpu.memory_space<vmem>>, vector<1x1x16x8xf32>
    %120 = vector.shape_cast %119 : vector<1x1x16x8xf32> to vector<16x8xf32>
    %cst_149 = arith.constant dense<0.000000e+00> : vector<16x256xf32>
    %121 = tpu.matmul %120, %118, %cst_149 {dimension_numbers = #tpu.dot_dimension_numbers<[1], [0], [0], [1], [0, 0, 1, 1], [], []>} : vector<16x8xf32>, vector<8x256xf32>, vector<16x256xf32> -> vector<16x256xf32>
    %122 = arith.addf %116, %121 : vector<16x256xf32>
    %c0_150 = arith.constant 0 : index
    %c0_151 = arith.constant 0 : index
    %c13 = arith.constant 13 : index
    %123 = vector.load %arg1[%c0_150, %c0_151, %c13] : memref<1x8x342xf32, #tpu.memory_space<vmem>>, vector<1x8x256xf32>
    %124 = vector.shape_cast %123 : vector<1x8x256xf32> to vector<8x256xf32>
    %c2_152 = arith.constant 2 : index
    %c4_153 = arith.constant 4 : index
    %c0_154 = arith.constant 0 : index
    %c0_155 = arith.constant 0 : index
    %125 = vector.load %arg2[%c2_152, %c4_153, %c0_154, %c0_155] : memref<8x8x16x8xf32, #tpu.memory_space<vmem>>, vector<1x1x16x8xf32>
    %126 = vector.shape_cast %125 : vector<1x1x16x8xf32> to vector<16x8xf32>
    %cst_156 = arith.constant dense<0.000000e+00> : vector<16x256xf32>
    %127 = tpu.matmul %126, %124, %cst_156 {dimension_numbers = #tpu.dot_dimension_numbers<[1], [0], [0], [1], [0, 0, 1, 1], [], []>} : vector<16x8xf32>, vector<8x256xf32>, vector<16x256xf32> -> vector<16x256xf32>
    %128 = arith.addf %122, %127 : vector<16x256xf32>
    %c0_157 = arith.constant 0 : index
    %c0_158 = arith.constant 0 : index
    %c12 = arith.constant 12 : index
    %129 = vector.load %arg1[%c0_157, %c0_158, %c12] : memref<1x8x342xf32, #tpu.memory_space<vmem>>, vector<1x8x256xf32>
    %130 = vector.shape_cast %129 : vector<1x8x256xf32> to vector<8x256xf32>
    %c2_159 = arith.constant 2 : index
    %c5_160 = arith.constant 5 : index
    %c0_161 = arith.constant 0 : index
    %c0_162 = arith.constant 0 : index
    %131 = vector.load %arg2[%c2_159, %c5_160, %c0_161, %c0_162] : memref<8x8x16x8xf32, #tpu.memory_space<vmem>>, vector<1x1x16x8xf32>
    %132 = vector.shape_cast %131 : vector<1x1x16x8xf32> to vector<16x8xf32>
    %cst_163 = arith.constant dense<0.000000e+00> : vector<16x256xf32>
    %133 = tpu.matmul %132, %130, %cst_163 {dimension_numbers = #tpu.dot_dimension_numbers<[1], [0], [0], [1], [0, 0, 1, 1], [], []>} : vector<16x8xf32>, vector<8x256xf32>, vector<16x256xf32> -> vector<16x256xf32>
    %134 = arith.addf %128, %133 : vector<16x256xf32>
    %c0_164 = arith.constant 0 : index
    %c0_165 = arith.constant 0 : index
    %c7_166 = arith.constant 7 : index
    %135 = vector.load %arg1[%c0_164, %c0_165, %c7_166] : memref<1x8x342xf32, #tpu.memory_space<vmem>>, vector<1x8x256xf32>
    %136 = vector.shape_cast %135 : vector<1x8x256xf32> to vector<8x256xf32>
    %c2_167 = arith.constant 2 : index
    %c6_168 = arith.constant 6 : index
    %c0_169 = arith.constant 0 : index
    %c0_170 = arith.constant 0 : index
    %137 = vector.load %arg2[%c2_167, %c6_168, %c0_169, %c0_170] : memref<8x8x16x8xf32, #tpu.memory_space<vmem>>, vector<1x1x16x8xf32>
    %138 = vector.shape_cast %137 : vector<1x1x16x8xf32> to vector<16x8xf32>
    %cst_171 = arith.constant dense<0.000000e+00> : vector<16x256xf32>
    %139 = tpu.matmul %138, %136, %cst_171 {dimension_numbers = #tpu.dot_dimension_numbers<[1], [0], [0], [1], [0, 0, 1, 1], [], []>} : vector<16x8xf32>, vector<8x256xf32>, vector<16x256xf32> -> vector<16x256xf32>
    %140 = arith.addf %134, %139 : vector<16x256xf32>
    %c0_172 = arith.constant 0 : index
    %c0_173 = arith.constant 0 : index
    %c6_174 = arith.constant 6 : index
    %141 = vector.load %arg1[%c0_172, %c0_173, %c6_174] : memref<1x8x342xf32, #tpu.memory_space<vmem>>, vector<1x8x256xf32>
    %142 = vector.shape_cast %141 : vector<1x8x256xf32> to vector<8x256xf32>
    %c2_175 = arith.constant 2 : index
    %c7_176 = arith.constant 7 : index
    %c0_177 = arith.constant 0 : index
    %c0_178 = arith.constant 0 : index
    %143 = vector.load %arg2[%c2_175, %c7_176, %c0_177, %c0_178] : memref<8x8x16x8xf32, #tpu.memory_space<vmem>>, vector<1x1x16x8xf32>
    %144 = vector.shape_cast %143 : vector<1x1x16x8xf32> to vector<16x8xf32>
    %cst_179 = arith.constant dense<0.000000e+00> : vector<16x256xf32>
    %145 = tpu.matmul %144, %142, %cst_179 {dimension_numbers = #tpu.dot_dimension_numbers<[1], [0], [0], [1], [0, 0, 1, 1], [], []>} : vector<16x8xf32>, vector<8x256xf32>, vector<16x256xf32> -> vector<16x256xf32>
    %146 = arith.addf %140, %145 : vector<16x256xf32>
    %c0_180 = arith.constant 0 : index
    %c2_181 = arith.constant 2 : index
    %c0_182 = arith.constant 0 : index
    %c0_183 = arith.constant 0 : index
    %147 = vector.load %arg3[%c0_180, %c2_181, %c0_182, %c0_183] : memref<1x8x16x256xf32, #tpu.memory_space<vmem>>, vector<1x1x16x256xf32>
    %148 = vector.shape_cast %147 : vector<1x1x16x256xf32> to vector<16x256xf32>
    %149 = vector.shape_cast %146 : vector<16x256xf32> to vector<1x1x16x256xf32>
    tpu.vector_store %arg3[%c0_180, %c2_181, %c0_182, %c0_183], %149 {strides = array<i32>} : memref<1x8x16x256xf32, #tpu.memory_space<vmem>>, vector<1x1x16x256xf32>,
    %c0_184 = arith.constant 0 : index
    %c0_185 = arith.constant 0 : index
    %c50 = arith.constant 50 : index
    %150 = vector.load %arg1[%c0_184, %c0_185, %c50] : memref<1x8x342xf32, #tpu.memory_space<vmem>>, vector<1x8x256xf32>
    %151 = vector.shape_cast %150 : vector<1x8x256xf32> to vector<8x256xf32>
    %c3_186 = arith.constant 3 : index
    %c0_187 = arith.constant 0 : index
    %c0_188 = arith.constant 0 : index
    %c0_189 = arith.constant 0 : index
    %152 = vector.load %arg2[%c3_186, %c0_187, %c0_188, %c0_189] : memref<8x8x16x8xf32, #tpu.memory_space<vmem>>, vector<1x1x16x8xf32>
    %153 = vector.shape_cast %152 : vector<1x1x16x8xf32> to vector<16x8xf32>
    %cst_190 = arith.constant dense<0.000000e+00> : vector<16x256xf32>
    %154 = tpu.matmul %153, %151, %cst_190 {dimension_numbers = #tpu.dot_dimension_numbers<[1], [0], [0], [1], [0, 0, 1, 1], [], []>} : vector<16x8xf32>, vector<8x256xf32>, vector<16x256xf32> -> vector<16x256xf32>
    %c0_191 = arith.constant 0 : index
    %c0_192 = arith.constant 0 : index
    %c49_193 = arith.constant 49 : index
    %155 = vector.load %arg1[%c0_191, %c0_192, %c49_193] : memref<1x8x342xf32, #tpu.memory_space<vmem>>, vector<1x8x256xf32>
    %156 = vector.shape_cast %155 : vector<1x8x256xf32> to vector<8x256xf32>
    %c3_194 = arith.constant 3 : index
    %c1_195 = arith.constant 1 : index
    %c0_196 = arith.constant 0 : index
    %c0_197 = arith.constant 0 : index
    %157 = vector.load %arg2[%c3_194, %c1_195, %c0_196, %c0_197] : memref<8x8x16x8xf32, #tpu.memory_space<vmem>>, vector<1x1x16x8xf32>
    %158 = vector.shape_cast %157 : vector<1x1x16x8xf32> to vector<16x8xf32>
    %cst_198 = arith.constant dense<0.000000e+00> : vector<16x256xf32>
    %159 = tpu.matmul %158, %156, %cst_198 {dimension_numbers = #tpu.dot_dimension_numbers<[1], [0], [0], [1], [0, 0, 1, 1], [], []>} : vector<16x8xf32>, vector<8x256xf32>, vector<16x256xf32> -> vector<16x256xf32>
    %160 = arith.addf %154, %159 : vector<16x256xf32>
    %c0_199 = arith.constant 0 : index
    %c0_200 = arith.constant 0 : index
    %c44_201 = arith.constant 44 : index
    %161 = vector.load %arg1[%c0_199, %c0_200, %c44_201] : memref<1x8x342xf32, #tpu.memory_space<vmem>>, vector<1x8x256xf32>
    %162 = vector.shape_cast %161 : vector<1x8x256xf32> to vector<8x256xf32>
    %c3_202 = arith.constant 3 : index
    %c2_203 = arith.constant 2 : index
    %c0_204 = arith.constant 0 : index
    %c0_205 = arith.constant 0 : index
    %163 = vector.load %arg2[%c3_202, %c2_203, %c0_204, %c0_205] : memref<8x8x16x8xf32, #tpu.memory_space<vmem>>, vector<1x1x16x8xf32>
    %164 = vector.shape_cast %163 : vector<1x1x16x8xf32> to vector<16x8xf32>
    %cst_206 = arith.constant dense<0.000000e+00> : vector<16x256xf32>
    %165 = tpu.matmul %164, %162, %cst_206 {dimension_numbers = #tpu.dot_dimension_numbers<[1], [0], [0], [1], [0, 0, 1, 1], [], []>} : vector<16x8xf32>, vector<8x256xf32>, vector<16x256xf32> -> vector<16x256xf32>
    %166 = arith.addf %160, %165 : vector<16x256xf32>
    %c0_207 = arith.constant 0 : index
    %c0_208 = arith.constant 0 : index
    %c43_209 = arith.constant 43 : index
    %167 = vector.load %arg1[%c0_207, %c0_208, %c43_209] : memref<1x8x342xf32, #tpu.memory_space<vmem>>, vector<1x8x256xf32>
    %168 = vector.shape_cast %167 : vector<1x8x256xf32> to vector<8x256xf32>
    %c3_210 = arith.constant 3 : index
    %c3_211 = arith.constant 3 : index
    %c0_212 = arith.constant 0 : index
    %c0_213 = arith.constant 0 : index
    %169 = vector.load %arg2[%c3_210, %c3_211, %c0_212, %c0_213] : memref<8x8x16x8xf32, #tpu.memory_space<vmem>>, vector<1x1x16x8xf32>
    %170 = vector.shape_cast %169 : vector<1x1x16x8xf32> to vector<16x8xf32>
    %cst_214 = arith.constant dense<0.000000e+00> : vector<16x256xf32>
    %171 = tpu.matmul %170, %168, %cst_214 {dimension_numbers = #tpu.dot_dimension_numbers<[1], [0], [0], [1], [0, 0, 1, 1], [], []>} : vector<16x8xf32>, vector<8x256xf32>, vector<16x256xf32> -> vector<16x256xf32>
    %172 = arith.addf %166, %171 : vector<16x256xf32>
    %c0_215 = arith.constant 0 : index
    %c0_216 = arith.constant 0 : index
    %c14 = arith.constant 14 : index
    %173 = vector.load %arg1[%c0_215, %c0_216, %c14] : memref<1x8x342xf32, #tpu.memory_space<vmem>>, vector<1x8x256xf32>
    %174 = vector.shape_cast %173 : vector<1x8x256xf32> to vector<8x256xf32>
    %c3_217 = arith.constant 3 : index
    %c4_218 = arith.constant 4 : index
    %c0_219 = arith.constant 0 : index
    %c0_220 = arith.constant 0 : index
    %175 = vector.load %arg2[%c3_217, %c4_218, %c0_219, %c0_220] : memref<8x8x16x8xf32, #tpu.memory_space<vmem>>, vector<1x1x16x8xf32>
    %176 = vector.shape_cast %175 : vector<1x1x16x8xf32> to vector<16x8xf32>
    %cst_221 = arith.constant dense<0.000000e+00> : vector<16x256xf32>
    %177 = tpu.matmul %176, %174, %cst_221 {dimension_numbers = #tpu.dot_dimension_numbers<[1], [0], [0], [1], [0, 0, 1, 1], [], []>} : vector<16x8xf32>, vector<8x256xf32>, vector<16x256xf32> -> vector<16x256xf32>
    %178 = arith.addf %172, %177 : vector<16x256xf32>
    %c0_222 = arith.constant 0 : index
    %c0_223 = arith.constant 0 : index
    %c13_224 = arith.constant 13 : index
    %179 = vector.load %arg1[%c0_222, %c0_223, %c13_224] : memref<1x8x342xf32, #tpu.memory_space<vmem>>, vector<1x8x256xf32>
    %180 = vector.shape_cast %179 : vector<1x8x256xf32> to vector<8x256xf32>
    %c3_225 = arith.constant 3 : index
    %c5_226 = arith.constant 5 : index
    %c0_227 = arith.constant 0 : index
    %c0_228 = arith.constant 0 : index
    %181 = vector.load %arg2[%c3_225, %c5_226, %c0_227, %c0_228] : memref<8x8x16x8xf32, #tpu.memory_space<vmem>>, vector<1x1x16x8xf32>
    %182 = vector.shape_cast %181 : vector<1x1x16x8xf32> to vector<16x8xf32>
    %cst_229 = arith.constant dense<0.000000e+00> : vector<16x256xf32>
    %183 = tpu.matmul %182, %180, %cst_229 {dimension_numbers = #tpu.dot_dimension_numbers<[1], [0], [0], [1], [0, 0, 1, 1], [], []>} : vector<16x8xf32>, vector<8x256xf32>, vector<16x256xf32> -> vector<16x256xf32>
    %184 = arith.addf %178, %183 : vector<16x256xf32>
    %c0_230 = arith.constant 0 : index
    %c0_231 = arith.constant 0 : index
    %c8_232 = arith.constant 8 : index
    %185 = vector.load %arg1[%c0_230, %c0_231, %c8_232] : memref<1x8x342xf32, #tpu.memory_space<vmem>>, vector<1x8x256xf32>
    %186 = vector.shape_cast %185 : vector<1x8x256xf32> to vector<8x256xf32>
    %c3_233 = arith.constant 3 : index
    %c6_234 = arith.constant 6 : index
    %c0_235 = arith.constant 0 : index
    %c0_236 = arith.constant 0 : index
    %187 = vector.load %arg2[%c3_233, %c6_234, %c0_235, %c0_236] : memref<8x8x16x8xf32, #tpu.memory_space<vmem>>, vector<1x1x16x8xf32>
    %188 = vector.shape_cast %187 : vector<1x1x16x8xf32> to vector<16x8xf32>
    %cst_237 = arith.constant dense<0.000000e+00> : vector<16x256xf32>
    %189 = tpu.matmul %188, %186, %cst_237 {dimension_numbers = #tpu.dot_dimension_numbers<[1], [0], [0], [1], [0, 0, 1, 1], [], []>} : vector<16x8xf32>, vector<8x256xf32>, vector<16x256xf32> -> vector<16x256xf32>
    %190 = arith.addf %184, %189 : vector<16x256xf32>
    %c0_238 = arith.constant 0 : index
    %c0_239 = arith.constant 0 : index
    %c7_240 = arith.constant 7 : index
    %191 = vector.load %arg1[%c0_238, %c0_239, %c7_240] : memref<1x8x342xf32, #tpu.memory_space<vmem>>, vector<1x8x256xf32>
    %192 = vector.shape_cast %191 : vector<1x8x256xf32> to vector<8x256xf32>
    %c3_241 = arith.constant 3 : index
    %c7_242 = arith.constant 7 : index
    %c0_243 = arith.constant 0 : index
    %c0_244 = arith.constant 0 : index
    %193 = vector.load %arg2[%c3_241, %c7_242, %c0_243, %c0_244] : memref<8x8x16x8xf32, #tpu.memory_space<vmem>>, vector<1x1x16x8xf32>
    %194 = vector.shape_cast %193 : vector<1x1x16x8xf32> to vector<16x8xf32>
    %cst_245 = arith.constant dense<0.000000e+00> : vector<16x256xf32>
    %195 = tpu.matmul %194, %192, %cst_245 {dimension_numbers = #tpu.dot_dimension_numbers<[1], [0], [0], [1], [0, 0, 1, 1], [], []>} : vector<16x8xf32>, vector<8x256xf32>, vector<16x256xf32> -> vector<16x256xf32>
    %196 = arith.addf %190, %195 : vector<16x256xf32>
    %c0_246 = arith.constant 0 : index
    %c3_247 = arith.constant 3 : index
    %c0_248 = arith.constant 0 : index
    %c0_249 = arith.constant 0 : index
    %197 = vector.load %arg3[%c0_246, %c3_247, %c0_248, %c0_249] : memref<1x8x16x256xf32, #tpu.memory_space<vmem>>, vector<1x1x16x256xf32>
    %198 = vector.shape_cast %197 : vector<1x1x16x256xf32> to vector<16x256xf32>
    %199 = vector.shape_cast %196 : vector<16x256xf32> to vector<1x1x16x256xf32>
    tpu.vector_store %arg3[%c0_246, %c3_247, %c0_248, %c0_249], %199 {strides = array<i32>} : memref<1x8x16x256xf32, #tpu.memory_space<vmem>>, vector<1x1x16x256xf32>,
    %c0_250 = arith.constant 0 : index
    %c0_251 = arith.constant 0 : index
    %c79 = arith.constant 79 : index
    %200 = vector.load %arg1[%c0_250, %c0_251, %c79] : memref<1x8x342xf32, #tpu.memory_space<vmem>>, vector<1x8x256xf32>
    %201 = vector.shape_cast %200 : vector<1x8x256xf32> to vector<8x256xf32>
    %c4_252 = arith.constant 4 : index
    %c0_253 = arith.constant 0 : index
    %c0_254 = arith.constant 0 : index
    %c0_255 = arith.constant 0 : index
    %202 = vector.load %arg2[%c4_252, %c0_253, %c0_254, %c0_255] : memref<8x8x16x8xf32, #tpu.memory_space<vmem>>, vector<1x1x16x8xf32>
    %203 = vector.shape_cast %202 : vector<1x1x16x8xf32> to vector<16x8xf32>
    %cst_256 = arith.constant dense<0.000000e+00> : vector<16x256xf32>
    %204 = tpu.matmul %203, %201, %cst_256 {dimension_numbers = #tpu.dot_dimension_numbers<[1], [0], [0], [1], [0, 0, 1, 1], [], []>} : vector<16x8xf32>, vector<8x256xf32>, vector<16x256xf32> -> vector<16x256xf32>
    %c0_257 = arith.constant 0 : index
    %c0_258 = arith.constant 0 : index
    %c78 = arith.constant 78 : index
    %205 = vector.load %arg1[%c0_257, %c0_258, %c78] : memref<1x8x342xf32, #tpu.memory_space<vmem>>, vector<1x8x256xf32>
    %206 = vector.shape_cast %205 : vector<1x8x256xf32> to vector<8x256xf32>
    %c4_259 = arith.constant 4 : index
    %c1_260 = arith.constant 1 : index
    %c0_261 = arith.constant 0 : index
    %c0_262 = arith.constant 0 : index
    %207 = vector.load %arg2[%c4_259, %c1_260, %c0_261, %c0_262] : memref<8x8x16x8xf32, #tpu.memory_space<vmem>>, vector<1x1x16x8xf32>
    %208 = vector.shape_cast %207 : vector<1x1x16x8xf32> to vector<16x8xf32>
    %cst_263 = arith.constant dense<0.000000e+00> : vector<16x256xf32>
    %209 = tpu.matmul %208, %206, %cst_263 {dimension_numbers = #tpu.dot_dimension_numbers<[1], [0], [0], [1], [0, 0, 1, 1], [], []>} : vector<16x8xf32>, vector<8x256xf32>, vector<16x256xf32> -> vector<16x256xf32>
    %210 = arith.addf %204, %209 : vector<16x256xf32>
    %c0_264 = arith.constant 0 : index
    %c0_265 = arith.constant 0 : index
    %c73 = arith.constant 73 : index
    %211 = vector.load %arg1[%c0_264, %c0_265, %c73] : memref<1x8x342xf32, #tpu.memory_space<vmem>>, vector<1x8x256xf32>
    %212 = vector.shape_cast %211 : vector<1x8x256xf32> to vector<8x256xf32>
    %c4_266 = arith.constant 4 : index
    %c2_267 = arith.constant 2 : index
    %c0_268 = arith.constant 0 : index
    %c0_269 = arith.constant 0 : index
    %213 = vector.load %arg2[%c4_266, %c2_267, %c0_268, %c0_269] : memref<8x8x16x8xf32, #tpu.memory_space<vmem>>, vector<1x1x16x8xf32>
    %214 = vector.shape_cast %213 : vector<1x1x16x8xf32> to vector<16x8xf32>
    %cst_270 = arith.constant dense<0.000000e+00> : vector<16x256xf32>
    %215 = tpu.matmul %214, %212, %cst_270 {dimension_numbers = #tpu.dot_dimension_numbers<[1], [0], [0], [1], [0, 0, 1, 1], [], []>} : vector<16x8xf32>, vector<8x256xf32>, vector<16x256xf32> -> vector<16x256xf32>
    %216 = arith.addf %210, %215 : vector<16x256xf32>
    %c0_271 = arith.constant 0 : index
    %c0_272 = arith.constant 0 : index
    %c72 = arith.constant 72 : index
    %217 = vector.load %arg1[%c0_271, %c0_272, %c72] : memref<1x8x342xf32, #tpu.memory_space<vmem>>, vector<1x8x256xf32>
    %218 = vector.shape_cast %217 : vector<1x8x256xf32> to vector<8x256xf32>
    %c4_273 = arith.constant 4 : index
    %c3_274 = arith.constant 3 : index
    %c0_275 = arith.constant 0 : index
    %c0_276 = arith.constant 0 : index
    %219 = vector.load %arg2[%c4_273, %c3_274, %c0_275, %c0_276] : memref<8x8x16x8xf32, #tpu.memory_space<vmem>>, vector<1x1x16x8xf32>
    %220 = vector.shape_cast %219 : vector<1x1x16x8xf32> to vector<16x8xf32>
    %cst_277 = arith.constant dense<0.000000e+00> : vector<16x256xf32>
    %221 = tpu.matmul %220, %218, %cst_277 {dimension_numbers = #tpu.dot_dimension_numbers<[1], [0], [0], [1], [0, 0, 1, 1], [], []>} : vector<16x8xf32>, vector<8x256xf32>, vector<16x256xf32> -> vector<16x256xf32>
    %222 = arith.addf %216, %221 : vector<16x256xf32>
    %c0_278 = arith.constant 0 : index
    %c0_279 = arith.constant 0 : index
    %c43_280 = arith.constant 43 : index
    %223 = vector.load %arg1[%c0_278, %c0_279, %c43_280] : memref<1x8x342xf32, #tpu.memory_space<vmem>>, vector<1x8x256xf32>
    %224 = vector.shape_cast %223 : vector<1x8x256xf32> to vector<8x256xf32>
    %c4_281 = arith.constant 4 : index
    %c4_282 = arith.constant 4 : index
    %c0_283 = arith.constant 0 : index
    %c0_284 = arith.constant 0 : index
    %225 = vector.load %arg2[%c4_281, %c4_282, %c0_283, %c0_284] : memref<8x8x16x8xf32, #tpu.memory_space<vmem>>, vector<1x1x16x8xf32>
    %226 = vector.shape_cast %225 : vector<1x1x16x8xf32> to vector<16x8xf32>
    %cst_285 = arith.constant dense<0.000000e+00> : vector<16x256xf32>
    %227 = tpu.matmul %226, %224, %cst_285 {dimension_numbers = #tpu.dot_dimension_numbers<[1], [0], [0], [1], [0, 0, 1, 1], [], []>} : vector<16x8xf32>, vector<8x256xf32>, vector<16x256xf32> -> vector<16x256xf32>
    %228 = arith.addf %222, %227 : vector<16x256xf32>
    %c0_286 = arith.constant 0 : index
    %c0_287 = arith.constant 0 : index
    %c42_288 = arith.constant 42 : index
    %229 = vector.load %arg1[%c0_286, %c0_287, %c42_288] : memref<1x8x342xf32, #tpu.memory_space<vmem>>, vector<1x8x256xf32>
    %230 = vector.shape_cast %229 : vector<1x8x256xf32> to vector<8x256xf32>
    %c4_289 = arith.constant 4 : index
    %c5_290 = arith.constant 5 : index
    %c0_291 = arith.constant 0 : index
    %c0_292 = arith.constant 0 : index
    %231 = vector.load %arg2[%c4_289, %c5_290, %c0_291, %c0_292] : memref<8x8x16x8xf32, #tpu.memory_space<vmem>>, vector<1x1x16x8xf32>
    %232 = vector.shape_cast %231 : vector<1x1x16x8xf32> to vector<16x8xf32>
    %cst_293 = arith.constant dense<0.000000e+00> : vector<16x256xf32>
    %233 = tpu.matmul %232, %230, %cst_293 {dimension_numbers = #tpu.dot_dimension_numbers<[1], [0], [0], [1], [0, 0, 1, 1], [], []>} : vector<16x8xf32>, vector<8x256xf32>, vector<16x256xf32> -> vector<16x256xf32>
    %234 = arith.addf %228, %233 : vector<16x256xf32>
    %c0_294 = arith.constant 0 : index
    %c0_295 = arith.constant 0 : index
    %c37_296 = arith.constant 37 : index
    %235 = vector.load %arg1[%c0_294, %c0_295, %c37_296] : memref<1x8x342xf32, #tpu.memory_space<vmem>>, vector<1x8x256xf32>
    %236 = vector.shape_cast %235 : vector<1x8x256xf32> to vector<8x256xf32>
    %c4_297 = arith.constant 4 : index
    %c6_298 = arith.constant 6 : index
    %c0_299 = arith.constant 0 : index
    %c0_300 = arith.constant 0 : index
    %237 = vector.load %arg2[%c4_297, %c6_298, %c0_299, %c0_300] : memref<8x8x16x8xf32, #tpu.memory_space<vmem>>, vector<1x1x16x8xf32>
    %238 = vector.shape_cast %237 : vector<1x1x16x8xf32> to vector<16x8xf32>
    %cst_301 = arith.constant dense<0.000000e+00> : vector<16x256xf32>
    %239 = tpu.matmul %238, %236, %cst_301 {dimension_numbers = #tpu.dot_dimension_numbers<[1], [0], [0], [1], [0, 0, 1, 1], [], []>} : vector<16x8xf32>, vector<8x256xf32>, vector<16x256xf32> -> vector<16x256xf32>
    %240 = arith.addf %234, %239 : vector<16x256xf32>
    %c0_302 = arith.constant 0 : index
    %c0_303 = arith.constant 0 : index
    %c36_304 = arith.constant 36 : index
    %241 = vector.load %arg1[%c0_302, %c0_303, %c36_304] : memref<1x8x342xf32, #tpu.memory_space<vmem>>, vector<1x8x256xf32>
    %242 = vector.shape_cast %241 : vector<1x8x256xf32> to vector<8x256xf32>
    %c4_305 = arith.constant 4 : index
    %c7_306 = arith.constant 7 : index
    %c0_307 = arith.constant 0 : index
    %c0_308 = arith.constant 0 : index
    %243 = vector.load %arg2[%c4_305, %c7_306, %c0_307, %c0_308] : memref<8x8x16x8xf32, #tpu.memory_space<vmem>>, vector<1x1x16x8xf32>
    %244 = vector.shape_cast %243 : vector<1x1x16x8xf32> to vector<16x8xf32>
    %cst_309 = arith.constant dense<0.000000e+00> : vector<16x256xf32>
    %245 = tpu.matmul %244, %242, %cst_309 {dimension_numbers = #tpu.dot_dimension_numbers<[1], [0], [0], [1], [0, 0, 1, 1], [], []>} : vector<16x8xf32>, vector<8x256xf32>, vector<16x256xf32> -> vector<16x256xf32>
    %246 = arith.addf %240, %245 : vector<16x256xf32>
    %c0_310 = arith.constant 0 : index
    %c4_311 = arith.constant 4 : index
    %c0_312 = arith.constant 0 : index
    %c0_313 = arith.constant 0 : index
    %247 = vector.load %arg3[%c0_310, %c4_311, %c0_312, %c0_313] : memref<1x8x16x256xf32, #tpu.memory_space<vmem>>, vector<1x1x16x256xf32>
    %248 = vector.shape_cast %247 : vector<1x1x16x256xf32> to vector<16x256xf32>
    %249 = vector.shape_cast %246 : vector<16x256xf32> to vector<1x1x16x256xf32>
    tpu.vector_store %arg3[%c0_310, %c4_311, %c0_312, %c0_313], %249 {strides = array<i32>} : memref<1x8x16x256xf32, #tpu.memory_space<vmem>>, vector<1x1x16x256xf32>,
    %c0_314 = arith.constant 0 : index
    %c0_315 = arith.constant 0 : index
    %c80 = arith.constant 80 : index
    %250 = vector.load %arg1[%c0_314, %c0_315, %c80] : memref<1x8x342xf32, #tpu.memory_space<vmem>>, vector<1x8x256xf32>
    %251 = vector.shape_cast %250 : vector<1x8x256xf32> to vector<8x256xf32>
    %c5_316 = arith.constant 5 : index
    %c0_317 = arith.constant 0 : index
    %c0_318 = arith.constant 0 : index
    %c0_319 = arith.constant 0 : index
    %252 = vector.load %arg2[%c5_316, %c0_317, %c0_318, %c0_319] : memref<8x8x16x8xf32, #tpu.memory_space<vmem>>, vector<1x1x16x8xf32>
    %253 = vector.shape_cast %252 : vector<1x1x16x8xf32> to vector<16x8xf32>
    %cst_320 = arith.constant dense<0.000000e+00> : vector<16x256xf32>
    %254 = tpu.matmul %253, %251, %cst_320 {dimension_numbers = #tpu.dot_dimension_numbers<[1], [0], [0], [1], [0, 0, 1, 1], [], []>} : vector<16x8xf32>, vector<8x256xf32>, vector<16x256xf32> -> vector<16x256xf32>
    %c0_321 = arith.constant 0 : index
    %c0_322 = arith.constant 0 : index
    %c79_323 = arith.constant 79 : index
    %255 = vector.load %arg1[%c0_321, %c0_322, %c79_323] : memref<1x8x342xf32, #tpu.memory_space<vmem>>, vector<1x8x256xf32>
    %256 = vector.shape_cast %255 : vector<1x8x256xf32> to vector<8x256xf32>
    %c5_324 = arith.constant 5 : index
    %c1_325 = arith.constant 1 : index
    %c0_326 = arith.constant 0 : index
    %c0_327 = arith.constant 0 : index
    %257 = vector.load %arg2[%c5_324, %c1_325, %c0_326, %c0_327] : memref<8x8x16x8xf32, #tpu.memory_space<vmem>>, vector<1x1x16x8xf32>
    %258 = vector.shape_cast %257 : vector<1x1x16x8xf32> to vector<16x8xf32>
    %cst_328 = arith.constant dense<0.000000e+00> : vector<16x256xf32>
    %259 = tpu.matmul %258, %256, %cst_328 {dimension_numbers = #tpu.dot_dimension_numbers<[1], [0], [0], [1], [0, 0, 1, 1], [], []>} : vector<16x8xf32>, vector<8x256xf32>, vector<16x256xf32> -> vector<16x256xf32>
    %260 = arith.addf %254, %259 : vector<16x256xf32>
    %c0_329 = arith.constant 0 : index
    %c0_330 = arith.constant 0 : index
    %c74 = arith.constant 74 : index
    %261 = vector.load %arg1[%c0_329, %c0_330, %c74] : memref<1x8x342xf32, #tpu.memory_space<vmem>>, vector<1x8x256xf32>
    %262 = vector.shape_cast %261 : vector<1x8x256xf32> to vector<8x256xf32>
    %c5_331 = arith.constant 5 : index
    %c2_332 = arith.constant 2 : index
    %c0_333 = arith.constant 0 : index
    %c0_334 = arith.constant 0 : index
    %263 = vector.load %arg2[%c5_331, %c2_332, %c0_333, %c0_334] : memref<8x8x16x8xf32, #tpu.memory_space<vmem>>, vector<1x1x16x8xf32>
    %264 = vector.shape_cast %263 : vector<1x1x16x8xf32> to vector<16x8xf32>
    %cst_335 = arith.constant dense<0.000000e+00> : vector<16x256xf32>
    %265 = tpu.matmul %264, %262, %cst_335 {dimension_numbers = #tpu.dot_dimension_numbers<[1], [0], [0], [1], [0, 0, 1, 1], [], []>} : vector<16x8xf32>, vector<8x256xf32>, vector<16x256xf32> -> vector<16x256xf32>
    %266 = arith.addf %260, %265 : vector<16x256xf32>
    %c0_336 = arith.constant 0 : index
    %c0_337 = arith.constant 0 : index
    %c73_338 = arith.constant 73 : index
    %267 = vector.load %arg1[%c0_336, %c0_337, %c73_338] : memref<1x8x342xf32, #tpu.memory_space<vmem>>, vector<1x8x256xf32>
    %268 = vector.shape_cast %267 : vector<1x8x256xf32> to vector<8x256xf32>
    %c5_339 = arith.constant 5 : index
    %c3_340 = arith.constant 3 : index
    %c0_341 = arith.constant 0 : index
    %c0_342 = arith.constant 0 : index
    %269 = vector.load %arg2[%c5_339, %c3_340, %c0_341, %c0_342] : memref<8x8x16x8xf32, #tpu.memory_space<vmem>>, vector<1x1x16x8xf32>
    %270 = vector.shape_cast %269 : vector<1x1x16x8xf32> to vector<16x8xf32>
    %cst_343 = arith.constant dense<0.000000e+00> : vector<16x256xf32>
    %271 = tpu.matmul %270, %268, %cst_343 {dimension_numbers = #tpu.dot_dimension_numbers<[1], [0], [0], [1], [0, 0, 1, 1], [], []>} : vector<16x8xf32>, vector<8x256xf32>, vector<16x256xf32> -> vector<16x256xf32>
    %272 = arith.addf %266, %271 : vector<16x256xf32>
    %c0_344 = arith.constant 0 : index
    %c0_345 = arith.constant 0 : index
    %c44_346 = arith.constant 44 : index
    %273 = vector.load %arg1[%c0_344, %c0_345, %c44_346] : memref<1x8x342xf32, #tpu.memory_space<vmem>>, vector<1x8x256xf32>
    %274 = vector.shape_cast %273 : vector<1x8x256xf32> to vector<8x256xf32>
    %c5_347 = arith.constant 5 : index
    %c4_348 = arith.constant 4 : index
    %c0_349 = arith.constant 0 : index
    %c0_350 = arith.constant 0 : index
    %275 = vector.load %arg2[%c5_347, %c4_348, %c0_349, %c0_350] : memref<8x8x16x8xf32, #tpu.memory_space<vmem>>, vector<1x1x16x8xf32>
    %276 = vector.shape_cast %275 : vector<1x1x16x8xf32> to vector<16x8xf32>
    %cst_351 = arith.constant dense<0.000000e+00> : vector<16x256xf32>
    %277 = tpu.matmul %276, %274, %cst_351 {dimension_numbers = #tpu.dot_dimension_numbers<[1], [0], [0], [1], [0, 0, 1, 1], [], []>} : vector<16x8xf32>, vector<8x256xf32>, vector<16x256xf32> -> vector<16x256xf32>
    %278 = arith.addf %272, %277 : vector<16x256xf32>
    %c0_352 = arith.constant 0 : index
    %c0_353 = arith.constant 0 : index
    %c43_354 = arith.constant 43 : index
    %279 = vector.load %arg1[%c0_352, %c0_353, %c43_354] : memref<1x8x342xf32, #tpu.memory_space<vmem>>, vector<1x8x256xf32>
    %280 = vector.shape_cast %279 : vector<1x8x256xf32> to vector<8x256xf32>
    %c5_355 = arith.constant 5 : index
    %c5_356 = arith.constant 5 : index
    %c0_357 = arith.constant 0 : index
    %c0_358 = arith.constant 0 : index
    %281 = vector.load %arg2[%c5_355, %c5_356, %c0_357, %c0_358] : memref<8x8x16x8xf32, #tpu.memory_space<vmem>>, vector<1x1x16x8xf32>
    %282 = vector.shape_cast %281 : vector<1x1x16x8xf32> to vector<16x8xf32>
    %cst_359 = arith.constant dense<0.000000e+00> : vector<16x256xf32>
    %283 = tpu.matmul %282, %280, %cst_359 {dimension_numbers = #tpu.dot_dimension_numbers<[1], [0], [0], [1], [0, 0, 1, 1], [], []>} : vector<16x8xf32>, vector<8x256xf32>, vector<16x256xf32> -> vector<16x256xf32>
    %284 = arith.addf %278, %283 : vector<16x256xf32>
    %c0_360 = arith.constant 0 : index
    %c0_361 = arith.constant 0 : index
    %c38_362 = arith.constant 38 : index
    %285 = vector.load %arg1[%c0_360, %c0_361, %c38_362] : memref<1x8x342xf32, #tpu.memory_space<vmem>>, vector<1x8x256xf32>
    %286 = vector.shape_cast %285 : vector<1x8x256xf32> to vector<8x256xf32>
    %c5_363 = arith.constant 5 : index
    %c6_364 = arith.constant 6 : index
    %c0_365 = arith.constant 0 : index
    %c0_366 = arith.constant 0 : index
    %287 = vector.load %arg2[%c5_363, %c6_364, %c0_365, %c0_366] : memref<8x8x16x8xf32, #tpu.memory_space<vmem>>, vector<1x1x16x8xf32>
    %288 = vector.shape_cast %287 : vector<1x1x16x8xf32> to vector<16x8xf32>
    %cst_367 = arith.constant dense<0.000000e+00> : vector<16x256xf32>
    %289 = tpu.matmul %288, %286, %cst_367 {dimension_numbers = #tpu.dot_dimension_numbers<[1], [0], [0], [1], [0, 0, 1, 1], [], []>} : vector<16x8xf32>, vector<8x256xf32>, vector<16x256xf32> -> vector<16x256xf32>
    %290 = arith.addf %284, %289 : vector<16x256xf32>
    %c0_368 = arith.constant 0 : index
    %c0_369 = arith.constant 0 : index
    %c37_370 = arith.constant 37 : index
    %291 = vector.load %arg1[%c0_368, %c0_369, %c37_370] : memref<1x8x342xf32, #tpu.memory_space<vmem>>, vector<1x8x256xf32>
    %292 = vector.shape_cast %291 : vector<1x8x256xf32> to vector<8x256xf32>
    %c5_371 = arith.constant 5 : index
    %c7_372 = arith.constant 7 : index
    %c0_373 = arith.constant 0 : index
    %c0_374 = arith.constant 0 : index
    %293 = vector.load %arg2[%c5_371, %c7_372, %c0_373, %c0_374] : memref<8x8x16x8xf32, #tpu.memory_space<vmem>>, vector<1x1x16x8xf32>
    %294 = vector.shape_cast %293 : vector<1x1x16x8xf32> to vector<16x8xf32>
    %cst_375 = arith.constant dense<0.000000e+00> : vector<16x256xf32>
    %295 = tpu.matmul %294, %292, %cst_375 {dimension_numbers = #tpu.dot_dimension_numbers<[1], [0], [0], [1], [0, 0, 1, 1], [], []>} : vector<16x8xf32>, vector<8x256xf32>, vector<16x256xf32> -> vector<16x256xf32>
    %296 = arith.addf %290, %295 : vector<16x256xf32>
    %c0_376 = arith.constant 0 : index
    %c5_377 = arith.constant 5 : index
    %c0_378 = arith.constant 0 : index
    %c0_379 = arith.constant 0 : index
    %297 = vector.load %arg3[%c0_376, %c5_377, %c0_378, %c0_379] : memref<1x8x16x256xf32, #tpu.memory_space<vmem>>, vector<1x1x16x256xf32>
    %298 = vector.shape_cast %297 : vector<1x1x16x256xf32> to vector<16x256xf32>
    %299 = vector.shape_cast %296 : vector<16x256xf32> to vector<1x1x16x256xf32>
    tpu.vector_store %arg3[%c0_376, %c5_377, %c0_378, %c0_379], %299 {strides = array<i32>} : memref<1x8x16x256xf32, #tpu.memory_space<vmem>>, vector<1x1x16x256xf32>,
    %c0_380 = arith.constant 0 : index
    %c0_381 = arith.constant 0 : index
    %c85 = arith.constant 85 : index
    %300 = vector.load %arg1[%c0_380, %c0_381, %c85] : memref<1x8x342xf32, #tpu.memory_space<vmem>>, vector<1x8x256xf32>
    %301 = vector.shape_cast %300 : vector<1x8x256xf32> to vector<8x256xf32>
    %c6_382 = arith.constant 6 : index
    %c0_383 = arith.constant 0 : index
    %c0_384 = arith.constant 0 : index
    %c0_385 = arith.constant 0 : index
    %302 = vector.load %arg2[%c6_382, %c0_383, %c0_384, %c0_385] : memref<8x8x16x8xf32, #tpu.memory_space<vmem>>, vector<1x1x16x8xf32>
    %303 = vector.shape_cast %302 : vector<1x1x16x8xf32> to vector<16x8xf32>
    %cst_386 = arith.constant dense<0.000000e+00> : vector<16x256xf32>
    %304 = tpu.matmul %303, %301, %cst_386 {dimension_numbers = #tpu.dot_dimension_numbers<[1], [0], [0], [1], [0, 0, 1, 1], [], []>} : vector<16x8xf32>, vector<8x256xf32>, vector<16x256xf32> -> vector<16x256xf32>
    %c0_387 = arith.constant 0 : index
    %c0_388 = arith.constant 0 : index
    %c84 = arith.constant 84 : index
    %305 = vector.load %arg1[%c0_387, %c0_388, %c84] : memref<1x8x342xf32, #tpu.memory_space<vmem>>, vector<1x8x256xf32>
    %306 = vector.shape_cast %305 : vector<1x8x256xf32> to vector<8x256xf32>
    %c6_389 = arith.constant 6 : index
    %c1_390 = arith.constant 1 : index
    %c0_391 = arith.constant 0 : index
    %c0_392 = arith.constant 0 : index
    %307 = vector.load %arg2[%c6_389, %c1_390, %c0_391, %c0_392] : memref<8x8x16x8xf32, #tpu.memory_space<vmem>>, vector<1x1x16x8xf32>
    %308 = vector.shape_cast %307 : vector<1x1x16x8xf32> to vector<16x8xf32>
    %cst_393 = arith.constant dense<0.000000e+00> : vector<16x256xf32>
    %309 = tpu.matmul %308, %306, %cst_393 {dimension_numbers = #tpu.dot_dimension_numbers<[1], [0], [0], [1], [0, 0, 1, 1], [], []>} : vector<16x8xf32>, vector<8x256xf32>, vector<16x256xf32> -> vector<16x256xf32>
    %310 = arith.addf %304, %309 : vector<16x256xf32>
    %c0_394 = arith.constant 0 : index
    %c0_395 = arith.constant 0 : index
    %c79_396 = arith.constant 79 : index
    %311 = vector.load %arg1[%c0_394, %c0_395, %c79_396] : memref<1x8x342xf32, #tpu.memory_space<vmem>>, vector<1x8x256xf32>
    %312 = vector.shape_cast %311 : vector<1x8x256xf32> to vector<8x256xf32>
    %c6_397 = arith.constant 6 : index
    %c2_398 = arith.constant 2 : index
    %c0_399 = arith.constant 0 : index
    %c0_400 = arith.constant 0 : index
    %313 = vector.load %arg2[%c6_397, %c2_398, %c0_399, %c0_400] : memref<8x8x16x8xf32, #tpu.memory_space<vmem>>, vector<1x1x16x8xf32>
    %314 = vector.shape_cast %313 : vector<1x1x16x8xf32> to vector<16x8xf32>
    %cst_401 = arith.constant dense<0.000000e+00> : vector<16x256xf32>
    %315 = tpu.matmul %314, %312, %cst_401 {dimension_numbers = #tpu.dot_dimension_numbers<[1], [0], [0], [1], [0, 0, 1, 1], [], []>} : vector<16x8xf32>, vector<8x256xf32>, vector<16x256xf32> -> vector<16x256xf32>
    %316 = arith.addf %310, %315 : vector<16x256xf32>
    %c0_402 = arith.constant 0 : index
    %c0_403 = arith.constant 0 : index
    %c78_404 = arith.constant 78 : index
    %317 = vector.load %arg1[%c0_402, %c0_403, %c78_404] : memref<1x8x342xf32, #tpu.memory_space<vmem>>, vector<1x8x256xf32>
    %318 = vector.shape_cast %317 : vector<1x8x256xf32> to vector<8x256xf32>
    %c6_405 = arith.constant 6 : index
    %c3_406 = arith.constant 3 : index
    %c0_407 = arith.constant 0 : index
    %c0_408 = arith.constant 0 : index
    %319 = vector.load %arg2[%c6_405, %c3_406, %c0_407, %c0_408] : memref<8x8x16x8xf32, #tpu.memory_space<vmem>>, vector<1x1x16x8xf32>
    %320 = vector.shape_cast %319 : vector<1x1x16x8xf32> to vector<16x8xf32>
    %cst_409 = arith.constant dense<0.000000e+00> : vector<16x256xf32>
    %321 = tpu.matmul %320, %318, %cst_409 {dimension_numbers = #tpu.dot_dimension_numbers<[1], [0], [0], [1], [0, 0, 1, 1], [], []>} : vector<16x8xf32>, vector<8x256xf32>, vector<16x256xf32> -> vector<16x256xf32>
    %322 = arith.addf %316, %321 : vector<16x256xf32>
    %c0_410 = arith.constant 0 : index
    %c0_411 = arith.constant 0 : index
    %c49_412 = arith.constant 49 : index
    %323 = vector.load %arg1[%c0_410, %c0_411, %c49_412] : memref<1x8x342xf32, #tpu.memory_space<vmem>>, vector<1x8x256xf32>
    %324 = vector.shape_cast %323 : vector<1x8x256xf32> to vector<8x256xf32>
    %c6_413 = arith.constant 6 : index
    %c4_414 = arith.constant 4 : index
    %c0_415 = arith.constant 0 : index
    %c0_416 = arith.constant 0 : index
    %325 = vector.load %arg2[%c6_413, %c4_414, %c0_415, %c0_416] : memref<8x8x16x8xf32, #tpu.memory_space<vmem>>, vector<1x1x16x8xf32>
    %326 = vector.shape_cast %325 : vector<1x1x16x8xf32> to vector<16x8xf32>
    %cst_417 = arith.constant dense<0.000000e+00> : vector<16x256xf32>
    %327 = tpu.matmul %326, %324, %cst_417 {dimension_numbers = #tpu.dot_dimension_numbers<[1], [0], [0], [1], [0, 0, 1, 1], [], []>} : vector<16x8xf32>, vector<8x256xf32>, vector<16x256xf32> -> vector<16x256xf32>
    %328 = arith.addf %322, %327 : vector<16x256xf32>
    %c0_418 = arith.constant 0 : index
    %c0_419 = arith.constant 0 : index
    %c48_420 = arith.constant 48 : index
    %329 = vector.load %arg1[%c0_418, %c0_419, %c48_420] : memref<1x8x342xf32, #tpu.memory_space<vmem>>, vector<1x8x256xf32>
    %330 = vector.shape_cast %329 : vector<1x8x256xf32> to vector<8x256xf32>
    %c6_421 = arith.constant 6 : index
    %c5_422 = arith.constant 5 : index
    %c0_423 = arith.constant 0 : index
    %c0_424 = arith.constant 0 : index
    %331 = vector.load %arg2[%c6_421, %c5_422, %c0_423, %c0_424] : memref<8x8x16x8xf32, #tpu.memory_space<vmem>>, vector<1x1x16x8xf32>
    %332 = vector.shape_cast %331 : vector<1x1x16x8xf32> to vector<16x8xf32>
    %cst_425 = arith.constant dense<0.000000e+00> : vector<16x256xf32>
    %333 = tpu.matmul %332, %330, %cst_425 {dimension_numbers = #tpu.dot_dimension_numbers<[1], [0], [0], [1], [0, 0, 1, 1], [], []>} : vector<16x8xf32>, vector<8x256xf32>, vector<16x256xf32> -> vector<16x256xf32>
    %334 = arith.addf %328, %333 : vector<16x256xf32>
    %c0_426 = arith.constant 0 : index
    %c0_427 = arith.constant 0 : index
    %c43_428 = arith.constant 43 : index
    %335 = vector.load %arg1[%c0_426, %c0_427, %c43_428] : memref<1x8x342xf32, #tpu.memory_space<vmem>>, vector<1x8x256xf32>
    %336 = vector.shape_cast %335 : vector<1x8x256xf32> to vector<8x256xf32>
    %c6_429 = arith.constant 6 : index
    %c6_430 = arith.constant 6 : index
    %c0_431 = arith.constant 0 : index
    %c0_432 = arith.constant 0 : index
    %337 = vector.load %arg2[%c6_429, %c6_430, %c0_431, %c0_432] : memref<8x8x16x8xf32, #tpu.memory_space<vmem>>, vector<1x1x16x8xf32>
    %338 = vector.shape_cast %337 : vector<1x1x16x8xf32> to vector<16x8xf32>
    %cst_433 = arith.constant dense<0.000000e+00> : vector<16x256xf32>
    %339 = tpu.matmul %338, %336, %cst_433 {dimension_numbers = #tpu.dot_dimension_numbers<[1], [0], [0], [1], [0, 0, 1, 1], [], []>} : vector<16x8xf32>, vector<8x256xf32>, vector<16x256xf32> -> vector<16x256xf32>
    %340 = arith.addf %334, %339 : vector<16x256xf32>
    %c0_434 = arith.constant 0 : index
    %c0_435 = arith.constant 0 : index
    %c42_436 = arith.constant 42 : index
    %341 = vector.load %arg1[%c0_434, %c0_435, %c42_436] : memref<1x8x342xf32, #tpu.memory_space<vmem>>, vector<1x8x256xf32>
    %342 = vector.shape_cast %341 : vector<1x8x256xf32> to vector<8x256xf32>
    %c6_437 = arith.constant 6 : index
    %c7_438 = arith.constant 7 : index
    %c0_439 = arith.constant 0 : index
    %c0_440 = arith.constant 0 : index
    %343 = vector.load %arg2[%c6_437, %c7_438, %c0_439, %c0_440] : memref<8x8x16x8xf32, #tpu.memory_space<vmem>>, vector<1x1x16x8xf32>
    %344 = vector.shape_cast %343 : vector<1x1x16x8xf32> to vector<16x8xf32>
    %cst_441 = arith.constant dense<0.000000e+00> : vector<16x256xf32>
    %345 = tpu.matmul %344, %342, %cst_441 {dimension_numbers = #tpu.dot_dimension_numbers<[1], [0], [0], [1], [0, 0, 1, 1], [], []>} : vector<16x8xf32>, vector<8x256xf32>, vector<16x256xf32> -> vector<16x256xf32>
    %346 = arith.addf %340, %345 : vector<16x256xf32>
    %c0_442 = arith.constant 0 : index
    %c6_443 = arith.constant 6 : index
    %c0_444 = arith.constant 0 : index
    %c0_445 = arith.constant 0 : index
    %347 = vector.load %arg3[%c0_442, %c6_443, %c0_444, %c0_445] : memref<1x8x16x256xf32, #tpu.memory_space<vmem>>, vector<1x1x16x256xf32>
    %348 = vector.shape_cast %347 : vector<1x1x16x256xf32> to vector<16x256xf32>
    %349 = vector.shape_cast %346 : vector<16x256xf32> to vector<1x1x16x256xf32>
    tpu.vector_store %arg3[%c0_442, %c6_443, %c0_444, %c0_445], %349 {strides = array<i32>} : memref<1x8x16x256xf32, #tpu.memory_space<vmem>>, vector<1x1x16x256xf32>,
    %c0_446 = arith.constant 0 : index
    %c0_447 = arith.constant 0 : index
    %c86 = arith.constant 86 : index
    %350 = vector.load %arg1[%c0_446, %c0_447, %c86] : memref<1x8x342xf32, #tpu.memory_space<vmem>>, vector<1x8x256xf32>
    %351 = vector.shape_cast %350 : vector<1x8x256xf32> to vector<8x256xf32>
    %c7_448 = arith.constant 7 : index
    %c0_449 = arith.constant 0 : index
    %c0_450 = arith.constant 0 : index
    %c0_451 = arith.constant 0 : index
    %352 = vector.load %arg2[%c7_448, %c0_449, %c0_450, %c0_451] : memref<8x8x16x8xf32, #tpu.memory_space<vmem>>, vector<1x1x16x8xf32>
    %353 = vector.shape_cast %352 : vector<1x1x16x8xf32> to vector<16x8xf32>
    %cst_452 = arith.constant dense<0.000000e+00> : vector<16x256xf32>
    %354 = tpu.matmul %353, %351, %cst_452 {dimension_numbers = #tpu.dot_dimension_numbers<[1], [0], [0], [1], [0, 0, 1, 1], [], []>} : vector<16x8xf32>, vector<8x256xf32>, vector<16x256xf32> -> vector<16x256xf32>
    %c0_453 = arith.constant 0 : index
    %c0_454 = arith.constant 0 : index
    %c85_455 = arith.constant 85 : index
    %355 = vector.load %arg1[%c0_453, %c0_454, %c85_455] : memref<1x8x342xf32, #tpu.memory_space<vmem>>, vector<1x8x256xf32>
    %356 = vector.shape_cast %355 : vector<1x8x256xf32> to vector<8x256xf32>
    %c7_456 = arith.constant 7 : index
    %c1_457 = arith.constant 1 : index
    %c0_458 = arith.constant 0 : index
    %c0_459 = arith.constant 0 : index
    %357 = vector.load %arg2[%c7_456, %c1_457, %c0_458, %c0_459] : memref<8x8x16x8xf32, #tpu.memory_space<vmem>>, vector<1x1x16x8xf32>
    %358 = vector.shape_cast %357 : vector<1x1x16x8xf32> to vector<16x8xf32>
    %cst_460 = arith.constant dense<0.000000e+00> : vector<16x256xf32>
    %359 = tpu.matmul %358, %356, %cst_460 {dimension_numbers = #tpu.dot_dimension_numbers<[1], [0], [0], [1], [0, 0, 1, 1], [], []>} : vector<16x8xf32>, vector<8x256xf32>, vector<16x256xf32> -> vector<16x256xf32>
    %360 = arith.addf %354, %359 : vector<16x256xf32>
    %c0_461 = arith.constant 0 : index
    %c0_462 = arith.constant 0 : index
    %c80_463 = arith.constant 80 : index
    %361 = vector.load %arg1[%c0_461, %c0_462, %c80_463] : memref<1x8x342xf32, #tpu.memory_space<vmem>>, vector<1x8x256xf32>
    %362 = vector.shape_cast %361 : vector<1x8x256xf32> to vector<8x256xf32>
    %c7_464 = arith.constant 7 : index
    %c2_465 = arith.constant 2 : index
    %c0_466 = arith.constant 0 : index
    %c0_467 = arith.constant 0 : index
    %363 = vector.load %arg2[%c7_464, %c2_465, %c0_466, %c0_467] : memref<8x8x16x8xf32, #tpu.memory_space<vmem>>, vector<1x1x16x8xf32>
    %364 = vector.shape_cast %363 : vector<1x1x16x8xf32> to vector<16x8xf32>
    %cst_468 = arith.constant dense<0.000000e+00> : vector<16x256xf32>
    %365 = tpu.matmul %364, %362, %cst_468 {dimension_numbers = #tpu.dot_dimension_numbers<[1], [0], [0], [1], [0, 0, 1, 1], [], []>} : vector<16x8xf32>, vector<8x256xf32>, vector<16x256xf32> -> vector<16x256xf32>
    %366 = arith.addf %360, %365 : vector<16x256xf32>
    %c0_469 = arith.constant 0 : index
    %c0_470 = arith.constant 0 : index
    %c79_471 = arith.constant 79 : index
    %367 = vector.load %arg1[%c0_469, %c0_470, %c79_471] : memref<1x8x342xf32, #tpu.memory_space<vmem>>, vector<1x8x256xf32>
    %368 = vector.shape_cast %367 : vector<1x8x256xf32> to vector<8x256xf32>
    %c7_472 = arith.constant 7 : index
    %c3_473 = arith.constant 3 : index
    %c0_474 = arith.constant 0 : index
    %c0_475 = arith.constant 0 : index
    %369 = vector.load %arg2[%c7_472, %c3_473, %c0_474, %c0_475] : memref<8x8x16x8xf32, #tpu.memory_space<vmem>>, vector<1x1x16x8xf32>
    %370 = vector.shape_cast %369 : vector<1x1x16x8xf32> to vector<16x8xf32>
    %cst_476 = arith.constant dense<0.000000e+00> : vector<16x256xf32>
    %371 = tpu.matmul %370, %368, %cst_476 {dimension_numbers = #tpu.dot_dimension_numbers<[1], [0], [0], [1], [0, 0, 1, 1], [], []>} : vector<16x8xf32>, vector<8x256xf32>, vector<16x256xf32> -> vector<16x256xf32>
    %372 = arith.addf %366, %371 : vector<16x256xf32>
    %c0_477 = arith.constant 0 : index
    %c0_478 = arith.constant 0 : index
    %c50_479 = arith.constant 50 : index
    %373 = vector.load %arg1[%c0_477, %c0_478, %c50_479] : memref<1x8x342xf32, #tpu.memory_space<vmem>>, vector<1x8x256xf32>
    %374 = vector.shape_cast %373 : vector<1x8x256xf32> to vector<8x256xf32>
    %c7_480 = arith.constant 7 : index
    %c4_481 = arith.constant 4 : index
    %c0_482 = arith.constant 0 : index
    %c0_483 = arith.constant 0 : index
    %375 = vector.load %arg2[%c7_480, %c4_481, %c0_482, %c0_483] : memref<8x8x16x8xf32, #tpu.memory_space<vmem>>, vector<1x1x16x8xf32>
    %376 = vector.shape_cast %375 : vector<1x1x16x8xf32> to vector<16x8xf32>
    %cst_484 = arith.constant dense<0.000000e+00> : vector<16x256xf32>
    %377 = tpu.matmul %376, %374, %cst_484 {dimension_numbers = #tpu.dot_dimension_numbers<[1], [0], [0], [1], [0, 0, 1, 1], [], []>} : vector<16x8xf32>, vector<8x256xf32>, vector<16x256xf32> -> vector<16x256xf32>
    %378 = arith.addf %372, %377 : vector<16x256xf32>
    %c0_485 = arith.constant 0 : index
    %c0_486 = arith.constant 0 : index
    %c49_487 = arith.constant 49 : index
    %379 = vector.load %arg1[%c0_485, %c0_486, %c49_487] : memref<1x8x342xf32, #tpu.memory_space<vmem>>, vector<1x8x256xf32>
    %380 = vector.shape_cast %379 : vector<1x8x256xf32> to vector<8x256xf32>
    %c7_488 = arith.constant 7 : index
    %c5_489 = arith.constant 5 : index
    %c0_490 = arith.constant 0 : index
    %c0_491 = arith.constant 0 : index
    %381 = vector.load %arg2[%c7_488, %c5_489, %c0_490, %c0_491] : memref<8x8x16x8xf32, #tpu.memory_space<vmem>>, vector<1x1x16x8xf32>
    %382 = vector.shape_cast %381 : vector<1x1x16x8xf32> to vector<16x8xf32>
    %cst_492 = arith.constant dense<0.000000e+00> : vector<16x256xf32>
    %383 = tpu.matmul %382, %380, %cst_492 {dimension_numbers = #tpu.dot_dimension_numbers<[1], [0], [0], [1], [0, 0, 1, 1], [], []>} : vector<16x8xf32>, vector<8x256xf32>, vector<16x256xf32> -> vector<16x256xf32>
    %384 = arith.addf %378, %383 : vector<16x256xf32>
    %c0_493 = arith.constant 0 : index
    %c0_494 = arith.constant 0 : index
    %c44_495 = arith.constant 44 : index
    %385 = vector.load %arg1[%c0_493, %c0_494, %c44_495] : memref<1x8x342xf32, #tpu.memory_space<vmem>>, vector<1x8x256xf32>
    %386 = vector.shape_cast %385 : vector<1x8x256xf32> to vector<8x256xf32>
    %c7_496 = arith.constant 7 : index
    %c6_497 = arith.constant 6 : index
    %c0_498 = arith.constant 0 : index
    %c0_499 = arith.constant 0 : index
    %387 = vector.load %arg2[%c7_496, %c6_497, %c0_498, %c0_499] : memref<8x8x16x8xf32, #tpu.memory_space<vmem>>, vector<1x1x16x8xf32>
    %388 = vector.shape_cast %387 : vector<1x1x16x8xf32> to vector<16x8xf32>
    %cst_500 = arith.constant dense<0.000000e+00> : vector<16x256xf32>
    %389 = tpu.matmul %388, %386, %cst_500 {dimension_numbers = #tpu.dot_dimension_numbers<[1], [0], [0], [1], [0, 0, 1, 1], [], []>} : vector<16x8xf32>, vector<8x256xf32>, vector<16x256xf32> -> vector<16x256xf32>
    %390 = arith.addf %384, %389 : vector<16x256xf32>
    %c0_501 = arith.constant 0 : index
    %c0_502 = arith.constant 0 : index
    %c43_503 = arith.constant 43 : index
    %391 = vector.load %arg1[%c0_501, %c0_502, %c43_503] : memref<1x8x342xf32, #tpu.memory_space<vmem>>, vector<1x8x256xf32>
    %392 = vector.shape_cast %391 : vector<1x8x256xf32> to vector<8x256xf32>
    %c7_504 = arith.constant 7 : index
    %c7_505 = arith.constant 7 : index
    %c0_506 = arith.constant 0 : index
    %c0_507 = arith.constant 0 : index
    %393 = vector.load %arg2[%c7_504, %c7_505, %c0_506, %c0_507] : memref<8x8x16x8xf32, #tpu.memory_space<vmem>>, vector<1x1x16x8xf32>
    %394 = vector.shape_cast %393 : vector<1x1x16x8xf32> to vector<16x8xf32>
    %cst_508 = arith.constant dense<0.000000e+00> : vector<16x256xf32>
    %395 = tpu.matmul %394, %392, %cst_508 {dimension_numbers = #tpu.dot_dimension_numbers<[1], [0], [0], [1], [0, 0, 1, 1], [], []>} : vector<16x8xf32>, vector<8x256xf32>, vector<16x256xf32> -> vector<16x256xf32>
    %396 = arith.addf %390, %395 : vector<16x256xf32>
    %c0_509 = arith.constant 0 : index
    %c7_510 = arith.constant 7 : index
    %c0_511 = arith.constant 0 : index
    %c0_512 = arith.constant 0 : index
    %397 = vector.load %arg3[%c0_509, %c7_510, %c0_511, %c0_512] : memref<1x8x16x256xf32, #tpu.memory_space<vmem>>, vector<1x1x16x256xf32>
    %398 = vector.shape_cast %397 : vector<1x1x16x256xf32> to vector<16x256xf32>
    %399 = vector.shape_cast %396 : vector<16x256xf32> to vector<1x1x16x256xf32>
    tpu.vector_store %arg3[%c0_509, %c7_510, %c0_511, %c0_512], %399 {strides = array<i32>} : memref<1x8x16x256xf32, #tpu.memory_space<vmem>>, vector<1x1x16x256xf32>,
    return
  }
  func.func @transform_0(%arg0: i32) -> (i32, i32, i32) {
    %c0_i32 = arith.constant 0 : i32
    %c0_i32_0 = arith.constant 0 : i32
    %c0_i32_1 = arith.constant 0 : i32
    return %arg0, %c0_i32, %c0_i32_0 : i32, i32, i32
  }
  func.func @transform_1(%arg0: i32) -> (i32, i32, i32, i32) {
    %c0_i32 = arith.constant 0 : i32
    %c0_i32_0 = arith.constant 0 : i32
    %c0_i32_1 = arith.constant 0 : i32
    %c0_i32_2 = arith.constant 0 : i32
    %c0_i32_3 = arith.constant 0 : i32
    return %c0_i32, %c0_i32_0, %c0_i32_1, %c0_i32_2 : i32, i32, i32, i32
  }
  func.func @transform_2(%arg0: i32) -> (i32, i32, i32, i32) {
    %c0_i32 = arith.constant 0 : i32
    %c0_i32_0 = arith.constant 0 : i32
    %c0_i32_1 = arith.constant 0 : i32
    %c0_i32_2 = arith.constant 0 : i32
    return %arg0, %c0_i32, %c0_i32_0, %c0_i32_1 : i32, i32, i32, i32
  }
}

module attributes {stable_mosaic.version = 11 : i64} {
  func.func @_bn_stats_kernel(%arg0: i32, %arg1: i32, %arg2: i32, %arg3: memref<1x1x16x64xf32, #tpu.memory_space<vmem>>, %arg4: memref<1x1x1x16x1xf32, #tpu.memory_space<vmem>>, %arg5: memref<1x1x1x16x1xf32, #tpu.memory_space<vmem>>) attributes {dimension_semantics = [#tpu.dimension_semantics<parallel>, #tpu.dimension_semantics<parallel>, #tpu.dimension_semantics<parallel>], iteration_bounds = array<i64: 2, 8, 1>, scalar_prefetch = 0 : i64, scratch_operands = 0 : i64, tpu.core_type = #tpu.core_type<tc>, window_params = [{transform_indices = @transform_0, window_bounds = array<i64: 1, 1, 16, 64>}, {transform_indices = @transform_1, window_bounds = array<i64: 1, 1, 1, 16, 1>}, {transform_indices = @transform_2, window_bounds = array<i64: 1, 1, 1, 16, 1>}]} {
    %c0 = arith.constant 0 : index
    %c0_0 = arith.constant 0 : index
    %c0_1 = arith.constant 0 : index
    %c0_2 = arith.constant 0 : index
    %0 = vector.load %arg3[%c0, %c0_0, %c0_1, %c0_2] : memref<1x1x16x64xf32, #tpu.memory_space<vmem>>, vector<1x1x16x64xf32>
    %1 = vector.shape_cast %0 : vector<1x1x16x64xf32> to vector<16x64xf32>
    %cst = arith.constant dense<0.000000e+00> : vector<16xf32>
    %2 = vector.multi_reduction <add>, %1, %cst [1] : vector<16x64xf32> to vector<16xf32>
    %3 = vector.shape_cast %2 : vector<16xf32> to vector<16x1xf32>
    %c0_3 = arith.constant 0 : index
    %c0_4 = arith.constant 0 : index
    %c0_5 = arith.constant 0 : index
    %c0_6 = arith.constant 0 : index
    %c0_7 = arith.constant 0 : index
    %4 = vector.load %arg4[%c0_3, %c0_4, %c0_5, %c0_6, %c0_7] : memref<1x1x1x16x1xf32, #tpu.memory_space<vmem>>, vector<1x1x1x16x1xf32>
    %5 = vector.shape_cast %4 : vector<1x1x1x16x1xf32> to vector<16x1xf32>
    %6 = vector.shape_cast %3 : vector<16x1xf32> to vector<1x1x1x16x1xf32>
    tpu.vector_store %arg4[%c0_3, %c0_4, %c0_5, %c0_6, %c0_7], %6 {strides = array<i32>} : memref<1x1x1x16x1xf32, #tpu.memory_space<vmem>>, vector<1x1x1x16x1xf32>,
    %7 = arith.mulf %1, %1 : vector<16x64xf32>
    %cst_8 = arith.constant dense<0.000000e+00> : vector<16xf32>
    %8 = vector.multi_reduction <add>, %7, %cst_8 [1] : vector<16x64xf32> to vector<16xf32>
    %9 = vector.shape_cast %8 : vector<16xf32> to vector<16x1xf32>
    %c0_9 = arith.constant 0 : index
    %c0_10 = arith.constant 0 : index
    %c0_11 = arith.constant 0 : index
    %c0_12 = arith.constant 0 : index
    %c0_13 = arith.constant 0 : index
    %10 = vector.load %arg5[%c0_9, %c0_10, %c0_11, %c0_12, %c0_13] : memref<1x1x1x16x1xf32, #tpu.memory_space<vmem>>, vector<1x1x1x16x1xf32>
    %11 = vector.shape_cast %10 : vector<1x1x1x16x1xf32> to vector<16x1xf32>
    %12 = vector.shape_cast %9 : vector<16x1xf32> to vector<1x1x1x16x1xf32>
    tpu.vector_store %arg5[%c0_9, %c0_10, %c0_11, %c0_12, %c0_13], %12 {strides = array<i32>} : memref<1x1x1x16x1xf32, #tpu.memory_space<vmem>>, vector<1x1x1x16x1xf32>,
    return
  }
  func.func @transform_0(%arg0: i32, %arg1: i32, %arg2: i32) -> (i32, i32, i32, i32) {
    %c0_i32 = arith.constant 0 : i32
    %c0_i32_0 = arith.constant 0 : i32
    return %arg0, %arg1, %c0_i32, %arg2 : i32, i32, i32, i32
  }
  func.func @transform_1(%arg0: i32, %arg1: i32, %arg2: i32) -> (i32, i32, i32, i32, i32) {
    %c0_i32 = arith.constant 0 : i32
    %c0_i32_0 = arith.constant 0 : i32
    %c0_i32_1 = arith.constant 0 : i32
    return %arg0, %arg1, %arg2, %c0_i32, %c0_i32_0 : i32, i32, i32, i32, i32
  }
  func.func @transform_2(%arg0: i32, %arg1: i32, %arg2: i32) -> (i32, i32, i32, i32, i32) {
    %c0_i32 = arith.constant 0 : i32
    %c0_i32_0 = arith.constant 0 : i32
    %c0_i32_1 = arith.constant 0 : i32
    return %arg0, %arg1, %arg2, %c0_i32, %c0_i32_0 : i32, i32, i32, i32, i32
  }
}

module attributes {stable_mosaic.version = 11 : i64} {
  func.func @_bn_relu_pool_kernel(%arg0: i32, %arg1: i32, %arg2: i32, %arg3: memref<1x1x16x64xf32, #tpu.memory_space<vmem>>, %arg4: memref<16x1xf32, #tpu.memory_space<vmem>>, %arg5: memref<16x1xf32, #tpu.memory_space<vmem>>, %arg6: memref<1x1x1x16x1xf32, #tpu.memory_space<vmem>>) attributes {dimension_semantics = [#tpu.dimension_semantics<parallel>, #tpu.dimension_semantics<parallel>, #tpu.dimension_semantics<parallel>], iteration_bounds = array<i64: 2, 8, 1>, scalar_prefetch = 0 : i64, scratch_operands = 0 : i64, tpu.core_type = #tpu.core_type<tc>, window_params = [{transform_indices = @transform_0, window_bounds = array<i64: 1, 1, 16, 64>}, {pipeline_mode = #tpu.pipeline_mode<synchronous>, transform_indices = @transform_1, window_bounds = array<i64: 16, 1>}, {pipeline_mode = #tpu.pipeline_mode<synchronous>, transform_indices = @transform_2, window_bounds = array<i64: 16, 1>}, {transform_indices = @transform_3, window_bounds = array<i64: 1, 1, 1, 16, 1>}]} {
    %c0 = arith.constant 0 : index
    %c0_0 = arith.constant 0 : index
    %c0_1 = arith.constant 0 : index
    %c0_2 = arith.constant 0 : index
    %0 = vector.load %arg3[%c0, %c0_0, %c0_1, %c0_2] : memref<1x1x16x64xf32, #tpu.memory_space<vmem>>, vector<1x1x16x64xf32>
    %1 = vector.shape_cast %0 : vector<1x1x16x64xf32> to vector<16x64xf32>
    %c0_3 = arith.constant 0 : index
    %c0_4 = arith.constant 0 : index
    %2 = vector.load %arg4[%c0_3, %c0_4] : memref<16x1xf32, #tpu.memory_space<vmem>>, vector<16x1xf32>
    %3 = vector.broadcast %2 : vector<16x1xf32> to vector<16x64xf32>
    %4 = arith.mulf %1, %3 : vector<16x64xf32>
    %c0_5 = arith.constant 0 : index
    %c0_6 = arith.constant 0 : index
    %5 = vector.load %arg5[%c0_5, %c0_6] : memref<16x1xf32, #tpu.memory_space<vmem>>, vector<16x1xf32>
    %6 = vector.broadcast %5 : vector<16x1xf32> to vector<16x64xf32>
    %7 = arith.addf %4, %6 : vector<16x64xf32>
    %cst = arith.constant 0.000000e+00 : f32
    %8 = vector.broadcast %cst : f32 to vector<16x64xf32>
    %9 = arith.maximumf %7, %8 : vector<16x64xf32>
    %cst_7 = arith.constant dense<0.000000e+00> : vector<16xf32>
    %10 = vector.multi_reduction <add>, %9, %cst_7 [1] : vector<16x64xf32> to vector<16xf32>
    %11 = vector.shape_cast %10 : vector<16xf32> to vector<16x1xf32>
    %c0_8 = arith.constant 0 : index
    %c0_9 = arith.constant 0 : index
    %c0_10 = arith.constant 0 : index
    %c0_11 = arith.constant 0 : index
    %c0_12 = arith.constant 0 : index
    %12 = vector.load %arg6[%c0_8, %c0_9, %c0_10, %c0_11, %c0_12] : memref<1x1x1x16x1xf32, #tpu.memory_space<vmem>>, vector<1x1x1x16x1xf32>
    %13 = vector.shape_cast %12 : vector<1x1x1x16x1xf32> to vector<16x1xf32>
    %14 = vector.shape_cast %11 : vector<16x1xf32> to vector<1x1x1x16x1xf32>
    tpu.vector_store %arg6[%c0_8, %c0_9, %c0_10, %c0_11, %c0_12], %14 {strides = array<i32>} : memref<1x1x1x16x1xf32, #tpu.memory_space<vmem>>, vector<1x1x1x16x1xf32>,
    return
  }
  func.func @transform_0(%arg0: i32, %arg1: i32, %arg2: i32) -> (i32, i32, i32, i32) {
    %c0_i32 = arith.constant 0 : i32
    %c0_i32_0 = arith.constant 0 : i32
    return %arg0, %arg1, %c0_i32, %arg2 : i32, i32, i32, i32
  }
  func.func @transform_1(%arg0: i32, %arg1: i32, %arg2: i32) -> (i32, i32) {
    %c0_i32 = arith.constant 0 : i32
    %c0_i32_0 = arith.constant 0 : i32
    %c0_i32_1 = arith.constant 0 : i32
    return %c0_i32, %c0_i32_0 : i32, i32
  }
  func.func @transform_2(%arg0: i32, %arg1: i32, %arg2: i32) -> (i32, i32) {
    %c0_i32 = arith.constant 0 : i32
    %c0_i32_0 = arith.constant 0 : i32
    %c0_i32_1 = arith.constant 0 : i32
    return %c0_i32, %c0_i32_0 : i32, i32
  }
  func.func @transform_3(%arg0: i32, %arg1: i32, %arg2: i32) -> (i32, i32, i32, i32, i32) {
    %c0_i32 = arith.constant 0 : i32
    %c0_i32_0 = arith.constant 0 : i32
    %c0_i32_1 = arith.constant 0 : i32
    return %arg0, %arg1, %arg2, %c0_i32, %c0_i32_0 : i32, i32, i32, i32, i32
  }
}

module attributes {stable_mosaic.version = 11 : i64} {
  func.func @_se_gate_kernel(%arg0: memref<2x16xf32, #tpu.memory_space<vmem>>, %arg1: memref<16x1xf32, #tpu.memory_space<vmem>>, %arg2: memref<1x1xf32, #tpu.memory_space<vmem>>, %arg3: memref<1x16xf32, #tpu.memory_space<vmem>>, %arg4: memref<1x16xf32, #tpu.memory_space<vmem>>, %arg5: memref<2x16xf32, #tpu.memory_space<vmem>>) attributes {dimension_semantics = [], scalar_prefetch = 0 : i64, scratch_operands = 0 : i64, tpu.core_type = #tpu.core_type<tc>} {
    %c0 = arith.constant 0 : index
    %c0_0 = arith.constant 0 : index
    %0 = vector.load %arg0[%c0, %c0_0] : memref<2x16xf32, #tpu.memory_space<vmem>>, vector<2x16xf32>
    %c0_1 = arith.constant 0 : index
    %c0_2 = arith.constant 0 : index
    %1 = vector.load %arg1[%c0_1, %c0_2] : memref<16x1xf32, #tpu.memory_space<vmem>>, vector<16x1xf32>
    %cst = arith.constant dense<0.000000e+00> : vector<2x1xf32>
    %2 = tpu.matmul %0, %1, %cst {dimension_numbers = #tpu.dot_dimension_numbers<[1], [0], [0], [1], [0, 0, 1, 1], [], []>} : vector<2x16xf32>, vector<16x1xf32>, vector<2x1xf32> -> vector<2x1xf32>
    %c0_3 = arith.constant 0 : index
    %c0_4 = arith.constant 0 : index
    %3 = vector.load %arg2[%c0_3, %c0_4] : memref<1x1xf32, #tpu.memory_space<vmem>>, vector<1x1xf32>
    %4 = vector.broadcast %3 : vector<1x1xf32> to vector<2x1xf32>
    %5 = arith.addf %2, %4 : vector<2x1xf32>
    %cst_5 = arith.constant 0.000000e+00 : f32
    %6 = vector.broadcast %cst_5 : f32 to vector<2x1xf32>
    %7 = arith.maximumf %5, %6 : vector<2x1xf32>
    %c0_6 = arith.constant 0 : index
    %c0_7 = arith.constant 0 : index
    %8 = vector.load %arg3[%c0_6, %c0_7] : memref<1x16xf32, #tpu.memory_space<vmem>>, vector<1x16xf32>
    %cst_8 = arith.constant dense<0.000000e+00> : vector<2x16xf32>
    %9 = tpu.matmul %7, %8, %cst_8 {dimension_numbers = #tpu.dot_dimension_numbers<[1], [0], [0], [1], [0, 0, 1, 1], [], []>} : vector<2x1xf32>, vector<1x16xf32>, vector<2x16xf32> -> vector<2x16xf32>
    %c0_9 = arith.constant 0 : index
    %c0_10 = arith.constant 0 : index
    %10 = vector.load %arg4[%c0_9, %c0_10] : memref<1x16xf32, #tpu.memory_space<vmem>>, vector<1x16xf32>
    %11 = vector.broadcast %10 : vector<1x16xf32> to vector<2x16xf32>
    %12 = arith.addf %9, %11 : vector<2x16xf32>
    %cst_11 = arith.constant 0.000000e+00 : f32
    %13 = vector.broadcast %cst_11 : f32 to vector<2x16xf32>
    %14 = arith.subf %13, %12 : vector<2x16xf32>
    %15 = math.exp %14 : vector<2x16xf32>
    %cst_12 = arith.constant 1.000000e+00 : f32
    %16 = vector.broadcast %cst_12 : f32 to vector<2x16xf32>
    %17 = arith.addf %16, %15 : vector<2x16xf32>
    %cst_13 = arith.constant 1.000000e+00 : f32
    %18 = vector.broadcast %cst_13 : f32 to vector<2x16xf32>
    %19 = arith.divf %18, %17 : vector<2x16xf32>
    %c0_14 = arith.constant 0 : index
    %c0_15 = arith.constant 0 : index
    %20 = vector.load %arg5[%c0_14, %c0_15] : memref<2x16xf32, #tpu.memory_space<vmem>>, vector<2x16xf32>
    tpu.vector_store %arg5[%c0_14, %c0_15], %19 {strides = array<i32>} : memref<2x16xf32, #tpu.memory_space<vmem>>, vector<2x16xf32>,
    return
  }
}

module attributes {stable_mosaic.version = 11 : i64} {
  func.func @_bn_relu_gate_kernel(%arg0: i32, %arg1: i32, %arg2: i32, %arg3: memref<1x1x16x64xf32, #tpu.memory_space<vmem>>, %arg4: memref<16x1xf32, #tpu.memory_space<vmem>>, %arg5: memref<16x1xf32, #tpu.memory_space<vmem>>, %arg6: memref<1x16x1xf32, #tpu.memory_space<vmem>>, %arg7: memref<1x1x16x64xf32, #tpu.memory_space<vmem>>) attributes {dimension_semantics = [#tpu.dimension_semantics<parallel>, #tpu.dimension_semantics<parallel>, #tpu.dimension_semantics<parallel>], iteration_bounds = array<i64: 2, 8, 1>, scalar_prefetch = 0 : i64, scratch_operands = 0 : i64, tpu.core_type = #tpu.core_type<tc>, window_params = [{transform_indices = @transform_0, window_bounds = array<i64: 1, 1, 16, 64>}, {pipeline_mode = #tpu.pipeline_mode<synchronous>, transform_indices = @transform_1, window_bounds = array<i64: 16, 1>}, {pipeline_mode = #tpu.pipeline_mode<synchronous>, transform_indices = @transform_2, window_bounds = array<i64: 16, 1>}, {transform_indices = @transform_3, window_bounds = array<i64: 1, 16, 1>}, {transform_indices = @transform_4, window_bounds = array<i64: 1, 1, 16, 64>}]} {
    %c0 = arith.constant 0 : index
    %c0_0 = arith.constant 0 : index
    %c0_1 = arith.constant 0 : index
    %c0_2 = arith.constant 0 : index
    %0 = vector.load %arg3[%c0, %c0_0, %c0_1, %c0_2] : memref<1x1x16x64xf32, #tpu.memory_space<vmem>>, vector<1x1x16x64xf32>
    %1 = vector.shape_cast %0 : vector<1x1x16x64xf32> to vector<16x64xf32>
    %c0_3 = arith.constant 0 : index
    %c0_4 = arith.constant 0 : index
    %2 = vector.load %arg4[%c0_3, %c0_4] : memref<16x1xf32, #tpu.memory_space<vmem>>, vector<16x1xf32>
    %3 = vector.broadcast %2 : vector<16x1xf32> to vector<16x64xf32>
    %4 = arith.mulf %1, %3 : vector<16x64xf32>
    %c0_5 = arith.constant 0 : index
    %c0_6 = arith.constant 0 : index
    %5 = vector.load %arg5[%c0_5, %c0_6] : memref<16x1xf32, #tpu.memory_space<vmem>>, vector<16x1xf32>
    %6 = vector.broadcast %5 : vector<16x1xf32> to vector<16x64xf32>
    %7 = arith.addf %4, %6 : vector<16x64xf32>
    %cst = arith.constant 0.000000e+00 : f32
    %8 = vector.broadcast %cst : f32 to vector<16x64xf32>
    %9 = arith.maximumf %7, %8 : vector<16x64xf32>
    %c0_7 = arith.constant 0 : index
    %c0_8 = arith.constant 0 : index
    %c0_9 = arith.constant 0 : index
    %10 = vector.load %arg6[%c0_7, %c0_8, %c0_9] : memref<1x16x1xf32, #tpu.memory_space<vmem>>, vector<1x16x1xf32>
    %11 = vector.shape_cast %10 : vector<1x16x1xf32> to vector<16x1xf32>
    %12 = vector.broadcast %11 : vector<16x1xf32> to vector<16x64xf32>
    %13 = arith.mulf %9, %12 : vector<16x64xf32>
    %c0_10 = arith.constant 0 : index
    %c0_11 = arith.constant 0 : index
    %c0_12 = arith.constant 0 : index
    %c0_13 = arith.constant 0 : index
    %14 = vector.load %arg7[%c0_10, %c0_11, %c0_12, %c0_13] : memref<1x1x16x64xf32, #tpu.memory_space<vmem>>, vector<1x1x16x64xf32>
    %15 = vector.shape_cast %14 : vector<1x1x16x64xf32> to vector<16x64xf32>
    %16 = vector.shape_cast %13 : vector<16x64xf32> to vector<1x1x16x64xf32>
    tpu.vector_store %arg7[%c0_10, %c0_11, %c0_12, %c0_13], %16 {strides = array<i32>} : memref<1x1x16x64xf32, #tpu.memory_space<vmem>>, vector<1x1x16x64xf32>,
    return
  }
  func.func @transform_0(%arg0: i32, %arg1: i32, %arg2: i32) -> (i32, i32, i32, i32) {
    %c0_i32 = arith.constant 0 : i32
    %c0_i32_0 = arith.constant 0 : i32
    return %arg0, %arg1, %c0_i32, %arg2 : i32, i32, i32, i32
  }
  func.func @transform_1(%arg0: i32, %arg1: i32, %arg2: i32) -> (i32, i32) {
    %c0_i32 = arith.constant 0 : i32
    %c0_i32_0 = arith.constant 0 : i32
    %c0_i32_1 = arith.constant 0 : i32
    return %c0_i32, %c0_i32_0 : i32, i32
  }
  func.func @transform_2(%arg0: i32, %arg1: i32, %arg2: i32) -> (i32, i32) {
    %c0_i32 = arith.constant 0 : i32
    %c0_i32_0 = arith.constant 0 : i32
    %c0_i32_1 = arith.constant 0 : i32
    return %c0_i32, %c0_i32_0 : i32, i32
  }
  func.func @transform_3(%arg0: i32, %arg1: i32, %arg2: i32) -> (i32, i32, i32) {
    %c0_i32 = arith.constant 0 : i32
    %c0_i32_0 = arith.constant 0 : i32
    %c0_i32_1 = arith.constant 0 : i32
    return %arg0, %c0_i32, %c0_i32_0 : i32, i32, i32
  }
  func.func @transform_4(%arg0: i32, %arg1: i32, %arg2: i32) -> (i32, i32, i32, i32) {
    %c0_i32 = arith.constant 0 : i32
    %c0_i32_0 = arith.constant 0 : i32
    return %arg0, %arg1, %c0_i32, %arg2 : i32, i32, i32, i32
  }
}

</mosaic_0001>

<llo_original>
// kernel: trans_conv3d_for_g.6
$region0: #{trans_conv3d_for_g.6}
  #allocation0 [shape = 'u32[]', space=smem, size = 0x4, offset = 0x4, fixed_abs, tag = 'smem constant byte address 0x4 - core index']
  #allocation1 [shape = 'u32[144,128]{1,0:T(1,128)}', space=vmem, size = 0x12000, scoped, tag = 'internal scratch']
  %s0 = inlined_call_operand.vmem [shape: f32[2,8,16,64], index: 0, kind: input, shape index: {}]
  %s1 = inlined_call_operand.vmem [shape: f32[2,8,1,16,1], index: 1, kind: output, shape index: {0}]
  %s2 = inlined_call_operand.vmem [shape: f32[2,8,1,16,1], index: 2, kind: output, shape index: {1}]
  %3 = xla_tuple %s1, %s2
  %s4 = sld [smem:[#allocation0]]
  $region45: #{trans_conv3d_for_g.6} parent=0
    _
  %s6 = ssub.s32 1, %s4
  %s7 = scalar_select 0, %s6, %s4
  loop: start=0, step=1, limit=18
  $region2: #{trans_conv3d_for_g.6} parent=0 // loop_pre_header
    _
  $region3: #{trans_conv3d_for_g.6} parent=0 // loop_header
    %s9 = sphi 0, %s13
    %p10 = scmp.ge.s32.totalorder %s9, 18
    %s16 = sphi 0, %s35
    %s17 = sphi 0, %s31
    %s18 = sphi 0, %s27
    %s19 = sphi 0, %s16
    %s20 = sphi 0, %s17
    %s21 = sphi 0, %s18
    %s22 = sphi 0, %s19
    %s23 = sphi 0, %s20
    %s24 = sphi 0, %s21
    %s42 = sphi 0, %s44
    %s45 = sphi 0, %s42
    %s46 = sphi 0, %s45
    %s62 = sphi 0, %s46
    %s72 = sphi 0, %s74
    %s75 = sphi 0, %s72
    %s76 = sphi 0, %s75
    %s92 = sphi 0, %s76
    %s102 = sphi 0, %s104
    %s105 = sphi 0, %s102
    %s106 = sphi 0, %s105
    %s122 = sphi 0, %s106
  $region4: #{trans_conv3d_for_g.6} parent=0 // loop_header_branch
    %12 = sbr.rel (%p10) target = $region8
  $region5: #{trans_conv3d_for_g.6} parent=0 // loop_body
    %s14 = ssub.s32 %s9, 1
    %s15 = ssub.s32 %s9, 2
    %s25 = sadd.s32 1, %s18
    %p26 = scmp.ge.s32.totalorder %s25, 1
    %s27 = scalar_select %p26, 0, %s25
    %s28 = sadd.s32 1, %s17
    %s29 = scalar_select %p26, %s28, %s17
    %p30 = scmp.ge.s32.totalorder %s29, 8
    %s31 = scalar_select %p30, 0, %s29
    %s32 = sadd.s32 1, %s16
    %s33 = scalar_select %p30, %s32, %s16
    %p34 = scmp.ge.s32.totalorder %s33, 2
    %s35 = scalar_select %p34, 0, %s33
    %s36 = ssub.s32 %s16, %s35
    %s37 = ssub.s32 %s17, %s31
    %s38 = sor.u32 %s36, %s37
    %s39 = ssub.s32 %s18, %s27
    %s40 = sor.u32 %s38, %s39
    %p41 = scmp.eq.s32.totalorder %s40, 0
    %s43 = sadd.s32 %s42, 1
    %s44 = scalar_select %p41, %s42, %s43
    %p47 = pneg %p41
    %p48 = scmp.eq.s32.totalorder %s9, 15
    %p49 = por %p47, %p48
    %p50 = scmp.ne.s32.totalorder %s42, %s45
    %p51 = scmp.eq.s32.totalorder %s9, 0
    %p52 = por %p50, %p51
    %p53 = scmp.ne.s32.totalorder %s42, %s45
    %p54 = scmp.eq.s32.totalorder %s14, 15
    %p55 = por %p53, %p54
    %p56 = scmp.ne.s32.totalorder %s45, %s46
    %p57 = scmp.eq.s32.totalorder %s14, 0
    %p58 = por %p56, %p57
    %p59 = scmp.ne.s32.totalorder %s45, %s46
    %p60 = scmp.eq.s32.totalorder %s15, 15
    %p61 = por %p59, %p60
    %p63 = scmp.ne.s32.totalorder %s46, %s62
    %p64 = scmp.eq.s32.totalorder %s15, 0
    %p65 = por %p63, %p64
    %s66 = ssub.s32 %s16, %s35
    %s67 = ssub.s32 %s17, %s31
    %s68 = sor.u32 %s66, %s67
    %s69 = ssub.s32 %s18, %s27
    %s70 = sor.u32 %s68, %s69
    %p71 = scmp.eq.s32.totalorder %s70, 0
    %s73 = sadd.s32 %s72, 1
    %s74 = scalar_select %p71, %s72, %s73
    %p77 = pneg %p71
    %p78 = scmp.eq.s32.totalorder %s9, 15
    %p79 = por %p77, %p78
    %p80 = scmp.ne.s32.totalorder %s72, %s75
    %p81 = scmp.eq.s32.totalorder %s9, 0
    %p82 = por %p80, %p81
    %p83 = scmp.ne.s32.totalorder %s72, %s75
    %p84 = scmp.eq.s32.totalorder %s14, 15
    %p85 = por %p83, %p84
    %p86 = scmp.ne.s32.totalorder %s75, %s76
    %p87 = scmp.eq.s32.totalorder %s14, 0
    %p88 = por %p86, %p87
    %p89 = scmp.ne.s32.totalorder %s75, %s76
    %p90 = scmp.eq.s32.totalorder %s15, 15
    %p91 = por %p89, %p90
    %p93 = scmp.ne.s32.totalorder %s76, %s92
    %p94 = scmp.eq.s32.totalorder %s15, 0
    %p95 = por %p93, %p94
    %s96 = ssub.s32 %s16, %s35
    %s97 = ssub.s32 %s17, %s31
    %s98 = sor.u32 %s96, %s97
    %s99 = ssub.s32 %s18, %s27
    %s100 = sor.u32 %s98, %s99
    %p101 = scmp.eq.s32.totalorder %s100, 0
    %s103 = sadd.s32 %s102, 1
    %s104 = scalar_select %p101, %s102, %s103
    %p107 = pneg %p101
    %p108 = scmp.eq.s32.totalorder %s9, 15
    %p109 = por %p107, %p108
    %p110 = scmp.ne.s32.totalorder %s102, %s105
    %p111 = scmp.eq.s32.totalorder %s9, 0
    %p112 = por %p110, %p111
    %p113 = scmp.ne.s32.totalorder %s102, %s105
    %p114 = scmp.eq.s32.totalorder %s14, 15
    %p115 = por %p113, %p114
    %p116 = scmp.ne.s32.totalorder %s105, %s106
    %p117 = scmp.eq.s32.totalorder %s14, 0
    %p118 = por %p116, %p117
    %p119 = scmp.ne.s32.totalorder %s105, %s106
    %p120 = scmp.eq.s32.totalorder %s15, 15
    %p121 = por %p119, %p120
    %p123 = scmp.ne.s32.totalorder %s106, %s122
    %p124 = scmp.eq.s32.totalorder %s15, 0
    %p125 = por %p123, %p124
    %p126 = scmp.le.s32.totalorder 1, %s9
    %p127 = scmp.lt.s32.totalorder %s9, 17
    %p128 = pnand %p126, %p127
    %p129 = pneg %p128
    // Predicated region
    $region9: #{trans_conv3d_for_g.6} parent=5 // pred_check
      _
    $region10: #{trans_conv3d_for_g.6} parent=5 // pred_check_branch
      %131 = sbr.rel (%p128) target = $region12
    $region11: #{trans_conv3d_for_g.6} parent=5 // pred_region
      %s132 = ssub.s32 %s9, 1
    $region12: #{trans_conv3d_for_g.6} parent=5 // pred_fallthru
      _
    %p133 = scmp.lt.s32.totalorder %s9, 16
    // Predicated region
    $region13: #{trans_conv3d_for_g.6} parent=5 // pred_check
      %p134 = pneg %p133
    $region14: #{trans_conv3d_for_g.6} parent=5 // pred_check_branch
      %136 = sbr.rel (%p134) target = $region16
    $region15: #{trans_conv3d_for_g.6} parent=5 // pred_region
      // Predicated region
      $region17: #{trans_conv3d_for_g.6} parent=15 // pred_check
        %p137 = pneg %p52
      $region18: #{trans_conv3d_for_g.6} parent=15 // pred_check_branch
        %139 = sbr.rel (%p137) target = $region20
      $region19: #{trans_conv3d_for_g.6} parent=15 // pred_region
        %p140 = scmp.lt.s32.totalorder %s16, 1
        %s141 = scalar_select %p140, %s16, 1
        %p142 = scmp.lt.s32.totalorder %s17, 7
        %s143 = scalar_select %p142, %s17, 7
        %p144 = scmp.lt.s32.totalorder %s18, 0
        %s145 = scalar_select %p144, %s18, 0
        %s146 = smul.addr %s143, 2
        %s147 = sadd.s32 %s145, %s146
        %s148 = smul.addr %s141, 16
        %s149 = sadd.s32 %s147, %s148
        %s150 = smul.addr %s149, 8
        %s151 = scalar_lea.vmem %s0, %s150
      $region20: #{trans_conv3d_for_g.6} parent=15 // pred_fallthru
        _
    $region16: #{trans_conv3d_for_g.6} parent=5 // pred_fallthru
      _
    %p152 = scmp.le.s32.totalorder 1, %s9
    %p153 = scmp.lt.s32.totalorder %s9, 17
    %p154 = pnand %p152, %p153
    %p155 = pneg %p154
    // Predicated region
    $region21: #{trans_conv3d_for_g.6} parent=5 // pred_check
      _
    $region22: #{trans_conv3d_for_g.6} parent=5 // pred_check_branch
      %157 = sbr.rel (%p154) target = $region24
    $region23: #{trans_conv3d_for_g.6} parent=5 // pred_region
      %s158 = ssub.s32 %s9, 1
      %p159 = scmp.lt.s32.totalorder %s19, 1
      %s160 = scalar_select %p159, %s19, 1
      %p161 = scmp.lt.s32.totalorder %s20, 7
      %s162 = scalar_select %p161, %s20, 7
      %p163 = scmp.lt.s32.totalorder %s21, 0
      %s164 = scalar_select %p163, %s21, 0
      %s165 = smul.addr %s162, 2
      %s166 = sadd.s32 %s164, %s165
      %s167 = smul.addr %s160, 16
      %s168 = sadd.s32 %s166, %s167
      %s169 = smul.addr %s168, 8
      %s170 = scalar_lea.vmem %s0, %s169
      %p171 = pneg %p58
      %p172 = pneg %p55
      %p173 = pneg %p88
      %p174 = pneg %p85
      %p175 = scmp.lt.s32.totalorder %s19, 1
      %s176 = scalar_select %p175, %s19, 1
      %p177 = scmp.lt.s32.totalorder %s20, 7
      %s178 = scalar_select %p177, %s20, 7
      %p179 = scmp.lt.s32.totalorder %s21, 0
      %s180 = scalar_select %p179, %s21, 0
      %s181 = smul.addr %s180, 2
      %s182 = smul.addr %s178, 2
      %s183 = sadd.s32 %s181, %s182
      %s184 = smul.addr %s176, 16
      %s185 = sadd.s32 %s183, %s184
      %s186 = smul.addr %s185, 8
      %s187 = scalar_lea.vmem %s1, %s186
      %p188 = pneg %p118
      %p189 = pneg %p115
      %p190 = scmp.lt.s32.totalorder %s19, 1
      %s191 = scalar_select %p190, %s19, 1
      %p192 = scmp.lt.s32.totalorder %s20, 7
      %s193 = scalar_select %p192, %s20, 7
      %p194 = scmp.lt.s32.totalorder %s21, 0
      %s195 = scalar_select %p194, %s21, 0
      %s196 = smul.addr %s195, 2
      %s197 = smul.addr %s193, 2
      %s198 = sadd.s32 %s196, %s197
      %s199 = smul.addr %s191, 16
      %s200 = sadd.s32 %s198, %s199
      %s201 = smul.addr %s200, 8
      %s202 = scalar_lea.vmem %s2, %s201
      %p203 = scmp.lt.s32.totalorder %s19, 1
      %s204 = scalar_select %p203, %s19, 1
      %p205 = scmp.lt.s32.totalorder %s20, 7
      %s206 = scalar_select %p205, %s20, 7
      %p207 = scmp.lt.s32.totalorder %s21, 0
      %s208 = scalar_select %p207, %s21, 0
      %s209 = smul.addr %s206, 2
      %s210 = sadd.s32 %s208, %s209
      %s211 = smul.addr %s204, 16
      %s212 = sadd.s32 %s210, %s211
      %s213 = smul.addr %s212, 8
      %s214 = scalar_lea.vmem %s0, %s213
      %p215 = scmp.lt.s32.totalorder %s19, 1
      %s216 = scalar_select %p215, %s19, 1
      %p217 = scmp.lt.s32.totalorder %s20, 7
      %s218 = scalar_select %p217, %s20, 7
      %p219 = scmp.lt.s32.totalorder %s21, 0
      %s220 = scalar_select %p219, %s21, 0
      %s221 = smul.addr %s220, 2
      %s222 = smul.addr %s218, 2
      %s223 = sadd.s32 %s221, %s222
      %s224 = smul.addr %s216, 16
      %s225 = sadd.s32 %s223, %s224
      %s226 = smul.addr %s225, 8
      %s227 = scalar_lea.vmem %s1, %s226
      %p228 = scmp.lt.s32.totalorder %s19, 1
      %s229 = scalar_select %p228, %s19, 1
      %p230 = scmp.lt.s32.totalorder %s20, 7
      %s231 = scalar_select %p230, %s20, 7
      %p232 = scmp.lt.s32.totalorder %s21, 0
      %s233 = scalar_select %p232, %s21, 0
      %s234 = smul.addr %s233, 2
      %s235 = smul.addr %s231, 2
      %s236 = sadd.s32 %s234, %s235
      %s237 = smul.addr %s229, 16
      %s238 = sadd.s32 %s236, %s237
      %s239 = smul.addr %s238, 8
      %s240 = scalar_lea.vmem %s2, %s239
      %v241 = vld [vmem:[%s214] sm:$0xff]
      %v242 = vld [vmem:[%s214 + $0x8] sm:$0xff]
      %vm243 = vcmask 523264
      %v244 = vsel %vm243, %v241, 0.0
      %245 = vadd.xlane.f32.xlu0 %v244
      %v246 = vpop.xlane.xlu0 %245
      %v247 = vsel %vm243, %v242, 0.0
      %248 = vadd.xlane.f32.xlu0 %v247
      %v249 = vpop.xlane.xlu0 %248
      %vm250 = vcmask 7168
      %251 = vst.msk [vmem:[%s227] sm:$0xff] %vm250, %v246
      %252 = vst.msk [vmem:[%s227 + $0x8] sm:$0xff] %vm250, %v249
      %v253 = vmul.f32 %v241, %v241
      %v254 = vmul.f32 %v242, %v242
      %v255 = vsel %vm243, %v253, 0.0
      %256 = vadd.xlane.f32.xlu0 %v255
      %v257 = vpop.xlane.xlu0 %256
      %v258 = vsel %vm243, %v254, 0.0
      %259 = vadd.xlane.f32.xlu0 %v258
      %v260 = vpop.xlane.xlu0 %259
      %261 = vst.msk [vmem:[%s240] sm:$0xff] %vm250, %v257
      %262 = vst.msk [vmem:[%s240 + $0x8] sm:$0xff] %vm250, %v260
      %p263 = scmp.lt.s32.totalorder %s19, 1
      %s264 = scalar_select %p263, %s19, 1
      %p265 = scmp.lt.s32.totalorder %s20, 7
      %s266 = scalar_select %p265, %s20, 7
      %p267 = scmp.lt.s32.totalorder %s21, 0
      %s268 = scalar_select %p267, %s21, 0
      %s269 = smul.addr %s268, 2
      %s270 = smul.addr %s266, 2
      %s271 = sadd.s32 %s269, %s270
      %s272 = smul.addr %s264, 16
      %s273 = sadd.s32 %s271, %s272
      %s274 = smul.addr %s273, 8
      %s275 = scalar_lea.vmem %s1, %s274
      %p276 = scmp.lt.s32.totalorder %s19, 1
      %s277 = scalar_select %p276, %s19, 1
      %p278 = scmp.lt.s32.totalorder %s20, 7
      %s279 = scalar_select %p278, %s20, 7
      %p280 = scmp.lt.s32.totalorder %s21, 0
      %s281 = scalar_select %p280, %s21, 0
      %s282 = smul.addr %s281, 2
      %s283 = smul.addr %s279, 2
      %s284 = sadd.s32 %s282, %s283
      %s285 = smul.addr %s277, 16
      %s286 = sadd.s32 %s284, %s285
      %s287 = smul.addr %s286, 8
      %s288 = scalar_lea.vmem %s2, %s287
      // Predicated region
      $region25: #{trans_conv3d_for_g.6} parent=23 // pred_check
        %p289 = pneg %p85
      $region26: #{trans_conv3d_for_g.6} parent=23 // pred_check_branch
        %291 = sbr.rel (%p289) target = $region28
      $region27: #{trans_conv3d_for_g.6} parent=23 // pred_region
        _
      $region28: #{trans_conv3d_for_g.6} parent=23 // pred_fallthru
        _
      // Predicated region
      $region29: #{trans_conv3d_for_g.6} parent=23 // pred_check
        %p292 = pneg %p115
      $region30: #{trans_conv3d_for_g.6} parent=23 // pred_check_branch
        %294 = sbr.rel (%p292) target = $region32
      $region31: #{trans_conv3d_for_g.6} parent=23 // pred_region
        _
      $region32: #{trans_conv3d_for_g.6} parent=23 // pred_fallthru
        _
    $region24: #{trans_conv3d_for_g.6} parent=5 // pred_fallthru
      _
    %p295 = scmp.le.s32.totalorder 2, %s9
    // Predicated region
    $region33: #{trans_conv3d_for_g.6} parent=5 // pred_check
      %p296 = pneg %p295
    $region34: #{trans_conv3d_for_g.6} parent=5 // pred_check_branch
      %298 = sbr.rel (%p296) target = $region36
    $region35: #{trans_conv3d_for_g.6} parent=5 // pred_region
      %s299 = ssub.s32 %s9, 2
      // Predicated region
      $region37: #{trans_conv3d_for_g.6} parent=35 // pred_check
        %p300 = pneg %p91
      $region38: #{trans_conv3d_for_g.6} parent=35 // pred_check_branch
        %302 = sbr.rel (%p300) target = $region40
      $region39: #{trans_conv3d_for_g.6} parent=35 // pred_region
        %p303 = scmp.lt.s32.totalorder %s22, 1
        %s304 = scalar_select %p303, %s22, 1
        %p305 = scmp.lt.s32.totalorder %s23, 7
        %s306 = scalar_select %p305, %s23, 7
        %p307 = scmp.lt.s32.totalorder %s24, 0
        %s308 = scalar_select %p307, %s24, 0
        %s309 = smul.addr %s308, 2
        %s310 = smul.addr %s306, 2
        %s311 = sadd.s32 %s309, %s310
        %s312 = smul.addr %s304, 16
        %s313 = sadd.s32 %s311, %s312
        %s314 = smul.addr %s313, 8
        %s315 = scalar_lea.vmem %s1, %s314
      $region40: #{trans_conv3d_for_g.6} parent=35 // pred_fallthru
        _
      // Predicated region
      $region41: #{trans_conv3d_for_g.6} parent=35 // pred_check
        %p316 = pneg %p121
      $region42: #{trans_conv3d_for_g.6} parent=35 // pred_check_branch
        %318 = sbr.rel (%p316) target = $region44
      $region43: #{trans_conv3d_for_g.6} parent=35 // pred_region
        %p319 = scmp.lt.s32.totalorder %s22, 1
        %s320 = scalar_select %p319, %s22, 1
        %p321 = scmp.lt.s32.totalorder %s23, 7
        %s322 = scalar_select %p321, %s23, 7
        %p323 = scmp.lt.s32.totalorder %s24, 0
        %s324 = scalar_select %p323, %s24, 0
        %s325 = smul.addr %s324, 2
        %s326 = smul.addr %s322, 2
        %s327 = sadd.s32 %s325, %s326
        %s328 = smul.addr %s320, 16
        %s329 = sadd.s32 %s327, %s328
        %s330 = smul.addr %s329, 8
        %s331 = scalar_lea.vmem %s2, %s330
      $region44: #{trans_conv3d_for_g.6} parent=35 // pred_fallthru
        _
    $region36: #{trans_conv3d_for_g.6} parent=5 // pred_fallthru
      _
  $region6: #{trans_conv3d_for_g.6} parent=0 // loop_footer
    %s13 = sadd.s32 1, %s9
  $region7: #{trans_conv3d_for_g.6} parent=0 // loop_footer_branch
    %8 = sbr.rel target = $region3
  $region8: #{trans_conv3d_for_g.6} parent=0 // loop_exit
    _

// kernel: trans_conv3d_for_g.7
$region0: #{trans_conv3d_for_g.7}
  #allocation0 [shape = 'u32[]', space=smem, size = 0x4, offset = 0x4, fixed_abs, tag = 'smem constant byte address 0x4 - core index']
  #allocation1 [shape = 'u32[144,128]{1,0:T(1,128)}', space=vmem, size = 0x12000, scoped, tag = 'internal scratch']
  %s0 = inlined_call_operand.vmem [shape: f32[2,8,16,64], index: 0, kind: input, shape index: {}]
  %s1 = inlined_call_operand.vmem [shape: f32[16,1], index: 1, kind: input, shape index: {}]
  %s2 = inlined_call_operand.vmem [shape: f32[16,1], index: 2, kind: input, shape index: {}]
  %s3 = inlined_call_operand.vmem [shape: f32[2,8,1,16,1], index: 3, kind: output, shape index: {}]
  %s4 = sld [smem:[#allocation0]]
  $region45: #{trans_conv3d_for_g.7} parent=0
    _
  %s6 = ssub.s32 1, %s4
  %s7 = scalar_select 0, %s6, %s4
  loop: start=0, step=1, limit=18
  $region2: #{trans_conv3d_for_g.7} parent=0 // loop_pre_header
    _
  $region3: #{trans_conv3d_for_g.7} parent=0 // loop_header
    %s9 = sphi 0, %s13
    %p10 = scmp.ge.s32.totalorder %s9, 18
    %s16 = sphi 0, %s35
    %s17 = sphi 0, %s31
    %s18 = sphi 0, %s27
    %s19 = sphi 0, %s16
    %s20 = sphi 0, %s17
    %s21 = sphi 0, %s18
    %s22 = sphi 0, %s19
    %s23 = sphi 0, %s20
    %s24 = sphi 0, %s21
    %s42 = sphi 0, %s44
    %s45 = sphi 0, %s42
    %s46 = sphi 0, %s45
    %s62 = sphi 0, %s46
    %s66 = sphi 0, %s66
    %s68 = sphi 0, %s66
    %s69 = sphi 0, %s68
    %s83 = sphi 0, %s69
    %s87 = sphi 0, %s87
    %s89 = sphi 0, %s87
    %s90 = sphi 0, %s89
    %s104 = sphi 0, %s90
    %s114 = sphi 0, %s116
    %s117 = sphi 0, %s114
    %s118 = sphi 0, %s117
    %s134 = sphi 0, %s118
  $region4: #{trans_conv3d_for_g.7} parent=0 // loop_header_branch
    %12 = sbr.rel (%p10) target = $region8
  $region5: #{trans_conv3d_for_g.7} parent=0 // loop_body
    %s14 = ssub.s32 %s9, 1
    %s15 = ssub.s32 %s9, 2
    %s25 = sadd.s32 1, %s18
    %p26 = scmp.ge.s32.totalorder %s25, 1
    %s27 = scalar_select %p26, 0, %s25
    %s28 = sadd.s32 1, %s17
    %s29 = scalar_select %p26, %s28, %s17
    %p30 = scmp.ge.s32.totalorder %s29, 8
    %s31 = scalar_select %p30, 0, %s29
    %s32 = sadd.s32 1, %s16
    %s33 = scalar_select %p30, %s32, %s16
    %p34 = scmp.ge.s32.totalorder %s33, 2
    %s35 = scalar_select %p34, 0, %s33
    %s36 = ssub.s32 %s16, %s35
    %s37 = ssub.s32 %s17, %s31
    %s38 = sor.u32 %s36, %s37
    %s39 = ssub.s32 %s18, %s27
    %s40 = sor.u32 %s38, %s39
    %p41 = scmp.eq.s32.totalorder %s40, 0
    %s43 = sadd.s32 %s42, 1
    %s44 = scalar_select %p41, %s42, %s43
    %p47 = pneg %p41
    %p48 = scmp.eq.s32.totalorder %s9, 15
    %p49 = por %p47, %p48
    %p50 = scmp.ne.s32.totalorder %s42, %s45
    %p51 = scmp.eq.s32.totalorder %s9, 0
    %p52 = por %p50, %p51
    %p53 = scmp.ne.s32.totalorder %s42, %s45
    %p54 = scmp.eq.s32.totalorder %s14, 15
    %p55 = por %p53, %p54
    %p56 = scmp.ne.s32.totalorder %s45, %s46
    %p57 = scmp.eq.s32.totalorder %s14, 0
    %p58 = por %p56, %p57
    %p59 = scmp.ne.s32.totalorder %s45, %s46
    %p60 = scmp.eq.s32.totalorder %s15, 15
    %p61 = por %p59, %p60
    %p63 = scmp.ne.s32.totalorder %s46, %s62
    %p64 = scmp.eq.s32.totalorder %s15, 0
    %p65 = por %p63, %p64
    %s67 = sadd.s32 %s66, 1
    %p70 = scmp.eq.s32.totalorder %s9, 15
    %p71 = scmp.ne.s32.totalorder %s66, %s68
    %p72 = scmp.eq.s32.totalorder %s9, 0
    %p73 = por %p71, %p72
    %p74 = scmp.ne.s32.totalorder %s66, %s68
    %p75 = scmp.eq.s32.totalorder %s14, 15
    %p76 = por %p74, %p75
    %p77 = scmp.ne.s32.totalorder %s68, %s69
    %p78 = scmp.eq.s32.totalorder %s14, 0
    %p79 = por %p77, %p78
    %p80 = scmp.ne.s32.totalorder %s68, %s69
    %p81 = scmp.eq.s32.totalorder %s15, 15
    %p82 = por %p80, %p81
    %p84 = scmp.ne.s32.totalorder %s69, %s83
    %p85 = scmp.eq.s32.totalorder %s15, 0
    %p86 = por %p84, %p85
    %s88 = sadd.s32 %s87, 1
    %p91 = scmp.eq.s32.totalorder %s9, 15
    %p92 = scmp.ne.s32.totalorder %s87, %s89
    %p93 = scmp.eq.s32.totalorder %s9, 0
    %p94 = por %p92, %p93
    %p95 = scmp.ne.s32.totalorder %s87, %s89
    %p96 = scmp.eq.s32.totalorder %s14, 15
    %p97 = por %p95, %p96
    %p98 = scmp.ne.s32.totalorder %s89, %s90
    %p99 = scmp.eq.s32.totalorder %s14, 0
    %p100 = por %p98, %p99
    %p101 = scmp.ne.s32.totalorder %s89, %s90
    %p102 = scmp.eq.s32.totalorder %s15, 15
    %p103 = por %p101, %p102
    %p105 = scmp.ne.s32.totalorder %s90, %s104
    %p106 = scmp.eq.s32.totalorder %s15, 0
    %p107 = por %p105, %p106
    %s108 = ssub.s32 %s16, %s35
    %s109 = ssub.s32 %s17, %s31
    %s110 = sor.u32 %s108, %s109
    %s111 = ssub.s32 %s18, %s27
    %s112 = sor.u32 %s110, %s111
    %p113 = scmp.eq.s32.totalorder %s112, 0
    %s115 = sadd.s32 %s114, 1
    %s116 = scalar_select %p113, %s114, %s115
    %p119 = pneg %p113
    %p120 = scmp.eq.s32.totalorder %s9, 15
    %p121 = por %p119, %p120
    %p122 = scmp.ne.s32.totalorder %s114, %s117
    %p123 = scmp.eq.s32.totalorder %s9, 0
    %p124 = por %p122, %p123
    %p125 = scmp.ne.s32.totalorder %s114, %s117
    %p126 = scmp.eq.s32.totalorder %s14, 15
    %p127 = por %p125, %p126
    %p128 = scmp.ne.s32.totalorder %s117, %s118
    %p129 = scmp.eq.s32.totalorder %s14, 0
    %p130 = por %p128, %p129
    %p131 = scmp.ne.s32.totalorder %s117, %s118
    %p132 = scmp.eq.s32.totalorder %s15, 15
    %p133 = por %p131, %p132
    %p135 = scmp.ne.s32.totalorder %s118, %s134
    %p136 = scmp.eq.s32.totalorder %s15, 0
    %p137 = por %p135, %p136
    %p138 = scmp.le.s32.totalorder 1, %s9
    %p139 = scmp.lt.s32.totalorder %s9, 17
    %p140 = pnand %p138, %p139
    %p141 = pneg %p140
    // Predicated region
    $region9: #{trans_conv3d_for_g.7} parent=5 // pred_check
      _
    $region10: #{trans_conv3d_for_g.7} parent=5 // pred_check_branch
      %143 = sbr.rel (%p140) target = $region12
    $region11: #{trans_conv3d_for_g.7} parent=5 // pred_region
      %s144 = ssub.s32 %s9, 1
      // Predicated region
      $region13: #{trans_conv3d_for_g.7} parent=11 // pred_check
        %p145 = pneg %p79
      $region14: #{trans_conv3d_for_g.7} parent=11 // pred_check_branch
        %147 = sbr.rel (%p145) target = $region16
      $region15: #{trans_conv3d_for_g.7} parent=11 // pred_region
        _
      $region16: #{trans_conv3d_for_g.7} parent=11 // pred_fallthru
        _
      // Predicated region
      $region17: #{trans_conv3d_for_g.7} parent=11 // pred_check
        %p148 = pneg %p100
      $region18: #{trans_conv3d_for_g.7} parent=11 // pred_check_branch
        %150 = sbr.rel (%p148) target = $region20
      $region19: #{trans_conv3d_for_g.7} parent=11 // pred_region
        _
      $region20: #{trans_conv3d_for_g.7} parent=11 // pred_fallthru
        _
    $region12: #{trans_conv3d_for_g.7} parent=5 // pred_fallthru
      _
    %p151 = scmp.lt.s32.totalorder %s9, 16
    // Predicated region
    $region21: #{trans_conv3d_for_g.7} parent=5 // pred_check
      %p152 = pneg %p151
    $region22: #{trans_conv3d_for_g.7} parent=5 // pred_check_branch
      %154 = sbr.rel (%p152) target = $region24
    $region23: #{trans_conv3d_for_g.7} parent=5 // pred_region
      // Predicated region
      $region25: #{trans_conv3d_for_g.7} parent=23 // pred_check
        %p155 = pneg %p52
      $region26: #{trans_conv3d_for_g.7} parent=23 // pred_check_branch
        %157 = sbr.rel (%p155) target = $region28
      $region27: #{trans_conv3d_for_g.7} parent=23 // pred_region
        %p158 = scmp.lt.s32.totalorder %s16, 1
        %s159 = scalar_select %p158, %s16, 1
        %p160 = scmp.lt.s32.totalorder %s17, 7
        %s161 = scalar_select %p160, %s17, 7
        %p162 = scmp.lt.s32.totalorder %s18, 0
        %s163 = scalar_select %p162, %s18, 0
        %s164 = smul.addr %s161, 2
        %s165 = sadd.s32 %s163, %s164
        %s166 = smul.addr %s159, 16
        %s167 = sadd.s32 %s165, %s166
        %s168 = smul.addr %s167, 8
        %s169 = scalar_lea.vmem %s0, %s168
      $region28: #{trans_conv3d_for_g.7} parent=23 // pred_fallthru
        _
    $region24: #{trans_conv3d_for_g.7} parent=5 // pred_fallthru
      _
    %p170 = scmp.le.s32.totalorder 1, %s9
    %p171 = scmp.lt.s32.totalorder %s9, 17
    %p172 = pnand %p170, %p171
    %p173 = pneg %p172
    // Predicated region
    $region29: #{trans_conv3d_for_g.7} parent=5 // pred_check
      _
    $region30: #{trans_conv3d_for_g.7} parent=5 // pred_check_branch
      %175 = sbr.rel (%p172) target = $region32
    $region31: #{trans_conv3d_for_g.7} parent=5 // pred_region
      %s176 = ssub.s32 %s9, 1
      %p177 = scmp.lt.s32.totalorder %s19, 1
      %s178 = scalar_select %p177, %s19, 1
      %p179 = scmp.lt.s32.totalorder %s20, 7
      %s180 = scalar_select %p179, %s20, 7
      %p181 = scmp.lt.s32.totalorder %s21, 0
      %s182 = scalar_select %p181, %s21, 0
      %s183 = smul.addr %s180, 2
      %s184 = sadd.s32 %s182, %s183
      %s185 = smul.addr %s178, 16
      %s186 = sadd.s32 %s184, %s185
      %s187 = smul.addr %s186, 8
      %s188 = scalar_lea.vmem %s0, %s187
      %p189 = pneg %p58
      %p190 = pneg %p55
      %p191 = pneg %p79
      %p192 = pneg %p76
      %p193 = pneg %p100
      %p194 = pneg %p97
      %p195 = pneg %p130
      %p196 = pneg %p127
      %p197 = scmp.lt.s32.totalorder %s19, 1
      %s198 = scalar_select %p197, %s19, 1
      %p199 = scmp.lt.s32.totalorder %s20, 7
      %s200 = scalar_select %p199, %s20, 7
      %p201 = scmp.lt.s32.totalorder %s21, 0
      %s202 = scalar_select %p201, %s21, 0
      %s203 = smul.addr %s202, 2
      %s204 = smul.addr %s200, 2
      %s205 = sadd.s32 %s203, %s204
      %s206 = smul.addr %s198, 16
      %s207 = sadd.s32 %s205, %s206
      %s208 = smul.addr %s207, 8
      %s209 = scalar_lea.vmem %s3, %s208
      %p210 = scmp.lt.s32.totalorder %s19, 1
      %s211 = scalar_select %p210, %s19, 1
      %p212 = scmp.lt.s32.totalorder %s20, 7
      %s213 = scalar_select %p212, %s20, 7
      %p214 = scmp.lt.s32.totalorder %s21, 0
      %s215 = scalar_select %p214, %s21, 0
      %s216 = smul.addr %s213, 2
      %s217 = sadd.s32 %s215, %s216
      %s218 = smul.addr %s211, 16
      %s219 = sadd.s32 %s217, %s218
      %s220 = smul.addr %s219, 8
      %s221 = scalar_lea.vmem %s0, %s220
      %p222 = scmp.lt.s32.totalorder %s19, 1
      %s223 = scalar_select %p222, %s19, 1
      %p224 = scmp.lt.s32.totalorder %s20, 7
      %s225 = scalar_select %p224, %s20, 7
      %p226 = scmp.lt.s32.totalorder %s21, 0
      %s227 = scalar_select %p226, %s21, 0
      %s228 = smul.addr %s227, 2
      %s229 = smul.addr %s225, 2
      %s230 = sadd.s32 %s228, %s229
      %s231 = smul.addr %s223, 16
      %s232 = sadd.s32 %s230, %s231
      %s233 = smul.addr %s232, 8
      %s234 = scalar_lea.vmem %s3, %s233
      %v235 = vld [vmem:[%s221] sm:$0xff]
      %v236 = vld [vmem:[%s221 + $0x8] sm:$0xff]
      %v237 = vld [vmem:[%s1] sm:$0xff]
      %v238 = vld [vmem:[%s1 + $0x8] sm:$0xff]
      %240 = vset.pattern.permute.xlu0 0
      %241 = vperm.xlu0 %240, %v237
      %v242 = vpop.permute.xlu0 %241
      %245 = vset.pattern.permute.xlu0 0
      %246 = vperm.xlu0 %245, %v238
      %v247 = vpop.permute.xlu0 %246
      %v249 = vmul.f32 %v235, %v242
      %v250 = vmul.f32 %v236, %v247
      %v251 = vld [vmem:[%s2] sm:$0xff]
      %v252 = vld [vmem:[%s2 + $0x8] sm:$0xff]
      %254 = vset.pattern.permute.xlu0 0
      %255 = vperm.xlu0 %254, %v251
      %v256 = vpop.permute.xlu0 %255
      %259 = vset.pattern.permute.xlu0 0
      %260 = vperm.xlu0 %259, %v252
      %v261 = vpop.permute.xlu0 %260
      %v263 = vadd.f32 %v249, %v256
      %v264 = vadd.f32 %v250, %v261
      %v265 = vmax.f32 %v263, 0.0
      %v266 = vmax.f32 %v264, 0.0
      %vm267 = vcmask 523264
      %v268 = vsel %vm267, %v265, 0.0
      %269 = vadd.xlane.f32.xlu0 %v268
      %v270 = vpop.xlane.xlu0 %269
      %v271 = vsel %vm267, %v266, 0.0
      %272 = vadd.xlane.f32.xlu0 %v271
      %v273 = vpop.xlane.xlu0 %272
      %vm274 = vcmask 7168
      %275 = vst.msk [vmem:[%s234] sm:$0xff] %vm274, %v270
      %276 = vst.msk [vmem:[%s234 + $0x8] sm:$0xff] %vm274, %v273
      %p277 = scmp.lt.s32.totalorder %s19, 1
      %s278 = scalar_select %p277, %s19, 1
      %p279 = scmp.lt.s32.totalorder %s20, 7
      %s280 = scalar_select %p279, %s20, 7
      %p281 = scmp.lt.s32.totalorder %s21, 0
      %s282 = scalar_select %p281, %s21, 0
      %s283 = smul.addr %s282, 2
      %s284 = smul.addr %s280, 2
      %s285 = sadd.s32 %s283, %s284
      %s286 = smul.addr %s278, 16
      %s287 = sadd.s32 %s285, %s286
      %s288 = smul.addr %s287, 8
      %s289 = scalar_lea.vmem %s3, %s288
      // Predicated region
      $region33: #{trans_conv3d_for_g.7} parent=31 // pred_check
        %p290 = pneg %p127
      $region34: #{trans_conv3d_for_g.7} parent=31 // pred_check_branch
        %292 = sbr.rel (%p290) target = $region36
      $region35: #{trans_conv3d_for_g.7} parent=31 // pred_region
        _
      $region36: #{trans_conv3d_for_g.7} parent=31 // pred_fallthru
        _
    $region32: #{trans_conv3d_for_g.7} parent=5 // pred_fallthru
      _
    %p293 = scmp.le.s32.totalorder 2, %s9
    // Predicated region
    $region37: #{trans_conv3d_for_g.7} parent=5 // pred_check
      %p294 = pneg %p293
    $region38: #{trans_conv3d_for_g.7} parent=5 // pred_check_branch
      %296 = sbr.rel (%p294) target = $region40
    $region39: #{trans_conv3d_for_g.7} parent=5 // pred_region
      %s297 = ssub.s32 %s9, 2
      // Predicated region
      $region41: #{trans_conv3d_for_g.7} parent=39 // pred_check
        %p298 = pneg %p133
      $region42: #{trans_conv3d_for_g.7} parent=39 // pred_check_branch
        %300 = sbr.rel (%p298) target = $region44
      $region43: #{trans_conv3d_for_g.7} parent=39 // pred_region
        %p301 = scmp.lt.s32.totalorder %s22, 1
        %s302 = scalar_select %p301, %s22, 1
        %p303 = scmp.lt.s32.totalorder %s23, 7
        %s304 = scalar_select %p303, %s23, 7
        %p305 = scmp.lt.s32.totalorder %s24, 0
        %s306 = scalar_select %p305, %s24, 0
        %s307 = smul.addr %s306, 2
        %s308 = smul.addr %s304, 2
        %s309 = sadd.s32 %s307, %s308
        %s310 = smul.addr %s302, 16
        %s311 = sadd.s32 %s309, %s310
        %s312 = smul.addr %s311, 8
        %s313 = scalar_lea.vmem %s3, %s312
      $region44: #{trans_conv3d_for_g.7} parent=39 // pred_fallthru
        _
    $region40: #{trans_conv3d_for_g.7} parent=5 // pred_fallthru
      _
  $region6: #{trans_conv3d_for_g.7} parent=0 // loop_footer
    %s13 = sadd.s32 1, %s9
  $region7: #{trans_conv3d_for_g.7} parent=0 // loop_footer_branch
    %8 = sbr.rel target = $region3
  $region8: #{trans_conv3d_for_g.7} parent=0 // loop_exit
    _

// kernel: trans_conv3d_for_g.8
$region0: #{trans_conv3d_for_g.8}
  #allocation0 [shape = 'u32[]', space=smem, size = 0x4, offset = 0x4, fixed_abs, tag = 'smem constant byte address 0x4 - core index']
  #allocation1 [shape = 'u32[144,128]{1,0:T(1,128)}', space=vmem, size = 0x12000, scoped, tag = 'internal scratch']
  #allocation2 [shape = 'f32[1,1]{1,0:T(1,128)S(1)}', space=vmem, size = 0x200, scoped, tag = 'scoped memory for trans_conv3d_for_g.8']
  %s0 = inlined_call_operand.vmem [shape: f32[2,16], index: 0, kind: input, shape index: {}]
  %s1 = inlined_call_operand.vmem [shape: f32[16,1], index: 1, kind: input, shape index: {}]
  %s2 = inlined_call_operand.<no memory space> [shape: f32[1,1], index: 2, kind: input, shape index: {}]
  %s3 = inlined_call_operand.vmem [shape: f32[1,16], index: 3, kind: input, shape index: {}]
  %s4 = inlined_call_operand.vmem [shape: f32[1,16], index: 4, kind: input, shape index: {}]
  %s5 = inlined_call_operand.vmem [shape: f32[2,16], index: 5, kind: output, shape index: {}]
  %s6 = sld [smem:[#allocation0]]
  $region30: #{trans_conv3d_for_g.8} parent=0
    _
  %s8 = ssub.s32 1, %s6
  %s9 = scalar_select 0, %s8, %s6
  %v10 = vstv %s2
  %11 = vst [vmem:[#allocation2] sm:$0x1] %v10
  // Predicated region
  $region2: #{trans_conv3d_for_g.8} parent=0 // pred_check
    _
  $region3: #{trans_conv3d_for_g.8} parent=0 // pred_check_branch
    %13 = sbr.rel (0) target = $region5
  $region4: #{trans_conv3d_for_g.8} parent=0 // pred_region
    _
  $region5: #{trans_conv3d_for_g.8} parent=0 // pred_fallthru
    _
  // Predicated region
  $region6: #{trans_conv3d_for_g.8} parent=0 // pred_check
    _
  $region7: #{trans_conv3d_for_g.8} parent=0 // pred_check_branch
    %15 = sbr.rel (0) target = $region9
  $region8: #{trans_conv3d_for_g.8} parent=0 // pred_region
    _
  $region9: #{trans_conv3d_for_g.8} parent=0 // pred_fallthru
    _
  // Predicated region
  $region10: #{trans_conv3d_for_g.8} parent=0 // pred_check
    _
  $region11: #{trans_conv3d_for_g.8} parent=0 // pred_check_branch
    %17 = sbr.rel (0) target = $region13
  $region12: #{trans_conv3d_for_g.8} parent=0 // pred_region
    _
  $region13: #{trans_conv3d_for_g.8} parent=0 // pred_fallthru
    _
  // Predicated region
  $region14: #{trans_conv3d_for_g.8} parent=0 // pred_check
    _
  $region15: #{trans_conv3d_for_g.8} parent=0 // pred_check_branch
    %19 = sbr.rel (0) target = $region17
  $region16: #{trans_conv3d_for_g.8} parent=0 // pred_region
    _
  $region17: #{trans_conv3d_for_g.8} parent=0 // pred_fallthru
    _
  // Predicated region
  $region18: #{trans_conv3d_for_g.8} parent=0 // pred_check
    _
  $region19: #{trans_conv3d_for_g.8} parent=0 // pred_check_branch
    %21 = sbr.rel (0) target = $region21
  $region20: #{trans_conv3d_for_g.8} parent=0 // pred_region
    _
  $region21: #{trans_conv3d_for_g.8} parent=0 // pred_fallthru
    _
  %v22 = vld [vmem:[%s0] sm:$0x3]
  %v23 = vld [vmem:[%s1] sm:$0xff]
  %v24 = vld [vmem:[%s1 + $0x8] sm:$0xff]
  %v25 = vld [vmem:[#allocation2] sm:$0x1]
  %v27 = vlaneseq
  %v28 = vshrl.u32 %v27, 7
  %v29 = vsub.s32 0, %v28
  %v30 = vrot.slane %v25, %v29
  %vm32 = vcmask 130048
  %v34 = vsel %vm32, %v22, 0
  %36 = vmatprep.subr.mxu0 0.0
  %37 = vmatpush1.msra.mxu0 %v23
  %38 = vmatprep.subr.mxu0 0.0
  %39 = vmatpush1.msra.mxu0 %v24
  %40 = vmatprep.subr.mxu0 0.0
  %41 = vmatpush1.msra.mxu0 0.0
  %42 = vmatprep.subr.mxu0 0.0
  %43 = vmatpush1.msra.mxu0 0.0
  %44 = vmatprep.subr.mxu0 0.0
  %45 = vmatpush1.msra.mxu0 0.0
  %46 = vmatprep.subr.mxu0 0.0
  %47 = vmatpush1.msra.mxu0 0.0
  %48 = vmatprep.subr.mxu0 0.0
  %49 = vmatpush1.msra.mxu0 0.0
  %50 = vmatprep.subr.mxu0 0.0
  %51 = vmatpush1.msra.mxu0 0.0
  %52 = vmatprep.subr.mxu0 0.0
  %53 = vmatpush1.msra.mxu0 0.0
  %54 = vmatprep.subr.mxu0 0.0
  %55 = vmatpush1.msra.mxu0 0.0
  %56 = vmatprep.subr.mxu0 0.0
  %57 = vmatpush1.msra.mxu0 0.0
  %58 = vmatprep.subr.mxu0 0.0
  %59 = vmatpush1.msra.mxu0 0.0
  %60 = vmatprep.subr.mxu0 0.0
  %61 = vmatpush1.msra.mxu0 0.0
  %62 = vmatprep.subr.mxu0 0.0
  %63 = vmatpush1.msra.mxu0 0.0
  %64 = vmatprep.subr.mxu0 0.0
  %65 = vmatpush1.msra.mxu0 0.0
  %66 = vmatprep.subr.mxu0 0.0
  %67 = vmatpush1.msra.mxu0 0.0
  %68 = vmatprep.subr.mxu0 0.0
  %69 = vmatpush1.msra.mxu0 0.0
  %70 = vmatprep.subr.mxu0 0.0
  %71 = vmatpush1.msra.mxu0 0.0
  %72 = vmatprep.subr.mxu0 0.0
  %73 = vmatpush1.msra.mxu0 0.0
  %74 = vmatprep.subr.mxu0 0.0
  %75 = vmatpush1.msra.mxu0 0.0
  %76 = vmatprep.subr.mxu0 0.0
  %77 = vmatpush1.msra.mxu0 0.0
  %78 = vmatprep.subr.mxu0 0.0
  %79 = vmatpush1.msra.mxu0 0.0
  %80 = vmatprep.subr.mxu0 0.0
  %81 = vmatpush1.msra.mxu0 0.0
  %82 = vmatprep.subr.mxu0 0.0
  %83 = vmatpush1.msra.mxu0 0.0
  %84 = vmatprep.subr.mxu0 0.0
  %85 = vmatpush1.msra.mxu0 0.0
  %86 = vmatprep.subr.mxu0 0.0
  %87 = vmatpush1.msra.mxu0 0.0
  %88 = vmatprep.subr.mxu0 0.0
  %89 = vmatpush1.msra.mxu0 0.0
  %90 = vmatprep.subr.mxu0 0.0
  %91 = vmatpush1.msra.mxu0 0.0
  %92 = vmatprep.subr.mxu0 0.0
  %93 = vmatpush1.msra.mxu0 0.0
  %94 = vmatprep.subr.mxu0 0.0
  %95 = vmatpush1.msra.mxu0 0.0
  %96 = vmatprep.subr.mxu0 0.0
  %97 = vmatpush1.msra.mxu0 0.0
  %98 = vmatprep.subr.mxu0 0.0
  %99 = vmatpush1.msra.mxu0 0.0
  %100 = vmatprep.mubr.f32.mxu0 0.0
  %101 = vmatmul.mubr.f32.gmra.mrb[0].mxu0 %v34
  %v102 = vpop.f32.mrb[0].mxu0
  %v103 = vadd.f32 %v30, %v102
  %v104 = vpop.f32.mrb[0].mxu0
  %105 = vdwg.mxu0
  %v106 = vmax.f32 %v103, 0.0
  %v107 = vld [vmem:[%s3] sm:$0x1]
  %v108 = vld [vmem:[%s4] sm:$0x1]
  %v110 = vlaneseq
  %v111 = vshrl.u32 %v110, 7
  %v112 = vsub.s32 0, %v111
  %v113 = vrot.slane %v108, %v112
  %vm115 = vcmask 7168
  %v117 = vsel %vm115, %v106, 0
  %vm119 = vcmask 1040384
  %v121 = vsel %vm119, %v107, 0
  %123 = vmatprep.subr.mxu0 0.0
  %124 = vmatpush1.msra.mxu0 %v121
  %125 = vmatprep.subr.mxu0 0.0
  %126 = vmatpush1.msra.mxu0 0.0
  %127 = vmatprep.subr.mxu0 0.0
  %128 = vmatpush1.msra.mxu0 0.0
  %129 = vmatprep.subr.mxu0 0.0
  %130 = vmatpush1.msra.mxu0 0.0
  %131 = vmatprep.subr.mxu0 0.0
  %132 = vmatpush1.msra.mxu0 0.0
  %133 = vmatprep.subr.mxu0 0.0
  %134 = vmatpush1.msra.mxu0 0.0
  %135 = vmatprep.subr.mxu0 0.0
  %136 = vmatpush1.msra.mxu0 0.0
  %137 = vmatprep.subr.mxu0 0.0
  %138 = vmatpush1.msra.mxu0 0.0
  %139 = vmatprep.subr.mxu0 0.0
  %140 = vmatpush1.msra.mxu0 0.0
  %141 = vmatprep.subr.mxu0 0.0
  %142 = vmatpush1.msra.mxu0 0.0
  %143 = vmatprep.subr.mxu0 0.0
  %144 = vmatpush1.msra.mxu0 0.0
  %145 = vmatprep.subr.mxu0 0.0
  %146 = vmatpush1.msra.mxu0 0.0
  %147 = vmatprep.subr.mxu0 0.0
  %148 = vmatpush1.msra.mxu0 0.0
  %149 = vmatprep.subr.mxu0 0.0
  %150 = vmatpush1.msra.mxu0 0.0
  %151 = vmatprep.subr.mxu0 0.0
  %152 = vmatpush1.msra.mxu0 0.0
  %153 = vmatprep.subr.mxu0 0.0
  %154 = vmatpush1.msra.mxu0 0.0
  %155 = vmatprep.subr.mxu0 0.0
  %156 = vmatpush1.msra.mxu0 0.0
  %157 = vmatprep.subr.mxu0 0.0
  %158 = vmatpush1.msra.mxu0 0.0
  %159 = vmatprep.subr.mxu0 0.0
  %160 = vmatpush1.msra.mxu0 0.0
  %161 = vmatprep.subr.mxu0 0.0
  %162 = vmatpush1.msra.mxu0 0.0
  %163 = vmatprep.subr.mxu0 0.0
  %164 = vmatpush1.msra.mxu0 0.0
  %165 = vmatprep.subr.mxu0 0.0
  %166 = vmatpush1.msra.mxu0 0.0
  %167 = vmatprep.subr.mxu0 0.0
  %168 = vmatpush1.msra.mxu0 0.0
  %169 = vmatprep.subr.mxu0 0.0
  %170 = vmatpush1.msra.mxu0 0.0
  %171 = vmatprep.subr.mxu0 0.0
  %172 = vmatpush1.msra.mxu0 0.0
  %173 = vmatprep.subr.mxu0 0.0
  %174 = vmatpush1.msra.mxu0 0.0
  %175 = vmatprep.subr.mxu0 0.0
  %176 = vmatpush1.msra.mxu0 0.0
  %177 = vmatprep.subr.mxu0 0.0
  %178 = vmatpush1.msra.mxu0 0.0
  %179 = vmatprep.subr.mxu0 0.0
  %180 = vmatpush1.msra.mxu0 0.0
  %181 = vmatprep.subr.mxu0 0.0
  %182 = vmatpush1.msra.mxu0 0.0
  %183 = vmatprep.subr.mxu0 0.0
  %184 = vmatpush1.msra.mxu0 0.0
  %185 = vmatprep.subr.mxu0 0.0
  %186 = vmatpush1.msra.mxu0 0.0
  %187 = vmatprep.mubr.f32.mxu0 0.0
  %188 = vmatmul.mubr.f32.gmra.mrb[0].mxu0 %v117
  %v189 = vpop.f32.mrb[0].mxu0
  %v190 = vadd.f32 %v113, %v189
  %v191 = vpop.f32.mrb[0].mxu0
  %192 = vdwg.mxu0
  %v193 = vsub.f32 0.0, %v190
  %v194 = vmul.f32 %v193, 1.442695
  %v195 = vpow.pop %v194
  %v196 = vadd.f32 %v195, 1.0
  %v197 = vrcp.pop %v196
  %v198 = vmul.f32 1.0, %v197
  %vm199 = vcmask 123904
  %200 = vst.msk [vmem:[%s5] sm:$0x3] %vm199, %v198
  // Predicated region
  $region22: #{trans_conv3d_for_g.8} parent=0 // pred_check
    _
  $region23: #{trans_conv3d_for_g.8} parent=0 // pred_check_branch
    %202 = sbr.rel (0) target = $region25
  $region24: #{trans_conv3d_for_g.8} parent=0 // pred_region
    _
  $region25: #{trans_conv3d_for_g.8} parent=0 // pred_fallthru
    _
  // Predicated region
  $region26: #{trans_conv3d_for_g.8} parent=0 // pred_check
    _
  $region27: #{trans_conv3d_for_g.8} parent=0 // pred_check_branch
    %204 = sbr.rel (0) target = $region29
  $region28: #{trans_conv3d_for_g.8} parent=0 // pred_region
    _
  $region29: #{trans_conv3d_for_g.8} parent=0 // pred_fallthru
    _

// kernel: trans_conv3d_for_g.9
$region0: #{trans_conv3d_for_g.9}
  #allocation0 [shape = 'u32[]', space=smem, size = 0x4, offset = 0x4, fixed_abs, tag = 'smem constant byte address 0x4 - core index']
  #allocation1 [shape = 'u32[144,128]{1,0:T(1,128)}', space=vmem, size = 0x12000, scoped, tag = 'internal scratch']
  %s0 = inlined_call_operand.vmem [shape: f32[2,8,16,64], index: 0, kind: input, shape index: {}]
  %s1 = inlined_call_operand.vmem [shape: f32[16,1], index: 1, kind: input, shape index: {}]
  %s2 = inlined_call_operand.vmem [shape: f32[16,1], index: 2, kind: input, shape index: {}]
  %s3 = inlined_call_operand.vmem [shape: f32[2,16,1], index: 3, kind: input, shape index: {}]
  %s4 = inlined_call_operand.vmem [shape: f32[2,8,16,64], index: 4, kind: output, shape index: {}]
  %s5 = sld [smem:[#allocation0]]
  $region49: #{trans_conv3d_for_g.9} parent=0
    _
  %s7 = ssub.s32 1, %s5
  %s8 = scalar_select 0, %s7, %s5
  loop: start=0, step=1, limit=18
  $region2: #{trans_conv3d_for_g.9} parent=0 // loop_pre_header
    _
  $region3: #{trans_conv3d_for_g.9} parent=0 // loop_header
    %s10 = sphi 0, %s14
    %p11 = scmp.ge.s32.totalorder %s10, 18
    %s17 = sphi 0, %s36
    %s18 = sphi 0, %s32
    %s19 = sphi 0, %s28
    %s20 = sphi 0, %s17
    %s21 = sphi 0, %s18
    %s22 = sphi 0, %s19
    %s23 = sphi 0, %s20
    %s24 = sphi 0, %s21
    %s25 = sphi 0, %s22
    %s43 = sphi 0, %s45
    %s46 = sphi 0, %s43
    %s47 = sphi 0, %s46
    %s63 = sphi 0, %s47
    %s67 = sphi 0, %s67
    %s69 = sphi 0, %s67
    %s70 = sphi 0, %s69
    %s84 = sphi 0, %s70
    %s88 = sphi 0, %s88
    %s90 = sphi 0, %s88
    %s91 = sphi 0, %s90
    %s105 = sphi 0, %s91
    %s111 = sphi 0, %s113
    %s114 = sphi 0, %s111
    %s115 = sphi 0, %s114
    %s131 = sphi 0, %s115
    %s141 = sphi 0, %s143
    %s144 = sphi 0, %s141
    %s145 = sphi 0, %s144
    %s161 = sphi 0, %s145
  $region4: #{trans_conv3d_for_g.9} parent=0 // loop_header_branch
    %13 = sbr.rel (%p11) target = $region8
  $region5: #{trans_conv3d_for_g.9} parent=0 // loop_body
    %s15 = ssub.s32 %s10, 1
    %s16 = ssub.s32 %s10, 2
    %s26 = sadd.s32 1, %s19
    %p27 = scmp.ge.s32.totalorder %s26, 1
    %s28 = scalar_select %p27, 0, %s26
    %s29 = sadd.s32 1, %s18
    %s30 = scalar_select %p27, %s29, %s18
    %p31 = scmp.ge.s32.totalorder %s30, 8
    %s32 = scalar_select %p31, 0, %s30
    %s33 = sadd.s32 1, %s17
    %s34 = scalar_select %p31, %s33, %s17
    %p35 = scmp.ge.s32.totalorder %s34, 2
    %s36 = scalar_select %p35, 0, %s34
    %s37 = ssub.s32 %s17, %s36
    %s38 = ssub.s32 %s18, %s32
    %s39 = sor.u32 %s37, %s38
    %s40 = ssub.s32 %s19, %s28
    %s41 = sor.u32 %s39, %s40
    %p42 = scmp.eq.s32.totalorder %s41, 0
    %s44 = sadd.s32 %s43, 1
    %s45 = scalar_select %p42, %s43, %s44
    %p48 = pneg %p42
    %p49 = scmp.eq.s32.totalorder %s10, 15
    %p50 = por %p48, %p49
    %p51 = scmp.ne.s32.totalorder %s43, %s46
    %p52 = scmp.eq.s32.totalorder %s10, 0
    %p53 = por %p51, %p52
    %p54 = scmp.ne.s32.totalorder %s43, %s46
    %p55 = scmp.eq.s32.totalorder %s15, 15
    %p56 = por %p54, %p55
    %p57 = scmp.ne.s32.totalorder %s46, %s47
    %p58 = scmp.eq.s32.totalorder %s15, 0
    %p59 = por %p57, %p58
    %p60 = scmp.ne.s32.totalorder %s46, %s47
    %p61 = scmp.eq.s32.totalorder %s16, 15
    %p62 = por %p60, %p61
    %p64 = scmp.ne.s32.totalorder %s47, %s63
    %p65 = scmp.eq.s32.totalorder %s16, 0
    %p66 = por %p64, %p65
    %s68 = sadd.s32 %s67, 1
    %p71 = scmp.eq.s32.totalorder %s10, 15
    %p72 = scmp.ne.s32.totalorder %s67, %s69
    %p73 = scmp.eq.s32.totalorder %s10, 0
    %p74 = por %p72, %p73
    %p75 = scmp.ne.s32.totalorder %s67, %s69
    %p76 = scmp.eq.s32.totalorder %s15, 15
    %p77 = por %p75, %p76
    %p78 = scmp.ne.s32.totalorder %s69, %s70
    %p79 = scmp.eq.s32.totalorder %s15, 0
    %p80 = por %p78, %p79
    %p81 = scmp.ne.s32.totalorder %s69, %s70
    %p82 = scmp.eq.s32.totalorder %s16, 15
    %p83 = por %p81, %p82
    %p85 = scmp.ne.s32.totalorder %s70, %s84
    %p86 = scmp.eq.s32.totalorder %s16, 0
    %p87 = por %p85, %p86
    %s89 = sadd.s32 %s88, 1
    %p92 = scmp.eq.s32.totalorder %s10, 15
    %p93 = scmp.ne.s32.totalorder %s88, %s90
    %p94 = scmp.eq.s32.totalorder %s10, 0
    %p95 = por %p93, %p94
    %p96 = scmp.ne.s32.totalorder %s88, %s90
    %p97 = scmp.eq.s32.totalorder %s15, 15
    %p98 = por %p96, %p97
    %p99 = scmp.ne.s32.totalorder %s90, %s91
    %p100 = scmp.eq.s32.totalorder %s15, 0
    %p101 = por %p99, %p100
    %p102 = scmp.ne.s32.totalorder %s90, %s91
    %p103 = scmp.eq.s32.totalorder %s16, 15
    %p104 = por %p102, %p103
    %p106 = scmp.ne.s32.totalorder %s91, %s105
    %p107 = scmp.eq.s32.totalorder %s16, 0
    %p108 = por %p106, %p107
    %s109 = ssub.s32 %s17, %s36
    %p110 = scmp.eq.s32.totalorder %s109, 0
    %s112 = sadd.s32 %s111, 1
    %s113 = scalar_select %p110, %s111, %s112
    %p116 = pneg %p110
    %p117 = scmp.eq.s32.totalorder %s10, 15
    %p118 = por %p116, %p117
    %p119 = scmp.ne.s32.totalorder %s111, %s114
    %p120 = scmp.eq.s32.totalorder %s10, 0
    %p121 = por %p119, %p120
    %p122 = scmp.ne.s32.totalorder %s111, %s114
    %p123 = scmp.eq.s32.totalorder %s15, 15
    %p124 = por %p122, %p123
    %p125 = scmp.ne.s32.totalorder %s114, %s115
    %p126 = scmp.eq.s32.totalorder %s15, 0
    %p127 = por %p125, %p126
    %p128 = scmp.ne.s32.totalorder %s114, %s115
    %p129 = scmp.eq.s32.totalorder %s16, 15
    %p130 = por %p128, %p129
    %p132 = scmp.ne.s32.totalorder %s115, %s131
    %p133 = scmp.eq.s32.totalorder %s16, 0
    %p134 = por %p132, %p133
    %s135 = ssub.s32 %s17, %s36
    %s136 = ssub.s32 %s18, %s32
    %s137 = sor.u32 %s135, %s136
    %s138 = ssub.s32 %s19, %s28
    %s139 = sor.u32 %s137, %s138
    %p140 = scmp.eq.s32.totalorder %s139, 0
    %s142 = sadd.s32 %s141, 1
    %s143 = scalar_select %p140, %s141, %s142
    %p146 = pneg %p140
    %p147 = scmp.eq.s32.totalorder %s10, 15
    %p148 = por %p146, %p147
    %p149 = scmp.ne.s32.totalorder %s141, %s144
    %p150 = scmp.eq.s32.totalorder %s10, 0
    %p151 = por %p149, %p150
    %p152 = scmp.ne.s32.totalorder %s141, %s144
    %p153 = scmp.eq.s32.totalorder %s15, 15
    %p154 = por %p152, %p153
    %p155 = scmp.ne.s32.totalorder %s144, %s145
    %p156 = scmp.eq.s32.totalorder %s15, 0
    %p157 = por %p155, %p156
    %p158 = scmp.ne.s32.totalorder %s144, %s145
    %p159 = scmp.eq.s32.totalorder %s16, 15
    %p160 = por %p158, %p159
    %p162 = scmp.ne.s32.totalorder %s145, %s161
    %p163 = scmp.eq.s32.totalorder %s16, 0
    %p164 = por %p162, %p163
    %p165 = scmp.le.s32.totalorder 1, %s10
    %p166 = scmp.lt.s32.totalorder %s10, 17
    %p167 = pnand %p165, %p166
    %p168 = pneg %p167
    // Predicated region
    $region9: #{trans_conv3d_for_g.9} parent=5 // pred_check
      _
    $region10: #{trans_conv3d_for_g.9} parent=5 // pred_check_branch
      %170 = sbr.rel (%p167) target = $region12
    $region11: #{trans_conv3d_for_g.9} parent=5 // pred_region
      %s171 = ssub.s32 %s10, 1
      // Predicated region
      $region13: #{trans_conv3d_for_g.9} parent=11 // pred_check
        %p172 = pneg %p80
      $region14: #{trans_conv3d_for_g.9} parent=11 // pred_check_branch
        %174 = sbr.rel (%p172) target = $region16
      $region15: #{trans_conv3d_for_g.9} parent=11 // pred_region
        _
      $region16: #{trans_conv3d_for_g.9} parent=11 // pred_fallthru
        _
      // Predicated region
      $region17: #{trans_conv3d_for_g.9} parent=11 // pred_check
        %p175 = pneg %p101
      $region18: #{trans_conv3d_for_g.9} parent=11 // pred_check_branch
        %177 = sbr.rel (%p175) target = $region20
      $region19: #{trans_conv3d_for_g.9} parent=11 // pred_region
        _
      $region20: #{trans_conv3d_for_g.9} parent=11 // pred_fallthru
        _
    $region12: #{trans_conv3d_for_g.9} parent=5 // pred_fallthru
      _
    %p178 = scmp.lt.s32.totalorder %s10, 16
    // Predicated region
    $region21: #{trans_conv3d_for_g.9} parent=5 // pred_check
      %p179 = pneg %p178
    $region22: #{trans_conv3d_for_g.9} parent=5 // pred_check_branch
      %181 = sbr.rel (%p179) target = $region24
    $region23: #{trans_conv3d_for_g.9} parent=5 // pred_region
      // Predicated region
      $region25: #{trans_conv3d_for_g.9} parent=23 // pred_check
        %p182 = pneg %p53
      $region26: #{trans_conv3d_for_g.9} parent=23 // pred_check_branch
        %184 = sbr.rel (%p182) target = $region28
      $region27: #{trans_conv3d_for_g.9} parent=23 // pred_region
        %p185 = scmp.lt.s32.totalorder %s17, 1
        %s186 = scalar_select %p185, %s17, 1
        %p187 = scmp.lt.s32.totalorder %s18, 7
        %s188 = scalar_select %p187, %s18, 7
        %p189 = scmp.lt.s32.totalorder %s19, 0
        %s190 = scalar_select %p189, %s19, 0
        %s191 = smul.addr %s188, 2
        %s192 = sadd.s32 %s190, %s191
        %s193 = smul.addr %s186, 16
        %s194 = sadd.s32 %s192, %s193
        %s195 = smul.addr %s194, 8
        %s196 = scalar_lea.vmem %s0, %s195
      $region28: #{trans_conv3d_for_g.9} parent=23 // pred_fallthru
        _
      // Predicated region
      $region29: #{trans_conv3d_for_g.9} parent=23 // pred_check
        %p197 = pneg %p121
      $region30: #{trans_conv3d_for_g.9} parent=23 // pred_check_branch
        %199 = sbr.rel (%p197) target = $region32
      $region31: #{trans_conv3d_for_g.9} parent=23 // pred_region
        %p200 = scmp.lt.s32.totalorder %s17, 1
        %s201 = scalar_select %p200, %s17, 1
        %s202 = smul.addr %s201, 2
        %s203 = smul.addr %s202, 8
        %s204 = scalar_lea.vmem %s3, %s203
      $region32: #{trans_conv3d_for_g.9} parent=23 // pred_fallthru
        _
    $region24: #{trans_conv3d_for_g.9} parent=5 // pred_fallthru
      _
    %p205 = scmp.le.s32.totalorder 1, %s10
    %p206 = scmp.lt.s32.totalorder %s10, 17
    %p207 = pnand %p205, %p206
    %p208 = pneg %p207
    // Predicated region
    $region33: #{trans_conv3d_for_g.9} parent=5 // pred_check
      _
    $region34: #{trans_conv3d_for_g.9} parent=5 // pred_check_branch
      %210 = sbr.rel (%p207) target = $region36
    $region35: #{trans_conv3d_for_g.9} parent=5 // pred_region
      %s211 = ssub.s32 %s10, 1
      %p212 = scmp.lt.s32.totalorder %s20, 1
      %s213 = scalar_select %p212, %s20, 1
      %p214 = scmp.lt.s32.totalorder %s21, 7
      %s215 = scalar_select %p214, %s21, 7
      %p216 = scmp.lt.s32.totalorder %s22, 0
      %s217 = scalar_select %p216, %s22, 0
      %s218 = smul.addr %s215, 2
      %s219 = sadd.s32 %s217, %s218
      %s220 = smul.addr %s213, 16
      %s221 = sadd.s32 %s219, %s220
      %s222 = smul.addr %s221, 8
      %s223 = scalar_lea.vmem %s0, %s222
      %p224 = pneg %p59
      %p225 = pneg %p56
      %p226 = pneg %p80
      %p227 = pneg %p77
      %p228 = pneg %p101
      %p229 = pneg %p98
      %p230 = scmp.lt.s32.totalorder %s20, 1
      %s231 = scalar_select %p230, %s20, 1
      %s232 = smul.addr %s231, 2
      %s233 = smul.addr %s232, 8
      %s234 = scalar_lea.vmem %s3, %s233
      %p235 = pneg %p127
      %p236 = pneg %p124
      %p237 = pneg %p157
      %p238 = pneg %p154
      %p239 = scmp.lt.s32.totalorder %s20, 1
      %s240 = scalar_select %p239, %s20, 1
      %p241 = scmp.lt.s32.totalorder %s21, 7
      %s242 = scalar_select %p241, %s21, 7
      %p243 = scmp.lt.s32.totalorder %s22, 0
      %s244 = scalar_select %p243, %s22, 0
      %s245 = smul.addr %s242, 2
      %s246 = sadd.s32 %s244, %s245
      %s247 = smul.addr %s240, 16
      %s248 = sadd.s32 %s246, %s247
      %s249 = smul.addr %s248, 8
      %s250 = scalar_lea.vmem %s4, %s249
      %p251 = scmp.lt.s32.totalorder %s20, 1
      %s252 = scalar_select %p251, %s20, 1
      %p253 = scmp.lt.s32.totalorder %s21, 7
      %s254 = scalar_select %p253, %s21, 7
      %p255 = scmp.lt.s32.totalorder %s22, 0
      %s256 = scalar_select %p255, %s22, 0
      %s257 = smul.addr %s254, 2
      %s258 = sadd.s32 %s256, %s257
      %s259 = smul.addr %s252, 16
      %s260 = sadd.s32 %s258, %s259
      %s261 = smul.addr %s260, 8
      %s262 = scalar_lea.vmem %s0, %s261
      %p263 = scmp.lt.s32.totalorder %s20, 1
      %s264 = scalar_select %p263, %s20, 1
      %s265 = smul.addr %s264, 2
      %s266 = smul.addr %s265, 8
      %s267 = scalar_lea.vmem %s3, %s266
      %p268 = scmp.lt.s32.totalorder %s20, 1
      %s269 = scalar_select %p268, %s20, 1
      %p270 = scmp.lt.s32.totalorder %s21, 7
      %s271 = scalar_select %p270, %s21, 7
      %p272 = scmp.lt.s32.totalorder %s22, 0
      %s273 = scalar_select %p272, %s22, 0
      %s274 = smul.addr %s271, 2
      %s275 = sadd.s32 %s273, %s274
      %s276 = smul.addr %s269, 16
      %s277 = sadd.s32 %s275, %s276
      %s278 = smul.addr %s277, 8
      %s279 = scalar_lea.vmem %s4, %s278
      %v280 = vld [vmem:[%s262] sm:$0xff]
      %v281 = vld [vmem:[%s262 + $0x8] sm:$0xff]
      %v282 = vld [vmem:[%s1] sm:$0xff]
      %v283 = vld [vmem:[%s1 + $0x8] sm:$0xff]
      %285 = vset.pattern.permute.xlu0 0
      %286 = vperm.xlu0 %285, %v282
      %v287 = vpop.permute.xlu0 %286
      %290 = vset.pattern.permute.xlu0 0
      %291 = vperm.xlu0 %290, %v283
      %v292 = vpop.permute.xlu0 %291
      %v294 = vmul.f32 %v280, %v287
      %v295 = vmul.f32 %v281, %v292
      %v296 = vld [vmem:[%s2] sm:$0xff]
      %v297 = vld [vmem:[%s2 + $0x8] sm:$0xff]
      %299 = vset.pattern.permute.xlu0 0
      %300 = vperm.xlu0 %299, %v296
      %v301 = vpop.permute.xlu0 %300
      %304 = vset.pattern.permute.xlu0 0
      %305 = vperm.xlu0 %304, %v297
      %v306 = vpop.permute.xlu0 %305
      %v308 = vadd.f32 %v294, %v301
      %v309 = vadd.f32 %v295, %v306
      %v310 = vmax.f32 %v308, 0.0
      %v311 = vmax.f32 %v309, 0.0
      %v312 = vld [vmem:[%s267] sm:$0xff]
      %v313 = vld [vmem:[%s267 + $0x8] sm:$0xff]
      %315 = vset.pattern.permute.xlu0 0
      %316 = vperm.xlu0 %315, %v312
      %v317 = vpop.permute.xlu0 %316
      %320 = vset.pattern.permute.xlu0 0
      %321 = vperm.xlu0 %320, %v313
      %v322 = vpop.permute.xlu0 %321
      %v324 = vmul.f32 %v310, %v317
      %v325 = vmul.f32 %v311, %v322
      %vm326 = vcmask 523264
      %327 = vst.msk [vmem:[%s279] sm:$0xff] %vm326, %v324
      %328 = vst.msk [vmem:[%s279 + $0x8] sm:$0xff] %vm326, %v325
      %p329 = scmp.lt.s32.totalorder %s20, 1
      %s330 = scalar_select %p329, %s20, 1
      %p331 = scmp.lt.s32.totalorder %s21, 7
      %s332 = scalar_select %p331, %s21, 7
      %p333 = scmp.lt.s32.totalorder %s22, 0
      %s334 = scalar_select %p333, %s22, 0
      %s335 = smul.addr %s332, 2
      %s336 = sadd.s32 %s334, %s335
      %s337 = smul.addr %s330, 16
      %s338 = sadd.s32 %s336, %s337
      %s339 = smul.addr %s338, 8
      %s340 = scalar_lea.vmem %s4, %s339
      // Predicated region
      $region37: #{trans_conv3d_for_g.9} parent=35 // pred_check
        %p341 = pneg %p154
      $region38: #{trans_conv3d_for_g.9} parent=35 // pred_check_branch
        %343 = sbr.rel (%p341) target = $region40
      $region39: #{trans_conv3d_for_g.9} parent=35 // pred_region
        _
      $region40: #{trans_conv3d_for_g.9} parent=35 // pred_fallthru
        _
    $region36: #{trans_conv3d_for_g.9} parent=5 // pred_fallthru
      _
    %p344 = scmp.le.s32.totalorder 2, %s10
    // Predicated region
    $region41: #{trans_conv3d_for_g.9} parent=5 // pred_check
      %p345 = pneg %p344
    $region42: #{trans_conv3d_for_g.9} parent=5 // pred_check_branch
      %347 = sbr.rel (%p345) target = $region44
    $region43: #{trans_conv3d_for_g.9} parent=5 // pred_region
      %s348 = ssub.s32 %s10, 2
      // Predicated region
      $region45: #{trans_conv3d_for_g.9} parent=43 // pred_check
        %p349 = pneg %p160
      $region46: #{trans_conv3d_for_g.9} parent=43 // pred_check_branch
        %351 = sbr.rel (%p349) target = $region48
      $region47: #{trans_conv3d_for_g.9} parent=43 // pred_region
        %p352 = scmp.lt.s32.totalorder %s23, 1
        %s353 = scalar_select %p352, %s23, 1
        %p354 = scmp.lt.s32.totalorder %s24, 7
        %s355 = scalar_select %p354, %s24, 7
        %p356 = scmp.lt.s32.totalorder %s25, 0
        %s357 = scalar_select %p356, %s25, 0
        %s358 = smul.addr %s355, 2
        %s359 = sadd.s32 %s357, %s358
        %s360 = smul.addr %s353, 16
        %s361 = sadd.s32 %s359, %s360
        %s362 = smul.addr %s361, 8
        %s363 = scalar_lea.vmem %s4, %s362
      $region48: #{trans_conv3d_for_g.9} parent=43 // pred_fallthru
        _
    $region44: #{trans_conv3d_for_g.9} parent=5 // pred_fallthru
      _
  $region6: #{trans_conv3d_for_g.9} parent=0 // loop_footer
    %s14 = sadd.s32 1, %s10
  $region7: #{trans_conv3d_for_g.9} parent=0 // loop_footer_branch
    %9 = sbr.rel target = $region3
  $region8: #{trans_conv3d_for_g.9} parent=0 // loop_exit
    _

// kernel: trans_conv3d_for_g.5
$region0: #{trans_conv3d_for_g.5}
  #allocation0 [shape = 'u32[]', space=smem, size = 0x4, offset = 0x4, fixed_abs, tag = 'smem constant byte address 0x4 - core index']
  #allocation1 [shape = 'u32[144,128]{1,0:T(1,128)}', space=vmem, size = 0x12000, scoped, tag = 'internal scratch']
  %s0 = inlined_call_operand.vmem [shape: f32[2,8,342], index: 0, kind: input, shape index: {}]
  %s1 = inlined_call_operand.vmem [shape: f32[8,8,16,8], index: 1, kind: input, shape index: {}]
  %s2 = inlined_call_operand.vmem [shape: f32[2,8,16,256], index: 2, kind: output, shape index: {}]
  %s3 = sld [smem:[#allocation0]]
  $region41: #{trans_conv3d_for_g.5} parent=0
    _
  %s5 = ssub.s32 1, %s3
  %s6 = scalar_select 0, %s5, %s3
  loop: start=0, step=1, limit=4
  $region2: #{trans_conv3d_for_g.5} parent=0 // loop_pre_header
    _
  $region3: #{trans_conv3d_for_g.5} parent=0 // loop_header
    %s8 = sphi 0, %s12
    %p9 = scmp.ge.s32.totalorder %s8, 4
    %s18 = sphi 0, %s20
    %s21 = sphi 0, %s18
    %s22 = sphi 0, %s21
    %s38 = sphi 0, %s22
    %s42 = sphi 0, %s42
    %s44 = sphi 0, %s42
    %s45 = sphi 0, %s44
    %s59 = sphi 0, %s45
    %s65 = sphi 0, %s67
    %s68 = sphi 0, %s65
    %s69 = sphi 0, %s68
    %s85 = sphi 0, %s69
  $region4: #{trans_conv3d_for_g.5} parent=0 // loop_header_branch
    %11 = sbr.rel (%p9) target = $region8
  $region5: #{trans_conv3d_for_g.5} parent=0 // loop_body
    %s13 = ssub.s32 %s8, 1
    %s14 = ssub.s32 %s8, 2
    %s15 = sadd.s32 %s8, 1
    %s16 = ssub.s32 %s8, %s15
    %p17 = scmp.eq.s32.totalorder %s16, 0
    %s19 = sadd.s32 %s18, 1
    %s20 = scalar_select %p17, %s18, %s19
    %p23 = pneg %p17
    %p24 = scmp.eq.s32.totalorder %s8, 1
    %p25 = por %p23, %p24
    %p26 = scmp.ne.s32.totalorder %s18, %s21
    %p27 = scmp.eq.s32.totalorder %s8, 0
    %p28 = por %p26, %p27
    %p29 = scmp.ne.s32.totalorder %s18, %s21
    %p30 = scmp.eq.s32.totalorder %s13, 1
    %p31 = por %p29, %p30
    %p32 = scmp.ne.s32.totalorder %s21, %s22
    %p33 = scmp.eq.s32.totalorder %s13, 0
    %p34 = por %p32, %p33
    %p35 = scmp.ne.s32.totalorder %s21, %s22
    %p36 = scmp.eq.s32.totalorder %s14, 1
    %p37 = por %p35, %p36
    %p39 = scmp.ne.s32.totalorder %s22, %s38
    %p40 = scmp.eq.s32.totalorder %s14, 0
    %p41 = por %p39, %p40
    %s43 = sadd.s32 %s42, 1
    %p46 = scmp.eq.s32.totalorder %s8, 1
    %p47 = scmp.ne.s32.totalorder %s42, %s44
    %p48 = scmp.eq.s32.totalorder %s8, 0
    %p49 = por %p47, %p48
    %p50 = scmp.ne.s32.totalorder %s42, %s44
    %p51 = scmp.eq.s32.totalorder %s13, 1
    %p52 = por %p50, %p51
    %p53 = scmp.ne.s32.totalorder %s44, %s45
    %p54 = scmp.eq.s32.totalorder %s13, 0
    %p55 = por %p53, %p54
    %p56 = scmp.ne.s32.totalorder %s44, %s45
    %p57 = scmp.eq.s32.totalorder %s14, 1
    %p58 = por %p56, %p57
    %p60 = scmp.ne.s32.totalorder %s45, %s59
    %p61 = scmp.eq.s32.totalorder %s14, 0
    %p62 = por %p60, %p61
    %s63 = ssub.s32 %s8, %s15
    %p64 = scmp.eq.s32.totalorder %s63, 0
    %s66 = sadd.s32 %s65, 1
    %s67 = scalar_select %p64, %s65, %s66
    %p70 = pneg %p64
    %p71 = scmp.eq.s32.totalorder %s8, 1
    %p72 = por %p70, %p71
    %p73 = scmp.ne.s32.totalorder %s65, %s68
    %p74 = scmp.eq.s32.totalorder %s8, 0
    %p75 = por %p73, %p74
    %p76 = scmp.ne.s32.totalorder %s65, %s68
    %p77 = scmp.eq.s32.totalorder %s13, 1
    %p78 = por %p76, %p77
    %p79 = scmp.ne.s32.totalorder %s68, %s69
    %p80 = scmp.eq.s32.totalorder %s13, 0
    %p81 = por %p79, %p80
    %p82 = scmp.ne.s32.totalorder %s68, %s69
    %p83 = scmp.eq.s32.totalorder %s14, 1
    %p84 = por %p82, %p83
    %p86 = scmp.ne.s32.totalorder %s69, %s85
    %p87 = scmp.eq.s32.totalorder %s14, 0
    %p88 = por %p86, %p87
    %p89 = scmp.le.s32.totalorder 1, %s8
    %p90 = scmp.lt.s32.totalorder %s8, 3
    %p91 = pnand %p89, %p90
    %p92 = pneg %p91
    // Predicated region
    $region9: #{trans_conv3d_for_g.5} parent=5 // pred_check
      _
    $region10: #{trans_conv3d_for_g.5} parent=5 // pred_check_branch
      %94 = sbr.rel (%p91) target = $region12
    $region11: #{trans_conv3d_for_g.5} parent=5 // pred_region
      %s95 = ssub.s32 %s8, 1
      // Predicated region
      $region13: #{trans_conv3d_for_g.5} parent=11 // pred_check
        %p96 = pneg %p55
      $region14: #{trans_conv3d_for_g.5} parent=11 // pred_check_branch
        %98 = sbr.rel (%p96) target = $region16
      $region15: #{trans_conv3d_for_g.5} parent=11 // pred_region
        _
      $region16: #{trans_conv3d_for_g.5} parent=11 // pred_fallthru
        _
    $region12: #{trans_conv3d_for_g.5} parent=5 // pred_fallthru
      _
    %p99 = scmp.lt.s32.totalorder %s8, 2
    // Predicated region
    $region17: #{trans_conv3d_for_g.5} parent=5 // pred_check
      %p100 = pneg %p99
    $region18: #{trans_conv3d_for_g.5} parent=5 // pred_check_branch
      %102 = sbr.rel (%p100) target = $region20
    $region19: #{trans_conv3d_for_g.5} parent=5 // pred_region
      // Predicated region
      $region21: #{trans_conv3d_for_g.5} parent=19 // pred_check
        %p103 = pneg %p28
      $region22: #{trans_conv3d_for_g.5} parent=19 // pred_check_branch
        %105 = sbr.rel (%p103) target = $region24
      $region23: #{trans_conv3d_for_g.5} parent=19 // pred_region
        %p106 = scmp.lt.s32.totalorder %s8, 1
        %s107 = scalar_select %p106, %s8, 1
        %s108 = smul.addr %s107, 3
        %s109 = smul.addr %s108, 8
        %s110 = scalar_lea.vmem %s0, %s109
      $region24: #{trans_conv3d_for_g.5} parent=19 // pred_fallthru
        _
    $region20: #{trans_conv3d_for_g.5} parent=5 // pred_fallthru
      _
    %p111 = scmp.le.s32.totalorder 1, %s8
    %p112 = scmp.lt.s32.totalorder %s8, 3
    %p113 = pnand %p111, %p112
    %p114 = pneg %p113
    // Predicated region
    $region25: #{trans_conv3d_for_g.5} parent=5 // pred_check
      _
    $region26: #{trans_conv3d_for_g.5} parent=5 // pred_check_branch
      %116 = sbr.rel (%p113) target = $region28
    $region27: #{trans_conv3d_for_g.5} parent=5 // pred_region
      %s117 = ssub.s32 %s8, 1
      %p118 = scmp.lt.s32.totalorder %s13, 1
      %s119 = scalar_select %p118, %s13, 1
      %s120 = smul.addr %s119, 3
      %s121 = smul.addr %s120, 8
      %s122 = scalar_lea.vmem %s0, %s121
      %p123 = pneg %p34
      %p124 = pneg %p31
      %p125 = pneg %p55
      %p126 = pneg %p52
      %p127 = pneg %p81
      %p128 = pneg %p78
      %p129 = scmp.lt.s32.totalorder %s13, 1
      %s130 = scalar_select %p129, %s13, 1
      %s131 = smul.addr %s130, 32
      %s132 = smul.addr %s131, 8
      %s133 = scalar_lea.vmem %s2, %s132
      %p134 = scmp.lt.s32.totalorder %s13, 1
      %s135 = scalar_select %p134, %s13, 1
      %s136 = smul.addr %s135, 3
      %s137 = smul.addr %s136, 8
      %s138 = scalar_lea.vmem %s0, %s137
      %p139 = scmp.lt.s32.totalorder %s13, 1
      %s140 = scalar_select %p139, %s13, 1
      %s141 = smul.addr %s140, 32
      %s142 = smul.addr %s141, 8
      %s143 = scalar_lea.vmem %s2, %s142
      %v144 = vld [vmem:[%s138] sm:$0xff]
      %v145 = vld [vmem:[%s138 + $0x8] sm:$0xff]
      %v146 = vld [vmem:[%s138 + $0x10] sm:$0xff]
      %v147 = vld [vmem:[%s1] sm:$0xff]
      %v148 = vld [vmem:[%s1 + $0x8] sm:$0xff]
      %s149 = scalar_lea.vmem %s1, 16
      %v150 = vld [vmem:[%s149] sm:$0xff]
      %v151 = vld [vmem:[%s149 + $0x8] sm:$0xff]
      %155 = vrot.lane.b32.xlu0 %v144, 86
      %v156 = vpop.permute.xlu0 %155
      %157 = vrot.lane.b32.xlu0 %v145, 86
      %v158 = vpop.permute.xlu0 %157
      %159 = vrot.lane.b32.xlu0 %v146, 86
      %v160 = vpop.permute.xlu0 %159
      %vm161 = vcmask 703488
      %v162 = vsel %vm161, %v156, %v158
      %v163 = vsel %vm161, %v158, %v160
      %vm166 = vcmask 64512
      %v168 = vsel %vm166, %v150, 0
      %v171 = vsel %vm166, %v151, 0
      %173 = vmatprep.subr.mxu0 %v163
      %174 = vmatpush1.msra.mxu0 %v162
      %175 = vmatprep.subr.mxu0 0.0
      %176 = vmatpush1.msra.mxu0 0.0
      %177 = vmatprep.subr.mxu0 0.0
      %178 = vmatpush1.msra.mxu0 0.0
      %179 = vmatprep.subr.mxu0 0.0
      %180 = vmatpush1.msra.mxu0 0.0
      %181 = vmatprep.subr.mxu0 0.0
      %182 = vmatpush1.msra.mxu0 0.0
      %183 = vmatprep.subr.mxu0 0.0
      %184 = vmatpush1.msra.mxu0 0.0
      %185 = vmatprep.subr.mxu0 0.0
      %186 = vmatpush1.msra.mxu0 0.0
      %187 = vmatprep.subr.mxu0 0.0
      %188 = vmatpush1.msra.mxu0 0.0
      %189 = vmatprep.subr.mxu0 0.0
      %190 = vmatpush1.msra.mxu0 0.0
      %191 = vmatprep.subr.mxu0 0.0
      %192 = vmatpush1.msra.mxu0 0.0
      %193 = vmatprep.subr.mxu0 0.0
      %194 = vmatpush1.msra.mxu0 0.0
      %195 = vmatprep.subr.mxu0 0.0
      %196 = vmatpush1.msra.mxu0 0.0
      %197 = vmatprep.subr.mxu0 0.0
      %198 = vmatpush1.msra.mxu0 0.0
      %199 = vmatprep.subr.mxu0 0.0
      %200 = vmatpush1.msra.mxu0 0.0
      %201 = vmatprep.subr.mxu0 0.0
      %202 = vmatpush1.msra.mxu0 0.0
      %203 = vmatprep.subr.mxu0 0.0
      %204 = vmatpush1.msra.mxu0 0.0
      %205 = vmatprep.subr.mxu0 0.0
      %206 = vmatpush1.msra.mxu0 0.0
      %207 = vmatprep.subr.mxu0 0.0
      %208 = vmatpush1.msra.mxu0 0.0
      %209 = vmatprep.subr.mxu0 0.0
      %210 = vmatpush1.msra.mxu0 0.0
      %211 = vmatprep.subr.mxu0 0.0
      %212 = vmatpush1.msra.mxu0 0.0
      %213 = vmatprep.subr.mxu0 0.0
      %214 = vmatpush1.msra.mxu0 0.0
      %215 = vmatprep.subr.mxu0 0.0
      %216 = vmatpush1.msra.mxu0 0.0
      %217 = vmatprep.subr.mxu0 0.0
      %218 = vmatpush1.msra.mxu0 0.0
      %219 = vmatprep.subr.mxu0 0.0
      %220 = vmatpush1.msra.mxu0 0.0
      %221 = vmatprep.subr.mxu0 0.0
      %222 = vmatpush1.msra.mxu0 0.0
      %223 = vmatprep.subr.mxu0 0.0
      %224 = vmatpush1.msra.mxu0 0.0
      %225 = vmatprep.subr.mxu0 0.0
      %226 = vmatpush1.msra.mxu0 0.0
      %227 = vmatprep.subr.mxu0 0.0
      %228 = vmatpush1.msra.mxu0 0.0
      %229 = vmatprep.subr.mxu0 0.0
      %230 = vmatpush1.msra.mxu0 0.0
      %231 = vmatprep.subr.mxu0 0.0
      %232 = vmatpush1.msra.mxu0 0.0
      %233 = vmatprep.subr.mxu0 0.0
      %234 = vmatpush1.msra.mxu0 0.0
      %235 = vmatprep.subr.mxu0 0.0
      %236 = vmatpush1.msra.mxu0 0.0
      %237 = vmatprep.mubr.f32.mxu0 0.0
      %238 = vmatmul.mubr.f32.gmra.mrb[0].mxu0 %v168
      %v239 = vpop.f32.mrb[0].mxu0
      %v240 = vadd.f32 0.0, %v239
      %v241 = vpop.f32.mrb[0].mxu0
      %v242 = vadd.f32 0.0, %v241
      %243 = vmatprep.mubr.f32.mxu0 0.0
      %244 = vmatmul.mubr.f32.gmra.mrb[0].mxu0 %v171
      %v245 = vpop.f32.mrb[0].mxu0
      %v246 = vadd.f32 0.0, %v245
      %v247 = vpop.f32.mrb[0].mxu0
      %v248 = vadd.f32 0.0, %v247
      %249 = vdwg.mxu0
      %250 = vrot.lane.b32.xlu0 %v144, 85
      %v251 = vpop.permute.xlu0 %250
      %252 = vrot.lane.b32.xlu0 %v145, 85
      %v253 = vpop.permute.xlu0 %252
      %254 = vrot.lane.b32.xlu0 %v146, 85
      %v255 = vpop.permute.xlu0 %254
      %vm256 = vcmask 695296
      %v257 = vsel %vm256, %v251, %v253
      %v258 = vsel %vm256, %v253, %v255
      %v262 = vsel %vm166, %v147, 0
      %v265 = vsel %vm166, %v148, 0
      %267 = vmatprep.subr.mxu0 %v258
      %268 = vmatpush1.msra.mxu0 %v257
      %269 = vmatprep.subr.mxu0 0.0
      %270 = vmatpush1.msra.mxu0 0.0
      %271 = vmatprep.subr.mxu0 0.0
      %272 = vmatpush1.msra.mxu0 0.0
      %273 = vmatprep.subr.mxu0 0.0
      %274 = vmatpush1.msra.mxu0 0.0
      %275 = vmatprep.subr.mxu0 0.0
      %276 = vmatpush1.msra.mxu0 0.0
      %277 = vmatprep.subr.mxu0 0.0
      %278 = vmatpush1.msra.mxu0 0.0
      %279 = vmatprep.subr.mxu0 0.0
      %280 = vmatpush1.msra.mxu0 0.0
      %281 = vmatprep.subr.mxu0 0.0
      %282 = vmatpush1.msra.mxu0 0.0
      %283 = vmatprep.subr.mxu0 0.0
      %284 = vmatpush1.msra.mxu0 0.0
      %285 = vmatprep.subr.mxu0 0.0
      %286 = vmatpush1.msra.mxu0 0.0
      %287 = vmatprep.subr.mxu0 0.0
      %288 = vmatpush1.msra.mxu0 0.0
      %289 = vmatprep.subr.mxu0 0.0
      %290 = vmatpush1.msra.mxu0 0.0
      %291 = vmatprep.subr.mxu0 0.0
      %292 = vmatpush1.msra.mxu0 0.0
      %293 = vmatprep.subr.mxu0 0.0
      %294 = vmatpush1.msra.mxu0 0.0
      %295 = vmatprep.subr.mxu0 0.0
      %296 = vmatpush1.msra.mxu0 0.0
      %297 = vmatprep.subr.mxu0 0.0
      %298 = vmatpush1.msra.mxu0 0.0
      %299 = vmatprep.subr.mxu0 0.0
      %300 = vmatpush1.msra.mxu0 0.0
      %301 = vmatprep.subr.mxu0 0.0
      %302 = vmatpush1.msra.mxu0 0.0
      %303 = vmatprep.subr.mxu0 0.0
      %304 = vmatpush1.msra.mxu0 0.0
      %305 = vmatprep.subr.mxu0 0.0
      %306 = vmatpush1.msra.mxu0 0.0
      %307 = vmatprep.subr.mxu0 0.0
      %308 = vmatpush1.msra.mxu0 0.0
      %309 = vmatprep.subr.mxu0 0.0
      %310 = vmatpush1.msra.mxu0 0.0
      %311 = vmatprep.subr.mxu0 0.0
      %312 = vmatpush1.msra.mxu0 0.0
      %313 = vmatprep.subr.mxu0 0.0
      %314 = vmatpush1.msra.mxu0 0.0
      %315 = vmatprep.subr.mxu0 0.0
      %316 = vmatpush1.msra.mxu0 0.0
      %317 = vmatprep.subr.mxu0 0.0
      %318 = vmatpush1.msra.mxu0 0.0
      %319 = vmatprep.subr.mxu0 0.0
      %320 = vmatpush1.msra.mxu0 0.0
      %321 = vmatprep.subr.mxu0 0.0
      %322 = vmatpush1.msra.mxu0 0.0
      %323 = vmatprep.subr.mxu0 0.0
      %324 = vmatpush1.msra.mxu0 0.0
      %325 = vmatprep.subr.mxu0 0.0
      %326 = vmatpush1.msra.mxu0 0.0
      %327 = vmatprep.subr.mxu0 0.0
      %328 = vmatpush1.msra.mxu0 0.0
      %329 = vmatprep.subr.mxu0 0.0
      %330 = vmatpush1.msra.mxu0 0.0
      %331 = vmatprep.mubr.f32.mxu0 0.0
      %332 = vmatmul.mubr.f32.gmra.mrb[0].mxu0 %v262
      %v333 = vpop.f32.mrb[0].mxu0
      %v334 = vadd.f32 %v240, %v333
      %v335 = vpop.f32.mrb[0].mxu0
      %v336 = vadd.f32 %v242, %v335
      %337 = vmatprep.mubr.f32.mxu0 0.0
      %338 = vmatmul.mubr.f32.gmra.mrb[0].mxu0 %v265
      %v339 = vpop.f32.mrb[0].mxu0
      %v340 = vadd.f32 %v246, %v339
      %v341 = vpop.f32.mrb[0].mxu0
      %v342 = vadd.f32 %v248, %v341
      %343 = vdwg.mxu0
      %s344 = scalar_lea.vmem %s1, 32
      %v345 = vld [vmem:[%s344] sm:$0xff]
      %v346 = vld [vmem:[%s344 + $0x8] sm:$0xff]
      %347 = vrot.lane.b32.xlu0 %v144, 91
      %v348 = vpop.permute.xlu0 %347
      %349 = vrot.lane.b32.xlu0 %v145, 91
      %v350 = vpop.permute.xlu0 %349
      %351 = vrot.lane.b32.xlu0 %v146, 91
      %v352 = vpop.permute.xlu0 %351
      %vm353 = vcmask 744448
      %v354 = vsel %vm353, %v348, %v350
      %v355 = vsel %vm353, %v350, %v352
      %v359 = vsel %vm166, %v345, 0
      %v362 = vsel %vm166, %v346, 0
      %364 = vmatprep.subr.mxu0 %v355
      %365 = vmatpush1.msra.mxu0 %v354
      %366 = vmatprep.subr.mxu0 0.0
      %367 = vmatpush1.msra.mxu0 0.0
      %368 = vmatprep.subr.mxu0 0.0
      %369 = vmatpush1.msra.mxu0 0.0
      %370 = vmatprep.subr.mxu0 0.0
      %371 = vmatpush1.msra.mxu0 0.0
      %372 = vmatprep.subr.mxu0 0.0
      %373 = vmatpush1.msra.mxu0 0.0
      %374 = vmatprep.subr.mxu0 0.0
      %375 = vmatpush1.msra.mxu0 0.0
      %376 = vmatprep.subr.mxu0 0.0
      %377 = vmatpush1.msra.mxu0 0.0
      %378 = vmatprep.subr.mxu0 0.0
      %379 = vmatpush1.msra.mxu0 0.0
      %380 = vmatprep.subr.mxu0 0.0
      %381 = vmatpush1.msra.mxu0 0.0
      %382 = vmatprep.subr.mxu0 0.0
      %383 = vmatpush1.msra.mxu0 0.0
      %384 = vmatprep.subr.mxu0 0.0
      %385 = vmatpush1.msra.mxu0 0.0
      %386 = vmatprep.subr.mxu0 0.0
      %387 = vmatpush1.msra.mxu0 0.0
      %388 = vmatprep.subr.mxu0 0.0
      %389 = vmatpush1.msra.mxu0 0.0
      %390 = vmatprep.subr.mxu0 0.0
      %391 = vmatpush1.msra.mxu0 0.0
      %392 = vmatprep.subr.mxu0 0.0
      %393 = vmatpush1.msra.mxu0 0.0
      %394 = vmatprep.subr.mxu0 0.0
      %395 = vmatpush1.msra.mxu0 0.0
      %396 = vmatprep.subr.mxu0 0.0
      %397 = vmatpush1.msra.mxu0 0.0
      %398 = vmatprep.subr.mxu0 0.0
      %399 = vmatpush1.msra.mxu0 0.0
      %400 = vmatprep.subr.mxu0 0.0
      %401 = vmatpush1.msra.mxu0 0.0
      %402 = vmatprep.subr.mxu0 0.0
      %403 = vmatpush1.msra.mxu0 0.0
      %404 = vmatprep.subr.mxu0 0.0
      %405 = vmatpush1.msra.mxu0 0.0
      %406 = vmatprep.subr.mxu0 0.0
      %407 = vmatpush1.msra.mxu0 0.0
      %408 = vmatprep.subr.mxu0 0.0
      %409 = vmatpush1.msra.mxu0 0.0
      %410 = vmatprep.subr.mxu0 0.0
      %411 = vmatpush1.msra.mxu0 0.0
      %412 = vmatprep.subr.mxu0 0.0
      %413 = vmatpush1.msra.mxu0 0.0
      %414 = vmatprep.subr.mxu0 0.0
      %415 = vmatpush1.msra.mxu0 0.0
      %416 = vmatprep.subr.mxu0 0.0
      %417 = vmatpush1.msra.mxu0 0.0
      %418 = vmatprep.subr.mxu0 0.0
      %419 = vmatpush1.msra.mxu0 0.0
      %420 = vmatprep.subr.mxu0 0.0
      %421 = vmatpush1.msra.mxu0 0.0
      %422 = vmatprep.subr.mxu0 0.0
      %423 = vmatpush1.msra.mxu0 0.0
      %424 = vmatprep.subr.mxu0 0.0
      %425 = vmatpush1.msra.mxu0 0.0
      %426 = vmatprep.subr.mxu0 0.0
      %427 = vmatpush1.msra.mxu0 0.0
      %428 = vmatprep.mubr.f32.mxu0 0.0
      %429 = vmatmul.mubr.f32.gmra.mrb[0].mxu0 %v359
      %v430 = vpop.f32.mrb[0].mxu0
      %v431 = vadd.f32 0.0, %v430
      %v432 = vpop.f32.mrb[0].mxu0
      %v433 = vadd.f32 0.0, %v432
      %434 = vmatprep.mubr.f32.mxu0 0.0
      %435 = vmatmul.mubr.f32.gmra.mrb[0].mxu0 %v362
      %v436 = vpop.f32.mrb[0].mxu0
      %v437 = vadd.f32 0.0, %v436
      %v438 = vpop.f32.mrb[0].mxu0
      %v439 = vadd.f32 0.0, %v438
      %440 = vdwg.mxu0
      %v441 = vadd.f32 %v334, %v431
      %v442 = vadd.f32 %v336, %v433
      %v443 = vadd.f32 %v340, %v437
      %v444 = vadd.f32 %v342, %v439
      %s445 = scalar_lea.vmem %s1, 48
      %v446 = vld [vmem:[%s445] sm:$0xff]
      %v447 = vld [vmem:[%s445 + $0x8] sm:$0xff]
      %448 = vrot.lane.b32.xlu0 %v144, 92
      %v449 = vpop.permute.xlu0 %448
      %450 = vrot.lane.b32.xlu0 %v145, 92
      %v451 = vpop.permute.xlu0 %450
      %452 = vrot.lane.b32.xlu0 %v146, 92
      %v453 = vpop.permute.xlu0 %452
      %vm454 = vcmask 752640
      %v455 = vsel %vm454, %v449, %v451
      %v456 = vsel %vm454, %v451, %v453
      %v460 = vsel %vm166, %v446, 0
      %v463 = vsel %vm166, %v447, 0
      %465 = vmatprep.subr.mxu0 %v456
      %466 = vmatpush1.msra.mxu0 %v455
      %467 = vmatprep.subr.mxu0 0.0
      %468 = vmatpush1.msra.mxu0 0.0
      %469 = vmatprep.subr.mxu0 0.0
      %470 = vmatpush1.msra.mxu0 0.0
      %471 = vmatprep.subr.mxu0 0.0
      %472 = vmatpush1.msra.mxu0 0.0
      %473 = vmatprep.subr.mxu0 0.0
      %474 = vmatpush1.msra.mxu0 0.0
      %475 = vmatprep.subr.mxu0 0.0
      %476 = vmatpush1.msra.mxu0 0.0
      %477 = vmatprep.subr.mxu0 0.0
      %478 = vmatpush1.msra.mxu0 0.0
      %479 = vmatprep.subr.mxu0 0.0
      %480 = vmatpush1.msra.mxu0 0.0
      %481 = vmatprep.subr.mxu0 0.0
      %482 = vmatpush1.msra.mxu0 0.0
      %483 = vmatprep.subr.mxu0 0.0
      %484 = vmatpush1.msra.mxu0 0.0
      %485 = vmatprep.subr.mxu0 0.0
      %486 = vmatpush1.msra.mxu0 0.0
      %487 = vmatprep.subr.mxu0 0.0
      %488 = vmatpush1.msra.mxu0 0.0
      %489 = vmatprep.subr.mxu0 0.0
      %490 = vmatpush1.msra.mxu0 0.0
      %491 = vmatprep.subr.mxu0 0.0
      %492 = vmatpush1.msra.mxu0 0.0
      %493 = vmatprep.subr.mxu0 0.0
      %494 = vmatpush1.msra.mxu0 0.0
      %495 = vmatprep.subr.mxu0 0.0
      %496 = vmatpush1.msra.mxu0 0.0
      %497 = vmatprep.subr.mxu0 0.0
      %498 = vmatpush1.msra.mxu0 0.0
      %499 = vmatprep.subr.mxu0 0.0
      %500 = vmatpush1.msra.mxu0 0.0
      %501 = vmatprep.subr.mxu0 0.0
      %502 = vmatpush1.msra.mxu0 0.0
      %503 = vmatprep.subr.mxu0 0.0
      %504 = vmatpush1.msra.mxu0 0.0
      %505 = vmatprep.subr.mxu0 0.0
      %506 = vmatpush1.msra.mxu0 0.0
      %507 = vmatprep.subr.mxu0 0.0
      %508 = vmatpush1.msra.mxu0 0.0
      %509 = vmatprep.subr.mxu0 0.0
      %510 = vmatpush1.msra.mxu0 0.0
      %511 = vmatprep.subr.mxu0 0.0
      %512 = vmatpush1.msra.mxu0 0.0
      %513 = vmatprep.subr.mxu0 0.0
      %514 = vmatpush1.msra.mxu0 0.0
      %515 = vmatprep.subr.mxu0 0.0
      %516 = vmatpush1.msra.mxu0 0.0
      %517 = vmatprep.subr.mxu0 0.0
      %518 = vmatpush1.msra.mxu0 0.0
      %519 = vmatprep.subr.mxu0 0.0
      %520 = vmatpush1.msra.mxu0 0.0
      %521 = vmatprep.subr.mxu0 0.0
      %522 = vmatpush1.msra.mxu0 0.0
      %523 = vmatprep.subr.mxu0 0.0
      %524 = vmatpush1.msra.mxu0 0.0
      %525 = vmatprep.subr.mxu0 0.0
      %526 = vmatpush1.msra.mxu0 0.0
      %527 = vmatprep.subr.mxu0 0.0
      %528 = vmatpush1.msra.mxu0 0.0
      %529 = vmatprep.mubr.f32.mxu0 0.0
      %530 = vmatmul.mubr.f32.gmra.mrb[0].mxu0 %v460
      %v531 = vpop.f32.mrb[0].mxu0
      %v532 = vadd.f32 0.0, %v531
      %v533 = vpop.f32.mrb[0].mxu0
      %v534 = vadd.f32 0.0, %v533
      %535 = vmatprep.mubr.f32.mxu0 0.0
      %536 = vmatmul.mubr.f32.gmra.mrb[0].mxu0 %v463
      %v537 = vpop.f32.mrb[0].mxu0
      %v538 = vadd.f32 0.0, %v537
      %v539 = vpop.f32.mrb[0].mxu0
      %v540 = vadd.f32 0.0, %v539
      %541 = vdwg.mxu0
      %v542 = vadd.f32 %v441, %v532
      %v543 = vadd.f32 %v442, %v534
      %v544 = vadd.f32 %v443, %v538
      %v545 = vadd.f32 %v444, %v540
      %s546 = scalar_lea.vmem %s1, 64
      %v547 = vld [vmem:[%s546] sm:$0xff]
      %v548 = vld [vmem:[%s546 + $0x8] sm:$0xff]
      %549 = vrot.lane.b32.xlu0 %v144, 121
      %v550 = vpop.permute.xlu0 %549
      %551 = vrot.lane.b32.xlu0 %v145, 121
      %v552 = vpop.permute.xlu0 %551
      %553 = vrot.lane.b32.xlu0 %v146, 121
      %v554 = vpop.permute.xlu0 %553
      %vm555 = vcmask 990208
      %v556 = vsel %vm555, %v550, %v552
      %v557 = vsel %vm555, %v552, %v554
      %v561 = vsel %vm166, %v547, 0
      %v564 = vsel %vm166, %v548, 0
      %566 = vmatprep.subr.mxu0 %v557
      %567 = vmatpush1.msra.mxu0 %v556
      %568 = vmatprep.subr.mxu0 0.0
      %569 = vmatpush1.msra.mxu0 0.0
      %570 = vmatprep.subr.mxu0 0.0
      %571 = vmatpush1.msra.mxu0 0.0
      %572 = vmatprep.subr.mxu0 0.0
      %573 = vmatpush1.msra.mxu0 0.0
      %574 = vmatprep.subr.mxu0 0.0
      %575 = vmatpush1.msra.mxu0 0.0
      %576 = vmatprep.subr.mxu0 0.0
      %577 = vmatpush1.msra.mxu0 0.0
      %578 = vmatprep.subr.mxu0 0.0
      %579 = vmatpush1.msra.mxu0 0.0
      %580 = vmatprep.subr.mxu0 0.0
      %581 = vmatpush1.msra.mxu0 0.0
      %582 = vmatprep.subr.mxu0 0.0
      %583 = vmatpush1.msra.mxu0 0.0
      %584 = vmatprep.subr.mxu0 0.0
      %585 = vmatpush1.msra.mxu0 0.0
      %586 = vmatprep.subr.mxu0 0.0
      %587 = vmatpush1.msra.mxu0 0.0
      %588 = vmatprep.subr.mxu0 0.0
      %589 = vmatpush1.msra.mxu0 0.0
      %590 = vmatprep.subr.mxu0 0.0
      %591 = vmatpush1.msra.mxu0 0.0
      %592 = vmatprep.subr.mxu0 0.0
      %593 = vmatpush1.msra.mxu0 0.0
      %594 = vmatprep.subr.mxu0 0.0
      %595 = vmatpush1.msra.mxu0 0.0
      %596 = vmatprep.subr.mxu0 0.0
      %597 = vmatpush1.msra.mxu0 0.0
      %598 = vmatprep.subr.mxu0 0.0
      %599 = vmatpush1.msra.mxu0 0.0
      %600 = vmatprep.subr.mxu0 0.0
      %601 = vmatpush1.msra.mxu0 0.0
      %602 = vmatprep.subr.mxu0 0.0
      %603 = vmatpush1.msra.mxu0 0.0
      %604 = vmatprep.subr.mxu0 0.0
      %605 = vmatpush1.msra.mxu0 0.0
      %606 = vmatprep.subr.mxu0 0.0
      %607 = vmatpush1.msra.mxu0 0.0
      %608 = vmatprep.subr.mxu0 0.0
      %609 = vmatpush1.msra.mxu0 0.0
      %610 = vmatprep.subr.mxu0 0.0
      %611 = vmatpush1.msra.mxu0 0.0
      %612 = vmatprep.subr.mxu0 0.0
      %613 = vmatpush1.msra.mxu0 0.0
      %614 = vmatprep.subr.mxu0 0.0
      %615 = vmatpush1.msra.mxu0 0.0
      %616 = vmatprep.subr.mxu0 0.0
      %617 = vmatpush1.msra.mxu0 0.0
      %618 = vmatprep.subr.mxu0 0.0
      %619 = vmatpush1.msra.mxu0 0.0
      %620 = vmatprep.subr.mxu0 0.0
      %621 = vmatpush1.msra.mxu0 0.0
      %622 = vmatprep.subr.mxu0 0.0
      %623 = vmatpush1.msra.mxu0 0.0
      %624 = vmatprep.subr.mxu0 0.0
      %625 = vmatpush1.msra.mxu0 0.0
      %626 = vmatprep.subr.mxu0 0.0
      %627 = vmatpush1.msra.mxu0 0.0
      %628 = vmatprep.subr.mxu0 0.0
      %629 = vmatpush1.msra.mxu0 0.0
      %630 = vmatprep.mubr.f32.mxu0 0.0
      %631 = vmatmul.mubr.f32.gmra.mrb[0].mxu0 %v561
      %v632 = vpop.f32.mrb[0].mxu0
      %v633 = vadd.f32 0.0, %v632
      %v634 = vpop.f32.mrb[0].mxu0
      %v635 = vadd.f32 0.0, %v634
      %636 = vmatprep.mubr.f32.mxu0 0.0
      %637 = vmatmul.mubr.f32.gmra.mrb[0].mxu0 %v564
      %v638 = vpop.f32.mrb[0].mxu0
      %v639 = vadd.f32 0.0, %v638
      %v640 = vpop.f32.mrb[0].mxu0
      %v641 = vadd.f32 0.0, %v640
      %642 = vdwg.mxu0
      %v643 = vadd.f32 %v542, %v633
      %v644 = vadd.f32 %v543, %v635
      %v645 = vadd.f32 %v544, %v639
      %v646 = vadd.f32 %v545, %v641
      %s647 = scalar_lea.vmem %s1, 80
      %v648 = vld [vmem:[%s647] sm:$0xff]
      %v649 = vld [vmem:[%s647 + $0x8] sm:$0xff]
      %650 = vrot.lane.b32.xlu0 %v144, 122
      %v651 = vpop.permute.xlu0 %650
      %652 = vrot.lane.b32.xlu0 %v145, 122
      %v653 = vpop.permute.xlu0 %652
      %654 = vrot.lane.b32.xlu0 %v146, 122
      %v655 = vpop.permute.xlu0 %654
      %vm656 = vcmask 998400
      %v657 = vsel %vm656, %v651, %v653
      %v658 = vsel %vm656, %v653, %v655
      %v662 = vsel %vm166, %v648, 0
      %v665 = vsel %vm166, %v649, 0
      %667 = vmatprep.subr.mxu0 %v658
      %668 = vmatpush1.msra.mxu0 %v657
      %669 = vmatprep.subr.mxu0 0.0
      %670 = vmatpush1.msra.mxu0 0.0
      %671 = vmatprep.subr.mxu0 0.0
      %672 = vmatpush1.msra.mxu0 0.0
      %673 = vmatprep.subr.mxu0 0.0
      %674 = vmatpush1.msra.mxu0 0.0
      %675 = vmatprep.subr.mxu0 0.0
      %676 = vmatpush1.msra.mxu0 0.0
      %677 = vmatprep.subr.mxu0 0.0
      %678 = vmatpush1.msra.mxu0 0.0
      %679 = vmatprep.subr.mxu0 0.0
      %680 = vmatpush1.msra.mxu0 0.0
      %681 = vmatprep.subr.mxu0 0.0
      %682 = vmatpush1.msra.mxu0 0.0
      %683 = vmatprep.subr.mxu0 0.0
      %684 = vmatpush1.msra.mxu0 0.0
      %685 = vmatprep.subr.mxu0 0.0
      %686 = vmatpush1.msra.mxu0 0.0
      %687 = vmatprep.subr.mxu0 0.0
      %688 = vmatpush1.msra.mxu0 0.0
      %689 = vmatprep.subr.mxu0 0.0
      %690 = vmatpush1.msra.mxu0 0.0
      %691 = vmatprep.subr.mxu0 0.0
      %692 = vmatpush1.msra.mxu0 0.0
      %693 = vmatprep.subr.mxu0 0.0
      %694 = vmatpush1.msra.mxu0 0.0
      %695 = vmatprep.subr.mxu0 0.0
      %696 = vmatpush1.msra.mxu0 0.0
      %697 = vmatprep.subr.mxu0 0.0
      %698 = vmatpush1.msra.mxu0 0.0
      %699 = vmatprep.subr.mxu0 0.0
      %700 = vmatpush1.msra.mxu0 0.0
      %701 = vmatprep.subr.mxu0 0.0
      %702 = vmatpush1.msra.mxu0 0.0
      %703 = vmatprep.subr.mxu0 0.0
      %704 = vmatpush1.msra.mxu0 0.0
      %705 = vmatprep.subr.mxu0 0.0
      %706 = vmatpush1.msra.mxu0 0.0
      %707 = vmatprep.subr.mxu0 0.0
      %708 = vmatpush1.msra.mxu0 0.0
      %709 = vmatprep.subr.mxu0 0.0
      %710 = vmatpush1.msra.mxu0 0.0
      %711 = vmatprep.subr.mxu0 0.0
      %712 = vmatpush1.msra.mxu0 0.0
      %713 = vmatprep.subr.mxu0 0.0
      %714 = vmatpush1.msra.mxu0 0.0
      %715 = vmatprep.subr.mxu0 0.0
      %716 = vmatpush1.msra.mxu0 0.0
      %717 = vmatprep.subr.mxu0 0.0
      %718 = vmatpush1.msra.mxu0 0.0
      %719 = vmatprep.subr.mxu0 0.0
      %720 = vmatpush1.msra.mxu0 0.0
      %721 = vmatprep.subr.mxu0 0.0
      %722 = vmatpush1.msra.mxu0 0.0
      %723 = vmatprep.subr.mxu0 0.0
      %724 = vmatpush1.msra.mxu0 0.0
      %725 = vmatprep.subr.mxu0 0.0
      %726 = vmatpush1.msra.mxu0 0.0
      %727 = vmatprep.subr.mxu0 0.0
      %728 = vmatpush1.msra.mxu0 0.0
      %729 = vmatprep.subr.mxu0 0.0
      %730 = vmatpush1.msra.mxu0 0.0
      %731 = vmatprep.mubr.f32.mxu0 0.0
      %732 = vmatmul.mubr.f32.gmra.mrb[0].mxu0 %v662
      %v733 = vpop.f32.mrb[0].mxu0
      %v734 = vadd.f32 0.0, %v733
      %v735 = vpop.f32.mrb[0].mxu0
      %v736 = vadd.f32 0.0, %v735
      %737 = vmatprep.mubr.f32.mxu0 0.0
      %738 = vmatmul.mubr.f32.gmra.mrb[0].mxu0 %v665
      %v739 = vpop.f32.mrb[0].mxu0
      %v740 = vadd.f32 0.0, %v739
      %v741 = vpop.f32.mrb[0].mxu0
      %v742 = vadd.f32 0.0, %v741
      %743 = vdwg.mxu0
      %v744 = vadd.f32 %v643, %v734
      %v745 = vadd.f32 %v644, %v736
      %v746 = vadd.f32 %v645, %v740
      %v747 = vadd.f32 %v646, %v742
      %s748 = scalar_lea.vmem %s1, 96
      %v749 = vld [vmem:[%s748] sm:$0xff]
      %v750 = vld [vmem:[%s748 + $0x8] sm:$0xff]
      %751 = vrot.lane.b32.xlu0 %v144, 127
      %v752 = vpop.permute.xlu0 %751
      %753 = vrot.lane.b32.xlu0 %v145, 127
      %v754 = vpop.permute.xlu0 %753
      %755 = vrot.lane.b32.xlu0 %v146, 127
      %v756 = vpop.permute.xlu0 %755
      %vm757 = vcmask 1039360
      %v758 = vsel %vm757, %v752, %v754
      %v759 = vsel %vm757, %v754, %v756
      %v763 = vsel %vm166, %v749, 0
      %v766 = vsel %vm166, %v750, 0
      %768 = vmatprep.subr.mxu0 %v759
      %769 = vmatpush1.msra.mxu0 %v758
      %770 = vmatprep.subr.mxu0 0.0
      %771 = vmatpush1.msra.mxu0 0.0
      %772 = vmatprep.subr.mxu0 0.0
      %773 = vmatpush1.msra.mxu0 0.0
      %774 = vmatprep.subr.mxu0 0.0
      %775 = vmatpush1.msra.mxu0 0.0
      %776 = vmatprep.subr.mxu0 0.0
      %777 = vmatpush1.msra.mxu0 0.0
      %778 = vmatprep.subr.mxu0 0.0
      %779 = vmatpush1.msra.mxu0 0.0
      %780 = vmatprep.subr.mxu0 0.0
      %781 = vmatpush1.msra.mxu0 0.0
      %782 = vmatprep.subr.mxu0 0.0
      %783 = vmatpush1.msra.mxu0 0.0
      %784 = vmatprep.subr.mxu0 0.0
      %785 = vmatpush1.msra.mxu0 0.0
      %786 = vmatprep.subr.mxu0 0.0
      %787 = vmatpush1.msra.mxu0 0.0
      %788 = vmatprep.subr.mxu0 0.0
      %789 = vmatpush1.msra.mxu0 0.0
      %790 = vmatprep.subr.mxu0 0.0
      %791 = vmatpush1.msra.mxu0 0.0
      %792 = vmatprep.subr.mxu0 0.0
      %793 = vmatpush1.msra.mxu0 0.0
      %794 = vmatprep.subr.mxu0 0.0
      %795 = vmatpush1.msra.mxu0 0.0
      %796 = vmatprep.subr.mxu0 0.0
      %797 = vmatpush1.msra.mxu0 0.0
      %798 = vmatprep.subr.mxu0 0.0
      %799 = vmatpush1.msra.mxu0 0.0
      %800 = vmatprep.subr.mxu0 0.0
      %801 = vmatpush1.msra.mxu0 0.0
      %802 = vmatprep.subr.mxu0 0.0
      %803 = vmatpush1.msra.mxu0 0.0
      %804 = vmatprep.subr.mxu0 0.0
      %805 = vmatpush1.msra.mxu0 0.0
      %806 = vmatprep.subr.mxu0 0.0
      %807 = vmatpush1.msra.mxu0 0.0
      %808 = vmatprep.subr.mxu0 0.0
      %809 = vmatpush1.msra.mxu0 0.0
      %810 = vmatprep.subr.mxu0 0.0
      %811 = vmatpush1.msra.mxu0 0.0
      %812 = vmatprep.subr.mxu0 0.0
      %813 = vmatpush1.msra.mxu0 0.0
      %814 = vmatprep.subr.mxu0 0.0
      %815 = vmatpush1.msra.mxu0 0.0
      %816 = vmatprep.subr.mxu0 0.0
      %817 = vmatpush1.msra.mxu0 0.0
      %818 = vmatprep.subr.mxu0 0.0
      %819 = vmatpush1.msra.mxu0 0.0
      %820 = vmatprep.subr.mxu0 0.0
      %821 = vmatpush1.msra.mxu0 0.0
      %822 = vmatprep.subr.mxu0 0.0
      %823 = vmatpush1.msra.mxu0 0.0
      %824 = vmatprep.subr.mxu0 0.0
      %825 = vmatpush1.msra.mxu0 0.0
      %826 = vmatprep.subr.mxu0 0.0
      %827 = vmatpush1.msra.mxu0 0.0
      %828 = vmatprep.subr.mxu0 0.0
      %829 = vmatpush1.msra.mxu0 0.0
      %830 = vmatprep.subr.mxu0 0.0
      %831 = vmatpush1.msra.mxu0 0.0
      %832 = vmatprep.mubr.f32.mxu0 0.0
      %833 = vmatmul.mubr.f32.gmra.mrb[0].mxu0 %v763
      %v834 = vpop.f32.mrb[0].mxu0
      %v835 = vadd.f32 0.0, %v834
      %v836 = vpop.f32.mrb[0].mxu0
      %v837 = vadd.f32 0.0, %v836
      %838 = vmatprep.mubr.f32.mxu0 0.0
      %839 = vmatmul.mubr.f32.gmra.mrb[0].mxu0 %v766
      %v840 = vpop.f32.mrb[0].mxu0
      %v841 = vadd.f32 0.0, %v840
      %v842 = vpop.f32.mrb[0].mxu0
      %v843 = vadd.f32 0.0, %v842
      %844 = vdwg.mxu0
      %v845 = vadd.f32 %v744, %v835
      %v846 = vadd.f32 %v745, %v837
      %v847 = vadd.f32 %v746, %v841
      %v848 = vadd.f32 %v747, %v843
      %v849 = vld [vmem:[%s138] sm:$0xff]
      %v850 = vld [vmem:[%s138 + $0x8] sm:$0xff]
      %s851 = scalar_lea.vmem %s1, 112
      %v852 = vld [vmem:[%s851] sm:$0xff]
      %v853 = vld [vmem:[%s851 + $0x8] sm:$0xff]
      %v855 = vsel %vm166, %v852, 0
      %v858 = vsel %vm166, %v853, 0
      %860 = vmatprep.subr.mxu0 %v850
      %861 = vmatpush1.msra.mxu0 %v849
      %862 = vmatprep.subr.mxu0 0.0
      %863 = vmatpush1.msra.mxu0 0.0
      %864 = vmatprep.subr.mxu0 0.0
      %865 = vmatpush1.msra.mxu0 0.0
      %866 = vmatprep.subr.mxu0 0.0
      %867 = vmatpush1.msra.mxu0 0.0
      %868 = vmatprep.subr.mxu0 0.0
      %869 = vmatpush1.msra.mxu0 0.0
      %870 = vmatprep.subr.mxu0 0.0
      %871 = vmatpush1.msra.mxu0 0.0
      %872 = vmatprep.subr.mxu0 0.0
      %873 = vmatpush1.msra.mxu0 0.0
      %874 = vmatprep.subr.mxu0 0.0
      %875 = vmatpush1.msra.mxu0 0.0
      %876 = vmatprep.subr.mxu0 0.0
      %877 = vmatpush1.msra.mxu0 0.0
      %878 = vmatprep.subr.mxu0 0.0
      %879 = vmatpush1.msra.mxu0 0.0
      %880 = vmatprep.subr.mxu0 0.0
      %881 = vmatpush1.msra.mxu0 0.0
      %882 = vmatprep.subr.mxu0 0.0
      %883 = vmatpush1.msra.mxu0 0.0
      %884 = vmatprep.subr.mxu0 0.0
      %885 = vmatpush1.msra.mxu0 0.0
      %886 = vmatprep.subr.mxu0 0.0
      %887 = vmatpush1.msra.mxu0 0.0
      %888 = vmatprep.subr.mxu0 0.0
      %889 = vmatpush1.msra.mxu0 0.0
      %890 = vmatprep.subr.mxu0 0.0
      %891 = vmatpush1.msra.mxu0 0.0
      %892 = vmatprep.subr.mxu0 0.0
      %893 = vmatpush1.msra.mxu0 0.0
      %894 = vmatprep.subr.mxu0 0.0
      %895 = vmatpush1.msra.mxu0 0.0
      %896 = vmatprep.subr.mxu0 0.0
      %897 = vmatpush1.msra.mxu0 0.0
      %898 = vmatprep.subr.mxu0 0.0
      %899 = vmatpush1.msra.mxu0 0.0
      %900 = vmatprep.subr.mxu0 0.0
      %901 = vmatpush1.msra.mxu0 0.0
      %902 = vmatprep.subr.mxu0 0.0
      %903 = vmatpush1.msra.mxu0 0.0
      %904 = vmatprep.subr.mxu0 0.0
      %905 = vmatpush1.msra.mxu0 0.0
      %906 = vmatprep.subr.mxu0 0.0
      %907 = vmatpush1.msra.mxu0 0.0
      %908 = vmatprep.subr.mxu0 0.0
      %909 = vmatpush1.msra.mxu0 0.0
      %910 = vmatprep.subr.mxu0 0.0
      %911 = vmatpush1.msra.mxu0 0.0
      %912 = vmatprep.subr.mxu0 0.0
      %913 = vmatpush1.msra.mxu0 0.0
      %914 = vmatprep.subr.mxu0 0.0
      %915 = vmatpush1.msra.mxu0 0.0
      %916 = vmatprep.subr.mxu0 0.0
      %917 = vmatpush1.msra.mxu0 0.0
      %918 = vmatprep.subr.mxu0 0.0
      %919 = vmatpush1.msra.mxu0 0.0
      %920 = vmatprep.subr.mxu0 0.0
      %921 = vmatpush1.msra.mxu0 0.0
      %922 = vmatprep.subr.mxu0 0.0
      %923 = vmatpush1.msra.mxu0 0.0
      %924 = vmatprep.mubr.f32.mxu0 0.0
      %925 = vmatmul.mubr.f32.gmra.mrb[0].mxu0 %v855
      %v926 = vpop.f32.mrb[0].mxu0
      %v927 = vadd.f32 0.0, %v926
      %v928 = vpop.f32.mrb[0].mxu0
      %v929 = vadd.f32 0.0, %v928
      %930 = vmatprep.mubr.f32.mxu0 0.0
      %931 = vmatmul.mubr.f32.gmra.mrb[0].mxu0 %v858
      %v932 = vpop.f32.mrb[0].mxu0
      %v933 = vadd.f32 0.0, %v932
      %v934 = vpop.f32.mrb[0].mxu0
      %v935 = vadd.f32 0.0, %v934
      %936 = vdwg.mxu0
      %v937 = vadd.f32 %v845, %v927
      %v938 = vadd.f32 %v846, %v929
      %v939 = vadd.f32 %v847, %v933
      %v940 = vadd.f32 %v848, %v935
      %941 = vst [vmem:[%s143] sm:$0xff] %v937
      %942 = vst [vmem:[%s143 + $0x8] sm:$0xff] %v938
      %943 = vst [vmem:[%s143 + $0x10] sm:$0xff] %v939
      %944 = vst [vmem:[%s143 + $0x18] sm:$0xff] %v940
      %v945 = vld [vmem:[%s138] sm:$0xff]
      %v946 = vld [vmem:[%s138 + $0x8] sm:$0xff]
      %v947 = vld [vmem:[%s138 + $0x10] sm:$0xff]
      %s948 = scalar_lea.vmem %s1, 128
      %v949 = vld [vmem:[%s948] sm:$0xff]
      %v950 = vld [vmem:[%s948 + $0x8] sm:$0xff]
      %s951 = scalar_lea.vmem %s1, 144
      %v952 = vld [vmem:[%s951] sm:$0xff]
      %v953 = vld [vmem:[%s951 + $0x8] sm:$0xff]
      %957 = vrot.lane.b32.xlu0 %v945, 85
      %v958 = vpop.permute.xlu0 %957
      %959 = vrot.lane.b32.xlu0 %v946, 85
      %v960 = vpop.permute.xlu0 %959
      %961 = vrot.lane.b32.xlu0 %v947, 85
      %v962 = vpop.permute.xlu0 %961
      %v963 = vsel %vm256, %v958, %v960
      %v964 = vsel %vm256, %v960, %v962
      %v968 = vsel %vm166, %v952, 0
      %v971 = vsel %vm166, %v953, 0
      %973 = vmatprep.subr.mxu0 %v964
      %974 = vmatpush1.msra.mxu0 %v963
      %975 = vmatprep.subr.mxu0 0.0
      %976 = vmatpush1.msra.mxu0 0.0
      %977 = vmatprep.subr.mxu0 0.0
      %978 = vmatpush1.msra.mxu0 0.0
      %979 = vmatprep.subr.mxu0 0.0
      %980 = vmatpush1.msra.mxu0 0.0
      %981 = vmatprep.subr.mxu0 0.0
      %982 = vmatpush1.msra.mxu0 0.0
      %983 = vmatprep.subr.mxu0 0.0
      %984 = vmatpush1.msra.mxu0 0.0
      %985 = vmatprep.subr.mxu0 0.0
      %986 = vmatpush1.msra.mxu0 0.0
      %987 = vmatprep.subr.mxu0 0.0
      %988 = vmatpush1.msra.mxu0 0.0
      %989 = vmatprep.subr.mxu0 0.0
      %990 = vmatpush1.msra.mxu0 0.0
      %991 = vmatprep.subr.mxu0 0.0
      %992 = vmatpush1.msra.mxu0 0.0
      %993 = vmatprep.subr.mxu0 0.0
      %994 = vmatpush1.msra.mxu0 0.0
      %995 = vmatprep.subr.mxu0 0.0
      %996 = vmatpush1.msra.mxu0 0.0
      %997 = vmatprep.subr.mxu0 0.0
      %998 = vmatpush1.msra.mxu0 0.0
      %999 = vmatprep.subr.mxu0 0.0
      %1000 = vmatpush1.msra.mxu0 0.0
      %1001 = vmatprep.subr.mxu0 0.0
      %1002 = vmatpush1.msra.mxu0 0.0
      %1003 = vmatprep.subr.mxu0 0.0
      %1004 = vmatpush1.msra.mxu0 0.0
      %1005 = vmatprep.subr.mxu0 0.0
      %1006 = vmatpush1.msra.mxu0 0.0
      %1007 = vmatprep.subr.mxu0 0.0
      %1008 = vmatpush1.msra.mxu0 0.0
      %1009 = vmatprep.subr.mxu0 0.0
      %1010 = vmatpush1.msra.mxu0 0.0
      %1011 = vmatprep.subr.mxu0 0.0
      %1012 = vmatpush1.msra.mxu0 0.0
      %1013 = vmatprep.subr.mxu0 0.0
      %1014 = vmatpush1.msra.mxu0 0.0
      %1015 = vmatprep.subr.mxu0 0.0
      %1016 = vmatpush1.msra.mxu0 0.0
      %1017 = vmatprep.subr.mxu0 0.0
      %1018 = vmatpush1.msra.mxu0 0.0
      %1019 = vmatprep.subr.mxu0 0.0
      %1020 = vmatpush1.msra.mxu0 0.0
      %1021 = vmatprep.subr.mxu0 0.0
      %1022 = vmatpush1.msra.mxu0 0.0
      %1023 = vmatprep.subr.mxu0 0.0
      %1024 = vmatpush1.msra.mxu0 0.0
      %1025 = vmatprep.subr.mxu0 0.0
      %1026 = vmatpush1.msra.mxu0 0.0
      %1027 = vmatprep.subr.mxu0 0.0
      %1028 = vmatpush1.msra.mxu0 0.0
      %1029 = vmatprep.subr.mxu0 0.0
      %1030 = vmatpush1.msra.mxu0 0.0
      %1031 = vmatprep.subr.mxu0 0.0
      %1032 = vmatpush1.msra.mxu0 0.0
      %1033 = vmatprep.subr.mxu0 0.0
      %1034 = vmatpush1.msra.mxu0 0.0
      %1035 = vmatprep.subr.mxu0 0.0
      %1036 = vmatpush1.msra.mxu0 0.0
      %1037 = vmatprep.mubr.f32.mxu0 0.0
      %1038 = vmatmul.mubr.f32.gmra.mrb[0].mxu0 %v968
      %v1039 = vpop.f32.mrb[0].mxu0
      %v1040 = vadd.f32 0.0, %v1039
      %v1041 = vpop.f32.mrb[0].mxu0
      %v1042 = vadd.f32 0.0, %v1041
      %1043 = vmatprep.mubr.f32.mxu0 0.0
      %1044 = vmatmul.mubr.f32.gmra.mrb[0].mxu0 %v971
      %v1045 = vpop.f32.mrb[0].mxu0
      %v1046 = vadd.f32 0.0, %v1045
      %v1047 = vpop.f32.mrb[0].mxu0
      %v1048 = vadd.f32 0.0, %v1047
      %1049 = vdwg.mxu0
      %1050 = vrot.lane.b32.xlu0 %v945, 84
      %v1051 = vpop.permute.xlu0 %1050
      %1052 = vrot.lane.b32.xlu0 %v946, 84
      %v1053 = vpop.permute.xlu0 %1052
      %1054 = vrot.lane.b32.xlu0 %v947, 84
      %v1055 = vpop.permute.xlu0 %1054
      %vm1056 = vcmask 687104
      %v1057 = vsel %vm1056, %v1051, %v1053
      %v1058 = vsel %vm1056, %v1053, %v1055
      %v1062 = vsel %vm166, %v949, 0
      %v1065 = vsel %vm166, %v950, 0
      %1067 = vmatprep.subr.mxu0 %v1058
      %1068 = vmatpush1.msra.mxu0 %v1057
      %1069 = vmatprep.subr.mxu0 0.0
      %1070 = vmatpush1.msra.mxu0 0.0
      %1071 = vmatprep.subr.mxu0 0.0
      %1072 = vmatpush1.msra.mxu0 0.0
      %1073 = vmatprep.subr.mxu0 0.0
      %1074 = vmatpush1.msra.mxu0 0.0
      %1075 = vmatprep.subr.mxu0 0.0
      %1076 = vmatpush1.msra.mxu0 0.0
      %1077 = vmatprep.subr.mxu0 0.0
      %1078 = vmatpush1.msra.mxu0 0.0
      %1079 = vmatprep.subr.mxu0 0.0
      %1080 = vmatpush1.msra.mxu0 0.0
      %1081 = vmatprep.subr.mxu0 0.0
      %1082 = vmatpush1.msra.mxu0 0.0
      %1083 = vmatprep.subr.mxu0 0.0
      %1084 = vmatpush1.msra.mxu0 0.0
      %1085 = vmatprep.subr.mxu0 0.0
      %1086 = vmatpush1.msra.mxu0 0.0
      %1087 = vmatprep.subr.mxu0 0.0
      %1088 = vmatpush1.msra.mxu0 0.0
      %1089 = vmatprep.subr.mxu0 0.0
      %1090 = vmatpush1.msra.mxu0 0.0
      %1091 = vmatprep.subr.mxu0 0.0
      %1092 = vmatpush1.msra.mxu0 0.0
      %1093 = vmatprep.subr.mxu0 0.0
      %1094 = vmatpush1.msra.mxu0 0.0
      %1095 = vmatprep.subr.mxu0 0.0
      %1096 = vmatpush1.msra.mxu0 0.0
      %1097 = vmatprep.subr.mxu0 0.0
      %1098 = vmatpush1.msra.mxu0 0.0
      %1099 = vmatprep.subr.mxu0 0.0
      %1100 = vmatpush1.msra.mxu0 0.0
      %1101 = vmatprep.subr.mxu0 0.0
      %1102 = vmatpush1.msra.mxu0 0.0
      %1103 = vmatprep.subr.mxu0 0.0
      %1104 = vmatpush1.msra.mxu0 0.0
      %1105 = vmatprep.subr.mxu0 0.0
      %1106 = vmatpush1.msra.mxu0 0.0
      %1107 = vmatprep.subr.mxu0 0.0
      %1108 = vmatpush1.msra.mxu0 0.0
      %1109 = vmatprep.subr.mxu0 0.0
      %1110 = vmatpush1.msra.mxu0 0.0
      %1111 = vmatprep.subr.mxu0 0.0
      %1112 = vmatpush1.msra.mxu0 0.0
      %1113 = vmatprep.subr.mxu0 0.0
      %1114 = vmatpush1.msra.mxu0 0.0
      %1115 = vmatprep.subr.mxu0 0.0
      %1116 = vmatpush1.msra.mxu0 0.0
      %1117 = vmatprep.subr.mxu0 0.0
      %1118 = vmatpush1.msra.mxu0 0.0
      %1119 = vmatprep.subr.mxu0 0.0
      %1120 = vmatpush1.msra.mxu0 0.0
      %1121 = vmatprep.subr.mxu0 0.0
      %1122 = vmatpush1.msra.mxu0 0.0
      %1123 = vmatprep.subr.mxu0 0.0
      %1124 = vmatpush1.msra.mxu0 0.0
      %1125 = vmatprep.subr.mxu0 0.0
      %1126 = vmatpush1.msra.mxu0 0.0
      %1127 = vmatprep.subr.mxu0 0.0
      %1128 = vmatpush1.msra.mxu0 0.0
      %1129 = vmatprep.subr.mxu0 0.0
      %1130 = vmatpush1.msra.mxu0 0.0
      %1131 = vmatprep.mubr.f32.mxu0 0.0
      %1132 = vmatmul.mubr.f32.gmra.mrb[0].mxu0 %v1062
      %v1133 = vpop.f32.mrb[0].mxu0
      %v1134 = vadd.f32 %v1040, %v1133
      %v1135 = vpop.f32.mrb[0].mxu0
      %v1136 = vadd.f32 %v1042, %v1135
      %1137 = vmatprep.mubr.f32.mxu0 0.0
      %1138 = vmatmul.mubr.f32.gmra.mrb[0].mxu0 %v1065
      %v1139 = vpop.f32.mrb[0].mxu0
      %v1140 = vadd.f32 %v1046, %v1139
      %v1141 = vpop.f32.mrb[0].mxu0
      %v1142 = vadd.f32 %v1048, %v1141
      %1143 = vdwg.mxu0
      %s1144 = scalar_lea.vmem %s1, 160
      %v1145 = vld [vmem:[%s1144] sm:$0xff]
      %v1146 = vld [vmem:[%s1144 + $0x8] sm:$0xff]
      %1147 = vrot.lane.b32.xlu0 %v945, 90
      %v1148 = vpop.permute.xlu0 %1147
      %1149 = vrot.lane.b32.xlu0 %v946, 90
      %v1150 = vpop.permute.xlu0 %1149
      %1151 = vrot.lane.b32.xlu0 %v947, 90
      %v1152 = vpop.permute.xlu0 %1151
      %vm1153 = vcmask 736256
      %v1154 = vsel %vm1153, %v1148, %v1150
      %v1155 = vsel %vm1153, %v1150, %v1152
      %v1159 = vsel %vm166, %v1145, 0
      %v1162 = vsel %vm166, %v1146, 0
      %1164 = vmatprep.subr.mxu0 %v1155
      %1165 = vmatpush1.msra.mxu0 %v1154
      %1166 = vmatprep.subr.mxu0 0.0
      %1167 = vmatpush1.msra.mxu0 0.0
      %1168 = vmatprep.subr.mxu0 0.0
      %1169 = vmatpush1.msra.mxu0 0.0
      %1170 = vmatprep.subr.mxu0 0.0
      %1171 = vmatpush1.msra.mxu0 0.0
      %1172 = vmatprep.subr.mxu0 0.0
      %1173 = vmatpush1.msra.mxu0 0.0
      %1174 = vmatprep.subr.mxu0 0.0
      %1175 = vmatpush1.msra.mxu0 0.0
      %1176 = vmatprep.subr.mxu0 0.0
      %1177 = vmatpush1.msra.mxu0 0.0
      %1178 = vmatprep.subr.mxu0 0.0
      %1179 = vmatpush1.msra.mxu0 0.0
      %1180 = vmatprep.subr.mxu0 0.0
      %1181 = vmatpush1.msra.mxu0 0.0
      %1182 = vmatprep.subr.mxu0 0.0
      %1183 = vmatpush1.msra.mxu0 0.0
      %1184 = vmatprep.subr.mxu0 0.0
      %1185 = vmatpush1.msra.mxu0 0.0
      %1186 = vmatprep.subr.mxu0 0.0
      %1187 = vmatpush1.msra.mxu0 0.0
      %1188 = vmatprep.subr.mxu0 0.0
      %1189 = vmatpush1.msra.mxu0 0.0
      %1190 = vmatprep.subr.mxu0 0.0
      %1191 = vmatpush1.msra.mxu0 0.0
      %1192 = vmatprep.subr.mxu0 0.0
      %1193 = vmatpush1.msra.mxu0 0.0
      %1194 = vmatprep.subr.mxu0 0.0
      %1195 = vmatpush1.msra.mxu0 0.0
      %1196 = vmatprep.subr.mxu0 0.0
      %1197 = vmatpush1.msra.mxu0 0.0
      %1198 = vmatprep.subr.mxu0 0.0
      %1199 = vmatpush1.msra.mxu0 0.0
      %1200 = vmatprep.subr.mxu0 0.0
      %1201 = vmatpush1.msra.mxu0 0.0
      %1202 = vmatprep.subr.mxu0 0.0
      %1203 = vmatpush1.msra.mxu0 0.0
      %1204 = vmatprep.subr.mxu0 0.0
      %1205 = vmatpush1.msra.mxu0 0.0
      %1206 = vmatprep.subr.mxu0 0.0
      %1207 = vmatpush1.msra.mxu0 0.0
      %1208 = vmatprep.subr.mxu0 0.0
      %1209 = vmatpush1.msra.mxu0 0.0
      %1210 = vmatprep.subr.mxu0 0.0
      %1211 = vmatpush1.msra.mxu0 0.0
      %1212 = vmatprep.subr.mxu0 0.0
      %1213 = vmatpush1.msra.mxu0 0.0
      %1214 = vmatprep.subr.mxu0 0.0
      %1215 = vmatpush1.msra.mxu0 0.0
      %1216 = vmatprep.subr.mxu0 0.0
      %1217 = vmatpush1.msra.mxu0 0.0
      %1218 = vmatprep.subr.mxu0 0.0
      %1219 = vmatpush1.msra.mxu0 0.0
      %1220 = vmatprep.subr.mxu0 0.0
      %1221 = vmatpush1.msra.mxu0 0.0
      %1222 = vmatprep.subr.mxu0 0.0
      %1223 = vmatpush1.msra.mxu0 0.0
      %1224 = vmatprep.subr.mxu0 0.0
      %1225 = vmatpush1.msra.mxu0 0.0
      %1226 = vmatprep.subr.mxu0 0.0
      %1227 = vmatpush1.msra.mxu0 0.0
      %1228 = vmatprep.mubr.f32.mxu0 0.0
      %1229 = vmatmul.mubr.f32.gmra.mrb[0].mxu0 %v1159
      %v1230 = vpop.f32.mrb[0].mxu0
      %v1231 = vadd.f32 0.0, %v1230
      %v1232 = vpop.f32.mrb[0].mxu0
      %v1233 = vadd.f32 0.0, %v1232
      %1234 = vmatprep.mubr.f32.mxu0 0.0
      %1235 = vmatmul.mubr.f32.gmra.mrb[0].mxu0 %v1162
      %v1236 = vpop.f32.mrb[0].mxu0
      %v1237 = vadd.f32 0.0, %v1236
      %v1238 = vpop.f32.mrb[0].mxu0
      %v1239 = vadd.f32 0.0, %v1238
      %1240 = vdwg.mxu0
      %v1241 = vadd.f32 %v1134, %v1231
      %v1242 = vadd.f32 %v1136, %v1233
      %v1243 = vadd.f32 %v1140, %v1237
      %v1244 = vadd.f32 %v1142, %v1239
      %s1245 = scalar_lea.vmem %s1, 176
      %v1246 = vld [vmem:[%s1245] sm:$0xff]
      %v1247 = vld [vmem:[%s1245 + $0x8] sm:$0xff]
      %1248 = vrot.lane.b32.xlu0 %v945, 91
      %v1249 = vpop.permute.xlu0 %1248
      %1250 = vrot.lane.b32.xlu0 %v946, 91
      %v1251 = vpop.permute.xlu0 %1250
      %1252 = vrot.lane.b32.xlu0 %v947, 91
      %v1253 = vpop.permute.xlu0 %1252
      %v1254 = vsel %vm353, %v1249, %v1251
      %v1255 = vsel %vm353, %v1251, %v1253
      %v1259 = vsel %vm166, %v1246, 0
      %v1262 = vsel %vm166, %v1247, 0
      %1264 = vmatprep.subr.mxu0 %v1255
      %1265 = vmatpush1.msra.mxu0 %v1254
      %1266 = vmatprep.subr.mxu0 0.0
      %1267 = vmatpush1.msra.mxu0 0.0
      %1268 = vmatprep.subr.mxu0 0.0
      %1269 = vmatpush1.msra.mxu0 0.0
      %1270 = vmatprep.subr.mxu0 0.0
      %1271 = vmatpush1.msra.mxu0 0.0
      %1272 = vmatprep.subr.mxu0 0.0
      %1273 = vmatpush1.msra.mxu0 0.0
      %1274 = vmatprep.subr.mxu0 0.0
      %1275 = vmatpush1.msra.mxu0 0.0
      %1276 = vmatprep.subr.mxu0 0.0
      %1277 = vmatpush1.msra.mxu0 0.0
      %1278 = vmatprep.subr.mxu0 0.0
      %1279 = vmatpush1.msra.mxu0 0.0
      %1280 = vmatprep.subr.mxu0 0.0
      %1281 = vmatpush1.msra.mxu0 0.0
      %1282 = vmatprep.subr.mxu0 0.0
      %1283 = vmatpush1.msra.mxu0 0.0
      %1284 = vmatprep.subr.mxu0 0.0
      %1285 = vmatpush1.msra.mxu0 0.0
      %1286 = vmatprep.subr.mxu0 0.0
      %1287 = vmatpush1.msra.mxu0 0.0
      %1288 = vmatprep.subr.mxu0 0.0
      %1289 = vmatpush1.msra.mxu0 0.0
      %1290 = vmatprep.subr.mxu0 0.0
      %1291 = vmatpush1.msra.mxu0 0.0
      %1292 = vmatprep.subr.mxu0 0.0
      %1293 = vmatpush1.msra.mxu0 0.0
      %1294 = vmatprep.subr.mxu0 0.0
      %1295 = vmatpush1.msra.mxu0 0.0
      %1296 = vmatprep.subr.mxu0 0.0
      %1297 = vmatpush1.msra.mxu0 0.0
      %1298 = vmatprep.subr.mxu0 0.0
      %1299 = vmatpush1.msra.mxu0 0.0
      %1300 = vmatprep.subr.mxu0 0.0
      %1301 = vmatpush1.msra.mxu0 0.0
      %1302 = vmatprep.subr.mxu0 0.0
      %1303 = vmatpush1.msra.mxu0 0.0
      %1304 = vmatprep.subr.mxu0 0.0
      %1305 = vmatpush1.msra.mxu0 0.0
      %1306 = vmatprep.subr.mxu0 0.0
      %1307 = vmatpush1.msra.mxu0 0.0
      %1308 = vmatprep.subr.mxu0 0.0
      %1309 = vmatpush1.msra.mxu0 0.0
      %1310 = vmatprep.subr.mxu0 0.0
      %1311 = vmatpush1.msra.mxu0 0.0
      %1312 = vmatprep.subr.mxu0 0.0
      %1313 = vmatpush1.msra.mxu0 0.0
      %1314 = vmatprep.subr.mxu0 0.0
      %1315 = vmatpush1.msra.mxu0 0.0
      %1316 = vmatprep.subr.mxu0 0.0
      %1317 = vmatpush1.msra.mxu0 0.0
      %1318 = vmatprep.subr.mxu0 0.0
      %1319 = vmatpush1.msra.mxu0 0.0
      %1320 = vmatprep.subr.mxu0 0.0
      %1321 = vmatpush1.msra.mxu0 0.0
      %1322 = vmatprep.subr.mxu0 0.0
      %1323 = vmatpush1.msra.mxu0 0.0
      %1324 = vmatprep.subr.mxu0 0.0
      %1325 = vmatpush1.msra.mxu0 0.0
      %1326 = vmatprep.subr.mxu0 0.0
      %1327 = vmatpush1.msra.mxu0 0.0
      %1328 = vmatprep.mubr.f32.mxu0 0.0
      %1329 = vmatmul.mubr.f32.gmra.mrb[0].mxu0 %v1259
      %v1330 = vpop.f32.mrb[0].mxu0
      %v1331 = vadd.f32 0.0, %v1330
      %v1332 = vpop.f32.mrb[0].mxu0
      %v1333 = vadd.f32 0.0, %v1332
      %1334 = vmatprep.mubr.f32.mxu0 0.0
      %1335 = vmatmul.mubr.f32.gmra.mrb[0].mxu0 %v1262
      %v1336 = vpop.f32.mrb[0].mxu0
      %v1337 = vadd.f32 0.0, %v1336
      %v1338 = vpop.f32.mrb[0].mxu0
      %v1339 = vadd.f32 0.0, %v1338
      %1340 = vdwg.mxu0
      %v1341 = vadd.f32 %v1241, %v1331
      %v1342 = vadd.f32 %v1242, %v1333
      %v1343 = vadd.f32 %v1243, %v1337
      %v1344 = vadd.f32 %v1244, %v1339
      %s1345 = scalar_lea.vmem %s1, 192
      %v1346 = vld [vmem:[%s1345] sm:$0xff]
      %v1347 = vld [vmem:[%s1345 + $0x8] sm:$0xff]
      %1348 = vrot.lane.b32.xlu0 %v945, 120
      %v1349 = vpop.permute.xlu0 %1348
      %1350 = vrot.lane.b32.xlu0 %v946, 120
      %v1351 = vpop.permute.xlu0 %1350
      %1352 = vrot.lane.b32.xlu0 %v947, 120
      %v1353 = vpop.permute.xlu0 %1352
      %vm1354 = vcmask 982016
      %v1355 = vsel %vm1354, %v1349, %v1351
      %v1356 = vsel %vm1354, %v1351, %v1353
      %v1360 = vsel %vm166, %v1346, 0
      %v1363 = vsel %vm166, %v1347, 0
      %1365 = vmatprep.subr.mxu0 %v1356
      %1366 = vmatpush1.msra.mxu0 %v1355
      %1367 = vmatprep.subr.mxu0 0.0
      %1368 = vmatpush1.msra.mxu0 0.0
      %1369 = vmatprep.subr.mxu0 0.0
      %1370 = vmatpush1.msra.mxu0 0.0
      %1371 = vmatprep.subr.mxu0 0.0
      %1372 = vmatpush1.msra.mxu0 0.0
      %1373 = vmatprep.subr.mxu0 0.0
      %1374 = vmatpush1.msra.mxu0 0.0
      %1375 = vmatprep.subr.mxu0 0.0
      %1376 = vmatpush1.msra.mxu0 0.0
      %1377 = vmatprep.subr.mxu0 0.0
      %1378 = vmatpush1.msra.mxu0 0.0
      %1379 = vmatprep.subr.mxu0 0.0
      %1380 = vmatpush1.msra.mxu0 0.0
      %1381 = vmatprep.subr.mxu0 0.0
      %1382 = vmatpush1.msra.mxu0 0.0
      %1383 = vmatprep.subr.mxu0 0.0
      %1384 = vmatpush1.msra.mxu0 0.0
      %1385 = vmatprep.subr.mxu0 0.0
      %1386 = vmatpush1.msra.mxu0 0.0
      %1387 = vmatprep.subr.mxu0 0.0
      %1388 = vmatpush1.msra.mxu0 0.0
      %1389 = vmatprep.subr.mxu0 0.0
      %1390 = vmatpush1.msra.mxu0 0.0
      %1391 = vmatprep.subr.mxu0 0.0
      %1392 = vmatpush1.msra.mxu0 0.0
      %1393 = vmatprep.subr.mxu0 0.0
      %1394 = vmatpush1.msra.mxu0 0.0
      %1395 = vmatprep.subr.mxu0 0.0
      %1396 = vmatpush1.msra.mxu0 0.0
      %1397 = vmatprep.subr.mxu0 0.0
      %1398 = vmatpush1.msra.mxu0 0.0
      %1399 = vmatprep.subr.mxu0 0.0
      %1400 = vmatpush1.msra.mxu0 0.0
      %1401 = vmatprep.subr.mxu0 0.0
      %1402 = vmatpush1.msra.mxu0 0.0
      %1403 = vmatprep.subr.mxu0 0.0
      %1404 = vmatpush1.msra.mxu0 0.0
      %1405 = vmatprep.subr.mxu0 0.0
      %1406 = vmatpush1.msra.mxu0 0.0
      %1407 = vmatprep.subr.mxu0 0.0
      %1408 = vmatpush1.msra.mxu0 0.0
      %1409 = vmatprep.subr.mxu0 0.0
      %1410 = vmatpush1.msra.mxu0 0.0
      %1411 = vmatprep.subr.mxu0 0.0
      %1412 = vmatpush1.msra.mxu0 0.0
      %1413 = vmatprep.subr.mxu0 0.0
      %1414 = vmatpush1.msra.mxu0 0.0
      %1415 = vmatprep.subr.mxu0 0.0
      %1416 = vmatpush1.msra.mxu0 0.0
      %1417 = vmatprep.subr.mxu0 0.0
      %1418 = vmatpush1.msra.mxu0 0.0
      %1419 = vmatprep.subr.mxu0 0.0
      %1420 = vmatpush1.msra.mxu0 0.0
      %1421 = vmatprep.subr.mxu0 0.0
      %1422 = vmatpush1.msra.mxu0 0.0
      %1423 = vmatprep.subr.mxu0 0.0
      %1424 = vmatpush1.msra.mxu0 0.0
      %1425 = vmatprep.subr.mxu0 0.0
      %1426 = vmatpush1.msra.mxu0 0.0
      %1427 = vmatprep.subr.mxu0 0.0
      %1428 = vmatpush1.msra.mxu0 0.0
      %1429 = vmatprep.mubr.f32.mxu0 0.0
      %1430 = vmatmul.mubr.f32.gmra.mrb[0].mxu0 %v1360
      %v1431 = vpop.f32.mrb[0].mxu0
      %v1432 = vadd.f32 0.0, %v1431
      %v1433 = vpop.f32.mrb[0].mxu0
      %v1434 = vadd.f32 0.0, %v1433
      %1435 = vmatprep.mubr.f32.mxu0 0.0
      %1436 = vmatmul.mubr.f32.gmra.mrb[0].mxu0 %v1363
      %v1437 = vpop.f32.mrb[0].mxu0
      %v1438 = vadd.f32 0.0, %v1437
      %v1439 = vpop.f32.mrb[0].mxu0
      %v1440 = vadd.f32 0.0, %v1439
      %1441 = vdwg.mxu0
      %v1442 = vadd.f32 %v1341, %v1432
      %v1443 = vadd.f32 %v1342, %v1434
      %v1444 = vadd.f32 %v1343, %v1438
      %v1445 = vadd.f32 %v1344, %v1440
      %s1446 = scalar_lea.vmem %s1, 208
      %v1447 = vld [vmem:[%s1446] sm:$0xff]
      %v1448 = vld [vmem:[%s1446 + $0x8] sm:$0xff]
      %1449 = vrot.lane.b32.xlu0 %v945, 121
      %v1450 = vpop.permute.xlu0 %1449
      %1451 = vrot.lane.b32.xlu0 %v946, 121
      %v1452 = vpop.permute.xlu0 %1451
      %1453 = vrot.lane.b32.xlu0 %v947, 121
      %v1454 = vpop.permute.xlu0 %1453
      %v1455 = vsel %vm555, %v1450, %v1452
      %v1456 = vsel %vm555, %v1452, %v1454
      %v1460 = vsel %vm166, %v1447, 0
      %v1463 = vsel %vm166, %v1448, 0
      %1465 = vmatprep.subr.mxu0 %v1456
      %1466 = vmatpush1.msra.mxu0 %v1455
      %1467 = vmatprep.subr.mxu0 0.0
      %1468 = vmatpush1.msra.mxu0 0.0
      %1469 = vmatprep.subr.mxu0 0.0
      %1470 = vmatpush1.msra.mxu0 0.0
      %1471 = vmatprep.subr.mxu0 0.0
      %1472 = vmatpush1.msra.mxu0 0.0
      %1473 = vmatprep.subr.mxu0 0.0
      %1474 = vmatpush1.msra.mxu0 0.0
      %1475 = vmatprep.subr.mxu0 0.0
      %1476 = vmatpush1.msra.mxu0 0.0
      %1477 = vmatprep.subr.mxu0 0.0
      %1478 = vmatpush1.msra.mxu0 0.0
      %1479 = vmatprep.subr.mxu0 0.0
      %1480 = vmatpush1.msra.mxu0 0.0
      %1481 = vmatprep.subr.mxu0 0.0
      %1482 = vmatpush1.msra.mxu0 0.0
      %1483 = vmatprep.subr.mxu0 0.0
      %1484 = vmatpush1.msra.mxu0 0.0
      %1485 = vmatprep.subr.mxu0 0.0
      %1486 = vmatpush1.msra.mxu0 0.0
      %1487 = vmatprep.subr.mxu0 0.0
      %1488 = vmatpush1.msra.mxu0 0.0
      %1489 = vmatprep.subr.mxu0 0.0
      %1490 = vmatpush1.msra.mxu0 0.0
      %1491 = vmatprep.subr.mxu0 0.0
      %1492 = vmatpush1.msra.mxu0 0.0
      %1493 = vmatprep.subr.mxu0 0.0
      %1494 = vmatpush1.msra.mxu0 0.0
      %1495 = vmatprep.subr.mxu0 0.0
      %1496 = vmatpush1.msra.mxu0 0.0
      %1497 = vmatprep.subr.mxu0 0.0
      %1498 = vmatpush1.msra.mxu0 0.0
      %1499 = vmatprep.subr.mxu0 0.0
      %1500 = vmatpush1.msra.mxu0 0.0
      %1501 = vmatprep.subr.mxu0 0.0
      %1502 = vmatpush1.msra.mxu0 0.0
      %1503 = vmatprep.subr.mxu0 0.0
      %1504 = vmatpush1.msra.mxu0 0.0
      %1505 = vmatprep.subr.mxu0 0.0
      %1506 = vmatpush1.msra.mxu0 0.0
      %1507 = vmatprep.subr.mxu0 0.0
      %1508 = vmatpush1.msra.mxu0 0.0
      %1509 = vmatprep.subr.mxu0 0.0
      %1510 = vmatpush1.msra.mxu0 0.0
      %1511 = vmatprep.subr.mxu0 0.0
      %1512 = vmatpush1.msra.mxu0 0.0
      %1513 = vmatprep.subr.mxu0 0.0
      %1514 = vmatpush1.msra.mxu0 0.0
      %1515 = vmatprep.subr.mxu0 0.0
      %1516 = vmatpush1.msra.mxu0 0.0
      %1517 = vmatprep.subr.mxu0 0.0
      %1518 = vmatpush1.msra.mxu0 0.0
      %1519 = vmatprep.subr.mxu0 0.0
      %1520 = vmatpush1.msra.mxu0 0.0
      %1521 = vmatprep.subr.mxu0 0.0
      %1522 = vmatpush1.msra.mxu0 0.0
      %1523 = vmatprep.subr.mxu0 0.0
      %1524 = vmatpush1.msra.mxu0 0.0
      %1525 = vmatprep.subr.mxu0 0.0
      %1526 = vmatpush1.msra.mxu0 0.0
      %1527 = vmatprep.subr.mxu0 0.0
      %1528 = vmatpush1.msra.mxu0 0.0
      %1529 = vmatprep.mubr.f32.mxu0 0.0
      %1530 = vmatmul.mubr.f32.gmra.mrb[0].mxu0 %v1460
      %v1531 = vpop.f32.mrb[0].mxu0
      %v1532 = vadd.f32 0.0, %v1531
      %v1533 = vpop.f32.mrb[0].mxu0
      %v1534 = vadd.f32 0.0, %v1533
      %1535 = vmatprep.mubr.f32.mxu0 0.0
      %1536 = vmatmul.mubr.f32.gmra.mrb[0].mxu0 %v1463
      %v1537 = vpop.f32.mrb[0].mxu0
      %v1538 = vadd.f32 0.0, %v1537
      %v1539 = vpop.f32.mrb[0].mxu0
      %v1540 = vadd.f32 0.0, %v1539
      %1541 = vdwg.mxu0
      %v1542 = vadd.f32 %v1442, %v1532
      %v1543 = vadd.f32 %v1443, %v1534
      %v1544 = vadd.f32 %v1444, %v1538
      %v1545 = vadd.f32 %v1445, %v1540
      %s1546 = scalar_lea.vmem %s1, 224
      %v1547 = vld [vmem:[%s1546] sm:$0xff]
      %v1548 = vld [vmem:[%s1546 + $0x8] sm:$0xff]
      %1549 = vrot.lane.b32.xlu0 %v945, 126
      %v1550 = vpop.permute.xlu0 %1549
      %1551 = vrot.lane.b32.xlu0 %v946, 126
      %v1552 = vpop.permute.xlu0 %1551
      %1553 = vrot.lane.b32.xlu0 %v947, 126
      %v1554 = vpop.permute.xlu0 %1553
      %vm1555 = vcmask 1031168
      %v1556 = vsel %vm1555, %v1550, %v1552
      %v1557 = vsel %vm1555, %v1552, %v1554
      %v1561 = vsel %vm166, %v1547, 0
      %v1564 = vsel %vm166, %v1548, 0
      %1566 = vmatprep.subr.mxu0 %v1557
      %1567 = vmatpush1.msra.mxu0 %v1556
      %1568 = vmatprep.subr.mxu0 0.0
      %1569 = vmatpush1.msra.mxu0 0.0
      %1570 = vmatprep.subr.mxu0 0.0
      %1571 = vmatpush1.msra.mxu0 0.0
      %1572 = vmatprep.subr.mxu0 0.0
      %1573 = vmatpush1.msra.mxu0 0.0
      %1574 = vmatprep.subr.mxu0 0.0
      %1575 = vmatpush1.msra.mxu0 0.0
      %1576 = vmatprep.subr.mxu0 0.0
      %1577 = vmatpush1.msra.mxu0 0.0
      %1578 = vmatprep.subr.mxu0 0.0
      %1579 = vmatpush1.msra.mxu0 0.0
      %1580 = vmatprep.subr.mxu0 0.0
      %1581 = vmatpush1.msra.mxu0 0.0
      %1582 = vmatprep.subr.mxu0 0.0
      %1583 = vmatpush1.msra.mxu0 0.0
      %1584 = vmatprep.subr.mxu0 0.0
      %1585 = vmatpush1.msra.mxu0 0.0
      %1586 = vmatprep.subr.mxu0 0.0
      %1587 = vmatpush1.msra.mxu0 0.0
      %1588 = vmatprep.subr.mxu0 0.0
      %1589 = vmatpush1.msra.mxu0 0.0
      %1590 = vmatprep.subr.mxu0 0.0
      %1591 = vmatpush1.msra.mxu0 0.0
      %1592 = vmatprep.subr.mxu0 0.0
      %1593 = vmatpush1.msra.mxu0 0.0
      %1594 = vmatprep.subr.mxu0 0.0
      %1595 = vmatpush1.msra.mxu0 0.0
      %1596 = vmatprep.subr.mxu0 0.0
      %1597 = vmatpush1.msra.mxu0 0.0
      %1598 = vmatprep.subr.mxu0 0.0
      %1599 = vmatpush1.msra.mxu0 0.0
      %1600 = vmatprep.subr.mxu0 0.0
      %1601 = vmatpush1.msra.mxu0 0.0
      %1602 = vmatprep.subr.mxu0 0.0
      %1603 = vmatpush1.msra.mxu0 0.0
      %1604 = vmatprep.subr.mxu0 0.0
      %1605 = vmatpush1.msra.mxu0 0.0
      %1606 = vmatprep.subr.mxu0 0.0
      %1607 = vmatpush1.msra.mxu0 0.0
      %1608 = vmatprep.subr.mxu0 0.0
      %1609 = vmatpush1.msra.mxu0 0.0
      %1610 = vmatprep.subr.mxu0 0.0
      %1611 = vmatpush1.msra.mxu0 0.0
      %1612 = vmatprep.subr.mxu0 0.0
      %1613 = vmatpush1.msra.mxu0 0.0
      %1614 = vmatprep.subr.mxu0 0.0
      %1615 = vmatpush1.msra.mxu0 0.0
      %1616 = vmatprep.subr.mxu0 0.0
      %1617 = vmatpush1.msra.mxu0 0.0
      %1618 = vmatprep.subr.mxu0 0.0
      %1619 = vmatpush1.msra.mxu0 0.0
      %1620 = vmatprep.subr.mxu0 0.0
      %1621 = vmatpush1.msra.mxu0 0.0
      %1622 = vmatprep.subr.mxu0 0.0
      %1623 = vmatpush1.msra.mxu0 0.0
      %1624 = vmatprep.subr.mxu0 0.0
      %1625 = vmatpush1.msra.mxu0 0.0
      %1626 = vmatprep.subr.mxu0 0.0
      %1627 = vmatpush1.msra.mxu0 0.0
      %1628 = vmatprep.subr.mxu0 0.0
      %1629 = vmatpush1.msra.mxu0 0.0
      %1630 = vmatprep.mubr.f32.mxu0 0.0
      %1631 = vmatmul.mubr.f32.gmra.mrb[0].mxu0 %v1561
      %v1632 = vpop.f32.mrb[0].mxu0
      %v1633 = vadd.f32 0.0, %v1632
      %v1634 = vpop.f32.mrb[0].mxu0
      %v1635 = vadd.f32 0.0, %v1634
      %1636 = vmatprep.mubr.f32.mxu0 0.0
      %1637 = vmatmul.mubr.f32.gmra.mrb[0].mxu0 %v1564
      %v1638 = vpop.f32.mrb[0].mxu0
      %v1639 = vadd.f32 0.0, %v1638
      %v1640 = vpop.f32.mrb[0].mxu0
      %v1641 = vadd.f32 0.0, %v1640
      %1642 = vdwg.mxu0
      %v1643 = vadd.f32 %v1542, %v1633
      %v1644 = vadd.f32 %v1543, %v1635
      %v1645 = vadd.f32 %v1544, %v1639
      %v1646 = vadd.f32 %v1545, %v1641
      %s1647 = scalar_lea.vmem %s1, 240
      %v1648 = vld [vmem:[%s1647] sm:$0xff]
      %v1649 = vld [vmem:[%s1647 + $0x8] sm:$0xff]
      %1650 = vrot.lane.b32.xlu0 %v945, 127
      %v1651 = vpop.permute.xlu0 %1650
      %1652 = vrot.lane.b32.xlu0 %v946, 127
      %v1653 = vpop.permute.xlu0 %1652
      %1654 = vrot.lane.b32.xlu0 %v947, 127
      %v1655 = vpop.permute.xlu0 %1654
      %v1656 = vsel %vm757, %v1651, %v1653
      %v1657 = vsel %vm757, %v1653, %v1655
      %v1661 = vsel %vm166, %v1648, 0
      %v1664 = vsel %vm166, %v1649, 0
      %1666 = vmatprep.subr.mxu0 %v1657
      %1667 = vmatpush1.msra.mxu0 %v1656
      %1668 = vmatprep.subr.mxu0 0.0
      %1669 = vmatpush1.msra.mxu0 0.0
      %1670 = vmatprep.subr.mxu0 0.0
      %1671 = vmatpush1.msra.mxu0 0.0
      %1672 = vmatprep.subr.mxu0 0.0
      %1673 = vmatpush1.msra.mxu0 0.0
      %1674 = vmatprep.subr.mxu0 0.0
      %1675 = vmatpush1.msra.mxu0 0.0
      %1676 = vmatprep.subr.mxu0 0.0
      %1677 = vmatpush1.msra.mxu0 0.0
      %1678 = vmatprep.subr.mxu0 0.0
      %1679 = vmatpush1.msra.mxu0 0.0
      %1680 = vmatprep.subr.mxu0 0.0
      %1681 = vmatpush1.msra.mxu0 0.0
      %1682 = vmatprep.subr.mxu0 0.0
      %1683 = vmatpush1.msra.mxu0 0.0
      %1684 = vmatprep.subr.mxu0 0.0
      %1685 = vmatpush1.msra.mxu0 0.0
      %1686 = vmatprep.subr.mxu0 0.0
      %1687 = vmatpush1.msra.mxu0 0.0
      %1688 = vmatprep.subr.mxu0 0.0
      %1689 = vmatpush1.msra.mxu0 0.0
      %1690 = vmatprep.subr.mxu0 0.0
      %1691 = vmatpush1.msra.mxu0 0.0
      %1692 = vmatprep.subr.mxu0 0.0
      %1693 = vmatpush1.msra.mxu0 0.0
      %1694 = vmatprep.subr.mxu0 0.0
      %1695 = vmatpush1.msra.mxu0 0.0
      %1696 = vmatprep.subr.mxu0 0.0
      %1697 = vmatpush1.msra.mxu0 0.0
      %1698 = vmatprep.subr.mxu0 0.0
      %1699 = vmatpush1.msra.mxu0 0.0
      %1700 = vmatprep.subr.mxu0 0.0
      %1701 = vmatpush1.msra.mxu0 0.0
      %1702 = vmatprep.subr.mxu0 0.0
      %1703 = vmatpush1.msra.mxu0 0.0
      %1704 = vmatprep.subr.mxu0 0.0
      %1705 = vmatpush1.msra.mxu0 0.0
      %1706 = vmatprep.subr.mxu0 0.0
      %1707 = vmatpush1.msra.mxu0 0.0
      %1708 = vmatprep.subr.mxu0 0.0
      %1709 = vmatpush1.msra.mxu0 0.0
      %1710 = vmatprep.subr.mxu0 0.0
      %1711 = vmatpush1.msra.mxu0 0.0
      %1712 = vmatprep.subr.mxu0 0.0
      %1713 = vmatpush1.msra.mxu0 0.0
      %1714 = vmatprep.subr.mxu0 0.0
      %1715 = vmatpush1.msra.mxu0 0.0
      %1716 = vmatprep.subr.mxu0 0.0
      %1717 = vmatpush1.msra.mxu0 0.0
      %1718 = vmatprep.subr.mxu0 0.0
      %1719 = vmatpush1.msra.mxu0 0.0
      %1720 = vmatprep.subr.mxu0 0.0
      %1721 = vmatpush1.msra.mxu0 0.0
      %1722 = vmatprep.subr.mxu0 0.0
      %1723 = vmatpush1.msra.mxu0 0.0
      %1724 = vmatprep.subr.mxu0 0.0
      %1725 = vmatpush1.msra.mxu0 0.0
      %1726 = vmatprep.subr.mxu0 0.0
      %1727 = vmatpush1.msra.mxu0 0.0
      %1728 = vmatprep.subr.mxu0 0.0
      %1729 = vmatpush1.msra.mxu0 0.0
      %1730 = vmatprep.mubr.f32.mxu0 0.0
      %1731 = vmatmul.mubr.f32.gmra.mrb[0].mxu0 %v1661
      %v1732 = vpop.f32.mrb[0].mxu0
      %v1733 = vadd.f32 0.0, %v1732
      %v1734 = vpop.f32.mrb[0].mxu0
      %v1735 = vadd.f32 0.0, %v1734
      %1736 = vmatprep.mubr.f32.mxu0 0.0
      %1737 = vmatmul.mubr.f32.gmra.mrb[0].mxu0 %v1664
      %v1738 = vpop.f32.mrb[0].mxu0
      %v1739 = vadd.f32 0.0, %v1738
      %v1740 = vpop.f32.mrb[0].mxu0
      %v1741 = vadd.f32 0.0, %v1740
      %1742 = vdwg.mxu0
      %v1743 = vadd.f32 %v1643, %v1733
      %v1744 = vadd.f32 %v1644, %v1735
      %v1745 = vadd.f32 %v1645, %v1739
      %v1746 = vadd.f32 %v1646, %v1741
      %s1747 = scalar_lea.vmem %s143, 32
      %1748 = vst [vmem:[%s1747] sm:$0xff] %v1743
      %1749 = vst [vmem:[%s1747 + $0x8] sm:$0xff] %v1744
      %1750 = vst [vmem:[%s1747 + $0x10] sm:$0xff] %v1745
      %1751 = vst [vmem:[%s1747 + $0x18] sm:$0xff] %v1746
      %v1752 = vld [vmem:[%s138] sm:$0xff]
      %v1753 = vld [vmem:[%s138 + $0x8] sm:$0xff]
      %v1754 = vld [vmem:[%s138 + $0x10] sm:$0xff]
      %s1755 = scalar_lea.vmem %s1, 256
      %v1756 = vld [vmem:[%s1755] sm:$0xff]
      %v1757 = vld [vmem:[%s1755 + $0x8] sm:$0xff]
      %s1758 = scalar_lea.vmem %s1, 272
      %v1759 = vld [vmem:[%s1758] sm:$0xff]
      %v1760 = vld [vmem:[%s1758 + $0x8] sm:$0xff]
      %1764 = vrot.lane.b32.xlu0 %v1752, 80
      %v1765 = vpop.permute.xlu0 %1764
      %1766 = vrot.lane.b32.xlu0 %v1753, 80
      %v1767 = vpop.permute.xlu0 %1766
      %1768 = vrot.lane.b32.xlu0 %v1754, 80
      %v1769 = vpop.permute.xlu0 %1768
      %vm1770 = vcmask 654336
      %v1771 = vsel %vm1770, %v1765, %v1767
      %v1772 = vsel %vm1770, %v1767, %v1769
      %v1776 = vsel %vm166, %v1759, 0
      %v1779 = vsel %vm166, %v1760, 0
      %1781 = vmatprep.subr.mxu0 %v1772
      %1782 = vmatpush1.msra.mxu0 %v1771
      %1783 = vmatprep.subr.mxu0 0.0
      %1784 = vmatpush1.msra.mxu0 0.0
      %1785 = vmatprep.subr.mxu0 0.0
      %1786 = vmatpush1.msra.mxu0 0.0
      %1787 = vmatprep.subr.mxu0 0.0
      %1788 = vmatpush1.msra.mxu0 0.0
      %1789 = vmatprep.subr.mxu0 0.0
      %1790 = vmatpush1.msra.mxu0 0.0
      %1791 = vmatprep.subr.mxu0 0.0
      %1792 = vmatpush1.msra.mxu0 0.0
      %1793 = vmatprep.subr.mxu0 0.0
      %1794 = vmatpush1.msra.mxu0 0.0
      %1795 = vmatprep.subr.mxu0 0.0
      %1796 = vmatpush1.msra.mxu0 0.0
      %1797 = vmatprep.subr.mxu0 0.0
      %1798 = vmatpush1.msra.mxu0 0.0
      %1799 = vmatprep.subr.mxu0 0.0
      %1800 = vmatpush1.msra.mxu0 0.0
      %1801 = vmatprep.subr.mxu0 0.0
      %1802 = vmatpush1.msra.mxu0 0.0
      %1803 = vmatprep.subr.mxu0 0.0
      %1804 = vmatpush1.msra.mxu0 0.0
      %1805 = vmatprep.subr.mxu0 0.0
      %1806 = vmatpush1.msra.mxu0 0.0
      %1807 = vmatprep.subr.mxu0 0.0
      %1808 = vmatpush1.msra.mxu0 0.0
      %1809 = vmatprep.subr.mxu0 0.0
      %1810 = vmatpush1.msra.mxu0 0.0
      %1811 = vmatprep.subr.mxu0 0.0
      %1812 = vmatpush1.msra.mxu0 0.0
      %1813 = vmatprep.subr.mxu0 0.0
      %1814 = vmatpush1.msra.mxu0 0.0
      %1815 = vmatprep.subr.mxu0 0.0
      %1816 = vmatpush1.msra.mxu0 0.0
      %1817 = vmatprep.subr.mxu0 0.0
      %1818 = vmatpush1.msra.mxu0 0.0
      %1819 = vmatprep.subr.mxu0 0.0
      %1820 = vmatpush1.msra.mxu0 0.0
      %1821 = vmatprep.subr.mxu0 0.0
      %1822 = vmatpush1.msra.mxu0 0.0
      %1823 = vmatprep.subr.mxu0 0.0
      %1824 = vmatpush1.msra.mxu0 0.0
      %1825 = vmatprep.subr.mxu0 0.0
      %1826 = vmatpush1.msra.mxu0 0.0
      %1827 = vmatprep.subr.mxu0 0.0
      %1828 = vmatpush1.msra.mxu0 0.0
      %1829 = vmatprep.subr.mxu0 0.0
      %1830 = vmatpush1.msra.mxu0 0.0
      %1831 = vmatprep.subr.mxu0 0.0
      %1832 = vmatpush1.msra.mxu0 0.0
      %1833 = vmatprep.subr.mxu0 0.0
      %1834 = vmatpush1.msra.mxu0 0.0
      %1835 = vmatprep.subr.mxu0 0.0
      %1836 = vmatpush1.msra.mxu0 0.0
      %1837 = vmatprep.subr.mxu0 0.0
      %1838 = vmatpush1.msra.mxu0 0.0
      %1839 = vmatprep.subr.mxu0 0.0
      %1840 = vmatpush1.msra.mxu0 0.0
      %1841 = vmatprep.subr.mxu0 0.0
      %1842 = vmatpush1.msra.mxu0 0.0
      %1843 = vmatprep.subr.mxu0 0.0
      %1844 = vmatpush1.msra.mxu0 0.0
      %1845 = vmatprep.mubr.f32.mxu0 0.0
      %1846 = vmatmul.mubr.f32.gmra.mrb[0].mxu0 %v1776
      %v1847 = vpop.f32.mrb[0].mxu0
      %v1848 = vadd.f32 0.0, %v1847
      %v1849 = vpop.f32.mrb[0].mxu0
      %v1850 = vadd.f32 0.0, %v1849
      %1851 = vmatprep.mubr.f32.mxu0 0.0
      %1852 = vmatmul.mubr.f32.gmra.mrb[0].mxu0 %v1779
      %v1853 = vpop.f32.mrb[0].mxu0
      %v1854 = vadd.f32 0.0, %v1853
      %v1855 = vpop.f32.mrb[0].mxu0
      %v1856 = vadd.f32 0.0, %v1855
      %1857 = vdwg.mxu0
      %1858 = vrot.lane.b32.xlu0 %v1752, 79
      %v1859 = vpop.permute.xlu0 %1858
      %1860 = vrot.lane.b32.xlu0 %v1753, 79
      %v1861 = vpop.permute.xlu0 %1860
      %1862 = vrot.lane.b32.xlu0 %v1754, 79
      %v1863 = vpop.permute.xlu0 %1862
      %vm1864 = vcmask 646144
      %v1865 = vsel %vm1864, %v1859, %v1861
      %v1866 = vsel %vm1864, %v1861, %v1863
      %v1870 = vsel %vm166, %v1756, 0
      %v1873 = vsel %vm166, %v1757, 0
      %1875 = vmatprep.subr.mxu0 %v1866
      %1876 = vmatpush1.msra.mxu0 %v1865
      %1877 = vmatprep.subr.mxu0 0.0
      %1878 = vmatpush1.msra.mxu0 0.0
      %1879 = vmatprep.subr.mxu0 0.0
      %1880 = vmatpush1.msra.mxu0 0.0
      %1881 = vmatprep.subr.mxu0 0.0
      %1882 = vmatpush1.msra.mxu0 0.0
      %1883 = vmatprep.subr.mxu0 0.0
      %1884 = vmatpush1.msra.mxu0 0.0
      %1885 = vmatprep.subr.mxu0 0.0
      %1886 = vmatpush1.msra.mxu0 0.0
      %1887 = vmatprep.subr.mxu0 0.0
      %1888 = vmatpush1.msra.mxu0 0.0
      %1889 = vmatprep.subr.mxu0 0.0
      %1890 = vmatpush1.msra.mxu0 0.0
      %1891 = vmatprep.subr.mxu0 0.0
      %1892 = vmatpush1.msra.mxu0 0.0
      %1893 = vmatprep.subr.mxu0 0.0
      %1894 = vmatpush1.msra.mxu0 0.0
      %1895 = vmatprep.subr.mxu0 0.0
      %1896 = vmatpush1.msra.mxu0 0.0
      %1897 = vmatprep.subr.mxu0 0.0
      %1898 = vmatpush1.msra.mxu0 0.0
      %1899 = vmatprep.subr.mxu0 0.0
      %1900 = vmatpush1.msra.mxu0 0.0
      %1901 = vmatprep.subr.mxu0 0.0
      %1902 = vmatpush1.msra.mxu0 0.0
      %1903 = vmatprep.subr.mxu0 0.0
      %1904 = vmatpush1.msra.mxu0 0.0
      %1905 = vmatprep.subr.mxu0 0.0
      %1906 = vmatpush1.msra.mxu0 0.0
      %1907 = vmatprep.subr.mxu0 0.0
      %1908 = vmatpush1.msra.mxu0 0.0
      %1909 = vmatprep.subr.mxu0 0.0
      %1910 = vmatpush1.msra.mxu0 0.0
      %1911 = vmatprep.subr.mxu0 0.0
      %1912 = vmatpush1.msra.mxu0 0.0
      %1913 = vmatprep.subr.mxu0 0.0
      %1914 = vmatpush1.msra.mxu0 0.0
      %1915 = vmatprep.subr.mxu0 0.0
      %1916 = vmatpush1.msra.mxu0 0.0
      %1917 = vmatprep.subr.mxu0 0.0
      %1918 = vmatpush1.msra.mxu0 0.0
      %1919 = vmatprep.subr.mxu0 0.0
      %1920 = vmatpush1.msra.mxu0 0.0
      %1921 = vmatprep.subr.mxu0 0.0
      %1922 = vmatpush1.msra.mxu0 0.0
      %1923 = vmatprep.subr.mxu0 0.0
      %1924 = vmatpush1.msra.mxu0 0.0
      %1925 = vmatprep.subr.mxu0 0.0
      %1926 = vmatpush1.msra.mxu0 0.0
      %1927 = vmatprep.subr.mxu0 0.0
      %1928 = vmatpush1.msra.mxu0 0.0
      %1929 = vmatprep.subr.mxu0 0.0
      %1930 = vmatpush1.msra.mxu0 0.0
      %1931 = vmatprep.subr.mxu0 0.0
      %1932 = vmatpush1.msra.mxu0 0.0
      %1933 = vmatprep.subr.mxu0 0.0
      %1934 = vmatpush1.msra.mxu0 0.0
      %1935 = vmatprep.subr.mxu0 0.0
      %1936 = vmatpush1.msra.mxu0 0.0
      %1937 = vmatprep.subr.mxu0 0.0
      %1938 = vmatpush1.msra.mxu0 0.0
      %1939 = vmatprep.mubr.f32.mxu0 0.0
      %1940 = vmatmul.mubr.f32.gmra.mrb[0].mxu0 %v1870
      %v1941 = vpop.f32.mrb[0].mxu0
      %v1942 = vadd.f32 %v1848, %v1941
      %v1943 = vpop.f32.mrb[0].mxu0
      %v1944 = vadd.f32 %v1850, %v1943
      %1945 = vmatprep.mubr.f32.mxu0 0.0
      %1946 = vmatmul.mubr.f32.gmra.mrb[0].mxu0 %v1873
      %v1947 = vpop.f32.mrb[0].mxu0
      %v1948 = vadd.f32 %v1854, %v1947
      %v1949 = vpop.f32.mrb[0].mxu0
      %v1950 = vadd.f32 %v1856, %v1949
      %1951 = vdwg.mxu0
      %s1952 = scalar_lea.vmem %s1, 288
      %v1953 = vld [vmem:[%s1952] sm:$0xff]
      %v1954 = vld [vmem:[%s1952 + $0x8] sm:$0xff]
      %1955 = vrot.lane.b32.xlu0 %v1752, 85
      %v1956 = vpop.permute.xlu0 %1955
      %1957 = vrot.lane.b32.xlu0 %v1753, 85
      %v1958 = vpop.permute.xlu0 %1957
      %1959 = vrot.lane.b32.xlu0 %v1754, 85
      %v1960 = vpop.permute.xlu0 %1959
      %v1961 = vsel %vm256, %v1956, %v1958
      %v1962 = vsel %vm256, %v1958, %v1960
      %v1966 = vsel %vm166, %v1953, 0
      %v1969 = vsel %vm166, %v1954, 0
      %1971 = vmatprep.subr.mxu0 %v1962
      %1972 = vmatpush1.msra.mxu0 %v1961
      %1973 = vmatprep.subr.mxu0 0.0
      %1974 = vmatpush1.msra.mxu0 0.0
      %1975 = vmatprep.subr.mxu0 0.0
      %1976 = vmatpush1.msra.mxu0 0.0
      %1977 = vmatprep.subr.mxu0 0.0
      %1978 = vmatpush1.msra.mxu0 0.0
      %1979 = vmatprep.subr.mxu0 0.0
      %1980 = vmatpush1.msra.mxu0 0.0
      %1981 = vmatprep.subr.mxu0 0.0
      %1982 = vmatpush1.msra.mxu0 0.0
      %1983 = vmatprep.subr.mxu0 0.0
      %1984 = vmatpush1.msra.mxu0 0.0
      %1985 = vmatprep.subr.mxu0 0.0
      %1986 = vmatpush1.msra.mxu0 0.0
      %1987 = vmatprep.subr.mxu0 0.0
      %1988 = vmatpush1.msra.mxu0 0.0
      %1989 = vmatprep.subr.mxu0 0.0
      %1990 = vmatpush1.msra.mxu0 0.0
      %1991 = vmatprep.subr.mxu0 0.0
      %1992 = vmatpush1.msra.mxu0 0.0
      %1993 = vmatprep.subr.mxu0 0.0
      %1994 = vmatpush1.msra.mxu0 0.0
      %1995 = vmatprep.subr.mxu0 0.0
      %1996 = vmatpush1.msra.mxu0 0.0
      %1997 = vmatprep.subr.mxu0 0.0
      %1998 = vmatpush1.msra.mxu0 0.0
      %1999 = vmatprep.subr.mxu0 0.0
      %2000 = vmatpush1.msra.mxu0 0.0
      %2001 = vmatprep.subr.mxu0 0.0
      %2002 = vmatpush1.msra.mxu0 0.0
      %2003 = vmatprep.subr.mxu0 0.0
      %2004 = vmatpush1.msra.mxu0 0.0
      %2005 = vmatprep.subr.mxu0 0.0
      %2006 = vmatpush1.msra.mxu0 0.0
      %2007 = vmatprep.subr.mxu0 0.0
      %2008 = vmatpush1.msra.mxu0 0.0
      %2009 = vmatprep.subr.mxu0 0.0
      %2010 = vmatpush1.msra.mxu0 0.0
      %2011 = vmatprep.subr.mxu0 0.0
      %2012 = vmatpush1.msra.mxu0 0.0
      %2013 = vmatprep.subr.mxu0 0.0
      %2014 = vmatpush1.msra.mxu0 0.0
      %2015 = vmatprep.subr.mxu0 0.0
      %2016 = vmatpush1.msra.mxu0 0.0
      %2017 = vmatprep.subr.mxu0 0.0
      %2018 = vmatpush1.msra.mxu0 0.0
      %2019 = vmatprep.subr.mxu0 0.0
      %2020 = vmatpush1.msra.mxu0 0.0
      %2021 = vmatprep.subr.mxu0 0.0
      %2022 = vmatpush1.msra.mxu0 0.0
      %2023 = vmatprep.subr.mxu0 0.0
      %2024 = vmatpush1.msra.mxu0 0.0
      %2025 = vmatprep.subr.mxu0 0.0
      %2026 = vmatpush1.msra.mxu0 0.0
      %2027 = vmatprep.subr.mxu0 0.0
      %2028 = vmatpush1.msra.mxu0 0.0
      %2029 = vmatprep.subr.mxu0 0.0
      %2030 = vmatpush1.msra.mxu0 0.0
      %2031 = vmatprep.subr.mxu0 0.0
      %2032 = vmatpush1.msra.mxu0 0.0
      %2033 = vmatprep.subr.mxu0 0.0
      %2034 = vmatpush1.msra.mxu0 0.0
      %2035 = vmatprep.mubr.f32.mxu0 0.0
      %2036 = vmatmul.mubr.f32.gmra.mrb[0].mxu0 %v1966
      %v2037 = vpop.f32.mrb[0].mxu0
      %v2038 = vadd.f32 0.0, %v2037
      %v2039 = vpop.f32.mrb[0].mxu0
      %v2040 = vadd.f32 0.0, %v2039
      %2041 = vmatprep.mubr.f32.mxu0 0.0
      %2042 = vmatmul.mubr.f32.gmra.mrb[0].mxu0 %v1969
      %v2043 = vpop.f32.mrb[0].mxu0
      %v2044 = vadd.f32 0.0, %v2043
      %v2045 = vpop.f32.mrb[0].mxu0
      %v2046 = vadd.f32 0.0, %v2045
      %2047 = vdwg.mxu0
      %v2048 = vadd.f32 %v1942, %v2038
      %v2049 = vadd.f32 %v1944, %v2040
      %v2050 = vadd.f32 %v1948, %v2044
      %v2051 = vadd.f32 %v1950, %v2046
      %s2052 = scalar_lea.vmem %s1, 304
      %v2053 = vld [vmem:[%s2052] sm:$0xff]
      %v2054 = vld [vmem:[%s2052 + $0x8] sm:$0xff]
      %2055 = vrot.lane.b32.xlu0 %v1752, 86
      %v2056 = vpop.permute.xlu0 %2055
      %2057 = vrot.lane.b32.xlu0 %v1753, 86
      %v2058 = vpop.permute.xlu0 %2057
      %2059 = vrot.lane.b32.xlu0 %v1754, 86
      %v2060 = vpop.permute.xlu0 %2059
      %v2061 = vsel %vm161, %v2056, %v2058
      %v2062 = vsel %vm161, %v2058, %v2060
      %v2066 = vsel %vm166, %v2053, 0
      %v2069 = vsel %vm166, %v2054, 0
      %2071 = vmatprep.subr.mxu0 %v2062
      %2072 = vmatpush1.msra.mxu0 %v2061
      %2073 = vmatprep.subr.mxu0 0.0
      %2074 = vmatpush1.msra.mxu0 0.0
      %2075 = vmatprep.subr.mxu0 0.0
      %2076 = vmatpush1.msra.mxu0 0.0
      %2077 = vmatprep.subr.mxu0 0.0
      %2078 = vmatpush1.msra.mxu0 0.0
      %2079 = vmatprep.subr.mxu0 0.0
      %2080 = vmatpush1.msra.mxu0 0.0
      %2081 = vmatprep.subr.mxu0 0.0
      %2082 = vmatpush1.msra.mxu0 0.0
      %2083 = vmatprep.subr.mxu0 0.0
      %2084 = vmatpush1.msra.mxu0 0.0
      %2085 = vmatprep.subr.mxu0 0.0
      %2086 = vmatpush1.msra.mxu0 0.0
      %2087 = vmatprep.subr.mxu0 0.0
      %2088 = vmatpush1.msra.mxu0 0.0
      %2089 = vmatprep.subr.mxu0 0.0
      %2090 = vmatpush1.msra.mxu0 0.0
      %2091 = vmatprep.subr.mxu0 0.0
      %2092 = vmatpush1.msra.mxu0 0.0
      %2093 = vmatprep.subr.mxu0 0.0
      %2094 = vmatpush1.msra.mxu0 0.0
      %2095 = vmatprep.subr.mxu0 0.0
      %2096 = vmatpush1.msra.mxu0 0.0
      %2097 = vmatprep.subr.mxu0 0.0
      %2098 = vmatpush1.msra.mxu0 0.0
      %2099 = vmatprep.subr.mxu0 0.0
      %2100 = vmatpush1.msra.mxu0 0.0
      %2101 = vmatprep.subr.mxu0 0.0
      %2102 = vmatpush1.msra.mxu0 0.0
      %2103 = vmatprep.subr.mxu0 0.0
      %2104 = vmatpush1.msra.mxu0 0.0
      %2105 = vmatprep.subr.mxu0 0.0
      %2106 = vmatpush1.msra.mxu0 0.0
      %2107 = vmatprep.subr.mxu0 0.0
      %2108 = vmatpush1.msra.mxu0 0.0
      %2109 = vmatprep.subr.mxu0 0.0
      %2110 = vmatpush1.msra.mxu0 0.0
      %2111 = vmatprep.subr.mxu0 0.0
      %2112 = vmatpush1.msra.mxu0 0.0
      %2113 = vmatprep.subr.mxu0 0.0
      %2114 = vmatpush1.msra.mxu0 0.0
      %2115 = vmatprep.subr.mxu0 0.0
      %2116 = vmatpush1.msra.mxu0 0.0
      %2117 = vmatprep.subr.mxu0 0.0
      %2118 = vmatpush1.msra.mxu0 0.0
      %2119 = vmatprep.subr.mxu0 0.0
      %2120 = vmatpush1.msra.mxu0 0.0
      %2121 = vmatprep.subr.mxu0 0.0
      %2122 = vmatpush1.msra.mxu0 0.0
      %2123 = vmatprep.subr.mxu0 0.0
      %2124 = vmatpush1.msra.mxu0 0.0
      %2125 = vmatprep.subr.mxu0 0.0
      %2126 = vmatpush1.msra.mxu0 0.0
      %2127 = vmatprep.subr.mxu0 0.0
      %2128 = vmatpush1.msra.mxu0 0.0
      %2129 = vmatprep.subr.mxu0 0.0
      %2130 = vmatpush1.msra.mxu0 0.0
      %2131 = vmatprep.subr.mxu0 0.0
      %2132 = vmatpush1.msra.mxu0 0.0
      %2133 = vmatprep.subr.mxu0 0.0
      %2134 = vmatpush1.msra.mxu0 0.0
      %2135 = vmatprep.mubr.f32.mxu0 0.0
      %2136 = vmatmul.mubr.f32.gmra.mrb[0].mxu0 %v2066
      %v2137 = vpop.f32.mrb[0].mxu0
      %v2138 = vadd.f32 0.0, %v2137
      %v2139 = vpop.f32.mrb[0].mxu0
      %v2140 = vadd.f32 0.0, %v2139
      %2141 = vmatprep.mubr.f32.mxu0 0.0
      %2142 = vmatmul.mubr.f32.gmra.mrb[0].mxu0 %v2069
      %v2143 = vpop.f32.mrb[0].mxu0
      %v2144 = vadd.f32 0.0, %v2143
      %v2145 = vpop.f32.mrb[0].mxu0
      %v2146 = vadd.f32 0.0, %v2145
      %2147 = vdwg.mxu0
      %v2148 = vadd.f32 %v2048, %v2138
      %v2149 = vadd.f32 %v2049, %v2140
      %v2150 = vadd.f32 %v2050, %v2144
      %v2151 = vadd.f32 %v2051, %v2146
      %s2152 = scalar_lea.vmem %s1, 320
      %v2153 = vld [vmem:[%s2152] sm:$0xff]
      %v2154 = vld [vmem:[%s2152 + $0x8] sm:$0xff]
      %2155 = vrot.lane.b32.xlu0 %v1752, 115
      %v2156 = vpop.permute.xlu0 %2155
      %2157 = vrot.lane.b32.xlu0 %v1753, 115
      %v2158 = vpop.permute.xlu0 %2157
      %2159 = vrot.lane.b32.xlu0 %v1754, 115
      %v2160 = vpop.permute.xlu0 %2159
      %vm2161 = vcmask 941056
      %v2162 = vsel %vm2161, %v2156, %v2158
      %v2163 = vsel %vm2161, %v2158, %v2160
      %v2167 = vsel %vm166, %v2153, 0
      %v2170 = vsel %vm166, %v2154, 0
      %2172 = vmatprep.subr.mxu0 %v2163
      %2173 = vmatpush1.msra.mxu0 %v2162
      %2174 = vmatprep.subr.mxu0 0.0
      %2175 = vmatpush1.msra.mxu0 0.0
      %2176 = vmatprep.subr.mxu0 0.0
      %2177 = vmatpush1.msra.mxu0 0.0
      %2178 = vmatprep.subr.mxu0 0.0
      %2179 = vmatpush1.msra.mxu0 0.0
      %2180 = vmatprep.subr.mxu0 0.0
      %2181 = vmatpush1.msra.mxu0 0.0
      %2182 = vmatprep.subr.mxu0 0.0
      %2183 = vmatpush1.msra.mxu0 0.0
      %2184 = vmatprep.subr.mxu0 0.0
      %2185 = vmatpush1.msra.mxu0 0.0
      %2186 = vmatprep.subr.mxu0 0.0
      %2187 = vmatpush1.msra.mxu0 0.0
      %2188 = vmatprep.subr.mxu0 0.0
      %2189 = vmatpush1.msra.mxu0 0.0
      %2190 = vmatprep.subr.mxu0 0.0
      %2191 = vmatpush1.msra.mxu0 0.0
      %2192 = vmatprep.subr.mxu0 0.0
      %2193 = vmatpush1.msra.mxu0 0.0
      %2194 = vmatprep.subr.mxu0 0.0
      %2195 = vmatpush1.msra.mxu0 0.0
      %2196 = vmatprep.subr.mxu0 0.0
      %2197 = vmatpush1.msra.mxu0 0.0
      %2198 = vmatprep.subr.mxu0 0.0
      %2199 = vmatpush1.msra.mxu0 0.0
      %2200 = vmatprep.subr.mxu0 0.0
      %2201 = vmatpush1.msra.mxu0 0.0
      %2202 = vmatprep.subr.mxu0 0.0
      %2203 = vmatpush1.msra.mxu0 0.0
      %2204 = vmatprep.subr.mxu0 0.0
      %2205 = vmatpush1.msra.mxu0 0.0
      %2206 = vmatprep.subr.mxu0 0.0
      %2207 = vmatpush1.msra.mxu0 0.0
      %2208 = vmatprep.subr.mxu0 0.0
      %2209 = vmatpush1.msra.mxu0 0.0
      %2210 = vmatprep.subr.mxu0 0.0
      %2211 = vmatpush1.msra.mxu0 0.0
      %2212 = vmatprep.subr.mxu0 0.0
      %2213 = vmatpush1.msra.mxu0 0.0
      %2214 = vmatprep.subr.mxu0 0.0
      %2215 = vmatpush1.msra.mxu0 0.0
      %2216 = vmatprep.subr.mxu0 0.0
      %2217 = vmatpush1.msra.mxu0 0.0
      %2218 = vmatprep.subr.mxu0 0.0
      %2219 = vmatpush1.msra.mxu0 0.0
      %2220 = vmatprep.subr.mxu0 0.0
      %2221 = vmatpush1.msra.mxu0 0.0
      %2222 = vmatprep.subr.mxu0 0.0
      %2223 = vmatpush1.msra.mxu0 0.0
      %2224 = vmatprep.subr.mxu0 0.0
      %2225 = vmatpush1.msra.mxu0 0.0
      %2226 = vmatprep.subr.mxu0 0.0
      %2227 = vmatpush1.msra.mxu0 0.0
      %2228 = vmatprep.subr.mxu0 0.0
      %2229 = vmatpush1.msra.mxu0 0.0
      %2230 = vmatprep.subr.mxu0 0.0
      %2231 = vmatpush1.msra.mxu0 0.0
      %2232 = vmatprep.subr.mxu0 0.0
      %2233 = vmatpush1.msra.mxu0 0.0
      %2234 = vmatprep.subr.mxu0 0.0
      %2235 = vmatpush1.msra.mxu0 0.0
      %2236 = vmatprep.mubr.f32.mxu0 0.0
      %2237 = vmatmul.mubr.f32.gmra.mrb[0].mxu0 %v2167
      %v2238 = vpop.f32.mrb[0].mxu0
      %v2239 = vadd.f32 0.0, %v2238
      %v2240 = vpop.f32.mrb[0].mxu0
      %v2241 = vadd.f32 0.0, %v2240
      %2242 = vmatprep.mubr.f32.mxu0 0.0
      %2243 = vmatmul.mubr.f32.gmra.mrb[0].mxu0 %v2170
      %v2244 = vpop.f32.mrb[0].mxu0
      %v2245 = vadd.f32 0.0, %v2244
      %v2246 = vpop.f32.mrb[0].mxu0
      %v2247 = vadd.f32 0.0, %v2246
      %2248 = vdwg.mxu0
      %v2249 = vadd.f32 %v2148, %v2239
      %v2250 = vadd.f32 %v2149, %v2241
      %v2251 = vadd.f32 %v2150, %v2245
      %v2252 = vadd.f32 %v2151, %v2247
      %s2253 = scalar_lea.vmem %s1, 336
      %v2254 = vld [vmem:[%s2253] sm:$0xff]
      %v2255 = vld [vmem:[%s2253 + $0x8] sm:$0xff]
      %2256 = vrot.lane.b32.xlu0 %v1752, 116
      %v2257 = vpop.permute.xlu0 %2256
      %2258 = vrot.lane.b32.xlu0 %v1753, 116
      %v2259 = vpop.permute.xlu0 %2258
      %2260 = vrot.lane.b32.xlu0 %v1754, 116
      %v2261 = vpop.permute.xlu0 %2260
      %vm2262 = vcmask 949248
      %v2263 = vsel %vm2262, %v2257, %v2259
      %v2264 = vsel %vm2262, %v2259, %v2261
      %v2268 = vsel %vm166, %v2254, 0
      %v2271 = vsel %vm166, %v2255, 0
      %2273 = vmatprep.subr.mxu0 %v2264
      %2274 = vmatpush1.msra.mxu0 %v2263
      %2275 = vmatprep.subr.mxu0 0.0
      %2276 = vmatpush1.msra.mxu0 0.0
      %2277 = vmatprep.subr.mxu0 0.0
      %2278 = vmatpush1.msra.mxu0 0.0
      %2279 = vmatprep.subr.mxu0 0.0
      %2280 = vmatpush1.msra.mxu0 0.0
      %2281 = vmatprep.subr.mxu0 0.0
      %2282 = vmatpush1.msra.mxu0 0.0
      %2283 = vmatprep.subr.mxu0 0.0
      %2284 = vmatpush1.msra.mxu0 0.0
      %2285 = vmatprep.subr.mxu0 0.0
      %2286 = vmatpush1.msra.mxu0 0.0
      %2287 = vmatprep.subr.mxu0 0.0
      %2288 = vmatpush1.msra.mxu0 0.0
      %2289 = vmatprep.subr.mxu0 0.0
      %2290 = vmatpush1.msra.mxu0 0.0
      %2291 = vmatprep.subr.mxu0 0.0
      %2292 = vmatpush1.msra.mxu0 0.0
      %2293 = vmatprep.subr.mxu0 0.0
      %2294 = vmatpush1.msra.mxu0 0.0
      %2295 = vmatprep.subr.mxu0 0.0
      %2296 = vmatpush1.msra.mxu0 0.0
      %2297 = vmatprep.subr.mxu0 0.0
      %2298 = vmatpush1.msra.mxu0 0.0
      %2299 = vmatprep.subr.mxu0 0.0
      %2300 = vmatpush1.msra.mxu0 0.0
      %2301 = vmatprep.subr.mxu0 0.0
      %2302 = vmatpush1.msra.mxu0 0.0
      %2303 = vmatprep.subr.mxu0 0.0
      %2304 = vmatpush1.msra.mxu0 0.0
      %2305 = vmatprep.subr.mxu0 0.0
      %2306 = vmatpush1.msra.mxu0 0.0
      %2307 = vmatprep.subr.mxu0 0.0
      %2308 = vmatpush1.msra.mxu0 0.0
      %2309 = vmatprep.subr.mxu0 0.0
      %2310 = vmatpush1.msra.mxu0 0.0
      %2311 = vmatprep.subr.mxu0 0.0
      %2312 = vmatpush1.msra.mxu0 0.0
      %2313 = vmatprep.subr.mxu0 0.0
      %2314 = vmatpush1.msra.mxu0 0.0
      %2315 = vmatprep.subr.mxu0 0.0
      %2316 = vmatpush1.msra.mxu0 0.0
      %2317 = vmatprep.subr.mxu0 0.0
      %2318 = vmatpush1.msra.mxu0 0.0
      %2319 = vmatprep.subr.mxu0 0.0
      %2320 = vmatpush1.msra.mxu0 0.0
      %2321 = vmatprep.subr.mxu0 0.0
      %2322 = vmatpush1.msra.mxu0 0.0
      %2323 = vmatprep.subr.mxu0 0.0
      %2324 = vmatpush1.msra.mxu0 0.0
      %2325 = vmatprep.subr.mxu0 0.0
      %2326 = vmatpush1.msra.mxu0 0.0
      %2327 = vmatprep.subr.mxu0 0.0
      %2328 = vmatpush1.msra.mxu0 0.0
      %2329 = vmatprep.subr.mxu0 0.0
      %2330 = vmatpush1.msra.mxu0 0.0
      %2331 = vmatprep.subr.mxu0 0.0
      %2332 = vmatpush1.msra.mxu0 0.0
      %2333 = vmatprep.subr.mxu0 0.0
      %2334 = vmatpush1.msra.mxu0 0.0
      %2335 = vmatprep.subr.mxu0 0.0
      %2336 = vmatpush1.msra.mxu0 0.0
      %2337 = vmatprep.mubr.f32.mxu0 0.0
      %2338 = vmatmul.mubr.f32.gmra.mrb[0].mxu0 %v2268
      %v2339 = vpop.f32.mrb[0].mxu0
      %v2340 = vadd.f32 0.0, %v2339
      %v2341 = vpop.f32.mrb[0].mxu0
      %v2342 = vadd.f32 0.0, %v2341
      %2343 = vmatprep.mubr.f32.mxu0 0.0
      %2344 = vmatmul.mubr.f32.gmra.mrb[0].mxu0 %v2271
      %v2345 = vpop.f32.mrb[0].mxu0
      %v2346 = vadd.f32 0.0, %v2345
      %v2347 = vpop.f32.mrb[0].mxu0
      %v2348 = vadd.f32 0.0, %v2347
      %2349 = vdwg.mxu0
      %v2350 = vadd.f32 %v2249, %v2340
      %v2351 = vadd.f32 %v2250, %v2342
      %v2352 = vadd.f32 %v2251, %v2346
      %v2353 = vadd.f32 %v2252, %v2348
      %s2354 = scalar_lea.vmem %s1, 352
      %v2355 = vld [vmem:[%s2354] sm:$0xff]
      %v2356 = vld [vmem:[%s2354 + $0x8] sm:$0xff]
      %2357 = vrot.lane.b32.xlu0 %v1752, 121
      %v2358 = vpop.permute.xlu0 %2357
      %2359 = vrot.lane.b32.xlu0 %v1753, 121
      %v2360 = vpop.permute.xlu0 %2359
      %2361 = vrot.lane.b32.xlu0 %v1754, 121
      %v2362 = vpop.permute.xlu0 %2361
      %v2363 = vsel %vm555, %v2358, %v2360
      %v2364 = vsel %vm555, %v2360, %v2362
      %v2368 = vsel %vm166, %v2355, 0
      %v2371 = vsel %vm166, %v2356, 0
      %2373 = vmatprep.subr.mxu0 %v2364
      %2374 = vmatpush1.msra.mxu0 %v2363
      %2375 = vmatprep.subr.mxu0 0.0
      %2376 = vmatpush1.msra.mxu0 0.0
      %2377 = vmatprep.subr.mxu0 0.0
      %2378 = vmatpush1.msra.mxu0 0.0
      %2379 = vmatprep.subr.mxu0 0.0
      %2380 = vmatpush1.msra.mxu0 0.0
      %2381 = vmatprep.subr.mxu0 0.0
      %2382 = vmatpush1.msra.mxu0 0.0
      %2383 = vmatprep.subr.mxu0 0.0
      %2384 = vmatpush1.msra.mxu0 0.0
      %2385 = vmatprep.subr.mxu0 0.0
      %2386 = vmatpush1.msra.mxu0 0.0
      %2387 = vmatprep.subr.mxu0 0.0
      %2388 = vmatpush1.msra.mxu0 0.0
      %2389 = vmatprep.subr.mxu0 0.0
      %2390 = vmatpush1.msra.mxu0 0.0
      %2391 = vmatprep.subr.mxu0 0.0
      %2392 = vmatpush1.msra.mxu0 0.0
      %2393 = vmatprep.subr.mxu0 0.0
      %2394 = vmatpush1.msra.mxu0 0.0
      %2395 = vmatprep.subr.mxu0 0.0
      %2396 = vmatpush1.msra.mxu0 0.0
      %2397 = vmatprep.subr.mxu0 0.0
      %2398 = vmatpush1.msra.mxu0 0.0
      %2399 = vmatprep.subr.mxu0 0.0
      %2400 = vmatpush1.msra.mxu0 0.0
      %2401 = vmatprep.subr.mxu0 0.0
      %2402 = vmatpush1.msra.mxu0 0.0
      %2403 = vmatprep.subr.mxu0 0.0
      %2404 = vmatpush1.msra.mxu0 0.0
      %2405 = vmatprep.subr.mxu0 0.0
      %2406 = vmatpush1.msra.mxu0 0.0
      %2407 = vmatprep.subr.mxu0 0.0
      %2408 = vmatpush1.msra.mxu0 0.0
      %2409 = vmatprep.subr.mxu0 0.0
      %2410 = vmatpush1.msra.mxu0 0.0
      %2411 = vmatprep.subr.mxu0 0.0
      %2412 = vmatpush1.msra.mxu0 0.0
      %2413 = vmatprep.subr.mxu0 0.0
      %2414 = vmatpush1.msra.mxu0 0.0
      %2415 = vmatprep.subr.mxu0 0.0
      %2416 = vmatpush1.msra.mxu0 0.0
      %2417 = vmatprep.subr.mxu0 0.0
      %2418 = vmatpush1.msra.mxu0 0.0
      %2419 = vmatprep.subr.mxu0 0.0
      %2420 = vmatpush1.msra.mxu0 0.0
      %2421 = vmatprep.subr.mxu0 0.0
      %2422 = vmatpush1.msra.mxu0 0.0
      %2423 = vmatprep.subr.mxu0 0.0
      %2424 = vmatpush1.msra.mxu0 0.0
      %2425 = vmatprep.subr.mxu0 0.0
      %2426 = vmatpush1.msra.mxu0 0.0
      %2427 = vmatprep.subr.mxu0 0.0
      %2428 = vmatpush1.msra.mxu0 0.0
      %2429 = vmatprep.subr.mxu0 0.0
      %2430 = vmatpush1.msra.mxu0 0.0
      %2431 = vmatprep.subr.mxu0 0.0
      %2432 = vmatpush1.msra.mxu0 0.0
      %2433 = vmatprep.subr.mxu0 0.0
      %2434 = vmatpush1.msra.mxu0 0.0
      %2435 = vmatprep.subr.mxu0 0.0
      %2436 = vmatpush1.msra.mxu0 0.0
      %2437 = vmatprep.mubr.f32.mxu0 0.0
      %2438 = vmatmul.mubr.f32.gmra.mrb[0].mxu0 %v2368
      %v2439 = vpop.f32.mrb[0].mxu0
      %v2440 = vadd.f32 0.0, %v2439
      %v2441 = vpop.f32.mrb[0].mxu0
      %v2442 = vadd.f32 0.0, %v2441
      %2443 = vmatprep.mubr.f32.mxu0 0.0
      %2444 = vmatmul.mubr.f32.gmra.mrb[0].mxu0 %v2371
      %v2445 = vpop.f32.mrb[0].mxu0
      %v2446 = vadd.f32 0.0, %v2445
      %v2447 = vpop.f32.mrb[0].mxu0
      %v2448 = vadd.f32 0.0, %v2447
      %2449 = vdwg.mxu0
      %v2450 = vadd.f32 %v2350, %v2440
      %v2451 = vadd.f32 %v2351, %v2442
      %v2452 = vadd.f32 %v2352, %v2446
      %v2453 = vadd.f32 %v2353, %v2448
      %s2454 = scalar_lea.vmem %s1, 368
      %v2455 = vld [vmem:[%s2454] sm:$0xff]
      %v2456 = vld [vmem:[%s2454 + $0x8] sm:$0xff]
      %2457 = vrot.lane.b32.xlu0 %v1752, 122
      %v2458 = vpop.permute.xlu0 %2457
      %2459 = vrot.lane.b32.xlu0 %v1753, 122
      %v2460 = vpop.permute.xlu0 %2459
      %2461 = vrot.lane.b32.xlu0 %v1754, 122
      %v2462 = vpop.permute.xlu0 %2461
      %v2463 = vsel %vm656, %v2458, %v2460
      %v2464 = vsel %vm656, %v2460, %v2462
      %v2468 = vsel %vm166, %v2455, 0
      %v2471 = vsel %vm166, %v2456, 0
      %2473 = vmatprep.subr.mxu0 %v2464
      %2474 = vmatpush1.msra.mxu0 %v2463
      %2475 = vmatprep.subr.mxu0 0.0
      %2476 = vmatpush1.msra.mxu0 0.0
      %2477 = vmatprep.subr.mxu0 0.0
      %2478 = vmatpush1.msra.mxu0 0.0
      %2479 = vmatprep.subr.mxu0 0.0
      %2480 = vmatpush1.msra.mxu0 0.0
      %2481 = vmatprep.subr.mxu0 0.0
      %2482 = vmatpush1.msra.mxu0 0.0
      %2483 = vmatprep.subr.mxu0 0.0
      %2484 = vmatpush1.msra.mxu0 0.0
      %2485 = vmatprep.subr.mxu0 0.0
      %2486 = vmatpush1.msra.mxu0 0.0
      %2487 = vmatprep.subr.mxu0 0.0
      %2488 = vmatpush1.msra.mxu0 0.0
      %2489 = vmatprep.subr.mxu0 0.0
      %2490 = vmatpush1.msra.mxu0 0.0
      %2491 = vmatprep.subr.mxu0 0.0
      %2492 = vmatpush1.msra.mxu0 0.0
      %2493 = vmatprep.subr.mxu0 0.0
      %2494 = vmatpush1.msra.mxu0 0.0
      %2495 = vmatprep.subr.mxu0 0.0
      %2496 = vmatpush1.msra.mxu0 0.0
      %2497 = vmatprep.subr.mxu0 0.0
      %2498 = vmatpush1.msra.mxu0 0.0
      %2499 = vmatprep.subr.mxu0 0.0
      %2500 = vmatpush1.msra.mxu0 0.0
      %2501 = vmatprep.subr.mxu0 0.0
      %2502 = vmatpush1.msra.mxu0 0.0
      %2503 = vmatprep.subr.mxu0 0.0
      %2504 = vmatpush1.msra.mxu0 0.0
      %2505 = vmatprep.subr.mxu0 0.0
      %2506 = vmatpush1.msra.mxu0 0.0
      %2507 = vmatprep.subr.mxu0 0.0
      %2508 = vmatpush1.msra.mxu0 0.0
      %2509 = vmatprep.subr.mxu0 0.0
      %2510 = vmatpush1.msra.mxu0 0.0
      %2511 = vmatprep.subr.mxu0 0.0
      %2512 = vmatpush1.msra.mxu0 0.0
      %2513 = vmatprep.subr.mxu0 0.0
      %2514 = vmatpush1.msra.mxu0 0.0
      %2515 = vmatprep.subr.mxu0 0.0
      %2516 = vmatpush1.msra.mxu0 0.0
      %2517 = vmatprep.subr.mxu0 0.0
      %2518 = vmatpush1.msra.mxu0 0.0
      %2519 = vmatprep.subr.mxu0 0.0
      %2520 = vmatpush1.msra.mxu0 0.0
      %2521 = vmatprep.subr.mxu0 0.0
      %2522 = vmatpush1.msra.mxu0 0.0
      %2523 = vmatprep.subr.mxu0 0.0
      %2524 = vmatpush1.msra.mxu0 0.0
      %2525 = vmatprep.subr.mxu0 0.0
      %2526 = vmatpush1.msra.mxu0 0.0
      %2527 = vmatprep.subr.mxu0 0.0
      %2528 = vmatpush1.msra.mxu0 0.0
      %2529 = vmatprep.subr.mxu0 0.0
      %2530 = vmatpush1.msra.mxu0 0.0
      %2531 = vmatprep.subr.mxu0 0.0
      %2532 = vmatpush1.msra.mxu0 0.0
      %2533 = vmatprep.subr.mxu0 0.0
      %2534 = vmatpush1.msra.mxu0 0.0
      %2535 = vmatprep.subr.mxu0 0.0
      %2536 = vmatpush1.msra.mxu0 0.0
      %2537 = vmatprep.mubr.f32.mxu0 0.0
      %2538 = vmatmul.mubr.f32.gmra.mrb[0].mxu0 %v2468
      %v2539 = vpop.f32.mrb[0].mxu0
      %v2540 = vadd.f32 0.0, %v2539
      %v2541 = vpop.f32.mrb[0].mxu0
      %v2542 = vadd.f32 0.0, %v2541
      %2543 = vmatprep.mubr.f32.mxu0 0.0
      %2544 = vmatmul.mubr.f32.gmra.mrb[0].mxu0 %v2471
      %v2545 = vpop.f32.mrb[0].mxu0
      %v2546 = vadd.f32 0.0, %v2545
      %v2547 = vpop.f32.mrb[0].mxu0
      %v2548 = vadd.f32 0.0, %v2547
      %2549 = vdwg.mxu0
      %v2550 = vadd.f32 %v2450, %v2540
      %v2551 = vadd.f32 %v2451, %v2542
      %v2552 = vadd.f32 %v2452, %v2546
      %v2553 = vadd.f32 %v2453, %v2548
      %s2554 = scalar_lea.vmem %s143, 64
      %2555 = vst [vmem:[%s2554] sm:$0xff] %v2550
      %2556 = vst [vmem:[%s2554 + $0x8] sm:$0xff] %v2551
      %2557 = vst [vmem:[%s2554 + $0x10] sm:$0xff] %v2552
      %2558 = vst [vmem:[%s2554 + $0x18] sm:$0xff] %v2553
      %v2559 = vld [vmem:[%s138] sm:$0xff]
      %v2560 = vld [vmem:[%s138 + $0x8] sm:$0xff]
      %v2561 = vld [vmem:[%s138 + $0x10] sm:$0xff]
      %s2562 = scalar_lea.vmem %s1, 384
      %v2563 = vld [vmem:[%s2562] sm:$0xff]
      %v2564 = vld [vmem:[%s2562 + $0x8] sm:$0xff]
      %s2565 = scalar_lea.vmem %s1, 400
      %v2566 = vld [vmem:[%s2565] sm:$0xff]
      %v2567 = vld [vmem:[%s2565 + $0x8] sm:$0xff]
      %2571 = vrot.lane.b32.xlu0 %v2559, 79
      %v2572 = vpop.permute.xlu0 %2571
      %2573 = vrot.lane.b32.xlu0 %v2560, 79
      %v2574 = vpop.permute.xlu0 %2573
      %2575 = vrot.lane.b32.xlu0 %v2561, 79
      %v2576 = vpop.permute.xlu0 %2575
      %v2577 = vsel %vm1864, %v2572, %v2574
      %v2578 = vsel %vm1864, %v2574, %v2576
      %v2582 = vsel %vm166, %v2566, 0
      %v2585 = vsel %vm166, %v2567, 0
      %2587 = vmatprep.subr.mxu0 %v2578
      %2588 = vmatpush1.msra.mxu0 %v2577
      %2589 = vmatprep.subr.mxu0 0.0
      %2590 = vmatpush1.msra.mxu0 0.0
      %2591 = vmatprep.subr.mxu0 0.0
      %2592 = vmatpush1.msra.mxu0 0.0
      %2593 = vmatprep.subr.mxu0 0.0
      %2594 = vmatpush1.msra.mxu0 0.0
      %2595 = vmatprep.subr.mxu0 0.0
      %2596 = vmatpush1.msra.mxu0 0.0
      %2597 = vmatprep.subr.mxu0 0.0
      %2598 = vmatpush1.msra.mxu0 0.0
      %2599 = vmatprep.subr.mxu0 0.0
      %2600 = vmatpush1.msra.mxu0 0.0
      %2601 = vmatprep.subr.mxu0 0.0
      %2602 = vmatpush1.msra.mxu0 0.0
      %2603 = vmatprep.subr.mxu0 0.0
      %2604 = vmatpush1.msra.mxu0 0.0
      %2605 = vmatprep.subr.mxu0 0.0
      %2606 = vmatpush1.msra.mxu0 0.0
      %2607 = vmatprep.subr.mxu0 0.0
      %2608 = vmatpush1.msra.mxu0 0.0
      %2609 = vmatprep.subr.mxu0 0.0
      %2610 = vmatpush1.msra.mxu0 0.0
      %2611 = vmatprep.subr.mxu0 0.0
      %2612 = vmatpush1.msra.mxu0 0.0
      %2613 = vmatprep.subr.mxu0 0.0
      %2614 = vmatpush1.msra.mxu0 0.0
      %2615 = vmatprep.subr.mxu0 0.0
      %2616 = vmatpush1.msra.mxu0 0.0
      %2617 = vmatprep.subr.mxu0 0.0
      %2618 = vmatpush1.msra.mxu0 0.0
      %2619 = vmatprep.subr.mxu0 0.0
      %2620 = vmatpush1.msra.mxu0 0.0
      %2621 = vmatprep.subr.mxu0 0.0
      %2622 = vmatpush1.msra.mxu0 0.0
      %2623 = vmatprep.subr.mxu0 0.0
      %2624 = vmatpush1.msra.mxu0 0.0
      %2625 = vmatprep.subr.mxu0 0.0
      %2626 = vmatpush1.msra.mxu0 0.0
      %2627 = vmatprep.subr.mxu0 0.0
      %2628 = vmatpush1.msra.mxu0 0.0
      %2629 = vmatprep.subr.mxu0 0.0
      %2630 = vmatpush1.msra.mxu0 0.0
      %2631 = vmatprep.subr.mxu0 0.0
      %2632 = vmatpush1.msra.mxu0 0.0
      %2633 = vmatprep.subr.mxu0 0.0
      %2634 = vmatpush1.msra.mxu0 0.0
      %2635 = vmatprep.subr.mxu0 0.0
      %2636 = vmatpush1.msra.mxu0 0.0
      %2637 = vmatprep.subr.mxu0 0.0
      %2638 = vmatpush1.msra.mxu0 0.0
      %2639 = vmatprep.subr.mxu0 0.0
      %2640 = vmatpush1.msra.mxu0 0.0
      %2641 = vmatprep.subr.mxu0 0.0
      %2642 = vmatpush1.msra.mxu0 0.0
      %2643 = vmatprep.subr.mxu0 0.0
      %2644 = vmatpush1.msra.mxu0 0.0
      %2645 = vmatprep.subr.mxu0 0.0
      %2646 = vmatpush1.msra.mxu0 0.0
      %2647 = vmatprep.subr.mxu0 0.0
      %2648 = vmatpush1.msra.mxu0 0.0
      %2649 = vmatprep.subr.mxu0 0.0
      %2650 = vmatpush1.msra.mxu0 0.0
      %2651 = vmatprep.mubr.f32.mxu0 0.0
      %2652 = vmatmul.mubr.f32.gmra.mrb[0].mxu0 %v2582
      %v2653 = vpop.f32.mrb[0].mxu0
      %v2654 = vadd.f32 0.0, %v2653
      %v2655 = vpop.f32.mrb[0].mxu0
      %v2656 = vadd.f32 0.0, %v2655
      %2657 = vmatprep.mubr.f32.mxu0 0.0
      %2658 = vmatmul.mubr.f32.gmra.mrb[0].mxu0 %v2585
      %v2659 = vpop.f32.mrb[0].mxu0
      %v2660 = vadd.f32 0.0, %v2659
      %v2661 = vpop.f32.mrb[0].mxu0
      %v2662 = vadd.f32 0.0, %v2661
      %2663 = vdwg.mxu0
      %2664 = vrot.lane.b32.xlu0 %v2559, 78
      %v2665 = vpop.permute.xlu0 %2664
      %2666 = vrot.lane.b32.xlu0 %v2560, 78
      %v2667 = vpop.permute.xlu0 %2666
      %2668 = vrot.lane.b32.xlu0 %v2561, 78
      %v2669 = vpop.permute.xlu0 %2668
      %vm2670 = vcmask 637952
      %v2671 = vsel %vm2670, %v2665, %v2667
      %v2672 = vsel %vm2670, %v2667, %v2669
      %v2676 = vsel %vm166, %v2563, 0
      %v2679 = vsel %vm166, %v2564, 0
      %2681 = vmatprep.subr.mxu0 %v2672
      %2682 = vmatpush1.msra.mxu0 %v2671
      %2683 = vmatprep.subr.mxu0 0.0
      %2684 = vmatpush1.msra.mxu0 0.0
      %2685 = vmatprep.subr.mxu0 0.0
      %2686 = vmatpush1.msra.mxu0 0.0
      %2687 = vmatprep.subr.mxu0 0.0
      %2688 = vmatpush1.msra.mxu0 0.0
      %2689 = vmatprep.subr.mxu0 0.0
      %2690 = vmatpush1.msra.mxu0 0.0
      %2691 = vmatprep.subr.mxu0 0.0
      %2692 = vmatpush1.msra.mxu0 0.0
      %2693 = vmatprep.subr.mxu0 0.0
      %2694 = vmatpush1.msra.mxu0 0.0
      %2695 = vmatprep.subr.mxu0 0.0
      %2696 = vmatpush1.msra.mxu0 0.0
      %2697 = vmatprep.subr.mxu0 0.0
      %2698 = vmatpush1.msra.mxu0 0.0
      %2699 = vmatprep.subr.mxu0 0.0
      %2700 = vmatpush1.msra.mxu0 0.0
      %2701 = vmatprep.subr.mxu0 0.0
      %2702 = vmatpush1.msra.mxu0 0.0
      %2703 = vmatprep.subr.mxu0 0.0
      %2704 = vmatpush1.msra.mxu0 0.0
      %2705 = vmatprep.subr.mxu0 0.0
      %2706 = vmatpush1.msra.mxu0 0.0
      %2707 = vmatprep.subr.mxu0 0.0
      %2708 = vmatpush1.msra.mxu0 0.0
      %2709 = vmatprep.subr.mxu0 0.0
      %2710 = vmatpush1.msra.mxu0 0.0
      %2711 = vmatprep.subr.mxu0 0.0
      %2712 = vmatpush1.msra.mxu0 0.0
      %2713 = vmatprep.subr.mxu0 0.0
      %2714 = vmatpush1.msra.mxu0 0.0
      %2715 = vmatprep.subr.mxu0 0.0
      %2716 = vmatpush1.msra.mxu0 0.0
      %2717 = vmatprep.subr.mxu0 0.0
      %2718 = vmatpush1.msra.mxu0 0.0
      %2719 = vmatprep.subr.mxu0 0.0
      %2720 = vmatpush1.msra.mxu0 0.0
      %2721 = vmatprep.subr.mxu0 0.0
      %2722 = vmatpush1.msra.mxu0 0.0
      %2723 = vmatprep.subr.mxu0 0.0
      %2724 = vmatpush1.msra.mxu0 0.0
      %2725 = vmatprep.subr.mxu0 0.0
      %2726 = vmatpush1.msra.mxu0 0.0
      %2727 = vmatprep.subr.mxu0 0.0
      %2728 = vmatpush1.msra.mxu0 0.0
      %2729 = vmatprep.subr.mxu0 0.0
      %2730 = vmatpush1.msra.mxu0 0.0
      %2731 = vmatprep.subr.mxu0 0.0
      %2732 = vmatpush1.msra.mxu0 0.0
      %2733 = vmatprep.subr.mxu0 0.0
      %2734 = vmatpush1.msra.mxu0 0.0
      %2735 = vmatprep.subr.mxu0 0.0
      %2736 = vmatpush1.msra.mxu0 0.0
      %2737 = vmatprep.subr.mxu0 0.0
      %2738 = vmatpush1.msra.mxu0 0.0
      %2739 = vmatprep.subr.mxu0 0.0
      %2740 = vmatpush1.msra.mxu0 0.0
      %2741 = vmatprep.subr.mxu0 0.0
      %2742 = vmatpush1.msra.mxu0 0.0
      %2743 = vmatprep.subr.mxu0 0.0
      %2744 = vmatpush1.msra.mxu0 0.0
      %2745 = vmatprep.mubr.f32.mxu0 0.0
      %2746 = vmatmul.mubr.f32.gmra.mrb[0].mxu0 %v2676
      %v2747 = vpop.f32.mrb[0].mxu0
      %v2748 = vadd.f32 %v2654, %v2747
      %v2749 = vpop.f32.mrb[0].mxu0
      %v2750 = vadd.f32 %v2656, %v2749
      %2751 = vmatprep.mubr.f32.mxu0 0.0
      %2752 = vmatmul.mubr.f32.gmra.mrb[0].mxu0 %v2679
      %v2753 = vpop.f32.mrb[0].mxu0
      %v2754 = vadd.f32 %v2660, %v2753
      %v2755 = vpop.f32.mrb[0].mxu0
      %v2756 = vadd.f32 %v2662, %v2755
      %2757 = vdwg.mxu0
      %s2758 = scalar_lea.vmem %s1, 416
      %v2759 = vld [vmem:[%s2758] sm:$0xff]
      %v2760 = vld [vmem:[%s2758 + $0x8] sm:$0xff]
      %2761 = vrot.lane.b32.xlu0 %v2559, 84
      %v2762 = vpop.permute.xlu0 %2761
      %2763 = vrot.lane.b32.xlu0 %v2560, 84
      %v2764 = vpop.permute.xlu0 %2763
      %2765 = vrot.lane.b32.xlu0 %v2561, 84
      %v2766 = vpop.permute.xlu0 %2765
      %v2767 = vsel %vm1056, %v2762, %v2764
      %v2768 = vsel %vm1056, %v2764, %v2766
      %v2772 = vsel %vm166, %v2759, 0
      %v2775 = vsel %vm166, %v2760, 0
      %2777 = vmatprep.subr.mxu0 %v2768
      %2778 = vmatpush1.msra.mxu0 %v2767
      %2779 = vmatprep.subr.mxu0 0.0
      %2780 = vmatpush1.msra.mxu0 0.0
      %2781 = vmatprep.subr.mxu0 0.0
      %2782 = vmatpush1.msra.mxu0 0.0
      %2783 = vmatprep.subr.mxu0 0.0
      %2784 = vmatpush1.msra.mxu0 0.0
      %2785 = vmatprep.subr.mxu0 0.0
      %2786 = vmatpush1.msra.mxu0 0.0
      %2787 = vmatprep.subr.mxu0 0.0
      %2788 = vmatpush1.msra.mxu0 0.0
      %2789 = vmatprep.subr.mxu0 0.0
      %2790 = vmatpush1.msra.mxu0 0.0
      %2791 = vmatprep.subr.mxu0 0.0
      %2792 = vmatpush1.msra.mxu0 0.0
      %2793 = vmatprep.subr.mxu0 0.0
      %2794 = vmatpush1.msra.mxu0 0.0
      %2795 = vmatprep.subr.mxu0 0.0
      %2796 = vmatpush1.msra.mxu0 0.0
      %2797 = vmatprep.subr.mxu0 0.0
      %2798 = vmatpush1.msra.mxu0 0.0
      %2799 = vmatprep.subr.mxu0 0.0
      %2800 = vmatpush1.msra.mxu0 0.0
      %2801 = vmatprep.subr.mxu0 0.0
      %2802 = vmatpush1.msra.mxu0 0.0
      %2803 = vmatprep.subr.mxu0 0.0
      %2804 = vmatpush1.msra.mxu0 0.0
      %2805 = vmatprep.subr.mxu0 0.0
      %2806 = vmatpush1.msra.mxu0 0.0
      %2807 = vmatprep.subr.mxu0 0.0
      %2808 = vmatpush1.msra.mxu0 0.0
      %2809 = vmatprep.subr.mxu0 0.0
      %2810 = vmatpush1.msra.mxu0 0.0
      %2811 = vmatprep.subr.mxu0 0.0
      %2812 = vmatpush1.msra.mxu0 0.0
      %2813 = vmatprep.subr.mxu0 0.0
      %2814 = vmatpush1.msra.mxu0 0.0
      %2815 = vmatprep.subr.mxu0 0.0
      %2816 = vmatpush1.msra.mxu0 0.0
      %2817 = vmatprep.subr.mxu0 0.0
      %2818 = vmatpush1.msra.mxu0 0.0
      %2819 = vmatprep.subr.mxu0 0.0
      %2820 = vmatpush1.msra.mxu0 0.0
      %2821 = vmatprep.subr.mxu0 0.0
      %2822 = vmatpush1.msra.mxu0 0.0
      %2823 = vmatprep.subr.mxu0 0.0
      %2824 = vmatpush1.msra.mxu0 0.0
      %2825 = vmatprep.subr.mxu0 0.0
      %2826 = vmatpush1.msra.mxu0 0.0
      %2827 = vmatprep.subr.mxu0 0.0
      %2828 = vmatpush1.msra.mxu0 0.0
      %2829 = vmatprep.subr.mxu0 0.0
      %2830 = vmatpush1.msra.mxu0 0.0
      %2831 = vmatprep.subr.mxu0 0.0
      %2832 = vmatpush1.msra.mxu0 0.0
      %2833 = vmatprep.subr.mxu0 0.0
      %2834 = vmatpush1.msra.mxu0 0.0
      %2835 = vmatprep.subr.mxu0 0.0
      %2836 = vmatpush1.msra.mxu0 0.0
      %2837 = vmatprep.subr.mxu0 0.0
      %2838 = vmatpush1.msra.mxu0 0.0
      %2839 = vmatprep.subr.mxu0 0.0
      %2840 = vmatpush1.msra.mxu0 0.0
      %2841 = vmatprep.mubr.f32.mxu0 0.0
      %2842 = vmatmul.mubr.f32.gmra.mrb[0].mxu0 %v2772
      %v2843 = vpop.f32.mrb[0].mxu0
      %v2844 = vadd.f32 0.0, %v2843
      %v2845 = vpop.f32.mrb[0].mxu0
      %v2846 = vadd.f32 0.0, %v2845
      %2847 = vmatprep.mubr.f32.mxu0 0.0
      %2848 = vmatmul.mubr.f32.gmra.mrb[0].mxu0 %v2775
      %v2849 = vpop.f32.mrb[0].mxu0
      %v2850 = vadd.f32 0.0, %v2849
      %v2851 = vpop.f32.mrb[0].mxu0
      %v2852 = vadd.f32 0.0, %v2851
      %2853 = vdwg.mxu0
      %v2854 = vadd.f32 %v2748, %v2844
      %v2855 = vadd.f32 %v2750, %v2846
      %v2856 = vadd.f32 %v2754, %v2850
      %v2857 = vadd.f32 %v2756, %v2852
      %s2858 = scalar_lea.vmem %s1, 432
      %v2859 = vld [vmem:[%s2858] sm:$0xff]
      %v2860 = vld [vmem:[%s2858 + $0x8] sm:$0xff]
      %2861 = vrot.lane.b32.xlu0 %v2559, 85
      %v2862 = vpop.permute.xlu0 %2861
      %2863 = vrot.lane.b32.xlu0 %v2560, 85
      %v2864 = vpop.permute.xlu0 %2863
      %2865 = vrot.lane.b32.xlu0 %v2561, 85
      %v2866 = vpop.permute.xlu0 %2865
      %v2867 = vsel %vm256, %v2862, %v2864
      %v2868 = vsel %vm256, %v2864, %v2866
      %v2872 = vsel %vm166, %v2859, 0
      %v2875 = vsel %vm166, %v2860, 0
      %2877 = vmatprep.subr.mxu0 %v2868
      %2878 = vmatpush1.msra.mxu0 %v2867
      %2879 = vmatprep.subr.mxu0 0.0
      %2880 = vmatpush1.msra.mxu0 0.0
      %2881 = vmatprep.subr.mxu0 0.0
      %2882 = vmatpush1.msra.mxu0 0.0
      %2883 = vmatprep.subr.mxu0 0.0
      %2884 = vmatpush1.msra.mxu0 0.0
      %2885 = vmatprep.subr.mxu0 0.0
      %2886 = vmatpush1.msra.mxu0 0.0
      %2887 = vmatprep.subr.mxu0 0.0
      %2888 = vmatpush1.msra.mxu0 0.0
      %2889 = vmatprep.subr.mxu0 0.0
      %2890 = vmatpush1.msra.mxu0 0.0
      %2891 = vmatprep.subr.mxu0 0.0
      %2892 = vmatpush1.msra.mxu0 0.0
      %2893 = vmatprep.subr.mxu0 0.0
      %2894 = vmatpush1.msra.mxu0 0.0
      %2895 = vmatprep.subr.mxu0 0.0
      %2896 = vmatpush1.msra.mxu0 0.0
      %2897 = vmatprep.subr.mxu0 0.0
      %2898 = vmatpush1.msra.mxu0 0.0
      %2899 = vmatprep.subr.mxu0 0.0
      %2900 = vmatpush1.msra.mxu0 0.0
      %2901 = vmatprep.subr.mxu0 0.0
      %2902 = vmatpush1.msra.mxu0 0.0
      %2903 = vmatprep.subr.mxu0 0.0
      %2904 = vmatpush1.msra.mxu0 0.0
      %2905 = vmatprep.subr.mxu0 0.0
      %2906 = vmatpush1.msra.mxu0 0.0
      %2907 = vmatprep.subr.mxu0 0.0
      %2908 = vmatpush1.msra.mxu0 0.0
      %2909 = vmatprep.subr.mxu0 0.0
      %2910 = vmatpush1.msra.mxu0 0.0
      %2911 = vmatprep.subr.mxu0 0.0
      %2912 = vmatpush1.msra.mxu0 0.0
      %2913 = vmatprep.subr.mxu0 0.0
      %2914 = vmatpush1.msra.mxu0 0.0
      %2915 = vmatprep.subr.mxu0 0.0
      %2916 = vmatpush1.msra.mxu0 0.0
      %2917 = vmatprep.subr.mxu0 0.0
      %2918 = vmatpush1.msra.mxu0 0.0
      %2919 = vmatprep.subr.mxu0 0.0
      %2920 = vmatpush1.msra.mxu0 0.0
      %2921 = vmatprep.subr.mxu0 0.0
      %2922 = vmatpush1.msra.mxu0 0.0
      %2923 = vmatprep.subr.mxu0 0.0
      %2924 = vmatpush1.msra.mxu0 0.0
      %2925 = vmatprep.subr.mxu0 0.0
      %2926 = vmatpush1.msra.mxu0 0.0
      %2927 = vmatprep.subr.mxu0 0.0
      %2928 = vmatpush1.msra.mxu0 0.0
      %2929 = vmatprep.subr.mxu0 0.0
      %2930 = vmatpush1.msra.mxu0 0.0
      %2931 = vmatprep.subr.mxu0 0.0
      %2932 = vmatpush1.msra.mxu0 0.0
      %2933 = vmatprep.subr.mxu0 0.0
      %2934 = vmatpush1.msra.mxu0 0.0
      %2935 = vmatprep.subr.mxu0 0.0
      %2936 = vmatpush1.msra.mxu0 0.0
      %2937 = vmatprep.subr.mxu0 0.0
      %2938 = vmatpush1.msra.mxu0 0.0
      %2939 = vmatprep.subr.mxu0 0.0
      %2940 = vmatpush1.msra.mxu0 0.0
      %2941 = vmatprep.mubr.f32.mxu0 0.0
      %2942 = vmatmul.mubr.f32.gmra.mrb[0].mxu0 %v2872
      %v2943 = vpop.f32.mrb[0].mxu0
      %v2944 = vadd.f32 0.0, %v2943
      %v2945 = vpop.f32.mrb[0].mxu0
      %v2946 = vadd.f32 0.0, %v2945
      %2947 = vmatprep.mubr.f32.mxu0 0.0
      %2948 = vmatmul.mubr.f32.gmra.mrb[0].mxu0 %v2875
      %v2949 = vpop.f32.mrb[0].mxu0
      %v2950 = vadd.f32 0.0, %v2949
      %v2951 = vpop.f32.mrb[0].mxu0
      %v2952 = vadd.f32 0.0, %v2951
      %2953 = vdwg.mxu0
      %v2954 = vadd.f32 %v2854, %v2944
      %v2955 = vadd.f32 %v2855, %v2946
      %v2956 = vadd.f32 %v2856, %v2950
      %v2957 = vadd.f32 %v2857, %v2952
      %s2958 = scalar_lea.vmem %s1, 448
      %v2959 = vld [vmem:[%s2958] sm:$0xff]
      %v2960 = vld [vmem:[%s2958 + $0x8] sm:$0xff]
      %2961 = vrot.lane.b32.xlu0 %v2559, 114
      %v2962 = vpop.permute.xlu0 %2961
      %2963 = vrot.lane.b32.xlu0 %v2560, 114
      %v2964 = vpop.permute.xlu0 %2963
      %2965 = vrot.lane.b32.xlu0 %v2561, 114
      %v2966 = vpop.permute.xlu0 %2965
      %vm2967 = vcmask 932864
      %v2968 = vsel %vm2967, %v2962, %v2964
      %v2969 = vsel %vm2967, %v2964, %v2966
      %v2973 = vsel %vm166, %v2959, 0
      %v2976 = vsel %vm166, %v2960, 0
      %2978 = vmatprep.subr.mxu0 %v2969
      %2979 = vmatpush1.msra.mxu0 %v2968
      %2980 = vmatprep.subr.mxu0 0.0
      %2981 = vmatpush1.msra.mxu0 0.0
      %2982 = vmatprep.subr.mxu0 0.0
      %2983 = vmatpush1.msra.mxu0 0.0
      %2984 = vmatprep.subr.mxu0 0.0
      %2985 = vmatpush1.msra.mxu0 0.0
      %2986 = vmatprep.subr.mxu0 0.0
      %2987 = vmatpush1.msra.mxu0 0.0
      %2988 = vmatprep.subr.mxu0 0.0
      %2989 = vmatpush1.msra.mxu0 0.0
      %2990 = vmatprep.subr.mxu0 0.0
      %2991 = vmatpush1.msra.mxu0 0.0
      %2992 = vmatprep.subr.mxu0 0.0
      %2993 = vmatpush1.msra.mxu0 0.0
      %2994 = vmatprep.subr.mxu0 0.0
      %2995 = vmatpush1.msra.mxu0 0.0
      %2996 = vmatprep.subr.mxu0 0.0
      %2997 = vmatpush1.msra.mxu0 0.0
      %2998 = vmatprep.subr.mxu0 0.0
      %2999 = vmatpush1.msra.mxu0 0.0
      %3000 = vmatprep.subr.mxu0 0.0
      %3001 = vmatpush1.msra.mxu0 0.0
      %3002 = vmatprep.subr.mxu0 0.0
      %3003 = vmatpush1.msra.mxu0 0.0
      %3004 = vmatprep.subr.mxu0 0.0
      %3005 = vmatpush1.msra.mxu0 0.0
      %3006 = vmatprep.subr.mxu0 0.0
      %3007 = vmatpush1.msra.mxu0 0.0
      %3008 = vmatprep.subr.mxu0 0.0
      %3009 = vmatpush1.msra.mxu0 0.0
      %3010 = vmatprep.subr.mxu0 0.0
      %3011 = vmatpush1.msra.mxu0 0.0
      %3012 = vmatprep.subr.mxu0 0.0
      %3013 = vmatpush1.msra.mxu0 0.0
      %3014 = vmatprep.subr.mxu0 0.0
      %3015 = vmatpush1.msra.mxu0 0.0
      %3016 = vmatprep.subr.mxu0 0.0
      %3017 = vmatpush1.msra.mxu0 0.0
      %3018 = vmatprep.subr.mxu0 0.0
      %3019 = vmatpush1.msra.mxu0 0.0
      %3020 = vmatprep.subr.mxu0 0.0
      %3021 = vmatpush1.msra.mxu0 0.0
      %3022 = vmatprep.subr.mxu0 0.0
      %3023 = vmatpush1.msra.mxu0 0.0
      %3024 = vmatprep.subr.mxu0 0.0
      %3025 = vmatpush1.msra.mxu0 0.0
      %3026 = vmatprep.subr.mxu0 0.0
      %3027 = vmatpush1.msra.mxu0 0.0
      %3028 = vmatprep.subr.mxu0 0.0
      %3029 = vmatpush1.msra.mxu0 0.0
      %3030 = vmatprep.subr.mxu0 0.0
      %3031 = vmatpush1.msra.mxu0 0.0
      %3032 = vmatprep.subr.mxu0 0.0
      %3033 = vmatpush1.msra.mxu0 0.0
      %3034 = vmatprep.subr.mxu0 0.0
      %3035 = vmatpush1.msra.mxu0 0.0
      %3036 = vmatprep.subr.mxu0 0.0
      %3037 = vmatpush1.msra.mxu0 0.0
      %3038 = vmatprep.subr.mxu0 0.0
      %3039 = vmatpush1.msra.mxu0 0.0
      %3040 = vmatprep.subr.mxu0 0.0
      %3041 = vmatpush1.msra.mxu0 0.0
      %3042 = vmatprep.mubr.f32.mxu0 0.0
      %3043 = vmatmul.mubr.f32.gmra.mrb[0].mxu0 %v2973
      %v3044 = vpop.f32.mrb[0].mxu0
      %v3045 = vadd.f32 0.0, %v3044
      %v3046 = vpop.f32.mrb[0].mxu0
      %v3047 = vadd.f32 0.0, %v3046
      %3048 = vmatprep.mubr.f32.mxu0 0.0
      %3049 = vmatmul.mubr.f32.gmra.mrb[0].mxu0 %v2976
      %v3050 = vpop.f32.mrb[0].mxu0
      %v3051 = vadd.f32 0.0, %v3050
      %v3052 = vpop.f32.mrb[0].mxu0
      %v3053 = vadd.f32 0.0, %v3052
      %3054 = vdwg.mxu0
      %v3055 = vadd.f32 %v2954, %v3045
      %v3056 = vadd.f32 %v2955, %v3047
      %v3057 = vadd.f32 %v2956, %v3051
      %v3058 = vadd.f32 %v2957, %v3053
      %s3059 = scalar_lea.vmem %s1, 464
      %v3060 = vld [vmem:[%s3059] sm:$0xff]
      %v3061 = vld [vmem:[%s3059 + $0x8] sm:$0xff]
      %3062 = vrot.lane.b32.xlu0 %v2559, 115
      %v3063 = vpop.permute.xlu0 %3062
      %3064 = vrot.lane.b32.xlu0 %v2560, 115
      %v3065 = vpop.permute.xlu0 %3064
      %3066 = vrot.lane.b32.xlu0 %v2561, 115
      %v3067 = vpop.permute.xlu0 %3066
      %v3068 = vsel %vm2161, %v3063, %v3065
      %v3069 = vsel %vm2161, %v3065, %v3067
      %v3073 = vsel %vm166, %v3060, 0
      %v3076 = vsel %vm166, %v3061, 0
      %3078 = vmatprep.subr.mxu0 %v3069
      %3079 = vmatpush1.msra.mxu0 %v3068
      %3080 = vmatprep.subr.mxu0 0.0
      %3081 = vmatpush1.msra.mxu0 0.0
      %3082 = vmatprep.subr.mxu0 0.0
      %3083 = vmatpush1.msra.mxu0 0.0
      %3084 = vmatprep.subr.mxu0 0.0
      %3085 = vmatpush1.msra.mxu0 0.0
      %3086 = vmatprep.subr.mxu0 0.0
      %3087 = vmatpush1.msra.mxu0 0.0
      %3088 = vmatprep.subr.mxu0 0.0
      %3089 = vmatpush1.msra.mxu0 0.0
      %3090 = vmatprep.subr.mxu0 0.0
      %3091 = vmatpush1.msra.mxu0 0.0
      %3092 = vmatprep.subr.mxu0 0.0
      %3093 = vmatpush1.msra.mxu0 0.0
      %3094 = vmatprep.subr.mxu0 0.0
      %3095 = vmatpush1.msra.mxu0 0.0
      %3096 = vmatprep.subr.mxu0 0.0
      %3097 = vmatpush1.msra.mxu0 0.0
      %3098 = vmatprep.subr.mxu0 0.0
      %3099 = vmatpush1.msra.mxu0 0.0
      %3100 = vmatprep.subr.mxu0 0.0
      %3101 = vmatpush1.msra.mxu0 0.0
      %3102 = vmatprep.subr.mxu0 0.0
      %3103 = vmatpush1.msra.mxu0 0.0
      %3104 = vmatprep.subr.mxu0 0.0
      %3105 = vmatpush1.msra.mxu0 0.0
      %3106 = vmatprep.subr.mxu0 0.0
      %3107 = vmatpush1.msra.mxu0 0.0
      %3108 = vmatprep.subr.mxu0 0.0
      %3109 = vmatpush1.msra.mxu0 0.0
      %3110 = vmatprep.subr.mxu0 0.0
      %3111 = vmatpush1.msra.mxu0 0.0
      %3112 = vmatprep.subr.mxu0 0.0
      %3113 = vmatpush1.msra.mxu0 0.0
      %3114 = vmatprep.subr.mxu0 0.0
      %3115 = vmatpush1.msra.mxu0 0.0
      %3116 = vmatprep.subr.mxu0 0.0
      %3117 = vmatpush1.msra.mxu0 0.0
      %3118 = vmatprep.subr.mxu0 0.0
      %3119 = vmatpush1.msra.mxu0 0.0
      %3120 = vmatprep.subr.mxu0 0.0
      %3121 = vmatpush1.msra.mxu0 0.0
      %3122 = vmatprep.subr.mxu0 0.0
      %3123 = vmatpush1.msra.mxu0 0.0
      %3124 = vmatprep.subr.mxu0 0.0
      %3125 = vmatpush1.msra.mxu0 0.0
      %3126 = vmatprep.subr.mxu0 0.0
      %3127 = vmatpush1.msra.mxu0 0.0
      %3128 = vmatprep.subr.mxu0 0.0
      %3129 = vmatpush1.msra.mxu0 0.0
      %3130 = vmatprep.subr.mxu0 0.0
      %3131 = vmatpush1.msra.mxu0 0.0
      %3132 = vmatprep.subr.mxu0 0.0
      %3133 = vmatpush1.msra.mxu0 0.0
      %3134 = vmatprep.subr.mxu0 0.0
      %3135 = vmatpush1.msra.mxu0 0.0
      %3136 = vmatprep.subr.mxu0 0.0
      %3137 = vmatpush1.msra.mxu0 0.0
      %3138 = vmatprep.subr.mxu0 0.0
      %3139 = vmatpush1.msra.mxu0 0.0
      %3140 = vmatprep.subr.mxu0 0.0
      %3141 = vmatpush1.msra.mxu0 0.0
      %3142 = vmatprep.mubr.f32.mxu0 0.0
      %3143 = vmatmul.mubr.f32.gmra.mrb[0].mxu0 %v3073
      %v3144 = vpop.f32.mrb[0].mxu0
      %v3145 = vadd.f32 0.0, %v3144
      %v3146 = vpop.f32.mrb[0].mxu0
      %v3147 = vadd.f32 0.0, %v3146
      %3148 = vmatprep.mubr.f32.mxu0 0.0
      %3149 = vmatmul.mubr.f32.gmra.mrb[0].mxu0 %v3076
      %v3150 = vpop.f32.mrb[0].mxu0
      %v3151 = vadd.f32 0.0, %v3150
      %v3152 = vpop.f32.mrb[0].mxu0
      %v3153 = vadd.f32 0.0, %v3152
      %3154 = vdwg.mxu0
      %v3155 = vadd.f32 %v3055, %v3145
      %v3156 = vadd.f32 %v3056, %v3147
      %v3157 = vadd.f32 %v3057, %v3151
      %v3158 = vadd.f32 %v3058, %v3153
      %s3159 = scalar_lea.vmem %s1, 480
      %v3160 = vld [vmem:[%s3159] sm:$0xff]
      %v3161 = vld [vmem:[%s3159 + $0x8] sm:$0xff]
      %3162 = vrot.lane.b32.xlu0 %v2559, 120
      %v3163 = vpop.permute.xlu0 %3162
      %3164 = vrot.lane.b32.xlu0 %v2560, 120
      %v3165 = vpop.permute.xlu0 %3164
      %3166 = vrot.lane.b32.xlu0 %v2561, 120
      %v3167 = vpop.permute.xlu0 %3166
      %v3168 = vsel %vm1354, %v3163, %v3165
      %v3169 = vsel %vm1354, %v3165, %v3167
      %v3173 = vsel %vm166, %v3160, 0
      %v3176 = vsel %vm166, %v3161, 0
      %3178 = vmatprep.subr.mxu0 %v3169
      %3179 = vmatpush1.msra.mxu0 %v3168
      %3180 = vmatprep.subr.mxu0 0.0
      %3181 = vmatpush1.msra.mxu0 0.0
      %3182 = vmatprep.subr.mxu0 0.0
      %3183 = vmatpush1.msra.mxu0 0.0
      %3184 = vmatprep.subr.mxu0 0.0
      %3185 = vmatpush1.msra.mxu0 0.0
      %3186 = vmatprep.subr.mxu0 0.0
      %3187 = vmatpush1.msra.mxu0 0.0
      %3188 = vmatprep.subr.mxu0 0.0
      %3189 = vmatpush1.msra.mxu0 0.0
      %3190 = vmatprep.subr.mxu0 0.0
      %3191 = vmatpush1.msra.mxu0 0.0
      %3192 = vmatprep.subr.mxu0 0.0
      %3193 = vmatpush1.msra.mxu0 0.0
      %3194 = vmatprep.subr.mxu0 0.0
      %3195 = vmatpush1.msra.mxu0 0.0
      %3196 = vmatprep.subr.mxu0 0.0
      %3197 = vmatpush1.msra.mxu0 0.0
      %3198 = vmatprep.subr.mxu0 0.0
      %3199 = vmatpush1.msra.mxu0 0.0
      %3200 = vmatprep.subr.mxu0 0.0
      %3201 = vmatpush1.msra.mxu0 0.0
      %3202 = vmatprep.subr.mxu0 0.0
      %3203 = vmatpush1.msra.mxu0 0.0
      %3204 = vmatprep.subr.mxu0 0.0
      %3205 = vmatpush1.msra.mxu0 0.0
      %3206 = vmatprep.subr.mxu0 0.0
      %3207 = vmatpush1.msra.mxu0 0.0
      %3208 = vmatprep.subr.mxu0 0.0
      %3209 = vmatpush1.msra.mxu0 0.0
      %3210 = vmatprep.subr.mxu0 0.0
      %3211 = vmatpush1.msra.mxu0 0.0
      %3212 = vmatprep.subr.mxu0 0.0
      %3213 = vmatpush1.msra.mxu0 0.0
      %3214 = vmatprep.subr.mxu0 0.0
      %3215 = vmatpush1.msra.mxu0 0.0
      %3216 = vmatprep.subr.mxu0 0.0
      %3217 = vmatpush1.msra.mxu0 0.0
      %3218 = vmatprep.subr.mxu0 0.0
      %3219 = vmatpush1.msra.mxu0 0.0
      %3220 = vmatprep.subr.mxu0 0.0
      %3221 = vmatpush1.msra.mxu0 0.0
      %3222 = vmatprep.subr.mxu0 0.0
      %3223 = vmatpush1.msra.mxu0 0.0
      %3224 = vmatprep.subr.mxu0 0.0
      %3225 = vmatpush1.msra.mxu0 0.0
      %3226 = vmatprep.subr.mxu0 0.0
      %3227 = vmatpush1.msra.mxu0 0.0
      %3228 = vmatprep.subr.mxu0 0.0
      %3229 = vmatpush1.msra.mxu0 0.0
      %3230 = vmatprep.subr.mxu0 0.0
      %3231 = vmatpush1.msra.mxu0 0.0
      %3232 = vmatprep.subr.mxu0 0.0
      %3233 = vmatpush1.msra.mxu0 0.0
      %3234 = vmatprep.subr.mxu0 0.0
      %3235 = vmatpush1.msra.mxu0 0.0
      %3236 = vmatprep.subr.mxu0 0.0
      %3237 = vmatpush1.msra.mxu0 0.0
      %3238 = vmatprep.subr.mxu0 0.0
      %3239 = vmatpush1.msra.mxu0 0.0
      %3240 = vmatprep.subr.mxu0 0.0
      %3241 = vmatpush1.msra.mxu0 0.0
      %3242 = vmatprep.mubr.f32.mxu0 0.0
      %3243 = vmatmul.mubr.f32.gmra.mrb[0].mxu0 %v3173
      %v3244 = vpop.f32.mrb[0].mxu0
      %v3245 = vadd.f32 0.0, %v3244
      %v3246 = vpop.f32.mrb[0].mxu0
      %v3247 = vadd.f32 0.0, %v3246
      %3248 = vmatprep.mubr.f32.mxu0 0.0
      %3249 = vmatmul.mubr.f32.gmra.mrb[0].mxu0 %v3176
      %v3250 = vpop.f32.mrb[0].mxu0
      %v3251 = vadd.f32 0.0, %v3250
      %v3252 = vpop.f32.mrb[0].mxu0
      %v3253 = vadd.f32 0.0, %v3252
      %3254 = vdwg.mxu0
      %v3255 = vadd.f32 %v3155, %v3245
      %v3256 = vadd.f32 %v3156, %v3247
      %v3257 = vadd.f32 %v3157, %v3251
      %v3258 = vadd.f32 %v3158, %v3253
      %s3259 = scalar_lea.vmem %s1, 496
      %v3260 = vld [vmem:[%s3259] sm:$0xff]
      %v3261 = vld [vmem:[%s3259 + $0x8] sm:$0xff]
      %3262 = vrot.lane.b32.xlu0 %v2559, 121
      %v3263 = vpop.permute.xlu0 %3262
      %3264 = vrot.lane.b32.xlu0 %v2560, 121
      %v3265 = vpop.permute.xlu0 %3264
      %3266 = vrot.lane.b32.xlu0 %v2561, 121
      %v3267 = vpop.permute.xlu0 %3266
      %v3268 = vsel %vm555, %v3263, %v3265
      %v3269 = vsel %vm555, %v3265, %v3267
      %v3273 = vsel %vm166, %v3260, 0
      %v3276 = vsel %vm166, %v3261, 0
      %3278 = vmatprep.subr.mxu0 %v3269
      %3279 = vmatpush1.msra.mxu0 %v3268
      %3280 = vmatprep.subr.mxu0 0.0
      %3281 = vmatpush1.msra.mxu0 0.0
      %3282 = vmatprep.subr.mxu0 0.0
      %3283 = vmatpush1.msra.mxu0 0.0
      %3284 = vmatprep.subr.mxu0 0.0
      %3285 = vmatpush1.msra.mxu0 0.0
      %3286 = vmatprep.subr.mxu0 0.0
      %3287 = vmatpush1.msra.mxu0 0.0
      %3288 = vmatprep.subr.mxu0 0.0
      %3289 = vmatpush1.msra.mxu0 0.0
      %3290 = vmatprep.subr.mxu0 0.0
      %3291 = vmatpush1.msra.mxu0 0.0
      %3292 = vmatprep.subr.mxu0 0.0
      %3293 = vmatpush1.msra.mxu0 0.0
      %3294 = vmatprep.subr.mxu0 0.0
      %3295 = vmatpush1.msra.mxu0 0.0
      %3296 = vmatprep.subr.mxu0 0.0
      %3297 = vmatpush1.msra.mxu0 0.0
      %3298 = vmatprep.subr.mxu0 0.0
      %3299 = vmatpush1.msra.mxu0 0.0
      %3300 = vmatprep.subr.mxu0 0.0
      %3301 = vmatpush1.msra.mxu0 0.0
      %3302 = vmatprep.subr.mxu0 0.0
      %3303 = vmatpush1.msra.mxu0 0.0
      %3304 = vmatprep.subr.mxu0 0.0
      %3305 = vmatpush1.msra.mxu0 0.0
      %3306 = vmatprep.subr.mxu0 0.0
      %3307 = vmatpush1.msra.mxu0 0.0
      %3308 = vmatprep.subr.mxu0 0.0
      %3309 = vmatpush1.msra.mxu0 0.0
      %3310 = vmatprep.subr.mxu0 0.0
      %3311 = vmatpush1.msra.mxu0 0.0
      %3312 = vmatprep.subr.mxu0 0.0
      %3313 = vmatpush1.msra.mxu0 0.0
      %3314 = vmatprep.subr.mxu0 0.0
      %3315 = vmatpush1.msra.mxu0 0.0
      %3316 = vmatprep.subr.mxu0 0.0
      %3317 = vmatpush1.msra.mxu0 0.0
      %3318 = vmatprep.subr.mxu0 0.0
      %3319 = vmatpush1.msra.mxu0 0.0
      %3320 = vmatprep.subr.mxu0 0.0
      %3321 = vmatpush1.msra.mxu0 0.0
      %3322 = vmatprep.subr.mxu0 0.0
      %3323 = vmatpush1.msra.mxu0 0.0
      %3324 = vmatprep.subr.mxu0 0.0
      %3325 = vmatpush1.msra.mxu0 0.0
      %3326 = vmatprep.subr.mxu0 0.0
      %3327 = vmatpush1.msra.mxu0 0.0
      %3328 = vmatprep.subr.mxu0 0.0
      %3329 = vmatpush1.msra.mxu0 0.0
      %3330 = vmatprep.subr.mxu0 0.0
      %3331 = vmatpush1.msra.mxu0 0.0
      %3332 = vmatprep.subr.mxu0 0.0
      %3333 = vmatpush1.msra.mxu0 0.0
      %3334 = vmatprep.subr.mxu0 0.0
      %3335 = vmatpush1.msra.mxu0 0.0
      %3336 = vmatprep.subr.mxu0 0.0
      %3337 = vmatpush1.msra.mxu0 0.0
      %3338 = vmatprep.subr.mxu0 0.0
      %3339 = vmatpush1.msra.mxu0 0.0
      %3340 = vmatprep.subr.mxu0 0.0
      %3341 = vmatpush1.msra.mxu0 0.0
      %3342 = vmatprep.mubr.f32.mxu0 0.0
      %3343 = vmatmul.mubr.f32.gmra.mrb[0].mxu0 %v3273
      %v3344 = vpop.f32.mrb[0].mxu0
      %v3345 = vadd.f32 0.0, %v3344
      %v3346 = vpop.f32.mrb[0].mxu0
      %v3347 = vadd.f32 0.0, %v3346
      %3348 = vmatprep.mubr.f32.mxu0 0.0
      %3349 = vmatmul.mubr.f32.gmra.mrb[0].mxu0 %v3276
      %v3350 = vpop.f32.mrb[0].mxu0
      %v3351 = vadd.f32 0.0, %v3350
      %v3352 = vpop.f32.mrb[0].mxu0
      %v3353 = vadd.f32 0.0, %v3352
      %3354 = vdwg.mxu0
      %v3355 = vadd.f32 %v3255, %v3345
      %v3356 = vadd.f32 %v3256, %v3347
      %v3357 = vadd.f32 %v3257, %v3351
      %v3358 = vadd.f32 %v3258, %v3353
      %s3359 = scalar_lea.vmem %s143, 96
      %3360 = vst [vmem:[%s3359] sm:$0xff] %v3355
      %3361 = vst [vmem:[%s3359 + $0x8] sm:$0xff] %v3356
      %3362 = vst [vmem:[%s3359 + $0x10] sm:$0xff] %v3357
      %3363 = vst [vmem:[%s3359 + $0x18] sm:$0xff] %v3358
      %v3364 = vld [vmem:[%s138] sm:$0xff]
      %v3365 = vld [vmem:[%s138 + $0x8] sm:$0xff]
      %v3366 = vld [vmem:[%s138 + $0x10] sm:$0xff]
      %s3367 = scalar_lea.vmem %s1, 512
      %v3368 = vld [vmem:[%s3367] sm:$0xff]
      %v3369 = vld [vmem:[%s3367 + $0x8] sm:$0xff]
      %s3370 = scalar_lea.vmem %s1, 528
      %v3371 = vld [vmem:[%s3370] sm:$0xff]
      %v3372 = vld [vmem:[%s3370 + $0x8] sm:$0xff]
      %3376 = vrot.lane.b32.xlu0 %v3364, 50
      %v3377 = vpop.permute.xlu0 %3376
      %3378 = vrot.lane.b32.xlu0 %v3365, 50
      %v3379 = vpop.permute.xlu0 %3378
      %3380 = vrot.lane.b32.xlu0 %v3366, 50
      %v3381 = vpop.permute.xlu0 %3380
      %vm3382 = vcmask 408576
      %v3383 = vsel %vm3382, %v3377, %v3379
      %v3384 = vsel %vm3382, %v3379, %v3381
      %v3388 = vsel %vm166, %v3371, 0
      %v3391 = vsel %vm166, %v3372, 0
      %3393 = vmatprep.subr.mxu0 %v3384
      %3394 = vmatpush1.msra.mxu0 %v3383
      %3395 = vmatprep.subr.mxu0 0.0
      %3396 = vmatpush1.msra.mxu0 0.0
      %3397 = vmatprep.subr.mxu0 0.0
      %3398 = vmatpush1.msra.mxu0 0.0
      %3399 = vmatprep.subr.mxu0 0.0
      %3400 = vmatpush1.msra.mxu0 0.0
      %3401 = vmatprep.subr.mxu0 0.0
      %3402 = vmatpush1.msra.mxu0 0.0
      %3403 = vmatprep.subr.mxu0 0.0
      %3404 = vmatpush1.msra.mxu0 0.0
      %3405 = vmatprep.subr.mxu0 0.0
      %3406 = vmatpush1.msra.mxu0 0.0
      %3407 = vmatprep.subr.mxu0 0.0
      %3408 = vmatpush1.msra.mxu0 0.0
      %3409 = vmatprep.subr.mxu0 0.0
      %3410 = vmatpush1.msra.mxu0 0.0
      %3411 = vmatprep.subr.mxu0 0.0
      %3412 = vmatpush1.msra.mxu0 0.0
      %3413 = vmatprep.subr.mxu0 0.0
      %3414 = vmatpush1.msra.mxu0 0.0
      %3415 = vmatprep.subr.mxu0 0.0
      %3416 = vmatpush1.msra.mxu0 0.0
      %3417 = vmatprep.subr.mxu0 0.0
      %3418 = vmatpush1.msra.mxu0 0.0
      %3419 = vmatprep.subr.mxu0 0.0
      %3420 = vmatpush1.msra.mxu0 0.0
      %3421 = vmatprep.subr.mxu0 0.0
      %3422 = vmatpush1.msra.mxu0 0.0
      %3423 = vmatprep.subr.mxu0 0.0
      %3424 = vmatpush1.msra.mxu0 0.0
      %3425 = vmatprep.subr.mxu0 0.0
      %3426 = vmatpush1.msra.mxu0 0.0
      %3427 = vmatprep.subr.mxu0 0.0
      %3428 = vmatpush1.msra.mxu0 0.0
      %3429 = vmatprep.subr.mxu0 0.0
      %3430 = vmatpush1.msra.mxu0 0.0
      %3431 = vmatprep.subr.mxu0 0.0
      %3432 = vmatpush1.msra.mxu0 0.0
      %3433 = vmatprep.subr.mxu0 0.0
      %3434 = vmatpush1.msra.mxu0 0.0
      %3435 = vmatprep.subr.mxu0 0.0
      %3436 = vmatpush1.msra.mxu0 0.0
      %3437 = vmatprep.subr.mxu0 0.0
      %3438 = vmatpush1.msra.mxu0 0.0
      %3439 = vmatprep.subr.mxu0 0.0
      %3440 = vmatpush1.msra.mxu0 0.0
      %3441 = vmatprep.subr.mxu0 0.0
      %3442 = vmatpush1.msra.mxu0 0.0
      %3443 = vmatprep.subr.mxu0 0.0
      %3444 = vmatpush1.msra.mxu0 0.0
      %3445 = vmatprep.subr.mxu0 0.0
      %3446 = vmatpush1.msra.mxu0 0.0
      %3447 = vmatprep.subr.mxu0 0.0
      %3448 = vmatpush1.msra.mxu0 0.0
      %3449 = vmatprep.subr.mxu0 0.0
      %3450 = vmatpush1.msra.mxu0 0.0
      %3451 = vmatprep.subr.mxu0 0.0
      %3452 = vmatpush1.msra.mxu0 0.0
      %3453 = vmatprep.subr.mxu0 0.0
      %3454 = vmatpush1.msra.mxu0 0.0
      %3455 = vmatprep.subr.mxu0 0.0
      %3456 = vmatpush1.msra.mxu0 0.0
      %3457 = vmatprep.mubr.f32.mxu0 0.0
      %3458 = vmatmul.mubr.f32.gmra.mrb[0].mxu0 %v3388
      %v3459 = vpop.f32.mrb[0].mxu0
      %v3460 = vadd.f32 0.0, %v3459
      %v3461 = vpop.f32.mrb[0].mxu0
      %v3462 = vadd.f32 0.0, %v3461
      %3463 = vmatprep.mubr.f32.mxu0 0.0
      %3464 = vmatmul.mubr.f32.gmra.mrb[0].mxu0 %v3391
      %v3465 = vpop.f32.mrb[0].mxu0
      %v3466 = vadd.f32 0.0, %v3465
      %v3467 = vpop.f32.mrb[0].mxu0
      %v3468 = vadd.f32 0.0, %v3467
      %3469 = vdwg.mxu0
      %3470 = vrot.lane.b32.xlu0 %v3364, 49
      %v3471 = vpop.permute.xlu0 %3470
      %3472 = vrot.lane.b32.xlu0 %v3365, 49
      %v3473 = vpop.permute.xlu0 %3472
      %3474 = vrot.lane.b32.xlu0 %v3366, 49
      %v3475 = vpop.permute.xlu0 %3474
      %vm3476 = vcmask 400384
      %v3477 = vsel %vm3476, %v3471, %v3473
      %v3478 = vsel %vm3476, %v3473, %v3475
      %v3482 = vsel %vm166, %v3368, 0
      %v3485 = vsel %vm166, %v3369, 0
      %3487 = vmatprep.subr.mxu0 %v3478
      %3488 = vmatpush1.msra.mxu0 %v3477
      %3489 = vmatprep.subr.mxu0 0.0
      %3490 = vmatpush1.msra.mxu0 0.0
      %3491 = vmatprep.subr.mxu0 0.0
      %3492 = vmatpush1.msra.mxu0 0.0
      %3493 = vmatprep.subr.mxu0 0.0
      %3494 = vmatpush1.msra.mxu0 0.0
      %3495 = vmatprep.subr.mxu0 0.0
      %3496 = vmatpush1.msra.mxu0 0.0
      %3497 = vmatprep.subr.mxu0 0.0
      %3498 = vmatpush1.msra.mxu0 0.0
      %3499 = vmatprep.subr.mxu0 0.0
      %3500 = vmatpush1.msra.mxu0 0.0
      %3501 = vmatprep.subr.mxu0 0.0
      %3502 = vmatpush1.msra.mxu0 0.0
      %3503 = vmatprep.subr.mxu0 0.0
      %3504 = vmatpush1.msra.mxu0 0.0
      %3505 = vmatprep.subr.mxu0 0.0
      %3506 = vmatpush1.msra.mxu0 0.0
      %3507 = vmatprep.subr.mxu0 0.0
      %3508 = vmatpush1.msra.mxu0 0.0
      %3509 = vmatprep.subr.mxu0 0.0
      %3510 = vmatpush1.msra.mxu0 0.0
      %3511 = vmatprep.subr.mxu0 0.0
      %3512 = vmatpush1.msra.mxu0 0.0
      %3513 = vmatprep.subr.mxu0 0.0
      %3514 = vmatpush1.msra.mxu0 0.0
      %3515 = vmatprep.subr.mxu0 0.0
      %3516 = vmatpush1.msra.mxu0 0.0
      %3517 = vmatprep.subr.mxu0 0.0
      %3518 = vmatpush1.msra.mxu0 0.0
      %3519 = vmatprep.subr.mxu0 0.0
      %3520 = vmatpush1.msra.mxu0 0.0
      %3521 = vmatprep.subr.mxu0 0.0
      %3522 = vmatpush1.msra.mxu0 0.0
      %3523 = vmatprep.subr.mxu0 0.0
      %3524 = vmatpush1.msra.mxu0 0.0
      %3525 = vmatprep.subr.mxu0 0.0
      %3526 = vmatpush1.msra.mxu0 0.0
      %3527 = vmatprep.subr.mxu0 0.0
      %3528 = vmatpush1.msra.mxu0 0.0
      %3529 = vmatprep.subr.mxu0 0.0
      %3530 = vmatpush1.msra.mxu0 0.0
      %3531 = vmatprep.subr.mxu0 0.0
      %3532 = vmatpush1.msra.mxu0 0.0
      %3533 = vmatprep.subr.mxu0 0.0
      %3534 = vmatpush1.msra.mxu0 0.0
      %3535 = vmatprep.subr.mxu0 0.0
      %3536 = vmatpush1.msra.mxu0 0.0
      %3537 = vmatprep.subr.mxu0 0.0
      %3538 = vmatpush1.msra.mxu0 0.0
      %3539 = vmatprep.subr.mxu0 0.0
      %3540 = vmatpush1.msra.mxu0 0.0
      %3541 = vmatprep.subr.mxu0 0.0
      %3542 = vmatpush1.msra.mxu0 0.0
      %3543 = vmatprep.subr.mxu0 0.0
      %3544 = vmatpush1.msra.mxu0 0.0
      %3545 = vmatprep.subr.mxu0 0.0
      %3546 = vmatpush1.msra.mxu0 0.0
      %3547 = vmatprep.subr.mxu0 0.0
      %3548 = vmatpush1.msra.mxu0 0.0
      %3549 = vmatprep.subr.mxu0 0.0
      %3550 = vmatpush1.msra.mxu0 0.0
      %3551 = vmatprep.mubr.f32.mxu0 0.0
      %3552 = vmatmul.mubr.f32.gmra.mrb[0].mxu0 %v3482
      %v3553 = vpop.f32.mrb[0].mxu0
      %v3554 = vadd.f32 %v3460, %v3553
      %v3555 = vpop.f32.mrb[0].mxu0
      %v3556 = vadd.f32 %v3462, %v3555
      %3557 = vmatprep.mubr.f32.mxu0 0.0
      %3558 = vmatmul.mubr.f32.gmra.mrb[0].mxu0 %v3485
      %v3559 = vpop.f32.mrb[0].mxu0
      %v3560 = vadd.f32 %v3466, %v3559
      %v3561 = vpop.f32.mrb[0].mxu0
      %v3562 = vadd.f32 %v3468, %v3561
      %3563 = vdwg.mxu0
      %s3564 = scalar_lea.vmem %s1, 544
      %v3565 = vld [vmem:[%s3564] sm:$0xff]
      %v3566 = vld [vmem:[%s3564 + $0x8] sm:$0xff]
      %3567 = vrot.lane.b32.xlu0 %v3364, 55
      %v3568 = vpop.permute.xlu0 %3567
      %3569 = vrot.lane.b32.xlu0 %v3365, 55
      %v3570 = vpop.permute.xlu0 %3569
      %3571 = vrot.lane.b32.xlu0 %v3366, 55
      %v3572 = vpop.permute.xlu0 %3571
      %vm3573 = vcmask 449536
      %v3574 = vsel %vm3573, %v3568, %v3570
      %v3575 = vsel %vm3573, %v3570, %v3572
      %v3579 = vsel %vm166, %v3565, 0
      %v3582 = vsel %vm166, %v3566, 0
      %3584 = vmatprep.subr.mxu0 %v3575
      %3585 = vmatpush1.msra.mxu0 %v3574
      %3586 = vmatprep.subr.mxu0 0.0
      %3587 = vmatpush1.msra.mxu0 0.0
      %3588 = vmatprep.subr.mxu0 0.0
      %3589 = vmatpush1.msra.mxu0 0.0
      %3590 = vmatprep.subr.mxu0 0.0
      %3591 = vmatpush1.msra.mxu0 0.0
      %3592 = vmatprep.subr.mxu0 0.0
      %3593 = vmatpush1.msra.mxu0 0.0
      %3594 = vmatprep.subr.mxu0 0.0
      %3595 = vmatpush1.msra.mxu0 0.0
      %3596 = vmatprep.subr.mxu0 0.0
      %3597 = vmatpush1.msra.mxu0 0.0
      %3598 = vmatprep.subr.mxu0 0.0
      %3599 = vmatpush1.msra.mxu0 0.0
      %3600 = vmatprep.subr.mxu0 0.0
      %3601 = vmatpush1.msra.mxu0 0.0
      %3602 = vmatprep.subr.mxu0 0.0
      %3603 = vmatpush1.msra.mxu0 0.0
      %3604 = vmatprep.subr.mxu0 0.0
      %3605 = vmatpush1.msra.mxu0 0.0
      %3606 = vmatprep.subr.mxu0 0.0
      %3607 = vmatpush1.msra.mxu0 0.0
      %3608 = vmatprep.subr.mxu0 0.0
      %3609 = vmatpush1.msra.mxu0 0.0
      %3610 = vmatprep.subr.mxu0 0.0
      %3611 = vmatpush1.msra.mxu0 0.0
      %3612 = vmatprep.subr.mxu0 0.0
      %3613 = vmatpush1.msra.mxu0 0.0
      %3614 = vmatprep.subr.mxu0 0.0
      %3615 = vmatpush1.msra.mxu0 0.0
      %3616 = vmatprep.subr.mxu0 0.0
      %3617 = vmatpush1.msra.mxu0 0.0
      %3618 = vmatprep.subr.mxu0 0.0
      %3619 = vmatpush1.msra.mxu0 0.0
      %3620 = vmatprep.subr.mxu0 0.0
      %3621 = vmatpush1.msra.mxu0 0.0
      %3622 = vmatprep.subr.mxu0 0.0
      %3623 = vmatpush1.msra.mxu0 0.0
      %3624 = vmatprep.subr.mxu0 0.0
      %3625 = vmatpush1.msra.mxu0 0.0
      %3626 = vmatprep.subr.mxu0 0.0
      %3627 = vmatpush1.msra.mxu0 0.0
      %3628 = vmatprep.subr.mxu0 0.0
      %3629 = vmatpush1.msra.mxu0 0.0
      %3630 = vmatprep.subr.mxu0 0.0
      %3631 = vmatpush1.msra.mxu0 0.0
      %3632 = vmatprep.subr.mxu0 0.0
      %3633 = vmatpush1.msra.mxu0 0.0
      %3634 = vmatprep.subr.mxu0 0.0
      %3635 = vmatpush1.msra.mxu0 0.0
      %3636 = vmatprep.subr.mxu0 0.0
      %3637 = vmatpush1.msra.mxu0 0.0
      %3638 = vmatprep.subr.mxu0 0.0
      %3639 = vmatpush1.msra.mxu0 0.0
      %3640 = vmatprep.subr.mxu0 0.0
      %3641 = vmatpush1.msra.mxu0 0.0
      %3642 = vmatprep.subr.mxu0 0.0
      %3643 = vmatpush1.msra.mxu0 0.0
      %3644 = vmatprep.subr.mxu0 0.0
      %3645 = vmatpush1.msra.mxu0 0.0
      %3646 = vmatprep.subr.mxu0 0.0
      %3647 = vmatpush1.msra.mxu0 0.0
      %3648 = vmatprep.mubr.f32.mxu0 0.0
      %3649 = vmatmul.mubr.f32.gmra.mrb[0].mxu0 %v3579
      %v3650 = vpop.f32.mrb[0].mxu0
      %v3651 = vadd.f32 0.0, %v3650
      %v3652 = vpop.f32.mrb[0].mxu0
      %v3653 = vadd.f32 0.0, %v3652
      %3654 = vmatprep.mubr.f32.mxu0 0.0
      %3655 = vmatmul.mubr.f32.gmra.mrb[0].mxu0 %v3582
      %v3656 = vpop.f32.mrb[0].mxu0
      %v3657 = vadd.f32 0.0, %v3656
      %v3658 = vpop.f32.mrb[0].mxu0
      %v3659 = vadd.f32 0.0, %v3658
      %3660 = vdwg.mxu0
      %v3661 = vadd.f32 %v3554, %v3651
      %v3662 = vadd.f32 %v3556, %v3653
      %v3663 = vadd.f32 %v3560, %v3657
      %v3664 = vadd.f32 %v3562, %v3659
      %s3665 = scalar_lea.vmem %s1, 560
      %v3666 = vld [vmem:[%s3665] sm:$0xff]
      %v3667 = vld [vmem:[%s3665 + $0x8] sm:$0xff]
      %3668 = vrot.lane.b32.xlu0 %v3364, 56
      %v3669 = vpop.permute.xlu0 %3668
      %3670 = vrot.lane.b32.xlu0 %v3365, 56
      %v3671 = vpop.permute.xlu0 %3670
      %3672 = vrot.lane.b32.xlu0 %v3366, 56
      %v3673 = vpop.permute.xlu0 %3672
      %vm3674 = vcmask 457728
      %v3675 = vsel %vm3674, %v3669, %v3671
      %v3676 = vsel %vm3674, %v3671, %v3673
      %v3680 = vsel %vm166, %v3666, 0
      %v3683 = vsel %vm166, %v3667, 0
      %3685 = vmatprep.subr.mxu0 %v3676
      %3686 = vmatpush1.msra.mxu0 %v3675
      %3687 = vmatprep.subr.mxu0 0.0
      %3688 = vmatpush1.msra.mxu0 0.0
      %3689 = vmatprep.subr.mxu0 0.0
      %3690 = vmatpush1.msra.mxu0 0.0
      %3691 = vmatprep.subr.mxu0 0.0
      %3692 = vmatpush1.msra.mxu0 0.0
      %3693 = vmatprep.subr.mxu0 0.0
      %3694 = vmatpush1.msra.mxu0 0.0
      %3695 = vmatprep.subr.mxu0 0.0
      %3696 = vmatpush1.msra.mxu0 0.0
      %3697 = vmatprep.subr.mxu0 0.0
      %3698 = vmatpush1.msra.mxu0 0.0
      %3699 = vmatprep.subr.mxu0 0.0
      %3700 = vmatpush1.msra.mxu0 0.0
      %3701 = vmatprep.subr.mxu0 0.0
      %3702 = vmatpush1.msra.mxu0 0.0
      %3703 = vmatprep.subr.mxu0 0.0
      %3704 = vmatpush1.msra.mxu0 0.0
      %3705 = vmatprep.subr.mxu0 0.0
      %3706 = vmatpush1.msra.mxu0 0.0
      %3707 = vmatprep.subr.mxu0 0.0
      %3708 = vmatpush1.msra.mxu0 0.0
      %3709 = vmatprep.subr.mxu0 0.0
      %3710 = vmatpush1.msra.mxu0 0.0
      %3711 = vmatprep.subr.mxu0 0.0
      %3712 = vmatpush1.msra.mxu0 0.0
      %3713 = vmatprep.subr.mxu0 0.0
      %3714 = vmatpush1.msra.mxu0 0.0
      %3715 = vmatprep.subr.mxu0 0.0
      %3716 = vmatpush1.msra.mxu0 0.0
      %3717 = vmatprep.subr.mxu0 0.0
      %3718 = vmatpush1.msra.mxu0 0.0
      %3719 = vmatprep.subr.mxu0 0.0
      %3720 = vmatpush1.msra.mxu0 0.0
      %3721 = vmatprep.subr.mxu0 0.0
      %3722 = vmatpush1.msra.mxu0 0.0
      %3723 = vmatprep.subr.mxu0 0.0
      %3724 = vmatpush1.msra.mxu0 0.0
      %3725 = vmatprep.subr.mxu0 0.0
      %3726 = vmatpush1.msra.mxu0 0.0
      %3727 = vmatprep.subr.mxu0 0.0
      %3728 = vmatpush1.msra.mxu0 0.0
      %3729 = vmatprep.subr.mxu0 0.0
      %3730 = vmatpush1.msra.mxu0 0.0
      %3731 = vmatprep.subr.mxu0 0.0
      %3732 = vmatpush1.msra.mxu0 0.0
      %3733 = vmatprep.subr.mxu0 0.0
      %3734 = vmatpush1.msra.mxu0 0.0
      %3735 = vmatprep.subr.mxu0 0.0
      %3736 = vmatpush1.msra.mxu0 0.0
      %3737 = vmatprep.subr.mxu0 0.0
      %3738 = vmatpush1.msra.mxu0 0.0
      %3739 = vmatprep.subr.mxu0 0.0
      %3740 = vmatpush1.msra.mxu0 0.0
      %3741 = vmatprep.subr.mxu0 0.0
      %3742 = vmatpush1.msra.mxu0 0.0
      %3743 = vmatprep.subr.mxu0 0.0
      %3744 = vmatpush1.msra.mxu0 0.0
      %3745 = vmatprep.subr.mxu0 0.0
      %3746 = vmatpush1.msra.mxu0 0.0
      %3747 = vmatprep.subr.mxu0 0.0
      %3748 = vmatpush1.msra.mxu0 0.0
      %3749 = vmatprep.mubr.f32.mxu0 0.0
      %3750 = vmatmul.mubr.f32.gmra.mrb[0].mxu0 %v3680
      %v3751 = vpop.f32.mrb[0].mxu0
      %v3752 = vadd.f32 0.0, %v3751
      %v3753 = vpop.f32.mrb[0].mxu0
      %v3754 = vadd.f32 0.0, %v3753
      %3755 = vmatprep.mubr.f32.mxu0 0.0
      %3756 = vmatmul.mubr.f32.gmra.mrb[0].mxu0 %v3683
      %v3757 = vpop.f32.mrb[0].mxu0
      %v3758 = vadd.f32 0.0, %v3757
      %v3759 = vpop.f32.mrb[0].mxu0
      %v3760 = vadd.f32 0.0, %v3759
      %3761 = vdwg.mxu0
      %v3762 = vadd.f32 %v3661, %v3752
      %v3763 = vadd.f32 %v3662, %v3754
      %v3764 = vadd.f32 %v3663, %v3758
      %v3765 = vadd.f32 %v3664, %v3760
      %s3766 = scalar_lea.vmem %s1, 576
      %v3767 = vld [vmem:[%s3766] sm:$0xff]
      %v3768 = vld [vmem:[%s3766 + $0x8] sm:$0xff]
      %3769 = vrot.lane.b32.xlu0 %v3364, 85
      %v3770 = vpop.permute.xlu0 %3769
      %3771 = vrot.lane.b32.xlu0 %v3365, 85
      %v3772 = vpop.permute.xlu0 %3771
      %3773 = vrot.lane.b32.xlu0 %v3366, 85
      %v3774 = vpop.permute.xlu0 %3773
      %v3775 = vsel %vm256, %v3770, %v3772
      %v3776 = vsel %vm256, %v3772, %v3774
      %v3780 = vsel %vm166, %v3767, 0
      %v3783 = vsel %vm166, %v3768, 0
      %3785 = vmatprep.subr.mxu0 %v3776
      %3786 = vmatpush1.msra.mxu0 %v3775
      %3787 = vmatprep.subr.mxu0 0.0
      %3788 = vmatpush1.msra.mxu0 0.0
      %3789 = vmatprep.subr.mxu0 0.0
      %3790 = vmatpush1.msra.mxu0 0.0
      %3791 = vmatprep.subr.mxu0 0.0
      %3792 = vmatpush1.msra.mxu0 0.0
      %3793 = vmatprep.subr.mxu0 0.0
      %3794 = vmatpush1.msra.mxu0 0.0
      %3795 = vmatprep.subr.mxu0 0.0
      %3796 = vmatpush1.msra.mxu0 0.0
      %3797 = vmatprep.subr.mxu0 0.0
      %3798 = vmatpush1.msra.mxu0 0.0
      %3799 = vmatprep.subr.mxu0 0.0
      %3800 = vmatpush1.msra.mxu0 0.0
      %3801 = vmatprep.subr.mxu0 0.0
      %3802 = vmatpush1.msra.mxu0 0.0
      %3803 = vmatprep.subr.mxu0 0.0
      %3804 = vmatpush1.msra.mxu0 0.0
      %3805 = vmatprep.subr.mxu0 0.0
      %3806 = vmatpush1.msra.mxu0 0.0
      %3807 = vmatprep.subr.mxu0 0.0
      %3808 = vmatpush1.msra.mxu0 0.0
      %3809 = vmatprep.subr.mxu0 0.0
      %3810 = vmatpush1.msra.mxu0 0.0
      %3811 = vmatprep.subr.mxu0 0.0
      %3812 = vmatpush1.msra.mxu0 0.0
      %3813 = vmatprep.subr.mxu0 0.0
      %3814 = vmatpush1.msra.mxu0 0.0
      %3815 = vmatprep.subr.mxu0 0.0
      %3816 = vmatpush1.msra.mxu0 0.0
      %3817 = vmatprep.subr.mxu0 0.0
      %3818 = vmatpush1.msra.mxu0 0.0
      %3819 = vmatprep.subr.mxu0 0.0
      %3820 = vmatpush1.msra.mxu0 0.0
      %3821 = vmatprep.subr.mxu0 0.0
      %3822 = vmatpush1.msra.mxu0 0.0
      %3823 = vmatprep.subr.mxu0 0.0
      %3824 = vmatpush1.msra.mxu0 0.0
      %3825 = vmatprep.subr.mxu0 0.0
      %3826 = vmatpush1.msra.mxu0 0.0
      %3827 = vmatprep.subr.mxu0 0.0
      %3828 = vmatpush1.msra.mxu0 0.0
      %3829 = vmatprep.subr.mxu0 0.0
      %3830 = vmatpush1.msra.mxu0 0.0
      %3831 = vmatprep.subr.mxu0 0.0
      %3832 = vmatpush1.msra.mxu0 0.0
      %3833 = vmatprep.subr.mxu0 0.0
      %3834 = vmatpush1.msra.mxu0 0.0
      %3835 = vmatprep.subr.mxu0 0.0
      %3836 = vmatpush1.msra.mxu0 0.0
      %3837 = vmatprep.subr.mxu0 0.0
      %3838 = vmatpush1.msra.mxu0 0.0
      %3839 = vmatprep.subr.mxu0 0.0
      %3840 = vmatpush1.msra.mxu0 0.0
      %3841 = vmatprep.subr.mxu0 0.0
      %3842 = vmatpush1.msra.mxu0 0.0
      %3843 = vmatprep.subr.mxu0 0.0
      %3844 = vmatpush1.msra.mxu0 0.0
      %3845 = vmatprep.subr.mxu0 0.0
      %3846 = vmatpush1.msra.mxu0 0.0
      %3847 = vmatprep.subr.mxu0 0.0
      %3848 = vmatpush1.msra.mxu0 0.0
      %3849 = vmatprep.mubr.f32.mxu0 0.0
      %3850 = vmatmul.mubr.f32.gmra.mrb[0].mxu0 %v3780
      %v3851 = vpop.f32.mrb[0].mxu0
      %v3852 = vadd.f32 0.0, %v3851
      %v3853 = vpop.f32.mrb[0].mxu0
      %v3854 = vadd.f32 0.0, %v3853
      %3855 = vmatprep.mubr.f32.mxu0 0.0
      %3856 = vmatmul.mubr.f32.gmra.mrb[0].mxu0 %v3783
      %v3857 = vpop.f32.mrb[0].mxu0
      %v3858 = vadd.f32 0.0, %v3857
      %v3859 = vpop.f32.mrb[0].mxu0
      %v3860 = vadd.f32 0.0, %v3859
      %3861 = vdwg.mxu0
      %v3862 = vadd.f32 %v3762, %v3852
      %v3863 = vadd.f32 %v3763, %v3854
      %v3864 = vadd.f32 %v3764, %v3858
      %v3865 = vadd.f32 %v3765, %v3860
      %s3866 = scalar_lea.vmem %s1, 592
      %v3867 = vld [vmem:[%s3866] sm:$0xff]
      %v3868 = vld [vmem:[%s3866 + $0x8] sm:$0xff]
      %3869 = vrot.lane.b32.xlu0 %v3364, 86
      %v3870 = vpop.permute.xlu0 %3869
      %3871 = vrot.lane.b32.xlu0 %v3365, 86
      %v3872 = vpop.permute.xlu0 %3871
      %3873 = vrot.lane.b32.xlu0 %v3366, 86
      %v3874 = vpop.permute.xlu0 %3873
      %v3875 = vsel %vm161, %v3870, %v3872
      %v3876 = vsel %vm161, %v3872, %v3874
      %v3880 = vsel %vm166, %v3867, 0
      %v3883 = vsel %vm166, %v3868, 0
      %3885 = vmatprep.subr.mxu0 %v3876
      %3886 = vmatpush1.msra.mxu0 %v3875
      %3887 = vmatprep.subr.mxu0 0.0
      %3888 = vmatpush1.msra.mxu0 0.0
      %3889 = vmatprep.subr.mxu0 0.0
      %3890 = vmatpush1.msra.mxu0 0.0
      %3891 = vmatprep.subr.mxu0 0.0
      %3892 = vmatpush1.msra.mxu0 0.0
      %3893 = vmatprep.subr.mxu0 0.0
      %3894 = vmatpush1.msra.mxu0 0.0
      %3895 = vmatprep.subr.mxu0 0.0
      %3896 = vmatpush1.msra.mxu0 0.0
      %3897 = vmatprep.subr.mxu0 0.0
      %3898 = vmatpush1.msra.mxu0 0.0
      %3899 = vmatprep.subr.mxu0 0.0
      %3900 = vmatpush1.msra.mxu0 0.0
      %3901 = vmatprep.subr.mxu0 0.0
      %3902 = vmatpush1.msra.mxu0 0.0
      %3903 = vmatprep.subr.mxu0 0.0
      %3904 = vmatpush1.msra.mxu0 0.0
      %3905 = vmatprep.subr.mxu0 0.0
      %3906 = vmatpush1.msra.mxu0 0.0
      %3907 = vmatprep.subr.mxu0 0.0
      %3908 = vmatpush1.msra.mxu0 0.0
      %3909 = vmatprep.subr.mxu0 0.0
      %3910 = vmatpush1.msra.mxu0 0.0
      %3911 = vmatprep.subr.mxu0 0.0
      %3912 = vmatpush1.msra.mxu0 0.0
      %3913 = vmatprep.subr.mxu0 0.0
      %3914 = vmatpush1.msra.mxu0 0.0
      %3915 = vmatprep.subr.mxu0 0.0
      %3916 = vmatpush1.msra.mxu0 0.0
      %3917 = vmatprep.subr.mxu0 0.0
      %3918 = vmatpush1.msra.mxu0 0.0
      %3919 = vmatprep.subr.mxu0 0.0
      %3920 = vmatpush1.msra.mxu0 0.0
      %3921 = vmatprep.subr.mxu0 0.0
      %3922 = vmatpush1.msra.mxu0 0.0
      %3923 = vmatprep.subr.mxu0 0.0
      %3924 = vmatpush1.msra.mxu0 0.0
      %3925 = vmatprep.subr.mxu0 0.0
      %3926 = vmatpush1.msra.mxu0 0.0
      %3927 = vmatprep.subr.mxu0 0.0
      %3928 = vmatpush1.msra.mxu0 0.0
      %3929 = vmatprep.subr.mxu0 0.0
      %3930 = vmatpush1.msra.mxu0 0.0
      %3931 = vmatprep.subr.mxu0 0.0
      %3932 = vmatpush1.msra.mxu0 0.0
      %3933 = vmatprep.subr.mxu0 0.0
      %3934 = vmatpush1.msra.mxu0 0.0
      %3935 = vmatprep.subr.mxu0 0.0
      %3936 = vmatpush1.msra.mxu0 0.0
      %3937 = vmatprep.subr.mxu0 0.0
      %3938 = vmatpush1.msra.mxu0 0.0
      %3939 = vmatprep.subr.mxu0 0.0
      %3940 = vmatpush1.msra.mxu0 0.0
      %3941 = vmatprep.subr.mxu0 0.0
      %3942 = vmatpush1.msra.mxu0 0.0
      %3943 = vmatprep.subr.mxu0 0.0
      %3944 = vmatpush1.msra.mxu0 0.0
      %3945 = vmatprep.subr.mxu0 0.0
      %3946 = vmatpush1.msra.mxu0 0.0
      %3947 = vmatprep.subr.mxu0 0.0
      %3948 = vmatpush1.msra.mxu0 0.0
      %3949 = vmatprep.mubr.f32.mxu0 0.0
      %3950 = vmatmul.mubr.f32.gmra.mrb[0].mxu0 %v3880
      %v3951 = vpop.f32.mrb[0].mxu0
      %v3952 = vadd.f32 0.0, %v3951
      %v3953 = vpop.f32.mrb[0].mxu0
      %v3954 = vadd.f32 0.0, %v3953
      %3955 = vmatprep.mubr.f32.mxu0 0.0
      %3956 = vmatmul.mubr.f32.gmra.mrb[0].mxu0 %v3883
      %v3957 = vpop.f32.mrb[0].mxu0
      %v3958 = vadd.f32 0.0, %v3957
      %v3959 = vpop.f32.mrb[0].mxu0
      %v3960 = vadd.f32 0.0, %v3959
      %3961 = vdwg.mxu0
      %v3962 = vadd.f32 %v3862, %v3952
      %v3963 = vadd.f32 %v3863, %v3954
      %v3964 = vadd.f32 %v3864, %v3958
      %v3965 = vadd.f32 %v3865, %v3960
      %s3966 = scalar_lea.vmem %s1, 608
      %v3967 = vld [vmem:[%s3966] sm:$0xff]
      %v3968 = vld [vmem:[%s3966 + $0x8] sm:$0xff]
      %3969 = vrot.lane.b32.xlu0 %v3364, 91
      %v3970 = vpop.permute.xlu0 %3969
      %3971 = vrot.lane.b32.xlu0 %v3365, 91
      %v3972 = vpop.permute.xlu0 %3971
      %3973 = vrot.lane.b32.xlu0 %v3366, 91
      %v3974 = vpop.permute.xlu0 %3973
      %v3975 = vsel %vm353, %v3970, %v3972
      %v3976 = vsel %vm353, %v3972, %v3974
      %v3980 = vsel %vm166, %v3967, 0
      %v3983 = vsel %vm166, %v3968, 0
      %3985 = vmatprep.subr.mxu0 %v3976
      %3986 = vmatpush1.msra.mxu0 %v3975
      %3987 = vmatprep.subr.mxu0 0.0
      %3988 = vmatpush1.msra.mxu0 0.0
      %3989 = vmatprep.subr.mxu0 0.0
      %3990 = vmatpush1.msra.mxu0 0.0
      %3991 = vmatprep.subr.mxu0 0.0
      %3992 = vmatpush1.msra.mxu0 0.0
      %3993 = vmatprep.subr.mxu0 0.0
      %3994 = vmatpush1.msra.mxu0 0.0
      %3995 = vmatprep.subr.mxu0 0.0
      %3996 = vmatpush1.msra.mxu0 0.0
      %3997 = vmatprep.subr.mxu0 0.0
      %3998 = vmatpush1.msra.mxu0 0.0
      %3999 = vmatprep.subr.mxu0 0.0
      %4000 = vmatpush1.msra.mxu0 0.0
      %4001 = vmatprep.subr.mxu0 0.0
      %4002 = vmatpush1.msra.mxu0 0.0
      %4003 = vmatprep.subr.mxu0 0.0
      %4004 = vmatpush1.msra.mxu0 0.0
      %4005 = vmatprep.subr.mxu0 0.0
      %4006 = vmatpush1.msra.mxu0 0.0
      %4007 = vmatprep.subr.mxu0 0.0
      %4008 = vmatpush1.msra.mxu0 0.0
      %4009 = vmatprep.subr.mxu0 0.0
      %4010 = vmatpush1.msra.mxu0 0.0
      %4011 = vmatprep.subr.mxu0 0.0
      %4012 = vmatpush1.msra.mxu0 0.0
      %4013 = vmatprep.subr.mxu0 0.0
      %4014 = vmatpush1.msra.mxu0 0.0
      %4015 = vmatprep.subr.mxu0 0.0
      %4016 = vmatpush1.msra.mxu0 0.0
      %4017 = vmatprep.subr.mxu0 0.0
      %4018 = vmatpush1.msra.mxu0 0.0
      %4019 = vmatprep.subr.mxu0 0.0
      %4020 = vmatpush1.msra.mxu0 0.0
      %4021 = vmatprep.subr.mxu0 0.0
      %4022 = vmatpush1.msra.mxu0 0.0
      %4023 = vmatprep.subr.mxu0 0.0
      %4024 = vmatpush1.msra.mxu0 0.0
      %4025 = vmatprep.subr.mxu0 0.0
      %4026 = vmatpush1.msra.mxu0 0.0
      %4027 = vmatprep.subr.mxu0 0.0
      %4028 = vmatpush1.msra.mxu0 0.0
      %4029 = vmatprep.subr.mxu0 0.0
      %4030 = vmatpush1.msra.mxu0 0.0
      %4031 = vmatprep.subr.mxu0 0.0
      %4032 = vmatpush1.msra.mxu0 0.0
      %4033 = vmatprep.subr.mxu0 0.0
      %4034 = vmatpush1.msra.mxu0 0.0
      %4035 = vmatprep.subr.mxu0 0.0
      %4036 = vmatpush1.msra.mxu0 0.0
      %4037 = vmatprep.subr.mxu0 0.0
      %4038 = vmatpush1.msra.mxu0 0.0
      %4039 = vmatprep.subr.mxu0 0.0
      %4040 = vmatpush1.msra.mxu0 0.0
      %4041 = vmatprep.subr.mxu0 0.0
      %4042 = vmatpush1.msra.mxu0 0.0
      %4043 = vmatprep.subr.mxu0 0.0
      %4044 = vmatpush1.msra.mxu0 0.0
      %4045 = vmatprep.subr.mxu0 0.0
      %4046 = vmatpush1.msra.mxu0 0.0
      %4047 = vmatprep.subr.mxu0 0.0
      %4048 = vmatpush1.msra.mxu0 0.0
      %4049 = vmatprep.mubr.f32.mxu0 0.0
      %4050 = vmatmul.mubr.f32.gmra.mrb[0].mxu0 %v3980
      %v4051 = vpop.f32.mrb[0].mxu0
      %v4052 = vadd.f32 0.0, %v4051
      %v4053 = vpop.f32.mrb[0].mxu0
      %v4054 = vadd.f32 0.0, %v4053
      %4055 = vmatprep.mubr.f32.mxu0 0.0
      %4056 = vmatmul.mubr.f32.gmra.mrb[0].mxu0 %v3983
      %v4057 = vpop.f32.mrb[0].mxu0
      %v4058 = vadd.f32 0.0, %v4057
      %v4059 = vpop.f32.mrb[0].mxu0
      %v4060 = vadd.f32 0.0, %v4059
      %4061 = vdwg.mxu0
      %v4062 = vadd.f32 %v3962, %v4052
      %v4063 = vadd.f32 %v3963, %v4054
      %v4064 = vadd.f32 %v3964, %v4058
      %v4065 = vadd.f32 %v3965, %v4060
      %s4066 = scalar_lea.vmem %s1, 624
      %v4067 = vld [vmem:[%s4066] sm:$0xff]
      %v4068 = vld [vmem:[%s4066 + $0x8] sm:$0xff]
      %4069 = vrot.lane.b32.xlu0 %v3364, 92
      %v4070 = vpop.permute.xlu0 %4069
      %4071 = vrot.lane.b32.xlu0 %v3365, 92
      %v4072 = vpop.permute.xlu0 %4071
      %4073 = vrot.lane.b32.xlu0 %v3366, 92
      %v4074 = vpop.permute.xlu0 %4073
      %v4075 = vsel %vm454, %v4070, %v4072
      %v4076 = vsel %vm454, %v4072, %v4074
      %v4080 = vsel %vm166, %v4067, 0
      %v4083 = vsel %vm166, %v4068, 0
      %4085 = vmatprep.subr.mxu0 %v4076
      %4086 = vmatpush1.msra.mxu0 %v4075
      %4087 = vmatprep.subr.mxu0 0.0
      %4088 = vmatpush1.msra.mxu0 0.0
      %4089 = vmatprep.subr.mxu0 0.0
      %4090 = vmatpush1.msra.mxu0 0.0
      %4091 = vmatprep.subr.mxu0 0.0
      %4092 = vmatpush1.msra.mxu0 0.0
      %4093 = vmatprep.subr.mxu0 0.0
      %4094 = vmatpush1.msra.mxu0 0.0
      %4095 = vmatprep.subr.mxu0 0.0
      %4096 = vmatpush1.msra.mxu0 0.0
      %4097 = vmatprep.subr.mxu0 0.0
      %4098 = vmatpush1.msra.mxu0 0.0
      %4099 = vmatprep.subr.mxu0 0.0
      %4100 = vmatpush1.msra.mxu0 0.0
      %4101 = vmatprep.subr.mxu0 0.0
      %4102 = vmatpush1.msra.mxu0 0.0
      %4103 = vmatprep.subr.mxu0 0.0
      %4104 = vmatpush1.msra.mxu0 0.0
      %4105 = vmatprep.subr.mxu0 0.0
      %4106 = vmatpush1.msra.mxu0 0.0
      %4107 = vmatprep.subr.mxu0 0.0
      %4108 = vmatpush1.msra.mxu0 0.0
      %4109 = vmatprep.subr.mxu0 0.0
      %4110 = vmatpush1.msra.mxu0 0.0
      %4111 = vmatprep.subr.mxu0 0.0
      %4112 = vmatpush1.msra.mxu0 0.0
      %4113 = vmatprep.subr.mxu0 0.0
      %4114 = vmatpush1.msra.mxu0 0.0
      %4115 = vmatprep.subr.mxu0 0.0
      %4116 = vmatpush1.msra.mxu0 0.0
      %4117 = vmatprep.subr.mxu0 0.0
      %4118 = vmatpush1.msra.mxu0 0.0
      %4119 = vmatprep.subr.mxu0 0.0
      %4120 = vmatpush1.msra.mxu0 0.0
      %4121 = vmatprep.subr.mxu0 0.0
      %4122 = vmatpush1.msra.mxu0 0.0
      %4123 = vmatprep.subr.mxu0 0.0
      %4124 = vmatpush1.msra.mxu0 0.0
      %4125 = vmatprep.subr.mxu0 0.0
      %4126 = vmatpush1.msra.mxu0 0.0
      %4127 = vmatprep.subr.mxu0 0.0
      %4128 = vmatpush1.msra.mxu0 0.0
      %4129 = vmatprep.subr.mxu0 0.0
      %4130 = vmatpush1.msra.mxu0 0.0
      %4131 = vmatprep.subr.mxu0 0.0
      %4132 = vmatpush1.msra.mxu0 0.0
      %4133 = vmatprep.subr.mxu0 0.0
      %4134 = vmatpush1.msra.mxu0 0.0
      %4135 = vmatprep.subr.mxu0 0.0
      %4136 = vmatpush1.msra.mxu0 0.0
      %4137 = vmatprep.subr.mxu0 0.0
      %4138 = vmatpush1.msra.mxu0 0.0
      %4139 = vmatprep.subr.mxu0 0.0
      %4140 = vmatpush1.msra.mxu0 0.0
      %4141 = vmatprep.subr.mxu0 0.0
      %4142 = vmatpush1.msra.mxu0 0.0
      %4143 = vmatprep.subr.mxu0 0.0
      %4144 = vmatpush1.msra.mxu0 0.0
      %4145 = vmatprep.subr.mxu0 0.0
      %4146 = vmatpush1.msra.mxu0 0.0
      %4147 = vmatprep.subr.mxu0 0.0
      %4148 = vmatpush1.msra.mxu0 0.0
      %4149 = vmatprep.mubr.f32.mxu0 0.0
      %4150 = vmatmul.mubr.f32.gmra.mrb[0].mxu0 %v4080
      %v4151 = vpop.f32.mrb[0].mxu0
      %v4152 = vadd.f32 0.0, %v4151
      %v4153 = vpop.f32.mrb[0].mxu0
      %v4154 = vadd.f32 0.0, %v4153
      %4155 = vmatprep.mubr.f32.mxu0 0.0
      %4156 = vmatmul.mubr.f32.gmra.mrb[0].mxu0 %v4083
      %v4157 = vpop.f32.mrb[0].mxu0
      %v4158 = vadd.f32 0.0, %v4157
      %v4159 = vpop.f32.mrb[0].mxu0
      %v4160 = vadd.f32 0.0, %v4159
      %4161 = vdwg.mxu0
      %v4162 = vadd.f32 %v4062, %v4152
      %v4163 = vadd.f32 %v4063, %v4154
      %v4164 = vadd.f32 %v4064, %v4158
      %v4165 = vadd.f32 %v4065, %v4160
      %s4166 = scalar_lea.vmem %s143, 128
      %4167 = vst [vmem:[%s4166] sm:$0xff] %v4162
      %4168 = vst [vmem:[%s4166 + $0x8] sm:$0xff] %v4163
      %4169 = vst [vmem:[%s4166 + $0x10] sm:$0xff] %v4164
      %4170 = vst [vmem:[%s4166 + $0x18] sm:$0xff] %v4165
      %v4171 = vld [vmem:[%s138] sm:$0xff]
      %v4172 = vld [vmem:[%s138 + $0x8] sm:$0xff]
      %v4173 = vld [vmem:[%s138 + $0x10] sm:$0xff]
      %s4174 = scalar_lea.vmem %s1, 640
      %v4175 = vld [vmem:[%s4174] sm:$0xff]
      %v4176 = vld [vmem:[%s4174 + $0x8] sm:$0xff]
      %s4177 = scalar_lea.vmem %s1, 656
      %v4178 = vld [vmem:[%s4177] sm:$0xff]
      %v4179 = vld [vmem:[%s4177 + $0x8] sm:$0xff]
      %4183 = vrot.lane.b32.xlu0 %v4171, 49
      %v4184 = vpop.permute.xlu0 %4183
      %4185 = vrot.lane.b32.xlu0 %v4172, 49
      %v4186 = vpop.permute.xlu0 %4185
      %4187 = vrot.lane.b32.xlu0 %v4173, 49
      %v4188 = vpop.permute.xlu0 %4187
      %v4189 = vsel %vm3476, %v4184, %v4186
      %v4190 = vsel %vm3476, %v4186, %v4188
      %v4194 = vsel %vm166, %v4178, 0
      %v4197 = vsel %vm166, %v4179, 0
      %4199 = vmatprep.subr.mxu0 %v4190
      %4200 = vmatpush1.msra.mxu0 %v4189
      %4201 = vmatprep.subr.mxu0 0.0
      %4202 = vmatpush1.msra.mxu0 0.0
      %4203 = vmatprep.subr.mxu0 0.0
      %4204 = vmatpush1.msra.mxu0 0.0
      %4205 = vmatprep.subr.mxu0 0.0
      %4206 = vmatpush1.msra.mxu0 0.0
      %4207 = vmatprep.subr.mxu0 0.0
      %4208 = vmatpush1.msra.mxu0 0.0
      %4209 = vmatprep.subr.mxu0 0.0
      %4210 = vmatpush1.msra.mxu0 0.0
      %4211 = vmatprep.subr.mxu0 0.0
      %4212 = vmatpush1.msra.mxu0 0.0
      %4213 = vmatprep.subr.mxu0 0.0
      %4214 = vmatpush1.msra.mxu0 0.0
      %4215 = vmatprep.subr.mxu0 0.0
      %4216 = vmatpush1.msra.mxu0 0.0
      %4217 = vmatprep.subr.mxu0 0.0
      %4218 = vmatpush1.msra.mxu0 0.0
      %4219 = vmatprep.subr.mxu0 0.0
      %4220 = vmatpush1.msra.mxu0 0.0
      %4221 = vmatprep.subr.mxu0 0.0
      %4222 = vmatpush1.msra.mxu0 0.0
      %4223 = vmatprep.subr.mxu0 0.0
      %4224 = vmatpush1.msra.mxu0 0.0
      %4225 = vmatprep.subr.mxu0 0.0
      %4226 = vmatpush1.msra.mxu0 0.0
      %4227 = vmatprep.subr.mxu0 0.0
      %4228 = vmatpush1.msra.mxu0 0.0
      %4229 = vmatprep.subr.mxu0 0.0
      %4230 = vmatpush1.msra.mxu0 0.0
      %4231 = vmatprep.subr.mxu0 0.0
      %4232 = vmatpush1.msra.mxu0 0.0
      %4233 = vmatprep.subr.mxu0 0.0
      %4234 = vmatpush1.msra.mxu0 0.0
      %4235 = vmatprep.subr.mxu0 0.0
      %4236 = vmatpush1.msra.mxu0 0.0
      %4237 = vmatprep.subr.mxu0 0.0
      %4238 = vmatpush1.msra.mxu0 0.0
      %4239 = vmatprep.subr.mxu0 0.0
      %4240 = vmatpush1.msra.mxu0 0.0
      %4241 = vmatprep.subr.mxu0 0.0
      %4242 = vmatpush1.msra.mxu0 0.0
      %4243 = vmatprep.subr.mxu0 0.0
      %4244 = vmatpush1.msra.mxu0 0.0
      %4245 = vmatprep.subr.mxu0 0.0
      %4246 = vmatpush1.msra.mxu0 0.0
      %4247 = vmatprep.subr.mxu0 0.0
      %4248 = vmatpush1.msra.mxu0 0.0
      %4249 = vmatprep.subr.mxu0 0.0
      %4250 = vmatpush1.msra.mxu0 0.0
      %4251 = vmatprep.subr.mxu0 0.0
      %4252 = vmatpush1.msra.mxu0 0.0
      %4253 = vmatprep.subr.mxu0 0.0
      %4254 = vmatpush1.msra.mxu0 0.0
      %4255 = vmatprep.subr.mxu0 0.0
      %4256 = vmatpush1.msra.mxu0 0.0
      %4257 = vmatprep.subr.mxu0 0.0
      %4258 = vmatpush1.msra.mxu0 0.0
      %4259 = vmatprep.subr.mxu0 0.0
      %4260 = vmatpush1.msra.mxu0 0.0
      %4261 = vmatprep.subr.mxu0 0.0
      %4262 = vmatpush1.msra.mxu0 0.0
      %4263 = vmatprep.mubr.f32.mxu0 0.0
      %4264 = vmatmul.mubr.f32.gmra.mrb[0].mxu0 %v4194
      %v4265 = vpop.f32.mrb[0].mxu0
      %v4266 = vadd.f32 0.0, %v4265
      %v4267 = vpop.f32.mrb[0].mxu0
      %v4268 = vadd.f32 0.0, %v4267
      %4269 = vmatprep.mubr.f32.mxu0 0.0
      %4270 = vmatmul.mubr.f32.gmra.mrb[0].mxu0 %v4197
      %v4271 = vpop.f32.mrb[0].mxu0
      %v4272 = vadd.f32 0.0, %v4271
      %v4273 = vpop.f32.mrb[0].mxu0
      %v4274 = vadd.f32 0.0, %v4273
      %4275 = vdwg.mxu0
      %4276 = vrot.lane.b32.xlu0 %v4171, 48
      %v4277 = vpop.permute.xlu0 %4276
      %4278 = vrot.lane.b32.xlu0 %v4172, 48
      %v4279 = vpop.permute.xlu0 %4278
      %4280 = vrot.lane.b32.xlu0 %v4173, 48
      %v4281 = vpop.permute.xlu0 %4280
      %vm4282 = vcmask 392192
      %v4283 = vsel %vm4282, %v4277, %v4279
      %v4284 = vsel %vm4282, %v4279, %v4281
      %v4288 = vsel %vm166, %v4175, 0
      %v4291 = vsel %vm166, %v4176, 0
      %4293 = vmatprep.subr.mxu0 %v4284
      %4294 = vmatpush1.msra.mxu0 %v4283
      %4295 = vmatprep.subr.mxu0 0.0
      %4296 = vmatpush1.msra.mxu0 0.0
      %4297 = vmatprep.subr.mxu0 0.0
      %4298 = vmatpush1.msra.mxu0 0.0
      %4299 = vmatprep.subr.mxu0 0.0
      %4300 = vmatpush1.msra.mxu0 0.0
      %4301 = vmatprep.subr.mxu0 0.0
      %4302 = vmatpush1.msra.mxu0 0.0
      %4303 = vmatprep.subr.mxu0 0.0
      %4304 = vmatpush1.msra.mxu0 0.0
      %4305 = vmatprep.subr.mxu0 0.0
      %4306 = vmatpush1.msra.mxu0 0.0
      %4307 = vmatprep.subr.mxu0 0.0
      %4308 = vmatpush1.msra.mxu0 0.0
      %4309 = vmatprep.subr.mxu0 0.0
      %4310 = vmatpush1.msra.mxu0 0.0
      %4311 = vmatprep.subr.mxu0 0.0
      %4312 = vmatpush1.msra.mxu0 0.0
      %4313 = vmatprep.subr.mxu0 0.0
      %4314 = vmatpush1.msra.mxu0 0.0
      %4315 = vmatprep.subr.mxu0 0.0
      %4316 = vmatpush1.msra.mxu0 0.0
      %4317 = vmatprep.subr.mxu0 0.0
      %4318 = vmatpush1.msra.mxu0 0.0
      %4319 = vmatprep.subr.mxu0 0.0
      %4320 = vmatpush1.msra.mxu0 0.0
      %4321 = vmatprep.subr.mxu0 0.0
      %4322 = vmatpush1.msra.mxu0 0.0
      %4323 = vmatprep.subr.mxu0 0.0
      %4324 = vmatpush1.msra.mxu0 0.0
      %4325 = vmatprep.subr.mxu0 0.0
      %4326 = vmatpush1.msra.mxu0 0.0
      %4327 = vmatprep.subr.mxu0 0.0
      %4328 = vmatpush1.msra.mxu0 0.0
      %4329 = vmatprep.subr.mxu0 0.0
      %4330 = vmatpush1.msra.mxu0 0.0
      %4331 = vmatprep.subr.mxu0 0.0
      %4332 = vmatpush1.msra.mxu0 0.0
      %4333 = vmatprep.subr.mxu0 0.0
      %4334 = vmatpush1.msra.mxu0 0.0
      %4335 = vmatprep.subr.mxu0 0.0
      %4336 = vmatpush1.msra.mxu0 0.0
      %4337 = vmatprep.subr.mxu0 0.0
      %4338 = vmatpush1.msra.mxu0 0.0
      %4339 = vmatprep.subr.mxu0 0.0
      %4340 = vmatpush1.msra.mxu0 0.0
      %4341 = vmatprep.subr.mxu0 0.0
      %4342 = vmatpush1.msra.mxu0 0.0
      %4343 = vmatprep.subr.mxu0 0.0
      %4344 = vmatpush1.msra.mxu0 0.0
      %4345 = vmatprep.subr.mxu0 0.0
      %4346 = vmatpush1.msra.mxu0 0.0
      %4347 = vmatprep.subr.mxu0 0.0
      %4348 = vmatpush1.msra.mxu0 0.0
      %4349 = vmatprep.subr.mxu0 0.0
      %4350 = vmatpush1.msra.mxu0 0.0
      %4351 = vmatprep.subr.mxu0 0.0
      %4352 = vmatpush1.msra.mxu0 0.0
      %4353 = vmatprep.subr.mxu0 0.0
      %4354 = vmatpush1.msra.mxu0 0.0
      %4355 = vmatprep.subr.mxu0 0.0
      %4356 = vmatpush1.msra.mxu0 0.0
      %4357 = vmatprep.mubr.f32.mxu0 0.0
      %4358 = vmatmul.mubr.f32.gmra.mrb[0].mxu0 %v4288
      %v4359 = vpop.f32.mrb[0].mxu0
      %v4360 = vadd.f32 %v4266, %v4359
      %v4361 = vpop.f32.mrb[0].mxu0
      %v4362 = vadd.f32 %v4268, %v4361
      %4363 = vmatprep.mubr.f32.mxu0 0.0
      %4364 = vmatmul.mubr.f32.gmra.mrb[0].mxu0 %v4291
      %v4365 = vpop.f32.mrb[0].mxu0
      %v4366 = vadd.f32 %v4272, %v4365
      %v4367 = vpop.f32.mrb[0].mxu0
      %v4368 = vadd.f32 %v4274, %v4367
      %4369 = vdwg.mxu0
      %s4370 = scalar_lea.vmem %s1, 672
      %v4371 = vld [vmem:[%s4370] sm:$0xff]
      %v4372 = vld [vmem:[%s4370 + $0x8] sm:$0xff]
      %4373 = vrot.lane.b32.xlu0 %v4171, 54
      %v4374 = vpop.permute.xlu0 %4373
      %4375 = vrot.lane.b32.xlu0 %v4172, 54
      %v4376 = vpop.permute.xlu0 %4375
      %4377 = vrot.lane.b32.xlu0 %v4173, 54
      %v4378 = vpop.permute.xlu0 %4377
      %vm4379 = vcmask 441344
      %v4380 = vsel %vm4379, %v4374, %v4376
      %v4381 = vsel %vm4379, %v4376, %v4378
      %v4385 = vsel %vm166, %v4371, 0
      %v4388 = vsel %vm166, %v4372, 0
      %4390 = vmatprep.subr.mxu0 %v4381
      %4391 = vmatpush1.msra.mxu0 %v4380
      %4392 = vmatprep.subr.mxu0 0.0
      %4393 = vmatpush1.msra.mxu0 0.0
      %4394 = vmatprep.subr.mxu0 0.0
      %4395 = vmatpush1.msra.mxu0 0.0
      %4396 = vmatprep.subr.mxu0 0.0
      %4397 = vmatpush1.msra.mxu0 0.0
      %4398 = vmatprep.subr.mxu0 0.0
      %4399 = vmatpush1.msra.mxu0 0.0
      %4400 = vmatprep.subr.mxu0 0.0
      %4401 = vmatpush1.msra.mxu0 0.0
      %4402 = vmatprep.subr.mxu0 0.0
      %4403 = vmatpush1.msra.mxu0 0.0
      %4404 = vmatprep.subr.mxu0 0.0
      %4405 = vmatpush1.msra.mxu0 0.0
      %4406 = vmatprep.subr.mxu0 0.0
      %4407 = vmatpush1.msra.mxu0 0.0
      %4408 = vmatprep.subr.mxu0 0.0
      %4409 = vmatpush1.msra.mxu0 0.0
      %4410 = vmatprep.subr.mxu0 0.0
      %4411 = vmatpush1.msra.mxu0 0.0
      %4412 = vmatprep.subr.mxu0 0.0
      %4413 = vmatpush1.msra.mxu0 0.0
      %4414 = vmatprep.subr.mxu0 0.0
      %4415 = vmatpush1.msra.mxu0 0.0
      %4416 = vmatprep.subr.mxu0 0.0
      %4417 = vmatpush1.msra.mxu0 0.0
      %4418 = vmatprep.subr.mxu0 0.0
      %4419 = vmatpush1.msra.mxu0 0.0
      %4420 = vmatprep.subr.mxu0 0.0
      %4421 = vmatpush1.msra.mxu0 0.0
      %4422 = vmatprep.subr.mxu0 0.0
      %4423 = vmatpush1.msra.mxu0 0.0
      %4424 = vmatprep.subr.mxu0 0.0
      %4425 = vmatpush1.msra.mxu0 0.0
      %4426 = vmatprep.subr.mxu0 0.0
      %4427 = vmatpush1.msra.mxu0 0.0
      %4428 = vmatprep.subr.mxu0 0.0
      %4429 = vmatpush1.msra.mxu0 0.0
      %4430 = vmatprep.subr.mxu0 0.0
      %4431 = vmatpush1.msra.mxu0 0.0
      %4432 = vmatprep.subr.mxu0 0.0
      %4433 = vmatpush1.msra.mxu0 0.0
      %4434 = vmatprep.subr.mxu0 0.0
      %4435 = vmatpush1.msra.mxu0 0.0
      %4436 = vmatprep.subr.mxu0 0.0
      %4437 = vmatpush1.msra.mxu0 0.0
      %4438 = vmatprep.subr.mxu0 0.0
      %4439 = vmatpush1.msra.mxu0 0.0
      %4440 = vmatprep.subr.mxu0 0.0
      %4441 = vmatpush1.msra.mxu0 0.0
      %4442 = vmatprep.subr.mxu0 0.0
      %4443 = vmatpush1.msra.mxu0 0.0
      %4444 = vmatprep.subr.mxu0 0.0
      %4445 = vmatpush1.msra.mxu0 0.0
      %4446 = vmatprep.subr.mxu0 0.0
      %4447 = vmatpush1.msra.mxu0 0.0
      %4448 = vmatprep.subr.mxu0 0.0
      %4449 = vmatpush1.msra.mxu0 0.0
      %4450 = vmatprep.subr.mxu0 0.0
      %4451 = vmatpush1.msra.mxu0 0.0
      %4452 = vmatprep.subr.mxu0 0.0
      %4453 = vmatpush1.msra.mxu0 0.0
      %4454 = vmatprep.mubr.f32.mxu0 0.0
      %4455 = vmatmul.mubr.f32.gmra.mrb[0].mxu0 %v4385
      %v4456 = vpop.f32.mrb[0].mxu0
      %v4457 = vadd.f32 0.0, %v4456
      %v4458 = vpop.f32.mrb[0].mxu0
      %v4459 = vadd.f32 0.0, %v4458
      %4460 = vmatprep.mubr.f32.mxu0 0.0
      %4461 = vmatmul.mubr.f32.gmra.mrb[0].mxu0 %v4388
      %v4462 = vpop.f32.mrb[0].mxu0
      %v4463 = vadd.f32 0.0, %v4462
      %v4464 = vpop.f32.mrb[0].mxu0
      %v4465 = vadd.f32 0.0, %v4464
      %4466 = vdwg.mxu0
      %v4467 = vadd.f32 %v4360, %v4457
      %v4468 = vadd.f32 %v4362, %v4459
      %v4469 = vadd.f32 %v4366, %v4463
      %v4470 = vadd.f32 %v4368, %v4465
      %s4471 = scalar_lea.vmem %s1, 688
      %v4472 = vld [vmem:[%s4471] sm:$0xff]
      %v4473 = vld [vmem:[%s4471 + $0x8] sm:$0xff]
      %4474 = vrot.lane.b32.xlu0 %v4171, 55
      %v4475 = vpop.permute.xlu0 %4474
      %4476 = vrot.lane.b32.xlu0 %v4172, 55
      %v4477 = vpop.permute.xlu0 %4476
      %4478 = vrot.lane.b32.xlu0 %v4173, 55
      %v4479 = vpop.permute.xlu0 %4478
      %v4480 = vsel %vm3573, %v4475, %v4477
      %v4481 = vsel %vm3573, %v4477, %v4479
      %v4485 = vsel %vm166, %v4472, 0
      %v4488 = vsel %vm166, %v4473, 0
      %4490 = vmatprep.subr.mxu0 %v4481
      %4491 = vmatpush1.msra.mxu0 %v4480
      %4492 = vmatprep.subr.mxu0 0.0
      %4493 = vmatpush1.msra.mxu0 0.0
      %4494 = vmatprep.subr.mxu0 0.0
      %4495 = vmatpush1.msra.mxu0 0.0
      %4496 = vmatprep.subr.mxu0 0.0
      %4497 = vmatpush1.msra.mxu0 0.0
      %4498 = vmatprep.subr.mxu0 0.0
      %4499 = vmatpush1.msra.mxu0 0.0
      %4500 = vmatprep.subr.mxu0 0.0
      %4501 = vmatpush1.msra.mxu0 0.0
      %4502 = vmatprep.subr.mxu0 0.0
      %4503 = vmatpush1.msra.mxu0 0.0
      %4504 = vmatprep.subr.mxu0 0.0
      %4505 = vmatpush1.msra.mxu0 0.0
      %4506 = vmatprep.subr.mxu0 0.0
      %4507 = vmatpush1.msra.mxu0 0.0
      %4508 = vmatprep.subr.mxu0 0.0
      %4509 = vmatpush1.msra.mxu0 0.0
      %4510 = vmatprep.subr.mxu0 0.0
      %4511 = vmatpush1.msra.mxu0 0.0
      %4512 = vmatprep.subr.mxu0 0.0
      %4513 = vmatpush1.msra.mxu0 0.0
      %4514 = vmatprep.subr.mxu0 0.0
      %4515 = vmatpush1.msra.mxu0 0.0
      %4516 = vmatprep.subr.mxu0 0.0
      %4517 = vmatpush1.msra.mxu0 0.0
      %4518 = vmatprep.subr.mxu0 0.0
      %4519 = vmatpush1.msra.mxu0 0.0
      %4520 = vmatprep.subr.mxu0 0.0
      %4521 = vmatpush1.msra.mxu0 0.0
      %4522 = vmatprep.subr.mxu0 0.0
      %4523 = vmatpush1.msra.mxu0 0.0
      %4524 = vmatprep.subr.mxu0 0.0
      %4525 = vmatpush1.msra.mxu0 0.0
      %4526 = vmatprep.subr.mxu0 0.0
      %4527 = vmatpush1.msra.mxu0 0.0
      %4528 = vmatprep.subr.mxu0 0.0
      %4529 = vmatpush1.msra.mxu0 0.0
      %4530 = vmatprep.subr.mxu0 0.0
      %4531 = vmatpush1.msra.mxu0 0.0
      %4532 = vmatprep.subr.mxu0 0.0
      %4533 = vmatpush1.msra.mxu0 0.0
      %4534 = vmatprep.subr.mxu0 0.0
      %4535 = vmatpush1.msra.mxu0 0.0
      %4536 = vmatprep.subr.mxu0 0.0
      %4537 = vmatpush1.msra.mxu0 0.0
      %4538 = vmatprep.subr.mxu0 0.0
      %4539 = vmatpush1.msra.mxu0 0.0
      %4540 = vmatprep.subr.mxu0 0.0
      %4541 = vmatpush1.msra.mxu0 0.0
      %4542 = vmatprep.subr.mxu0 0.0
      %4543 = vmatpush1.msra.mxu0 0.0
      %4544 = vmatprep.subr.mxu0 0.0
      %4545 = vmatpush1.msra.mxu0 0.0
      %4546 = vmatprep.subr.mxu0 0.0
      %4547 = vmatpush1.msra.mxu0 0.0
      %4548 = vmatprep.subr.mxu0 0.0
      %4549 = vmatpush1.msra.mxu0 0.0
      %4550 = vmatprep.subr.mxu0 0.0
      %4551 = vmatpush1.msra.mxu0 0.0
      %4552 = vmatprep.subr.mxu0 0.0
      %4553 = vmatpush1.msra.mxu0 0.0
      %4554 = vmatprep.mubr.f32.mxu0 0.0
      %4555 = vmatmul.mubr.f32.gmra.mrb[0].mxu0 %v4485
      %v4556 = vpop.f32.mrb[0].mxu0
      %v4557 = vadd.f32 0.0, %v4556
      %v4558 = vpop.f32.mrb[0].mxu0
      %v4559 = vadd.f32 0.0, %v4558
      %4560 = vmatprep.mubr.f32.mxu0 0.0
      %4561 = vmatmul.mubr.f32.gmra.mrb[0].mxu0 %v4488
      %v4562 = vpop.f32.mrb[0].mxu0
      %v4563 = vadd.f32 0.0, %v4562
      %v4564 = vpop.f32.mrb[0].mxu0
      %v4565 = vadd.f32 0.0, %v4564
      %4566 = vdwg.mxu0
      %v4567 = vadd.f32 %v4467, %v4557
      %v4568 = vadd.f32 %v4468, %v4559
      %v4569 = vadd.f32 %v4469, %v4563
      %v4570 = vadd.f32 %v4470, %v4565
      %s4571 = scalar_lea.vmem %s1, 704
      %v4572 = vld [vmem:[%s4571] sm:$0xff]
      %v4573 = vld [vmem:[%s4571 + $0x8] sm:$0xff]
      %4574 = vrot.lane.b32.xlu0 %v4171, 84
      %v4575 = vpop.permute.xlu0 %4574
      %4576 = vrot.lane.b32.xlu0 %v4172, 84
      %v4577 = vpop.permute.xlu0 %4576
      %4578 = vrot.lane.b32.xlu0 %v4173, 84
      %v4579 = vpop.permute.xlu0 %4578
      %v4580 = vsel %vm1056, %v4575, %v4577
      %v4581 = vsel %vm1056, %v4577, %v4579
      %v4585 = vsel %vm166, %v4572, 0
      %v4588 = vsel %vm166, %v4573, 0
      %4590 = vmatprep.subr.mxu0 %v4581
      %4591 = vmatpush1.msra.mxu0 %v4580
      %4592 = vmatprep.subr.mxu0 0.0
      %4593 = vmatpush1.msra.mxu0 0.0
      %4594 = vmatprep.subr.mxu0 0.0
      %4595 = vmatpush1.msra.mxu0 0.0
      %4596 = vmatprep.subr.mxu0 0.0
      %4597 = vmatpush1.msra.mxu0 0.0
      %4598 = vmatprep.subr.mxu0 0.0
      %4599 = vmatpush1.msra.mxu0 0.0
      %4600 = vmatprep.subr.mxu0 0.0
      %4601 = vmatpush1.msra.mxu0 0.0
      %4602 = vmatprep.subr.mxu0 0.0
      %4603 = vmatpush1.msra.mxu0 0.0
      %4604 = vmatprep.subr.mxu0 0.0
      %4605 = vmatpush1.msra.mxu0 0.0
      %4606 = vmatprep.subr.mxu0 0.0
      %4607 = vmatpush1.msra.mxu0 0.0
      %4608 = vmatprep.subr.mxu0 0.0
      %4609 = vmatpush1.msra.mxu0 0.0
      %4610 = vmatprep.subr.mxu0 0.0
      %4611 = vmatpush1.msra.mxu0 0.0
      %4612 = vmatprep.subr.mxu0 0.0
      %4613 = vmatpush1.msra.mxu0 0.0
      %4614 = vmatprep.subr.mxu0 0.0
      %4615 = vmatpush1.msra.mxu0 0.0
      %4616 = vmatprep.subr.mxu0 0.0
      %4617 = vmatpush1.msra.mxu0 0.0
      %4618 = vmatprep.subr.mxu0 0.0
      %4619 = vmatpush1.msra.mxu0 0.0
      %4620 = vmatprep.subr.mxu0 0.0
      %4621 = vmatpush1.msra.mxu0 0.0
      %4622 = vmatprep.subr.mxu0 0.0
      %4623 = vmatpush1.msra.mxu0 0.0
      %4624 = vmatprep.subr.mxu0 0.0
      %4625 = vmatpush1.msra.mxu0 0.0
      %4626 = vmatprep.subr.mxu0 0.0
      %4627 = vmatpush1.msra.mxu0 0.0
      %4628 = vmatprep.subr.mxu0 0.0
      %4629 = vmatpush1.msra.mxu0 0.0
      %4630 = vmatprep.subr.mxu0 0.0
      %4631 = vmatpush1.msra.mxu0 0.0
      %4632 = vmatprep.subr.mxu0 0.0
      %4633 = vmatpush1.msra.mxu0 0.0
      %4634 = vmatprep.subr.mxu0 0.0
      %4635 = vmatpush1.msra.mxu0 0.0
      %4636 = vmatprep.subr.mxu0 0.0
      %4637 = vmatpush1.msra.mxu0 0.0
      %4638 = vmatprep.subr.mxu0 0.0
      %4639 = vmatpush1.msra.mxu0 0.0
      %4640 = vmatprep.subr.mxu0 0.0
      %4641 = vmatpush1.msra.mxu0 0.0
      %4642 = vmatprep.subr.mxu0 0.0
      %4643 = vmatpush1.msra.mxu0 0.0
      %4644 = vmatprep.subr.mxu0 0.0
      %4645 = vmatpush1.msra.mxu0 0.0
      %4646 = vmatprep.subr.mxu0 0.0
      %4647 = vmatpush1.msra.mxu0 0.0
      %4648 = vmatprep.subr.mxu0 0.0
      %4649 = vmatpush1.msra.mxu0 0.0
      %4650 = vmatprep.subr.mxu0 0.0
      %4651 = vmatpush1.msra.mxu0 0.0
      %4652 = vmatprep.subr.mxu0 0.0
      %4653 = vmatpush1.msra.mxu0 0.0
      %4654 = vmatprep.mubr.f32.mxu0 0.0
      %4655 = vmatmul.mubr.f32.gmra.mrb[0].mxu0 %v4585
      %v4656 = vpop.f32.mrb[0].mxu0
      %v4657 = vadd.f32 0.0, %v4656
      %v4658 = vpop.f32.mrb[0].mxu0
      %v4659 = vadd.f32 0.0, %v4658
      %4660 = vmatprep.mubr.f32.mxu0 0.0
      %4661 = vmatmul.mubr.f32.gmra.mrb[0].mxu0 %v4588
      %v4662 = vpop.f32.mrb[0].mxu0
      %v4663 = vadd.f32 0.0, %v4662
      %v4664 = vpop.f32.mrb[0].mxu0
      %v4665 = vadd.f32 0.0, %v4664
      %4666 = vdwg.mxu0
      %v4667 = vadd.f32 %v4567, %v4657
      %v4668 = vadd.f32 %v4568, %v4659
      %v4669 = vadd.f32 %v4569, %v4663
      %v4670 = vadd.f32 %v4570, %v4665
      %s4671 = scalar_lea.vmem %s1, 720
      %v4672 = vld [vmem:[%s4671] sm:$0xff]
      %v4673 = vld [vmem:[%s4671 + $0x8] sm:$0xff]
      %4674 = vrot.lane.b32.xlu0 %v4171, 85
      %v4675 = vpop.permute.xlu0 %4674
      %4676 = vrot.lane.b32.xlu0 %v4172, 85
      %v4677 = vpop.permute.xlu0 %4676
      %4678 = vrot.lane.b32.xlu0 %v4173, 85
      %v4679 = vpop.permute.xlu0 %4678
      %v4680 = vsel %vm256, %v4675, %v4677
      %v4681 = vsel %vm256, %v4677, %v4679
      %v4685 = vsel %vm166, %v4672, 0
      %v4688 = vsel %vm166, %v4673, 0
      %4690 = vmatprep.subr.mxu0 %v4681
      %4691 = vmatpush1.msra.mxu0 %v4680
      %4692 = vmatprep.subr.mxu0 0.0
      %4693 = vmatpush1.msra.mxu0 0.0
      %4694 = vmatprep.subr.mxu0 0.0
      %4695 = vmatpush1.msra.mxu0 0.0
      %4696 = vmatprep.subr.mxu0 0.0
      %4697 = vmatpush1.msra.mxu0 0.0
      %4698 = vmatprep.subr.mxu0 0.0
      %4699 = vmatpush1.msra.mxu0 0.0
      %4700 = vmatprep.subr.mxu0 0.0
      %4701 = vmatpush1.msra.mxu0 0.0
      %4702 = vmatprep.subr.mxu0 0.0
      %4703 = vmatpush1.msra.mxu0 0.0
      %4704 = vmatprep.subr.mxu0 0.0
      %4705 = vmatpush1.msra.mxu0 0.0
      %4706 = vmatprep.subr.mxu0 0.0
      %4707 = vmatpush1.msra.mxu0 0.0
      %4708 = vmatprep.subr.mxu0 0.0
      %4709 = vmatpush1.msra.mxu0 0.0
      %4710 = vmatprep.subr.mxu0 0.0
      %4711 = vmatpush1.msra.mxu0 0.0
      %4712 = vmatprep.subr.mxu0 0.0
      %4713 = vmatpush1.msra.mxu0 0.0
      %4714 = vmatprep.subr.mxu0 0.0
      %4715 = vmatpush1.msra.mxu0 0.0
      %4716 = vmatprep.subr.mxu0 0.0
      %4717 = vmatpush1.msra.mxu0 0.0
      %4718 = vmatprep.subr.mxu0 0.0
      %4719 = vmatpush1.msra.mxu0 0.0
      %4720 = vmatprep.subr.mxu0 0.0
      %4721 = vmatpush1.msra.mxu0 0.0
      %4722 = vmatprep.subr.mxu0 0.0
      %4723 = vmatpush1.msra.mxu0 0.0
      %4724 = vmatprep.subr.mxu0 0.0
      %4725 = vmatpush1.msra.mxu0 0.0
      %4726 = vmatprep.subr.mxu0 0.0
      %4727 = vmatpush1.msra.mxu0 0.0
      %4728 = vmatprep.subr.mxu0 0.0
      %4729 = vmatpush1.msra.mxu0 0.0
      %4730 = vmatprep.subr.mxu0 0.0
      %4731 = vmatpush1.msra.mxu0 0.0
      %4732 = vmatprep.subr.mxu0 0.0
      %4733 = vmatpush1.msra.mxu0 0.0
      %4734 = vmatprep.subr.mxu0 0.0
      %4735 = vmatpush1.msra.mxu0 0.0
      %4736 = vmatprep.subr.mxu0 0.0
      %4737 = vmatpush1.msra.mxu0 0.0
      %4738 = vmatprep.subr.mxu0 0.0
      %4739 = vmatpush1.msra.mxu0 0.0
      %4740 = vmatprep.subr.mxu0 0.0
      %4741 = vmatpush1.msra.mxu0 0.0
      %4742 = vmatprep.subr.mxu0 0.0
      %4743 = vmatpush1.msra.mxu0 0.0
      %4744 = vmatprep.subr.mxu0 0.0
      %4745 = vmatpush1.msra.mxu0 0.0
      %4746 = vmatprep.subr.mxu0 0.0
      %4747 = vmatpush1.msra.mxu0 0.0
      %4748 = vmatprep.subr.mxu0 0.0
      %4749 = vmatpush1.msra.mxu0 0.0
      %4750 = vmatprep.subr.mxu0 0.0
      %4751 = vmatpush1.msra.mxu0 0.0
      %4752 = vmatprep.subr.mxu0 0.0
      %4753 = vmatpush1.msra.mxu0 0.0
      %4754 = vmatprep.mubr.f32.mxu0 0.0
      %4755 = vmatmul.mubr.f32.gmra.mrb[0].mxu0 %v4685
      %v4756 = vpop.f32.mrb[0].mxu0
      %v4757 = vadd.f32 0.0, %v4756
      %v4758 = vpop.f32.mrb[0].mxu0
      %v4759 = vadd.f32 0.0, %v4758
      %4760 = vmatprep.mubr.f32.mxu0 0.0
      %4761 = vmatmul.mubr.f32.gmra.mrb[0].mxu0 %v4688
      %v4762 = vpop.f32.mrb[0].mxu0
      %v4763 = vadd.f32 0.0, %v4762
      %v4764 = vpop.f32.mrb[0].mxu0
      %v4765 = vadd.f32 0.0, %v4764
      %4766 = vdwg.mxu0
      %v4767 = vadd.f32 %v4667, %v4757
      %v4768 = vadd.f32 %v4668, %v4759
      %v4769 = vadd.f32 %v4669, %v4763
      %v4770 = vadd.f32 %v4670, %v4765
      %s4771 = scalar_lea.vmem %s1, 736
      %v4772 = vld [vmem:[%s4771] sm:$0xff]
      %v4773 = vld [vmem:[%s4771 + $0x8] sm:$0xff]
      %4774 = vrot.lane.b32.xlu0 %v4171, 90
      %v4775 = vpop.permute.xlu0 %4774
      %4776 = vrot.lane.b32.xlu0 %v4172, 90
      %v4777 = vpop.permute.xlu0 %4776
      %4778 = vrot.lane.b32.xlu0 %v4173, 90
      %v4779 = vpop.permute.xlu0 %4778
      %v4780 = vsel %vm1153, %v4775, %v4777
      %v4781 = vsel %vm1153, %v4777, %v4779
      %v4785 = vsel %vm166, %v4772, 0
      %v4788 = vsel %vm166, %v4773, 0
      %4790 = vmatprep.subr.mxu0 %v4781
      %4791 = vmatpush1.msra.mxu0 %v4780
      %4792 = vmatprep.subr.mxu0 0.0
      %4793 = vmatpush1.msra.mxu0 0.0
      %4794 = vmatprep.subr.mxu0 0.0
      %4795 = vmatpush1.msra.mxu0 0.0
      %4796 = vmatprep.subr.mxu0 0.0
      %4797 = vmatpush1.msra.mxu0 0.0
      %4798 = vmatprep.subr.mxu0 0.0
      %4799 = vmatpush1.msra.mxu0 0.0
      %4800 = vmatprep.subr.mxu0 0.0
      %4801 = vmatpush1.msra.mxu0 0.0
      %4802 = vmatprep.subr.mxu0 0.0
      %4803 = vmatpush1.msra.mxu0 0.0
      %4804 = vmatprep.subr.mxu0 0.0
      %4805 = vmatpush1.msra.mxu0 0.0
      %4806 = vmatprep.subr.mxu0 0.0
      %4807 = vmatpush1.msra.mxu0 0.0
      %4808 = vmatprep.subr.mxu0 0.0
      %4809 = vmatpush1.msra.mxu0 0.0
      %4810 = vmatprep.subr.mxu0 0.0
      %4811 = vmatpush1.msra.mxu0 0.0
      %4812 = vmatprep.subr.mxu0 0.0
      %4813 = vmatpush1.msra.mxu0 0.0
      %4814 = vmatprep.subr.mxu0 0.0
      %4815 = vmatpush1.msra.mxu0 0.0
      %4816 = vmatprep.subr.mxu0 0.0
      %4817 = vmatpush1.msra.mxu0 0.0
      %4818 = vmatprep.subr.mxu0 0.0
      %4819 = vmatpush1.msra.mxu0 0.0
      %4820 = vmatprep.subr.mxu0 0.0
      %4821 = vmatpush1.msra.mxu0 0.0
      %4822 = vmatprep.subr.mxu0 0.0
      %4823 = vmatpush1.msra.mxu0 0.0
      %4824 = vmatprep.subr.mxu0 0.0
      %4825 = vmatpush1.msra.mxu0 0.0
      %4826 = vmatprep.subr.mxu0 0.0
      %4827 = vmatpush1.msra.mxu0 0.0
      %4828 = vmatprep.subr.mxu0 0.0
      %4829 = vmatpush1.msra.mxu0 0.0
      %4830 = vmatprep.subr.mxu0 0.0
      %4831 = vmatpush1.msra.mxu0 0.0
      %4832 = vmatprep.subr.mxu0 0.0
      %4833 = vmatpush1.msra.mxu0 0.0
      %4834 = vmatprep.subr.mxu0 0.0
      %4835 = vmatpush1.msra.mxu0 0.0
      %4836 = vmatprep.subr.mxu0 0.0
      %4837 = vmatpush1.msra.mxu0 0.0
      %4838 = vmatprep.subr.mxu0 0.0
      %4839 = vmatpush1.msra.mxu0 0.0
      %4840 = vmatprep.subr.mxu0 0.0
      %4841 = vmatpush1.msra.mxu0 0.0
      %4842 = vmatprep.subr.mxu0 0.0
      %4843 = vmatpush1.msra.mxu0 0.0
      %4844 = vmatprep.subr.mxu0 0.0
      %4845 = vmatpush1.msra.mxu0 0.0
      %4846 = vmatprep.subr.mxu0 0.0
      %4847 = vmatpush1.msra.mxu0 0.0
      %4848 = vmatprep.subr.mxu0 0.0
      %4849 = vmatpush1.msra.mxu0 0.0
      %4850 = vmatprep.subr.mxu0 0.0
      %4851 = vmatpush1.msra.mxu0 0.0
      %4852 = vmatprep.subr.mxu0 0.0
      %4853 = vmatpush1.msra.mxu0 0.0
      %4854 = vmatprep.mubr.f32.mxu0 0.0
      %4855 = vmatmul.mubr.f32.gmra.mrb[0].mxu0 %v4785
      %v4856 = vpop.f32.mrb[0].mxu0
      %v4857 = vadd.f32 0.0, %v4856
      %v4858 = vpop.f32.mrb[0].mxu0
      %v4859 = vadd.f32 0.0, %v4858
      %4860 = vmatprep.mubr.f32.mxu0 0.0
      %4861 = vmatmul.mubr.f32.gmra.mrb[0].mxu0 %v4788
      %v4862 = vpop.f32.mrb[0].mxu0
      %v4863 = vadd.f32 0.0, %v4862
      %v4864 = vpop.f32.mrb[0].mxu0
      %v4865 = vadd.f32 0.0, %v4864
      %4866 = vdwg.mxu0
      %v4867 = vadd.f32 %v4767, %v4857
      %v4868 = vadd.f32 %v4768, %v4859
      %v4869 = vadd.f32 %v4769, %v4863
      %v4870 = vadd.f32 %v4770, %v4865
      %s4871 = scalar_lea.vmem %s1, 752
      %v4872 = vld [vmem:[%s4871] sm:$0xff]
      %v4873 = vld [vmem:[%s4871 + $0x8] sm:$0xff]
      %4874 = vrot.lane.b32.xlu0 %v4171, 91
      %v4875 = vpop.permute.xlu0 %4874
      %4876 = vrot.lane.b32.xlu0 %v4172, 91
      %v4877 = vpop.permute.xlu0 %4876
      %4878 = vrot.lane.b32.xlu0 %v4173, 91
      %v4879 = vpop.permute.xlu0 %4878
      %v4880 = vsel %vm353, %v4875, %v4877
      %v4881 = vsel %vm353, %v4877, %v4879
      %v4885 = vsel %vm166, %v4872, 0
      %v4888 = vsel %vm166, %v4873, 0
      %4890 = vmatprep.subr.mxu0 %v4881
      %4891 = vmatpush1.msra.mxu0 %v4880
      %4892 = vmatprep.subr.mxu0 0.0
      %4893 = vmatpush1.msra.mxu0 0.0
      %4894 = vmatprep.subr.mxu0 0.0
      %4895 = vmatpush1.msra.mxu0 0.0
      %4896 = vmatprep.subr.mxu0 0.0
      %4897 = vmatpush1.msra.mxu0 0.0
      %4898 = vmatprep.subr.mxu0 0.0
      %4899 = vmatpush1.msra.mxu0 0.0
      %4900 = vmatprep.subr.mxu0 0.0
      %4901 = vmatpush1.msra.mxu0 0.0
      %4902 = vmatprep.subr.mxu0 0.0
      %4903 = vmatpush1.msra.mxu0 0.0
      %4904 = vmatprep.subr.mxu0 0.0
      %4905 = vmatpush1.msra.mxu0 0.0
      %4906 = vmatprep.subr.mxu0 0.0
      %4907 = vmatpush1.msra.mxu0 0.0
      %4908 = vmatprep.subr.mxu0 0.0
      %4909 = vmatpush1.msra.mxu0 0.0
      %4910 = vmatprep.subr.mxu0 0.0
      %4911 = vmatpush1.msra.mxu0 0.0
      %4912 = vmatprep.subr.mxu0 0.0
      %4913 = vmatpush1.msra.mxu0 0.0
      %4914 = vmatprep.subr.mxu0 0.0
      %4915 = vmatpush1.msra.mxu0 0.0
      %4916 = vmatprep.subr.mxu0 0.0
      %4917 = vmatpush1.msra.mxu0 0.0
      %4918 = vmatprep.subr.mxu0 0.0
      %4919 = vmatpush1.msra.mxu0 0.0
      %4920 = vmatprep.subr.mxu0 0.0
      %4921 = vmatpush1.msra.mxu0 0.0
      %4922 = vmatprep.subr.mxu0 0.0
      %4923 = vmatpush1.msra.mxu0 0.0
      %4924 = vmatprep.subr.mxu0 0.0
      %4925 = vmatpush1.msra.mxu0 0.0
      %4926 = vmatprep.subr.mxu0 0.0
      %4927 = vmatpush1.msra.mxu0 0.0
      %4928 = vmatprep.subr.mxu0 0.0
      %4929 = vmatpush1.msra.mxu0 0.0
      %4930 = vmatprep.subr.mxu0 0.0
      %4931 = vmatpush1.msra.mxu0 0.0
      %4932 = vmatprep.subr.mxu0 0.0
      %4933 = vmatpush1.msra.mxu0 0.0
      %4934 = vmatprep.subr.mxu0 0.0
      %4935 = vmatpush1.msra.mxu0 0.0
      %4936 = vmatprep.subr.mxu0 0.0
      %4937 = vmatpush1.msra.mxu0 0.0
      %4938 = vmatprep.subr.mxu0 0.0
      %4939 = vmatpush1.msra.mxu0 0.0
      %4940 = vmatprep.subr.mxu0 0.0
      %4941 = vmatpush1.msra.mxu0 0.0
      %4942 = vmatprep.subr.mxu0 0.0
      %4943 = vmatpush1.msra.mxu0 0.0
      %4944 = vmatprep.subr.mxu0 0.0
      %4945 = vmatpush1.msra.mxu0 0.0
      %4946 = vmatprep.subr.mxu0 0.0
      %4947 = vmatpush1.msra.mxu0 0.0
      %4948 = vmatprep.subr.mxu0 0.0
      %4949 = vmatpush1.msra.mxu0 0.0
      %4950 = vmatprep.subr.mxu0 0.0
      %4951 = vmatpush1.msra.mxu0 0.0
      %4952 = vmatprep.subr.mxu0 0.0
      %4953 = vmatpush1.msra.mxu0 0.0
      %4954 = vmatprep.mubr.f32.mxu0 0.0
      %4955 = vmatmul.mubr.f32.gmra.mrb[0].mxu0 %v4885
      %v4956 = vpop.f32.mrb[0].mxu0
      %v4957 = vadd.f32 0.0, %v4956
      %v4958 = vpop.f32.mrb[0].mxu0
      %v4959 = vadd.f32 0.0, %v4958
      %4960 = vmatprep.mubr.f32.mxu0 0.0
      %4961 = vmatmul.mubr.f32.gmra.mrb[0].mxu0 %v4888
      %v4962 = vpop.f32.mrb[0].mxu0
      %v4963 = vadd.f32 0.0, %v4962
      %v4964 = vpop.f32.mrb[0].mxu0
      %v4965 = vadd.f32 0.0, %v4964
      %4966 = vdwg.mxu0
      %v4967 = vadd.f32 %v4867, %v4957
      %v4968 = vadd.f32 %v4868, %v4959
      %v4969 = vadd.f32 %v4869, %v4963
      %v4970 = vadd.f32 %v4870, %v4965
      %s4971 = scalar_lea.vmem %s143, 160
      %4972 = vst [vmem:[%s4971] sm:$0xff] %v4967
      %4973 = vst [vmem:[%s4971 + $0x8] sm:$0xff] %v4968
      %4974 = vst [vmem:[%s4971 + $0x10] sm:$0xff] %v4969
      %4975 = vst [vmem:[%s4971 + $0x18] sm:$0xff] %v4970
      %v4976 = vld [vmem:[%s138] sm:$0xff]
      %v4977 = vld [vmem:[%s138 + $0x8] sm:$0xff]
      %v4978 = vld [vmem:[%s138 + $0x10] sm:$0xff]
      %s4979 = scalar_lea.vmem %s1, 768
      %v4980 = vld [vmem:[%s4979] sm:$0xff]
      %v4981 = vld [vmem:[%s4979 + $0x8] sm:$0xff]
      %s4982 = scalar_lea.vmem %s1, 784
      %v4983 = vld [vmem:[%s4982] sm:$0xff]
      %v4984 = vld [vmem:[%s4982 + $0x8] sm:$0xff]
      %4988 = vrot.lane.b32.xlu0 %v4976, 44
      %v4989 = vpop.permute.xlu0 %4988
      %4990 = vrot.lane.b32.xlu0 %v4977, 44
      %v4991 = vpop.permute.xlu0 %4990
      %4992 = vrot.lane.b32.xlu0 %v4978, 44
      %v4993 = vpop.permute.xlu0 %4992
      %vm4994 = vcmask 359424
      %v4995 = vsel %vm4994, %v4989, %v4991
      %v4996 = vsel %vm4994, %v4991, %v4993
      %v5000 = vsel %vm166, %v4983, 0
      %v5003 = vsel %vm166, %v4984, 0
      %5005 = vmatprep.subr.mxu0 %v4996
      %5006 = vmatpush1.msra.mxu0 %v4995
      %5007 = vmatprep.subr.mxu0 0.0
      %5008 = vmatpush1.msra.mxu0 0.0
      %5009 = vmatprep.subr.mxu0 0.0
      %5010 = vmatpush1.msra.mxu0 0.0
      %5011 = vmatprep.subr.mxu0 0.0
      %5012 = vmatpush1.msra.mxu0 0.0
      %5013 = vmatprep.subr.mxu0 0.0
      %5014 = vmatpush1.msra.mxu0 0.0
      %5015 = vmatprep.subr.mxu0 0.0
      %5016 = vmatpush1.msra.mxu0 0.0
      %5017 = vmatprep.subr.mxu0 0.0
      %5018 = vmatpush1.msra.mxu0 0.0
      %5019 = vmatprep.subr.mxu0 0.0
      %5020 = vmatpush1.msra.mxu0 0.0
      %5021 = vmatprep.subr.mxu0 0.0
      %5022 = vmatpush1.msra.mxu0 0.0
      %5023 = vmatprep.subr.mxu0 0.0
      %5024 = vmatpush1.msra.mxu0 0.0
      %5025 = vmatprep.subr.mxu0 0.0
      %5026 = vmatpush1.msra.mxu0 0.0
      %5027 = vmatprep.subr.mxu0 0.0
      %5028 = vmatpush1.msra.mxu0 0.0
      %5029 = vmatprep.subr.mxu0 0.0
      %5030 = vmatpush1.msra.mxu0 0.0
      %5031 = vmatprep.subr.mxu0 0.0
      %5032 = vmatpush1.msra.mxu0 0.0
      %5033 = vmatprep.subr.mxu0 0.0
      %5034 = vmatpush1.msra.mxu0 0.0
      %5035 = vmatprep.subr.mxu0 0.0
      %5036 = vmatpush1.msra.mxu0 0.0
      %5037 = vmatprep.subr.mxu0 0.0
      %5038 = vmatpush1.msra.mxu0 0.0
      %5039 = vmatprep.subr.mxu0 0.0
      %5040 = vmatpush1.msra.mxu0 0.0
      %5041 = vmatprep.subr.mxu0 0.0
      %5042 = vmatpush1.msra.mxu0 0.0
      %5043 = vmatprep.subr.mxu0 0.0
      %5044 = vmatpush1.msra.mxu0 0.0
      %5045 = vmatprep.subr.mxu0 0.0
      %5046 = vmatpush1.msra.mxu0 0.0
      %5047 = vmatprep.subr.mxu0 0.0
      %5048 = vmatpush1.msra.mxu0 0.0
      %5049 = vmatprep.subr.mxu0 0.0
      %5050 = vmatpush1.msra.mxu0 0.0
      %5051 = vmatprep.subr.mxu0 0.0
      %5052 = vmatpush1.msra.mxu0 0.0
      %5053 = vmatprep.subr.mxu0 0.0
      %5054 = vmatpush1.msra.mxu0 0.0
      %5055 = vmatprep.subr.mxu0 0.0
      %5056 = vmatpush1.msra.mxu0 0.0
      %5057 = vmatprep.subr.mxu0 0.0
      %5058 = vmatpush1.msra.mxu0 0.0
      %5059 = vmatprep.subr.mxu0 0.0
      %5060 = vmatpush1.msra.mxu0 0.0
      %5061 = vmatprep.subr.mxu0 0.0
      %5062 = vmatpush1.msra.mxu0 0.0
      %5063 = vmatprep.subr.mxu0 0.0
      %5064 = vmatpush1.msra.mxu0 0.0
      %5065 = vmatprep.subr.mxu0 0.0
      %5066 = vmatpush1.msra.mxu0 0.0
      %5067 = vmatprep.subr.mxu0 0.0
      %5068 = vmatpush1.msra.mxu0 0.0
      %5069 = vmatprep.mubr.f32.mxu0 0.0
      %5070 = vmatmul.mubr.f32.gmra.mrb[0].mxu0 %v5000
      %v5071 = vpop.f32.mrb[0].mxu0
      %v5072 = vadd.f32 0.0, %v5071
      %v5073 = vpop.f32.mrb[0].mxu0
      %v5074 = vadd.f32 0.0, %v5073
      %5075 = vmatprep.mubr.f32.mxu0 0.0
      %5076 = vmatmul.mubr.f32.gmra.mrb[0].mxu0 %v5003
      %v5077 = vpop.f32.mrb[0].mxu0
      %v5078 = vadd.f32 0.0, %v5077
      %v5079 = vpop.f32.mrb[0].mxu0
      %v5080 = vadd.f32 0.0, %v5079
      %5081 = vdwg.mxu0
      %5082 = vrot.lane.b32.xlu0 %v4976, 43
      %v5083 = vpop.permute.xlu0 %5082
      %5084 = vrot.lane.b32.xlu0 %v4977, 43
      %v5085 = vpop.permute.xlu0 %5084
      %5086 = vrot.lane.b32.xlu0 %v4978, 43
      %v5087 = vpop.permute.xlu0 %5086
      %vm5088 = vcmask 351232
      %v5089 = vsel %vm5088, %v5083, %v5085
      %v5090 = vsel %vm5088, %v5085, %v5087
      %v5094 = vsel %vm166, %v4980, 0
      %v5097 = vsel %vm166, %v4981, 0
      %5099 = vmatprep.subr.mxu0 %v5090
      %5100 = vmatpush1.msra.mxu0 %v5089
      %5101 = vmatprep.subr.mxu0 0.0
      %5102 = vmatpush1.msra.mxu0 0.0
      %5103 = vmatprep.subr.mxu0 0.0
      %5104 = vmatpush1.msra.mxu0 0.0
      %5105 = vmatprep.subr.mxu0 0.0
      %5106 = vmatpush1.msra.mxu0 0.0
      %5107 = vmatprep.subr.mxu0 0.0
      %5108 = vmatpush1.msra.mxu0 0.0
      %5109 = vmatprep.subr.mxu0 0.0
      %5110 = vmatpush1.msra.mxu0 0.0
      %5111 = vmatprep.subr.mxu0 0.0
      %5112 = vmatpush1.msra.mxu0 0.0
      %5113 = vmatprep.subr.mxu0 0.0
      %5114 = vmatpush1.msra.mxu0 0.0
      %5115 = vmatprep.subr.mxu0 0.0
      %5116 = vmatpush1.msra.mxu0 0.0
      %5117 = vmatprep.subr.mxu0 0.0
      %5118 = vmatpush1.msra.mxu0 0.0
      %5119 = vmatprep.subr.mxu0 0.0
      %5120 = vmatpush1.msra.mxu0 0.0
      %5121 = vmatprep.subr.mxu0 0.0
      %5122 = vmatpush1.msra.mxu0 0.0
      %5123 = vmatprep.subr.mxu0 0.0
      %5124 = vmatpush1.msra.mxu0 0.0
      %5125 = vmatprep.subr.mxu0 0.0
      %5126 = vmatpush1.msra.mxu0 0.0
      %5127 = vmatprep.subr.mxu0 0.0
      %5128 = vmatpush1.msra.mxu0 0.0
      %5129 = vmatprep.subr.mxu0 0.0
      %5130 = vmatpush1.msra.mxu0 0.0
      %5131 = vmatprep.subr.mxu0 0.0
      %5132 = vmatpush1.msra.mxu0 0.0
      %5133 = vmatprep.subr.mxu0 0.0
      %5134 = vmatpush1.msra.mxu0 0.0
      %5135 = vmatprep.subr.mxu0 0.0
      %5136 = vmatpush1.msra.mxu0 0.0
      %5137 = vmatprep.subr.mxu0 0.0
      %5138 = vmatpush1.msra.mxu0 0.0
      %5139 = vmatprep.subr.mxu0 0.0
      %5140 = vmatpush1.msra.mxu0 0.0
      %5141 = vmatprep.subr.mxu0 0.0
      %5142 = vmatpush1.msra.mxu0 0.0
      %5143 = vmatprep.subr.mxu0 0.0
      %5144 = vmatpush1.msra.mxu0 0.0
      %5145 = vmatprep.subr.mxu0 0.0
      %5146 = vmatpush1.msra.mxu0 0.0
      %5147 = vmatprep.subr.mxu0 0.0
      %5148 = vmatpush1.msra.mxu0 0.0
      %5149 = vmatprep.subr.mxu0 0.0
      %5150 = vmatpush1.msra.mxu0 0.0
      %5151 = vmatprep.subr.mxu0 0.0
      %5152 = vmatpush1.msra.mxu0 0.0
      %5153 = vmatprep.subr.mxu0 0.0
      %5154 = vmatpush1.msra.mxu0 0.0
      %5155 = vmatprep.subr.mxu0 0.0
      %5156 = vmatpush1.msra.mxu0 0.0
      %5157 = vmatprep.subr.mxu0 0.0
      %5158 = vmatpush1.msra.mxu0 0.0
      %5159 = vmatprep.subr.mxu0 0.0
      %5160 = vmatpush1.msra.mxu0 0.0
      %5161 = vmatprep.subr.mxu0 0.0
      %5162 = vmatpush1.msra.mxu0 0.0
      %5163 = vmatprep.mubr.f32.mxu0 0.0
      %5164 = vmatmul.mubr.f32.gmra.mrb[0].mxu0 %v5094
      %v5165 = vpop.f32.mrb[0].mxu0
      %v5166 = vadd.f32 %v5072, %v5165
      %v5167 = vpop.f32.mrb[0].mxu0
      %v5168 = vadd.f32 %v5074, %v5167
      %5169 = vmatprep.mubr.f32.mxu0 0.0
      %5170 = vmatmul.mubr.f32.gmra.mrb[0].mxu0 %v5097
      %v5171 = vpop.f32.mrb[0].mxu0
      %v5172 = vadd.f32 %v5078, %v5171
      %v5173 = vpop.f32.mrb[0].mxu0
      %v5174 = vadd.f32 %v5080, %v5173
      %5175 = vdwg.mxu0
      %s5176 = scalar_lea.vmem %s1, 800
      %v5177 = vld [vmem:[%s5176] sm:$0xff]
      %v5178 = vld [vmem:[%s5176 + $0x8] sm:$0xff]
      %5179 = vrot.lane.b32.xlu0 %v4976, 49
      %v5180 = vpop.permute.xlu0 %5179
      %5181 = vrot.lane.b32.xlu0 %v4977, 49
      %v5182 = vpop.permute.xlu0 %5181
      %5183 = vrot.lane.b32.xlu0 %v4978, 49
      %v5184 = vpop.permute.xlu0 %5183
      %v5185 = vsel %vm3476, %v5180, %v5182
      %v5186 = vsel %vm3476, %v5182, %v5184
      %v5190 = vsel %vm166, %v5177, 0
      %v5193 = vsel %vm166, %v5178, 0
      %5195 = vmatprep.subr.mxu0 %v5186
      %5196 = vmatpush1.msra.mxu0 %v5185
      %5197 = vmatprep.subr.mxu0 0.0
      %5198 = vmatpush1.msra.mxu0 0.0
      %5199 = vmatprep.subr.mxu0 0.0
      %5200 = vmatpush1.msra.mxu0 0.0
      %5201 = vmatprep.subr.mxu0 0.0
      %5202 = vmatpush1.msra.mxu0 0.0
      %5203 = vmatprep.subr.mxu0 0.0
      %5204 = vmatpush1.msra.mxu0 0.0
      %5205 = vmatprep.subr.mxu0 0.0
      %5206 = vmatpush1.msra.mxu0 0.0
      %5207 = vmatprep.subr.mxu0 0.0
      %5208 = vmatpush1.msra.mxu0 0.0
      %5209 = vmatprep.subr.mxu0 0.0
      %5210 = vmatpush1.msra.mxu0 0.0
      %5211 = vmatprep.subr.mxu0 0.0
      %5212 = vmatpush1.msra.mxu0 0.0
      %5213 = vmatprep.subr.mxu0 0.0
      %5214 = vmatpush1.msra.mxu0 0.0
      %5215 = vmatprep.subr.mxu0 0.0
      %5216 = vmatpush1.msra.mxu0 0.0
      %5217 = vmatprep.subr.mxu0 0.0
      %5218 = vmatpush1.msra.mxu0 0.0
      %5219 = vmatprep.subr.mxu0 0.0
      %5220 = vmatpush1.msra.mxu0 0.0
      %5221 = vmatprep.subr.mxu0 0.0
      %5222 = vmatpush1.msra.mxu0 0.0
      %5223 = vmatprep.subr.mxu0 0.0
      %5224 = vmatpush1.msra.mxu0 0.0
      %5225 = vmatprep.subr.mxu0 0.0
      %5226 = vmatpush1.msra.mxu0 0.0
      %5227 = vmatprep.subr.mxu0 0.0
      %5228 = vmatpush1.msra.mxu0 0.0
      %5229 = vmatprep.subr.mxu0 0.0
      %5230 = vmatpush1.msra.mxu0 0.0
      %5231 = vmatprep.subr.mxu0 0.0
      %5232 = vmatpush1.msra.mxu0 0.0
      %5233 = vmatprep.subr.mxu0 0.0
      %5234 = vmatpush1.msra.mxu0 0.0
      %5235 = vmatprep.subr.mxu0 0.0
      %5236 = vmatpush1.msra.mxu0 0.0
      %5237 = vmatprep.subr.mxu0 0.0
      %5238 = vmatpush1.msra.mxu0 0.0
      %5239 = vmatprep.subr.mxu0 0.0
      %5240 = vmatpush1.msra.mxu0 0.0
      %5241 = vmatprep.subr.mxu0 0.0
      %5242 = vmatpush1.msra.mxu0 0.0
      %5243 = vmatprep.subr.mxu0 0.0
      %5244 = vmatpush1.msra.mxu0 0.0
      %5245 = vmatprep.subr.mxu0 0.0
      %5246 = vmatpush1.msra.mxu0 0.0
      %5247 = vmatprep.subr.mxu0 0.0
      %5248 = vmatpush1.msra.mxu0 0.0
      %5249 = vmatprep.subr.mxu0 0.0
      %5250 = vmatpush1.msra.mxu0 0.0
      %5251 = vmatprep.subr.mxu0 0.0
      %5252 = vmatpush1.msra.mxu0 0.0
      %5253 = vmatprep.subr.mxu0 0.0
      %5254 = vmatpush1.msra.mxu0 0.0
      %5255 = vmatprep.subr.mxu0 0.0
      %5256 = vmatpush1.msra.mxu0 0.0
      %5257 = vmatprep.subr.mxu0 0.0
      %5258 = vmatpush1.msra.mxu0 0.0
      %5259 = vmatprep.mubr.f32.mxu0 0.0
      %5260 = vmatmul.mubr.f32.gmra.mrb[0].mxu0 %v5190
      %v5261 = vpop.f32.mrb[0].mxu0
      %v5262 = vadd.f32 0.0, %v5261
      %v5263 = vpop.f32.mrb[0].mxu0
      %v5264 = vadd.f32 0.0, %v5263
      %5265 = vmatprep.mubr.f32.mxu0 0.0
      %5266 = vmatmul.mubr.f32.gmra.mrb[0].mxu0 %v5193
      %v5267 = vpop.f32.mrb[0].mxu0
      %v5268 = vadd.f32 0.0, %v5267
      %v5269 = vpop.f32.mrb[0].mxu0
      %v5270 = vadd.f32 0.0, %v5269
      %5271 = vdwg.mxu0
      %v5272 = vadd.f32 %v5166, %v5262
      %v5273 = vadd.f32 %v5168, %v5264
      %v5274 = vadd.f32 %v5172, %v5268
      %v5275 = vadd.f32 %v5174, %v5270
      %s5276 = scalar_lea.vmem %s1, 816
      %v5277 = vld [vmem:[%s5276] sm:$0xff]
      %v5278 = vld [vmem:[%s5276 + $0x8] sm:$0xff]
      %5279 = vrot.lane.b32.xlu0 %v4976, 50
      %v5280 = vpop.permute.xlu0 %5279
      %5281 = vrot.lane.b32.xlu0 %v4977, 50
      %v5282 = vpop.permute.xlu0 %5281
      %5283 = vrot.lane.b32.xlu0 %v4978, 50
      %v5284 = vpop.permute.xlu0 %5283
      %v5285 = vsel %vm3382, %v5280, %v5282
      %v5286 = vsel %vm3382, %v5282, %v5284
      %v5290 = vsel %vm166, %v5277, 0
      %v5293 = vsel %vm166, %v5278, 0
      %5295 = vmatprep.subr.mxu0 %v5286
      %5296 = vmatpush1.msra.mxu0 %v5285
      %5297 = vmatprep.subr.mxu0 0.0
      %5298 = vmatpush1.msra.mxu0 0.0
      %5299 = vmatprep.subr.mxu0 0.0
      %5300 = vmatpush1.msra.mxu0 0.0
      %5301 = vmatprep.subr.mxu0 0.0
      %5302 = vmatpush1.msra.mxu0 0.0
      %5303 = vmatprep.subr.mxu0 0.0
      %5304 = vmatpush1.msra.mxu0 0.0
      %5305 = vmatprep.subr.mxu0 0.0
      %5306 = vmatpush1.msra.mxu0 0.0
      %5307 = vmatprep.subr.mxu0 0.0
      %5308 = vmatpush1.msra.mxu0 0.0
      %5309 = vmatprep.subr.mxu0 0.0
      %5310 = vmatpush1.msra.mxu0 0.0
      %5311 = vmatprep.subr.mxu0 0.0
      %5312 = vmatpush1.msra.mxu0 0.0
      %5313 = vmatprep.subr.mxu0 0.0
      %5314 = vmatpush1.msra.mxu0 0.0
      %5315 = vmatprep.subr.mxu0 0.0
      %5316 = vmatpush1.msra.mxu0 0.0
      %5317 = vmatprep.subr.mxu0 0.0
      %5318 = vmatpush1.msra.mxu0 0.0
      %5319 = vmatprep.subr.mxu0 0.0
      %5320 = vmatpush1.msra.mxu0 0.0
      %5321 = vmatprep.subr.mxu0 0.0
      %5322 = vmatpush1.msra.mxu0 0.0
      %5323 = vmatprep.subr.mxu0 0.0
      %5324 = vmatpush1.msra.mxu0 0.0
      %5325 = vmatprep.subr.mxu0 0.0
      %5326 = vmatpush1.msra.mxu0 0.0
      %5327 = vmatprep.subr.mxu0 0.0
      %5328 = vmatpush1.msra.mxu0 0.0
      %5329 = vmatprep.subr.mxu0 0.0
      %5330 = vmatpush1.msra.mxu0 0.0
      %5331 = vmatprep.subr.mxu0 0.0
      %5332 = vmatpush1.msra.mxu0 0.0
      %5333 = vmatprep.subr.mxu0 0.0
      %5334 = vmatpush1.msra.mxu0 0.0
      %5335 = vmatprep.subr.mxu0 0.0
      %5336 = vmatpush1.msra.mxu0 0.0
      %5337 = vmatprep.subr.mxu0 0.0
      %5338 = vmatpush1.msra.mxu0 0.0
      %5339 = vmatprep.subr.mxu0 0.0
      %5340 = vmatpush1.msra.mxu0 0.0
      %5341 = vmatprep.subr.mxu0 0.0
      %5342 = vmatpush1.msra.mxu0 0.0
      %5343 = vmatprep.subr.mxu0 0.0
      %5344 = vmatpush1.msra.mxu0 0.0
      %5345 = vmatprep.subr.mxu0 0.0
      %5346 = vmatpush1.msra.mxu0 0.0
      %5347 = vmatprep.subr.mxu0 0.0
      %5348 = vmatpush1.msra.mxu0 0.0
      %5349 = vmatprep.subr.mxu0 0.0
      %5350 = vmatpush1.msra.mxu0 0.0
      %5351 = vmatprep.subr.mxu0 0.0
      %5352 = vmatpush1.msra.mxu0 0.0
      %5353 = vmatprep.subr.mxu0 0.0
      %5354 = vmatpush1.msra.mxu0 0.0
      %5355 = vmatprep.subr.mxu0 0.0
      %5356 = vmatpush1.msra.mxu0 0.0
      %5357 = vmatprep.subr.mxu0 0.0
      %5358 = vmatpush1.msra.mxu0 0.0
      %5359 = vmatprep.mubr.f32.mxu0 0.0
      %5360 = vmatmul.mubr.f32.gmra.mrb[0].mxu0 %v5290
      %v5361 = vpop.f32.mrb[0].mxu0
      %v5362 = vadd.f32 0.0, %v5361
      %v5363 = vpop.f32.mrb[0].mxu0
      %v5364 = vadd.f32 0.0, %v5363
      %5365 = vmatprep.mubr.f32.mxu0 0.0
      %5366 = vmatmul.mubr.f32.gmra.mrb[0].mxu0 %v5293
      %v5367 = vpop.f32.mrb[0].mxu0
      %v5368 = vadd.f32 0.0, %v5367
      %v5369 = vpop.f32.mrb[0].mxu0
      %v5370 = vadd.f32 0.0, %v5369
      %5371 = vdwg.mxu0
      %v5372 = vadd.f32 %v5272, %v5362
      %v5373 = vadd.f32 %v5273, %v5364
      %v5374 = vadd.f32 %v5274, %v5368
      %v5375 = vadd.f32 %v5275, %v5370
      %s5376 = scalar_lea.vmem %s1, 832
      %v5377 = vld [vmem:[%s5376] sm:$0xff]
      %v5378 = vld [vmem:[%s5376 + $0x8] sm:$0xff]
      %5379 = vrot.lane.b32.xlu0 %v4976, 79
      %v5380 = vpop.permute.xlu0 %5379
      %5381 = vrot.lane.b32.xlu0 %v4977, 79
      %v5382 = vpop.permute.xlu0 %5381
      %5383 = vrot.lane.b32.xlu0 %v4978, 79
      %v5384 = vpop.permute.xlu0 %5383
      %v5385 = vsel %vm1864, %v5380, %v5382
      %v5386 = vsel %vm1864, %v5382, %v5384
      %v5390 = vsel %vm166, %v5377, 0
      %v5393 = vsel %vm166, %v5378, 0
      %5395 = vmatprep.subr.mxu0 %v5386
      %5396 = vmatpush1.msra.mxu0 %v5385
      %5397 = vmatprep.subr.mxu0 0.0
      %5398 = vmatpush1.msra.mxu0 0.0
      %5399 = vmatprep.subr.mxu0 0.0
      %5400 = vmatpush1.msra.mxu0 0.0
      %5401 = vmatprep.subr.mxu0 0.0
      %5402 = vmatpush1.msra.mxu0 0.0
      %5403 = vmatprep.subr.mxu0 0.0
      %5404 = vmatpush1.msra.mxu0 0.0
      %5405 = vmatprep.subr.mxu0 0.0
      %5406 = vmatpush1.msra.mxu0 0.0
      %5407 = vmatprep.subr.mxu0 0.0
      %5408 = vmatpush1.msra.mxu0 0.0
      %5409 = vmatprep.subr.mxu0 0.0
      %5410 = vmatpush1.msra.mxu0 0.0
      %5411 = vmatprep.subr.mxu0 0.0
      %5412 = vmatpush1.msra.mxu0 0.0
      %5413 = vmatprep.subr.mxu0 0.0
      %5414 = vmatpush1.msra.mxu0 0.0
      %5415 = vmatprep.subr.mxu0 0.0
      %5416 = vmatpush1.msra.mxu0 0.0
      %5417 = vmatprep.subr.mxu0 0.0
      %5418 = vmatpush1.msra.mxu0 0.0
      %5419 = vmatprep.subr.mxu0 0.0
      %5420 = vmatpush1.msra.mxu0 0.0
      %5421 = vmatprep.subr.mxu0 0.0
      %5422 = vmatpush1.msra.mxu0 0.0
      %5423 = vmatprep.subr.mxu0 0.0
      %5424 = vmatpush1.msra.mxu0 0.0
      %5425 = vmatprep.subr.mxu0 0.0
      %5426 = vmatpush1.msra.mxu0 0.0
      %5427 = vmatprep.subr.mxu0 0.0
      %5428 = vmatpush1.msra.mxu0 0.0
      %5429 = vmatprep.subr.mxu0 0.0
      %5430 = vmatpush1.msra.mxu0 0.0
      %5431 = vmatprep.subr.mxu0 0.0
      %5432 = vmatpush1.msra.mxu0 0.0
      %5433 = vmatprep.subr.mxu0 0.0
      %5434 = vmatpush1.msra.mxu0 0.0
      %5435 = vmatprep.subr.mxu0 0.0
      %5436 = vmatpush1.msra.mxu0 0.0
      %5437 = vmatprep.subr.mxu0 0.0
      %5438 = vmatpush1.msra.mxu0 0.0
      %5439 = vmatprep.subr.mxu0 0.0
      %5440 = vmatpush1.msra.mxu0 0.0
      %5441 = vmatprep.subr.mxu0 0.0
      %5442 = vmatpush1.msra.mxu0 0.0
      %5443 = vmatprep.subr.mxu0 0.0
      %5444 = vmatpush1.msra.mxu0 0.0
      %5445 = vmatprep.subr.mxu0 0.0
      %5446 = vmatpush1.msra.mxu0 0.0
      %5447 = vmatprep.subr.mxu0 0.0
      %5448 = vmatpush1.msra.mxu0 0.0
      %5449 = vmatprep.subr.mxu0 0.0
      %5450 = vmatpush1.msra.mxu0 0.0
      %5451 = vmatprep.subr.mxu0 0.0
      %5452 = vmatpush1.msra.mxu0 0.0
      %5453 = vmatprep.subr.mxu0 0.0
      %5454 = vmatpush1.msra.mxu0 0.0
      %5455 = vmatprep.subr.mxu0 0.0
      %5456 = vmatpush1.msra.mxu0 0.0
      %5457 = vmatprep.subr.mxu0 0.0
      %5458 = vmatpush1.msra.mxu0 0.0
      %5459 = vmatprep.mubr.f32.mxu0 0.0
      %5460 = vmatmul.mubr.f32.gmra.mrb[0].mxu0 %v5390
      %v5461 = vpop.f32.mrb[0].mxu0
      %v5462 = vadd.f32 0.0, %v5461
      %v5463 = vpop.f32.mrb[0].mxu0
      %v5464 = vadd.f32 0.0, %v5463
      %5465 = vmatprep.mubr.f32.mxu0 0.0
      %5466 = vmatmul.mubr.f32.gmra.mrb[0].mxu0 %v5393
      %v5467 = vpop.f32.mrb[0].mxu0
      %v5468 = vadd.f32 0.0, %v5467
      %v5469 = vpop.f32.mrb[0].mxu0
      %v5470 = vadd.f32 0.0, %v5469
      %5471 = vdwg.mxu0
      %v5472 = vadd.f32 %v5372, %v5462
      %v5473 = vadd.f32 %v5373, %v5464
      %v5474 = vadd.f32 %v5374, %v5468
      %v5475 = vadd.f32 %v5375, %v5470
      %s5476 = scalar_lea.vmem %s1, 848
      %v5477 = vld [vmem:[%s5476] sm:$0xff]
      %v5478 = vld [vmem:[%s5476 + $0x8] sm:$0xff]
      %5479 = vrot.lane.b32.xlu0 %v4976, 80
      %v5480 = vpop.permute.xlu0 %5479
      %5481 = vrot.lane.b32.xlu0 %v4977, 80
      %v5482 = vpop.permute.xlu0 %5481
      %5483 = vrot.lane.b32.xlu0 %v4978, 80
      %v5484 = vpop.permute.xlu0 %5483
      %v5485 = vsel %vm1770, %v5480, %v5482
      %v5486 = vsel %vm1770, %v5482, %v5484
      %v5490 = vsel %vm166, %v5477, 0
      %v5493 = vsel %vm166, %v5478, 0
      %5495 = vmatprep.subr.mxu0 %v5486
      %5496 = vmatpush1.msra.mxu0 %v5485
      %5497 = vmatprep.subr.mxu0 0.0
      %5498 = vmatpush1.msra.mxu0 0.0
      %5499 = vmatprep.subr.mxu0 0.0
      %5500 = vmatpush1.msra.mxu0 0.0
      %5501 = vmatprep.subr.mxu0 0.0
      %5502 = vmatpush1.msra.mxu0 0.0
      %5503 = vmatprep.subr.mxu0 0.0
      %5504 = vmatpush1.msra.mxu0 0.0
      %5505 = vmatprep.subr.mxu0 0.0
      %5506 = vmatpush1.msra.mxu0 0.0
      %5507 = vmatprep.subr.mxu0 0.0
      %5508 = vmatpush1.msra.mxu0 0.0
      %5509 = vmatprep.subr.mxu0 0.0
      %5510 = vmatpush1.msra.mxu0 0.0
      %5511 = vmatprep.subr.mxu0 0.0
      %5512 = vmatpush1.msra.mxu0 0.0
      %5513 = vmatprep.subr.mxu0 0.0
      %5514 = vmatpush1.msra.mxu0 0.0
      %5515 = vmatprep.subr.mxu0 0.0
      %5516 = vmatpush1.msra.mxu0 0.0
      %5517 = vmatprep.subr.mxu0 0.0
      %5518 = vmatpush1.msra.mxu0 0.0
      %5519 = vmatprep.subr.mxu0 0.0
      %5520 = vmatpush1.msra.mxu0 0.0
      %5521 = vmatprep.subr.mxu0 0.0
      %5522 = vmatpush1.msra.mxu0 0.0
      %5523 = vmatprep.subr.mxu0 0.0
      %5524 = vmatpush1.msra.mxu0 0.0
      %5525 = vmatprep.subr.mxu0 0.0
      %5526 = vmatpush1.msra.mxu0 0.0
      %5527 = vmatprep.subr.mxu0 0.0
      %5528 = vmatpush1.msra.mxu0 0.0
      %5529 = vmatprep.subr.mxu0 0.0
      %5530 = vmatpush1.msra.mxu0 0.0
      %5531 = vmatprep.subr.mxu0 0.0
      %5532 = vmatpush1.msra.mxu0 0.0
      %5533 = vmatprep.subr.mxu0 0.0
      %5534 = vmatpush1.msra.mxu0 0.0
      %5535 = vmatprep.subr.mxu0 0.0
      %5536 = vmatpush1.msra.mxu0 0.0
      %5537 = vmatprep.subr.mxu0 0.0
      %5538 = vmatpush1.msra.mxu0 0.0
      %5539 = vmatprep.subr.mxu0 0.0
      %5540 = vmatpush1.msra.mxu0 0.0
      %5541 = vmatprep.subr.mxu0 0.0
      %5542 = vmatpush1.msra.mxu0 0.0
      %5543 = vmatprep.subr.mxu0 0.0
      %5544 = vmatpush1.msra.mxu0 0.0
      %5545 = vmatprep.subr.mxu0 0.0
      %5546 = vmatpush1.msra.mxu0 0.0
      %5547 = vmatprep.subr.mxu0 0.0
      %5548 = vmatpush1.msra.mxu0 0.0
      %5549 = vmatprep.subr.mxu0 0.0
      %5550 = vmatpush1.msra.mxu0 0.0
      %5551 = vmatprep.subr.mxu0 0.0
      %5552 = vmatpush1.msra.mxu0 0.0
      %5553 = vmatprep.subr.mxu0 0.0
      %5554 = vmatpush1.msra.mxu0 0.0
      %5555 = vmatprep.subr.mxu0 0.0
      %5556 = vmatpush1.msra.mxu0 0.0
      %5557 = vmatprep.subr.mxu0 0.0
      %5558 = vmatpush1.msra.mxu0 0.0
      %5559 = vmatprep.mubr.f32.mxu0 0.0
      %5560 = vmatmul.mubr.f32.gmra.mrb[0].mxu0 %v5490
      %v5561 = vpop.f32.mrb[0].mxu0
      %v5562 = vadd.f32 0.0, %v5561
      %v5563 = vpop.f32.mrb[0].mxu0
      %v5564 = vadd.f32 0.0, %v5563
      %5565 = vmatprep.mubr.f32.mxu0 0.0
      %5566 = vmatmul.mubr.f32.gmra.mrb[0].mxu0 %v5493
      %v5567 = vpop.f32.mrb[0].mxu0
      %v5568 = vadd.f32 0.0, %v5567
      %v5569 = vpop.f32.mrb[0].mxu0
      %v5570 = vadd.f32 0.0, %v5569
      %5571 = vdwg.mxu0
      %v5572 = vadd.f32 %v5472, %v5562
      %v5573 = vadd.f32 %v5473, %v5564
      %v5574 = vadd.f32 %v5474, %v5568
      %v5575 = vadd.f32 %v5475, %v5570
      %s5576 = scalar_lea.vmem %s1, 864
      %v5577 = vld [vmem:[%s5576] sm:$0xff]
      %v5578 = vld [vmem:[%s5576 + $0x8] sm:$0xff]
      %5579 = vrot.lane.b32.xlu0 %v4976, 85
      %v5580 = vpop.permute.xlu0 %5579
      %5581 = vrot.lane.b32.xlu0 %v4977, 85
      %v5582 = vpop.permute.xlu0 %5581
      %5583 = vrot.lane.b32.xlu0 %v4978, 85
      %v5584 = vpop.permute.xlu0 %5583
      %v5585 = vsel %vm256, %v5580, %v5582
      %v5586 = vsel %vm256, %v5582, %v5584
      %v5590 = vsel %vm166, %v5577, 0
      %v5593 = vsel %vm166, %v5578, 0
      %5595 = vmatprep.subr.mxu0 %v5586
      %5596 = vmatpush1.msra.mxu0 %v5585
      %5597 = vmatprep.subr.mxu0 0.0
      %5598 = vmatpush1.msra.mxu0 0.0
      %5599 = vmatprep.subr.mxu0 0.0
      %5600 = vmatpush1.msra.mxu0 0.0
      %5601 = vmatprep.subr.mxu0 0.0
      %5602 = vmatpush1.msra.mxu0 0.0
      %5603 = vmatprep.subr.mxu0 0.0
      %5604 = vmatpush1.msra.mxu0 0.0
      %5605 = vmatprep.subr.mxu0 0.0
      %5606 = vmatpush1.msra.mxu0 0.0
      %5607 = vmatprep.subr.mxu0 0.0
      %5608 = vmatpush1.msra.mxu0 0.0
      %5609 = vmatprep.subr.mxu0 0.0
      %5610 = vmatpush1.msra.mxu0 0.0
      %5611 = vmatprep.subr.mxu0 0.0
      %5612 = vmatpush1.msra.mxu0 0.0
      %5613 = vmatprep.subr.mxu0 0.0
      %5614 = vmatpush1.msra.mxu0 0.0
      %5615 = vmatprep.subr.mxu0 0.0
      %5616 = vmatpush1.msra.mxu0 0.0
      %5617 = vmatprep.subr.mxu0 0.0
      %5618 = vmatpush1.msra.mxu0 0.0
      %5619 = vmatprep.subr.mxu0 0.0
      %5620 = vmatpush1.msra.mxu0 0.0
      %5621 = vmatprep.subr.mxu0 0.0
      %5622 = vmatpush1.msra.mxu0 0.0
      %5623 = vmatprep.subr.mxu0 0.0
      %5624 = vmatpush1.msra.mxu0 0.0
      %5625 = vmatprep.subr.mxu0 0.0
      %5626 = vmatpush1.msra.mxu0 0.0
      %5627 = vmatprep.subr.mxu0 0.0
      %5628 = vmatpush1.msra.mxu0 0.0
      %5629 = vmatprep.subr.mxu0 0.0
      %5630 = vmatpush1.msra.mxu0 0.0
      %5631 = vmatprep.subr.mxu0 0.0
      %5632 = vmatpush1.msra.mxu0 0.0
      %5633 = vmatprep.subr.mxu0 0.0
      %5634 = vmatpush1.msra.mxu0 0.0
      %5635 = vmatprep.subr.mxu0 0.0
      %5636 = vmatpush1.msra.mxu0 0.0
      %5637 = vmatprep.subr.mxu0 0.0
      %5638 = vmatpush1.msra.mxu0 0.0
      %5639 = vmatprep.subr.mxu0 0.0
      %5640 = vmatpush1.msra.mxu0 0.0
      %5641 = vmatprep.subr.mxu0 0.0
      %5642 = vmatpush1.msra.mxu0 0.0
      %5643 = vmatprep.subr.mxu0 0.0
      %5644 = vmatpush1.msra.mxu0 0.0
      %5645 = vmatprep.subr.mxu0 0.0
      %5646 = vmatpush1.msra.mxu0 0.0
      %5647 = vmatprep.subr.mxu0 0.0
      %5648 = vmatpush1.msra.mxu0 0.0
      %5649 = vmatprep.subr.mxu0 0.0
      %5650 = vmatpush1.msra.mxu0 0.0
      %5651 = vmatprep.subr.mxu0 0.0
      %5652 = vmatpush1.msra.mxu0 0.0
      %5653 = vmatprep.subr.mxu0 0.0
      %5654 = vmatpush1.msra.mxu0 0.0
      %5655 = vmatprep.subr.mxu0 0.0
      %5656 = vmatpush1.msra.mxu0 0.0
      %5657 = vmatprep.subr.mxu0 0.0
      %5658 = vmatpush1.msra.mxu0 0.0
      %5659 = vmatprep.mubr.f32.mxu0 0.0
      %5660 = vmatmul.mubr.f32.gmra.mrb[0].mxu0 %v5590
      %v5661 = vpop.f32.mrb[0].mxu0
      %v5662 = vadd.f32 0.0, %v5661
      %v5663 = vpop.f32.mrb[0].mxu0
      %v5664 = vadd.f32 0.0, %v5663
      %5665 = vmatprep.mubr.f32.mxu0 0.0
      %5666 = vmatmul.mubr.f32.gmra.mrb[0].mxu0 %v5593
      %v5667 = vpop.f32.mrb[0].mxu0
      %v5668 = vadd.f32 0.0, %v5667
      %v5669 = vpop.f32.mrb[0].mxu0
      %v5670 = vadd.f32 0.0, %v5669
      %5671 = vdwg.mxu0
      %v5672 = vadd.f32 %v5572, %v5662
      %v5673 = vadd.f32 %v5573, %v5664
      %v5674 = vadd.f32 %v5574, %v5668
      %v5675 = vadd.f32 %v5575, %v5670
      %s5676 = scalar_lea.vmem %s1, 880
      %v5677 = vld [vmem:[%s5676] sm:$0xff]
      %v5678 = vld [vmem:[%s5676 + $0x8] sm:$0xff]
      %5679 = vrot.lane.b32.xlu0 %v4976, 86
      %v5680 = vpop.permute.xlu0 %5679
      %5681 = vrot.lane.b32.xlu0 %v4977, 86
      %v5682 = vpop.permute.xlu0 %5681
      %5683 = vrot.lane.b32.xlu0 %v4978, 86
      %v5684 = vpop.permute.xlu0 %5683
      %v5685 = vsel %vm161, %v5680, %v5682
      %v5686 = vsel %vm161, %v5682, %v5684
      %v5690 = vsel %vm166, %v5677, 0
      %v5693 = vsel %vm166, %v5678, 0
      %5695 = vmatprep.subr.mxu0 %v5686
      %5696 = vmatpush1.msra.mxu0 %v5685
      %5697 = vmatprep.subr.mxu0 0.0
      %5698 = vmatpush1.msra.mxu0 0.0
      %5699 = vmatprep.subr.mxu0 0.0
      %5700 = vmatpush1.msra.mxu0 0.0
      %5701 = vmatprep.subr.mxu0 0.0
      %5702 = vmatpush1.msra.mxu0 0.0
      %5703 = vmatprep.subr.mxu0 0.0
      %5704 = vmatpush1.msra.mxu0 0.0
      %5705 = vmatprep.subr.mxu0 0.0
      %5706 = vmatpush1.msra.mxu0 0.0
      %5707 = vmatprep.subr.mxu0 0.0
      %5708 = vmatpush1.msra.mxu0 0.0
      %5709 = vmatprep.subr.mxu0 0.0
      %5710 = vmatpush1.msra.mxu0 0.0
      %5711 = vmatprep.subr.mxu0 0.0
      %5712 = vmatpush1.msra.mxu0 0.0
      %5713 = vmatprep.subr.mxu0 0.0
      %5714 = vmatpush1.msra.mxu0 0.0
      %5715 = vmatprep.subr.mxu0 0.0
      %5716 = vmatpush1.msra.mxu0 0.0
      %5717 = vmatprep.subr.mxu0 0.0
      %5718 = vmatpush1.msra.mxu0 0.0
      %5719 = vmatprep.subr.mxu0 0.0
      %5720 = vmatpush1.msra.mxu0 0.0
      %5721 = vmatprep.subr.mxu0 0.0
      %5722 = vmatpush1.msra.mxu0 0.0
      %5723 = vmatprep.subr.mxu0 0.0
      %5724 = vmatpush1.msra.mxu0 0.0
      %5725 = vmatprep.subr.mxu0 0.0
      %5726 = vmatpush1.msra.mxu0 0.0
      %5727 = vmatprep.subr.mxu0 0.0
      %5728 = vmatpush1.msra.mxu0 0.0
      %5729 = vmatprep.subr.mxu0 0.0
      %5730 = vmatpush1.msra.mxu0 0.0
      %5731 = vmatprep.subr.mxu0 0.0
      %5732 = vmatpush1.msra.mxu0 0.0
      %5733 = vmatprep.subr.mxu0 0.0
      %5734 = vmatpush1.msra.mxu0 0.0
      %5735 = vmatprep.subr.mxu0 0.0
      %5736 = vmatpush1.msra.mxu0 0.0
      %5737 = vmatprep.subr.mxu0 0.0
      %5738 = vmatpush1.msra.mxu0 0.0
      %5739 = vmatprep.subr.mxu0 0.0
      %5740 = vmatpush1.msra.mxu0 0.0
      %5741 = vmatprep.subr.mxu0 0.0
      %5742 = vmatpush1.msra.mxu0 0.0
      %5743 = vmatprep.subr.mxu0 0.0
      %5744 = vmatpush1.msra.mxu0 0.0
      %5745 = vmatprep.subr.mxu0 0.0
      %5746 = vmatpush1.msra.mxu0 0.0
      %5747 = vmatprep.subr.mxu0 0.0
      %5748 = vmatpush1.msra.mxu0 0.0
      %5749 = vmatprep.subr.mxu0 0.0
      %5750 = vmatpush1.msra.mxu0 0.0
      %5751 = vmatprep.subr.mxu0 0.0
      %5752 = vmatpush1.msra.mxu0 0.0
      %5753 = vmatprep.subr.mxu0 0.0
      %5754 = vmatpush1.msra.mxu0 0.0
      %5755 = vmatprep.subr.mxu0 0.0
      %5756 = vmatpush1.msra.mxu0 0.0
      %5757 = vmatprep.subr.mxu0 0.0
      %5758 = vmatpush1.msra.mxu0 0.0
      %5759 = vmatprep.mubr.f32.mxu0 0.0
      %5760 = vmatmul.mubr.f32.gmra.mrb[0].mxu0 %v5690
      %v5761 = vpop.f32.mrb[0].mxu0
      %v5762 = vadd.f32 0.0, %v5761
      %v5763 = vpop.f32.mrb[0].mxu0
      %v5764 = vadd.f32 0.0, %v5763
      %5765 = vmatprep.mubr.f32.mxu0 0.0
      %5766 = vmatmul.mubr.f32.gmra.mrb[0].mxu0 %v5693
      %v5767 = vpop.f32.mrb[0].mxu0
      %v5768 = vadd.f32 0.0, %v5767
      %v5769 = vpop.f32.mrb[0].mxu0
      %v5770 = vadd.f32 0.0, %v5769
      %5771 = vdwg.mxu0
      %v5772 = vadd.f32 %v5672, %v5762
      %v5773 = vadd.f32 %v5673, %v5764
      %v5774 = vadd.f32 %v5674, %v5768
      %v5775 = vadd.f32 %v5675, %v5770
      %s5776 = scalar_lea.vmem %s143, 192
      %5777 = vst [vmem:[%s5776] sm:$0xff] %v5772
      %5778 = vst [vmem:[%s5776 + $0x8] sm:$0xff] %v5773
      %5779 = vst [vmem:[%s5776 + $0x10] sm:$0xff] %v5774
      %5780 = vst [vmem:[%s5776 + $0x18] sm:$0xff] %v5775
      %v5781 = vld [vmem:[%s138] sm:$0xff]
      %v5782 = vld [vmem:[%s138 + $0x8] sm:$0xff]
      %v5783 = vld [vmem:[%s138 + $0x10] sm:$0xff]
      %s5784 = scalar_lea.vmem %s1, 896
      %v5785 = vld [vmem:[%s5784] sm:$0xff]
      %v5786 = vld [vmem:[%s5784 + $0x8] sm:$0xff]
      %s5787 = scalar_lea.vmem %s1, 912
      %v5788 = vld [vmem:[%s5787] sm:$0xff]
      %v5789 = vld [vmem:[%s5787 + $0x8] sm:$0xff]
      %5793 = vrot.lane.b32.xlu0 %v5781, 43
      %v5794 = vpop.permute.xlu0 %5793
      %5795 = vrot.lane.b32.xlu0 %v5782, 43
      %v5796 = vpop.permute.xlu0 %5795
      %5797 = vrot.lane.b32.xlu0 %v5783, 43
      %v5798 = vpop.permute.xlu0 %5797
      %v5799 = vsel %vm5088, %v5794, %v5796
      %v5800 = vsel %vm5088, %v5796, %v5798
      %v5804 = vsel %vm166, %v5788, 0
      %v5807 = vsel %vm166, %v5789, 0
      %5809 = vmatprep.subr.mxu0 %v5800
      %5810 = vmatpush1.msra.mxu0 %v5799
      %5811 = vmatprep.subr.mxu0 0.0
      %5812 = vmatpush1.msra.mxu0 0.0
      %5813 = vmatprep.subr.mxu0 0.0
      %5814 = vmatpush1.msra.mxu0 0.0
      %5815 = vmatprep.subr.mxu0 0.0
      %5816 = vmatpush1.msra.mxu0 0.0
      %5817 = vmatprep.subr.mxu0 0.0
      %5818 = vmatpush1.msra.mxu0 0.0
      %5819 = vmatprep.subr.mxu0 0.0
      %5820 = vmatpush1.msra.mxu0 0.0
      %5821 = vmatprep.subr.mxu0 0.0
      %5822 = vmatpush1.msra.mxu0 0.0
      %5823 = vmatprep.subr.mxu0 0.0
      %5824 = vmatpush1.msra.mxu0 0.0
      %5825 = vmatprep.subr.mxu0 0.0
      %5826 = vmatpush1.msra.mxu0 0.0
      %5827 = vmatprep.subr.mxu0 0.0
      %5828 = vmatpush1.msra.mxu0 0.0
      %5829 = vmatprep.subr.mxu0 0.0
      %5830 = vmatpush1.msra.mxu0 0.0
      %5831 = vmatprep.subr.mxu0 0.0
      %5832 = vmatpush1.msra.mxu0 0.0
      %5833 = vmatprep.subr.mxu0 0.0
      %5834 = vmatpush1.msra.mxu0 0.0
      %5835 = vmatprep.subr.mxu0 0.0
      %5836 = vmatpush1.msra.mxu0 0.0
      %5837 = vmatprep.subr.mxu0 0.0
      %5838 = vmatpush1.msra.mxu0 0.0
      %5839 = vmatprep.subr.mxu0 0.0
      %5840 = vmatpush1.msra.mxu0 0.0
      %5841 = vmatprep.subr.mxu0 0.0
      %5842 = vmatpush1.msra.mxu0 0.0
      %5843 = vmatprep.subr.mxu0 0.0
      %5844 = vmatpush1.msra.mxu0 0.0
      %5845 = vmatprep.subr.mxu0 0.0
      %5846 = vmatpush1.msra.mxu0 0.0
      %5847 = vmatprep.subr.mxu0 0.0
      %5848 = vmatpush1.msra.mxu0 0.0
      %5849 = vmatprep.subr.mxu0 0.0
      %5850 = vmatpush1.msra.mxu0 0.0
      %5851 = vmatprep.subr.mxu0 0.0
      %5852 = vmatpush1.msra.mxu0 0.0
      %5853 = vmatprep.subr.mxu0 0.0
      %5854 = vmatpush1.msra.mxu0 0.0
      %5855 = vmatprep.subr.mxu0 0.0
      %5856 = vmatpush1.msra.mxu0 0.0
      %5857 = vmatprep.subr.mxu0 0.0
      %5858 = vmatpush1.msra.mxu0 0.0
      %5859 = vmatprep.subr.mxu0 0.0
      %5860 = vmatpush1.msra.mxu0 0.0
      %5861 = vmatprep.subr.mxu0 0.0
      %5862 = vmatpush1.msra.mxu0 0.0
      %5863 = vmatprep.subr.mxu0 0.0
      %5864 = vmatpush1.msra.mxu0 0.0
      %5865 = vmatprep.subr.mxu0 0.0
      %5866 = vmatpush1.msra.mxu0 0.0
      %5867 = vmatprep.subr.mxu0 0.0
      %5868 = vmatpush1.msra.mxu0 0.0
      %5869 = vmatprep.subr.mxu0 0.0
      %5870 = vmatpush1.msra.mxu0 0.0
      %5871 = vmatprep.subr.mxu0 0.0
      %5872 = vmatpush1.msra.mxu0 0.0
      %5873 = vmatprep.mubr.f32.mxu0 0.0
      %5874 = vmatmul.mubr.f32.gmra.mrb[0].mxu0 %v5804
      %v5875 = vpop.f32.mrb[0].mxu0
      %v5876 = vadd.f32 0.0, %v5875
      %v5877 = vpop.f32.mrb[0].mxu0
      %v5878 = vadd.f32 0.0, %v5877
      %5879 = vmatprep.mubr.f32.mxu0 0.0
      %5880 = vmatmul.mubr.f32.gmra.mrb[0].mxu0 %v5807
      %v5881 = vpop.f32.mrb[0].mxu0
      %v5882 = vadd.f32 0.0, %v5881
      %v5883 = vpop.f32.mrb[0].mxu0
      %v5884 = vadd.f32 0.0, %v5883
      %5885 = vdwg.mxu0
      %5886 = vrot.lane.b32.xlu0 %v5781, 42
      %v5887 = vpop.permute.xlu0 %5886
      %5888 = vrot.lane.b32.xlu0 %v5782, 42
      %v5889 = vpop.permute.xlu0 %5888
      %5890 = vrot.lane.b32.xlu0 %v5783, 42
      %v5891 = vpop.permute.xlu0 %5890
      %vm5892 = vcmask 343040
      %v5893 = vsel %vm5892, %v5887, %v5889
      %v5894 = vsel %vm5892, %v5889, %v5891
      %v5898 = vsel %vm166, %v5785, 0
      %v5901 = vsel %vm166, %v5786, 0
      %5903 = vmatprep.subr.mxu0 %v5894
      %5904 = vmatpush1.msra.mxu0 %v5893
      %5905 = vmatprep.subr.mxu0 0.0
      %5906 = vmatpush1.msra.mxu0 0.0
      %5907 = vmatprep.subr.mxu0 0.0
      %5908 = vmatpush1.msra.mxu0 0.0
      %5909 = vmatprep.subr.mxu0 0.0
      %5910 = vmatpush1.msra.mxu0 0.0
      %5911 = vmatprep.subr.mxu0 0.0
      %5912 = vmatpush1.msra.mxu0 0.0
      %5913 = vmatprep.subr.mxu0 0.0
      %5914 = vmatpush1.msra.mxu0 0.0
      %5915 = vmatprep.subr.mxu0 0.0
      %5916 = vmatpush1.msra.mxu0 0.0
      %5917 = vmatprep.subr.mxu0 0.0
      %5918 = vmatpush1.msra.mxu0 0.0
      %5919 = vmatprep.subr.mxu0 0.0
      %5920 = vmatpush1.msra.mxu0 0.0
      %5921 = vmatprep.subr.mxu0 0.0
      %5922 = vmatpush1.msra.mxu0 0.0
      %5923 = vmatprep.subr.mxu0 0.0
      %5924 = vmatpush1.msra.mxu0 0.0
      %5925 = vmatprep.subr.mxu0 0.0
      %5926 = vmatpush1.msra.mxu0 0.0
      %5927 = vmatprep.subr.mxu0 0.0
      %5928 = vmatpush1.msra.mxu0 0.0
      %5929 = vmatprep.subr.mxu0 0.0
      %5930 = vmatpush1.msra.mxu0 0.0
      %5931 = vmatprep.subr.mxu0 0.0
      %5932 = vmatpush1.msra.mxu0 0.0
      %5933 = vmatprep.subr.mxu0 0.0
      %5934 = vmatpush1.msra.mxu0 0.0
      %5935 = vmatprep.subr.mxu0 0.0
      %5936 = vmatpush1.msra.mxu0 0.0
      %5937 = vmatprep.subr.mxu0 0.0
      %5938 = vmatpush1.msra.mxu0 0.0
      %5939 = vmatprep.subr.mxu0 0.0
      %5940 = vmatpush1.msra.mxu0 0.0
      %5941 = vmatprep.subr.mxu0 0.0
      %5942 = vmatpush1.msra.mxu0 0.0
      %5943 = vmatprep.subr.mxu0 0.0
      %5944 = vmatpush1.msra.mxu0 0.0
      %5945 = vmatprep.subr.mxu0 0.0
      %5946 = vmatpush1.msra.mxu0 0.0
      %5947 = vmatprep.subr.mxu0 0.0
      %5948 = vmatpush1.msra.mxu0 0.0
      %5949 = vmatprep.subr.mxu0 0.0
      %5950 = vmatpush1.msra.mxu0 0.0
      %5951 = vmatprep.subr.mxu0 0.0
      %5952 = vmatpush1.msra.mxu0 0.0
      %5953 = vmatprep.subr.mxu0 0.0
      %5954 = vmatpush1.msra.mxu0 0.0
      %5955 = vmatprep.subr.mxu0 0.0
      %5956 = vmatpush1.msra.mxu0 0.0
      %5957 = vmatprep.subr.mxu0 0.0
      %5958 = vmatpush1.msra.mxu0 0.0
      %5959 = vmatprep.subr.mxu0 0.0
      %5960 = vmatpush1.msra.mxu0 0.0
      %5961 = vmatprep.subr.mxu0 0.0
      %5962 = vmatpush1.msra.mxu0 0.0
      %5963 = vmatprep.subr.mxu0 0.0
      %5964 = vmatpush1.msra.mxu0 0.0
      %5965 = vmatprep.subr.mxu0 0.0
      %5966 = vmatpush1.msra.mxu0 0.0
      %5967 = vmatprep.mubr.f32.mxu0 0.0
      %5968 = vmatmul.mubr.f32.gmra.mrb[0].mxu0 %v5898
      %v5969 = vpop.f32.mrb[0].mxu0
      %v5970 = vadd.f32 %v5876, %v5969
      %v5971 = vpop.f32.mrb[0].mxu0
      %v5972 = vadd.f32 %v5878, %v5971
      %5973 = vmatprep.mubr.f32.mxu0 0.0
      %5974 = vmatmul.mubr.f32.gmra.mrb[0].mxu0 %v5901
      %v5975 = vpop.f32.mrb[0].mxu0
      %v5976 = vadd.f32 %v5882, %v5975
      %v5977 = vpop.f32.mrb[0].mxu0
      %v5978 = vadd.f32 %v5884, %v5977
      %5979 = vdwg.mxu0
      %s5980 = scalar_lea.vmem %s1, 928
      %v5981 = vld [vmem:[%s5980] sm:$0xff]
      %v5982 = vld [vmem:[%s5980 + $0x8] sm:$0xff]
      %5983 = vrot.lane.b32.xlu0 %v5781, 48
      %v5984 = vpop.permute.xlu0 %5983
      %5985 = vrot.lane.b32.xlu0 %v5782, 48
      %v5986 = vpop.permute.xlu0 %5985
      %5987 = vrot.lane.b32.xlu0 %v5783, 48
      %v5988 = vpop.permute.xlu0 %5987
      %v5989 = vsel %vm4282, %v5984, %v5986
      %v5990 = vsel %vm4282, %v5986, %v5988
      %v5994 = vsel %vm166, %v5981, 0
      %v5997 = vsel %vm166, %v5982, 0
      %5999 = vmatprep.subr.mxu0 %v5990
      %6000 = vmatpush1.msra.mxu0 %v5989
      %6001 = vmatprep.subr.mxu0 0.0
      %6002 = vmatpush1.msra.mxu0 0.0
      %6003 = vmatprep.subr.mxu0 0.0
      %6004 = vmatpush1.msra.mxu0 0.0
      %6005 = vmatprep.subr.mxu0 0.0
      %6006 = vmatpush1.msra.mxu0 0.0
      %6007 = vmatprep.subr.mxu0 0.0
      %6008 = vmatpush1.msra.mxu0 0.0
      %6009 = vmatprep.subr.mxu0 0.0
      %6010 = vmatpush1.msra.mxu0 0.0
      %6011 = vmatprep.subr.mxu0 0.0
      %6012 = vmatpush1.msra.mxu0 0.0
      %6013 = vmatprep.subr.mxu0 0.0
      %6014 = vmatpush1.msra.mxu0 0.0
      %6015 = vmatprep.subr.mxu0 0.0
      %6016 = vmatpush1.msra.mxu0 0.0
      %6017 = vmatprep.subr.mxu0 0.0
      %6018 = vmatpush1.msra.mxu0 0.0
      %6019 = vmatprep.subr.mxu0 0.0
      %6020 = vmatpush1.msra.mxu0 0.0
      %6021 = vmatprep.subr.mxu0 0.0
      %6022 = vmatpush1.msra.mxu0 0.0
      %6023 = vmatprep.subr.mxu0 0.0
      %6024 = vmatpush1.msra.mxu0 0.0
      %6025 = vmatprep.subr.mxu0 0.0
      %6026 = vmatpush1.msra.mxu0 0.0
      %6027 = vmatprep.subr.mxu0 0.0
      %6028 = vmatpush1.msra.mxu0 0.0
      %6029 = vmatprep.subr.mxu0 0.0
      %6030 = vmatpush1.msra.mxu0 0.0
      %6031 = vmatprep.subr.mxu0 0.0
      %6032 = vmatpush1.msra.mxu0 0.0
      %6033 = vmatprep.subr.mxu0 0.0
      %6034 = vmatpush1.msra.mxu0 0.0
      %6035 = vmatprep.subr.mxu0 0.0
      %6036 = vmatpush1.msra.mxu0 0.0
      %6037 = vmatprep.subr.mxu0 0.0
      %6038 = vmatpush1.msra.mxu0 0.0
      %6039 = vmatprep.subr.mxu0 0.0
      %6040 = vmatpush1.msra.mxu0 0.0
      %6041 = vmatprep.subr.mxu0 0.0
      %6042 = vmatpush1.msra.mxu0 0.0
      %6043 = vmatprep.subr.mxu0 0.0
      %6044 = vmatpush1.msra.mxu0 0.0
      %6045 = vmatprep.subr.mxu0 0.0
      %6046 = vmatpush1.msra.mxu0 0.0
      %6047 = vmatprep.subr.mxu0 0.0
      %6048 = vmatpush1.msra.mxu0 0.0
      %6049 = vmatprep.subr.mxu0 0.0
      %6050 = vmatpush1.msra.mxu0 0.0
      %6051 = vmatprep.subr.mxu0 0.0
      %6052 = vmatpush1.msra.mxu0 0.0
      %6053 = vmatprep.subr.mxu0 0.0
      %6054 = vmatpush1.msra.mxu0 0.0
      %6055 = vmatprep.subr.mxu0 0.0
      %6056 = vmatpush1.msra.mxu0 0.0
      %6057 = vmatprep.subr.mxu0 0.0
      %6058 = vmatpush1.msra.mxu0 0.0
      %6059 = vmatprep.subr.mxu0 0.0
      %6060 = vmatpush1.msra.mxu0 0.0
      %6061 = vmatprep.subr.mxu0 0.0
      %6062 = vmatpush1.msra.mxu0 0.0
      %6063 = vmatprep.mubr.f32.mxu0 0.0
      %6064 = vmatmul.mubr.f32.gmra.mrb[0].mxu0 %v5994
      %v6065 = vpop.f32.mrb[0].mxu0
      %v6066 = vadd.f32 0.0, %v6065
      %v6067 = vpop.f32.mrb[0].mxu0
      %v6068 = vadd.f32 0.0, %v6067
      %6069 = vmatprep.mubr.f32.mxu0 0.0
      %6070 = vmatmul.mubr.f32.gmra.mrb[0].mxu0 %v5997
      %v6071 = vpop.f32.mrb[0].mxu0
      %v6072 = vadd.f32 0.0, %v6071
      %v6073 = vpop.f32.mrb[0].mxu0
      %v6074 = vadd.f32 0.0, %v6073
      %6075 = vdwg.mxu0
      %v6076 = vadd.f32 %v5970, %v6066
      %v6077 = vadd.f32 %v5972, %v6068
      %v6078 = vadd.f32 %v5976, %v6072
      %v6079 = vadd.f32 %v5978, %v6074
      %s6080 = scalar_lea.vmem %s1, 944
      %v6081 = vld [vmem:[%s6080] sm:$0xff]
      %v6082 = vld [vmem:[%s6080 + $0x8] sm:$0xff]
      %6083 = vrot.lane.b32.xlu0 %v5781, 49
      %v6084 = vpop.permute.xlu0 %6083
      %6085 = vrot.lane.b32.xlu0 %v5782, 49
      %v6086 = vpop.permute.xlu0 %6085
      %6087 = vrot.lane.b32.xlu0 %v5783, 49
      %v6088 = vpop.permute.xlu0 %6087
      %v6089 = vsel %vm3476, %v6084, %v6086
      %v6090 = vsel %vm3476, %v6086, %v6088
      %v6094 = vsel %vm166, %v6081, 0
      %v6097 = vsel %vm166, %v6082, 0
      %6099 = vmatprep.subr.mxu0 %v6090
      %6100 = vmatpush1.msra.mxu0 %v6089
      %6101 = vmatprep.subr.mxu0 0.0
      %6102 = vmatpush1.msra.mxu0 0.0
      %6103 = vmatprep.subr.mxu0 0.0
      %6104 = vmatpush1.msra.mxu0 0.0
      %6105 = vmatprep.subr.mxu0 0.0
      %6106 = vmatpush1.msra.mxu0 0.0
      %6107 = vmatprep.subr.mxu0 0.0
      %6108 = vmatpush1.msra.mxu0 0.0
      %6109 = vmatprep.subr.mxu0 0.0
      %6110 = vmatpush1.msra.mxu0 0.0
      %6111 = vmatprep.subr.mxu0 0.0
      %6112 = vmatpush1.msra.mxu0 0.0
      %6113 = vmatprep.subr.mxu0 0.0
      %6114 = vmatpush1.msra.mxu0 0.0
      %6115 = vmatprep.subr.mxu0 0.0
      %6116 = vmatpush1.msra.mxu0 0.0
      %6117 = vmatprep.subr.mxu0 0.0
      %6118 = vmatpush1.msra.mxu0 0.0
      %6119 = vmatprep.subr.mxu0 0.0
      %6120 = vmatpush1.msra.mxu0 0.0
      %6121 = vmatprep.subr.mxu0 0.0
      %6122 = vmatpush1.msra.mxu0 0.0
      %6123 = vmatprep.subr.mxu0 0.0
      %6124 = vmatpush1.msra.mxu0 0.0
      %6125 = vmatprep.subr.mxu0 0.0
      %6126 = vmatpush1.msra.mxu0 0.0
      %6127 = vmatprep.subr.mxu0 0.0
      %6128 = vmatpush1.msra.mxu0 0.0
      %6129 = vmatprep.subr.mxu0 0.0
      %6130 = vmatpush1.msra.mxu0 0.0
      %6131 = vmatprep.subr.mxu0 0.0
      %6132 = vmatpush1.msra.mxu0 0.0
      %6133 = vmatprep.subr.mxu0 0.0
      %6134 = vmatpush1.msra.mxu0 0.0
      %6135 = vmatprep.subr.mxu0 0.0
      %6136 = vmatpush1.msra.mxu0 0.0
      %6137 = vmatprep.subr.mxu0 0.0
      %6138 = vmatpush1.msra.mxu0 0.0
      %6139 = vmatprep.subr.mxu0 0.0
      %6140 = vmatpush1.msra.mxu0 0.0
      %6141 = vmatprep.subr.mxu0 0.0
      %6142 = vmatpush1.msra.mxu0 0.0
      %6143 = vmatprep.subr.mxu0 0.0
      %6144 = vmatpush1.msra.mxu0 0.0
      %6145 = vmatprep.subr.mxu0 0.0
      %6146 = vmatpush1.msra.mxu0 0.0
      %6147 = vmatprep.subr.mxu0 0.0
      %6148 = vmatpush1.msra.mxu0 0.0
      %6149 = vmatprep.subr.mxu0 0.0
      %6150 = vmatpush1.msra.mxu0 0.0
      %6151 = vmatprep.subr.mxu0 0.0
      %6152 = vmatpush1.msra.mxu0 0.0
      %6153 = vmatprep.subr.mxu0 0.0
      %6154 = vmatpush1.msra.mxu0 0.0
      %6155 = vmatprep.subr.mxu0 0.0
      %6156 = vmatpush1.msra.mxu0 0.0
      %6157 = vmatprep.subr.mxu0 0.0
      %6158 = vmatpush1.msra.mxu0 0.0
      %6159 = vmatprep.subr.mxu0 0.0
      %6160 = vmatpush1.msra.mxu0 0.0
      %6161 = vmatprep.subr.mxu0 0.0
      %6162 = vmatpush1.msra.mxu0 0.0
      %6163 = vmatprep.mubr.f32.mxu0 0.0
      %6164 = vmatmul.mubr.f32.gmra.mrb[0].mxu0 %v6094
      %v6165 = vpop.f32.mrb[0].mxu0
      %v6166 = vadd.f32 0.0, %v6165
      %v6167 = vpop.f32.mrb[0].mxu0
      %v6168 = vadd.f32 0.0, %v6167
      %6169 = vmatprep.mubr.f32.mxu0 0.0
      %6170 = vmatmul.mubr.f32.gmra.mrb[0].mxu0 %v6097
      %v6171 = vpop.f32.mrb[0].mxu0
      %v6172 = vadd.f32 0.0, %v6171
      %v6173 = vpop.f32.mrb[0].mxu0
      %v6174 = vadd.f32 0.0, %v6173
      %6175 = vdwg.mxu0
      %v6176 = vadd.f32 %v6076, %v6166
      %v6177 = vadd.f32 %v6077, %v6168
      %v6178 = vadd.f32 %v6078, %v6172
      %v6179 = vadd.f32 %v6079, %v6174
      %s6180 = scalar_lea.vmem %s1, 960
      %v6181 = vld [vmem:[%s6180] sm:$0xff]
      %v6182 = vld [vmem:[%s6180 + $0x8] sm:$0xff]
      %6183 = vrot.lane.b32.xlu0 %v5781, 78
      %v6184 = vpop.permute.xlu0 %6183
      %6185 = vrot.lane.b32.xlu0 %v5782, 78
      %v6186 = vpop.permute.xlu0 %6185
      %6187 = vrot.lane.b32.xlu0 %v5783, 78
      %v6188 = vpop.permute.xlu0 %6187
      %v6189 = vsel %vm2670, %v6184, %v6186
      %v6190 = vsel %vm2670, %v6186, %v6188
      %v6194 = vsel %vm166, %v6181, 0
      %v6197 = vsel %vm166, %v6182, 0
      %6199 = vmatprep.subr.mxu0 %v6190
      %6200 = vmatpush1.msra.mxu0 %v6189
      %6201 = vmatprep.subr.mxu0 0.0
      %6202 = vmatpush1.msra.mxu0 0.0
      %6203 = vmatprep.subr.mxu0 0.0
      %6204 = vmatpush1.msra.mxu0 0.0
      %6205 = vmatprep.subr.mxu0 0.0
      %6206 = vmatpush1.msra.mxu0 0.0
      %6207 = vmatprep.subr.mxu0 0.0
      %6208 = vmatpush1.msra.mxu0 0.0
      %6209 = vmatprep.subr.mxu0 0.0
      %6210 = vmatpush1.msra.mxu0 0.0
      %6211 = vmatprep.subr.mxu0 0.0
      %6212 = vmatpush1.msra.mxu0 0.0
      %6213 = vmatprep.subr.mxu0 0.0
      %6214 = vmatpush1.msra.mxu0 0.0
      %6215 = vmatprep.subr.mxu0 0.0
      %6216 = vmatpush1.msra.mxu0 0.0
      %6217 = vmatprep.subr.mxu0 0.0
      %6218 = vmatpush1.msra.mxu0 0.0
      %6219 = vmatprep.subr.mxu0 0.0
      %6220 = vmatpush1.msra.mxu0 0.0
      %6221 = vmatprep.subr.mxu0 0.0
      %6222 = vmatpush1.msra.mxu0 0.0
      %6223 = vmatprep.subr.mxu0 0.0
      %6224 = vmatpush1.msra.mxu0 0.0
      %6225 = vmatprep.subr.mxu0 0.0
      %6226 = vmatpush1.msra.mxu0 0.0
      %6227 = vmatprep.subr.mxu0 0.0
      %6228 = vmatpush1.msra.mxu0 0.0
      %6229 = vmatprep.subr.mxu0 0.0
      %6230 = vmatpush1.msra.mxu0 0.0
      %6231 = vmatprep.subr.mxu0 0.0
      %6232 = vmatpush1.msra.mxu0 0.0
      %6233 = vmatprep.subr.mxu0 0.0
      %6234 = vmatpush1.msra.mxu0 0.0
      %6235 = vmatprep.subr.mxu0 0.0
      %6236 = vmatpush1.msra.mxu0 0.0
      %6237 = vmatprep.subr.mxu0 0.0
      %6238 = vmatpush1.msra.mxu0 0.0
      %6239 = vmatprep.subr.mxu0 0.0
      %6240 = vmatpush1.msra.mxu0 0.0
      %6241 = vmatprep.subr.mxu0 0.0
      %6242 = vmatpush1.msra.mxu0 0.0
      %6243 = vmatprep.subr.mxu0 0.0
      %6244 = vmatpush1.msra.mxu0 0.0
      %6245 = vmatprep.subr.mxu0 0.0
      %6246 = vmatpush1.msra.mxu0 0.0
      %6247 = vmatprep.subr.mxu0 0.0
      %6248 = vmatpush1.msra.mxu0 0.0
      %6249 = vmatprep.subr.mxu0 0.0
      %6250 = vmatpush1.msra.mxu0 0.0
      %6251 = vmatprep.subr.mxu0 0.0
      %6252 = vmatpush1.msra.mxu0 0.0
      %6253 = vmatprep.subr.mxu0 0.0
      %6254 = vmatpush1.msra.mxu0 0.0
      %6255 = vmatprep.subr.mxu0 0.0
      %6256 = vmatpush1.msra.mxu0 0.0
      %6257 = vmatprep.subr.mxu0 0.0
      %6258 = vmatpush1.msra.mxu0 0.0
      %6259 = vmatprep.subr.mxu0 0.0
      %6260 = vmatpush1.msra.mxu0 0.0
      %6261 = vmatprep.subr.mxu0 0.0
      %6262 = vmatpush1.msra.mxu0 0.0
      %6263 = vmatprep.mubr.f32.mxu0 0.0
      %6264 = vmatmul.mubr.f32.gmra.mrb[0].mxu0 %v6194
      %v6265 = vpop.f32.mrb[0].mxu0
      %v6266 = vadd.f32 0.0, %v6265
      %v6267 = vpop.f32.mrb[0].mxu0
      %v6268 = vadd.f32 0.0, %v6267
      %6269 = vmatprep.mubr.f32.mxu0 0.0
      %6270 = vmatmul.mubr.f32.gmra.mrb[0].mxu0 %v6197
      %v6271 = vpop.f32.mrb[0].mxu0
      %v6272 = vadd.f32 0.0, %v6271
      %v6273 = vpop.f32.mrb[0].mxu0
      %v6274 = vadd.f32 0.0, %v6273
      %6275 = vdwg.mxu0
      %v6276 = vadd.f32 %v6176, %v6266
      %v6277 = vadd.f32 %v6177, %v6268
      %v6278 = vadd.f32 %v6178, %v6272
      %v6279 = vadd.f32 %v6179, %v6274
      %s6280 = scalar_lea.vmem %s1, 976
      %v6281 = vld [vmem:[%s6280] sm:$0xff]
      %v6282 = vld [vmem:[%s6280 + $0x8] sm:$0xff]
      %6283 = vrot.lane.b32.xlu0 %v5781, 79
      %v6284 = vpop.permute.xlu0 %6283
      %6285 = vrot.lane.b32.xlu0 %v5782, 79
      %v6286 = vpop.permute.xlu0 %6285
      %6287 = vrot.lane.b32.xlu0 %v5783, 79
      %v6288 = vpop.permute.xlu0 %6287
      %v6289 = vsel %vm1864, %v6284, %v6286
      %v6290 = vsel %vm1864, %v6286, %v6288
      %v6294 = vsel %vm166, %v6281, 0
      %v6297 = vsel %vm166, %v6282, 0
      %6299 = vmatprep.subr.mxu0 %v6290
      %6300 = vmatpush1.msra.mxu0 %v6289
      %6301 = vmatprep.subr.mxu0 0.0
      %6302 = vmatpush1.msra.mxu0 0.0
      %6303 = vmatprep.subr.mxu0 0.0
      %6304 = vmatpush1.msra.mxu0 0.0
      %6305 = vmatprep.subr.mxu0 0.0
      %6306 = vmatpush1.msra.mxu0 0.0
      %6307 = vmatprep.subr.mxu0 0.0
      %6308 = vmatpush1.msra.mxu0 0.0
      %6309 = vmatprep.subr.mxu0 0.0
      %6310 = vmatpush1.msra.mxu0 0.0
      %6311 = vmatprep.subr.mxu0 0.0
      %6312 = vmatpush1.msra.mxu0 0.0
      %6313 = vmatprep.subr.mxu0 0.0
      %6314 = vmatpush1.msra.mxu0 0.0
      %6315 = vmatprep.subr.mxu0 0.0
      %6316 = vmatpush1.msra.mxu0 0.0
      %6317 = vmatprep.subr.mxu0 0.0
      %6318 = vmatpush1.msra.mxu0 0.0
      %6319 = vmatprep.subr.mxu0 0.0
      %6320 = vmatpush1.msra.mxu0 0.0
      %6321 = vmatprep.subr.mxu0 0.0
      %6322 = vmatpush1.msra.mxu0 0.0
      %6323 = vmatprep.subr.mxu0 0.0
      %6324 = vmatpush1.msra.mxu0 0.0
      %6325 = vmatprep.subr.mxu0 0.0
      %6326 = vmatpush1.msra.mxu0 0.0
      %6327 = vmatprep.subr.mxu0 0.0
      %6328 = vmatpush1.msra.mxu0 0.0
      %6329 = vmatprep.subr.mxu0 0.0
      %6330 = vmatpush1.msra.mxu0 0.0
      %6331 = vmatprep.subr.mxu0 0.0
      %6332 = vmatpush1.msra.mxu0 0.0
      %6333 = vmatprep.subr.mxu0 0.0
      %6334 = vmatpush1.msra.mxu0 0.0
      %6335 = vmatprep.subr.mxu0 0.0
      %6336 = vmatpush1.msra.mxu0 0.0
      %6337 = vmatprep.subr.mxu0 0.0
      %6338 = vmatpush1.msra.mxu0 0.0
      %6339 = vmatprep.subr.mxu0 0.0
      %6340 = vmatpush1.msra.mxu0 0.0
      %6341 = vmatprep.subr.mxu0 0.0
      %6342 = vmatpush1.msra.mxu0 0.0
      %6343 = vmatprep.subr.mxu0 0.0
      %6344 = vmatpush1.msra.mxu0 0.0
      %6345 = vmatprep.subr.mxu0 0.0
      %6346 = vmatpush1.msra.mxu0 0.0
      %6347 = vmatprep.subr.mxu0 0.0
      %6348 = vmatpush1.msra.mxu0 0.0
      %6349 = vmatprep.subr.mxu0 0.0
      %6350 = vmatpush1.msra.mxu0 0.0
      %6351 = vmatprep.subr.mxu0 0.0
      %6352 = vmatpush1.msra.mxu0 0.0
      %6353 = vmatprep.subr.mxu0 0.0
      %6354 = vmatpush1.msra.mxu0 0.0
      %6355 = vmatprep.subr.mxu0 0.0
      %6356 = vmatpush1.msra.mxu0 0.0
      %6357 = vmatprep.subr.mxu0 0.0
      %6358 = vmatpush1.msra.mxu0 0.0
      %6359 = vmatprep.subr.mxu0 0.0
      %6360 = vmatpush1.msra.mxu0 0.0
      %6361 = vmatprep.subr.mxu0 0.0
      %6362 = vmatpush1.msra.mxu0 0.0
      %6363 = vmatprep.mubr.f32.mxu0 0.0
      %6364 = vmatmul.mubr.f32.gmra.mrb[0].mxu0 %v6294
      %v6365 = vpop.f32.mrb[0].mxu0
      %v6366 = vadd.f32 0.0, %v6365
      %v6367 = vpop.f32.mrb[0].mxu0
      %v6368 = vadd.f32 0.0, %v6367
      %6369 = vmatprep.mubr.f32.mxu0 0.0
      %6370 = vmatmul.mubr.f32.gmra.mrb[0].mxu0 %v6297
      %v6371 = vpop.f32.mrb[0].mxu0
      %v6372 = vadd.f32 0.0, %v6371
      %v6373 = vpop.f32.mrb[0].mxu0
      %v6374 = vadd.f32 0.0, %v6373
      %6375 = vdwg.mxu0
      %v6376 = vadd.f32 %v6276, %v6366
      %v6377 = vadd.f32 %v6277, %v6368
      %v6378 = vadd.f32 %v6278, %v6372
      %v6379 = vadd.f32 %v6279, %v6374
      %s6380 = scalar_lea.vmem %s1, 992
      %v6381 = vld [vmem:[%s6380] sm:$0xff]
      %v6382 = vld [vmem:[%s6380 + $0x8] sm:$0xff]
      %6383 = vrot.lane.b32.xlu0 %v5781, 84
      %v6384 = vpop.permute.xlu0 %6383
      %6385 = vrot.lane.b32.xlu0 %v5782, 84
      %v6386 = vpop.permute.xlu0 %6385
      %6387 = vrot.lane.b32.xlu0 %v5783, 84
      %v6388 = vpop.permute.xlu0 %6387
      %v6389 = vsel %vm1056, %v6384, %v6386
      %v6390 = vsel %vm1056, %v6386, %v6388
      %v6394 = vsel %vm166, %v6381, 0
      %v6397 = vsel %vm166, %v6382, 0
      %6399 = vmatprep.subr.mxu0 %v6390
      %6400 = vmatpush1.msra.mxu0 %v6389
      %6401 = vmatprep.subr.mxu0 0.0
      %6402 = vmatpush1.msra.mxu0 0.0
      %6403 = vmatprep.subr.mxu0 0.0
      %6404 = vmatpush1.msra.mxu0 0.0
      %6405 = vmatprep.subr.mxu0 0.0
      %6406 = vmatpush1.msra.mxu0 0.0
      %6407 = vmatprep.subr.mxu0 0.0
      %6408 = vmatpush1.msra.mxu0 0.0
      %6409 = vmatprep.subr.mxu0 0.0
      %6410 = vmatpush1.msra.mxu0 0.0
      %6411 = vmatprep.subr.mxu0 0.0
      %6412 = vmatpush1.msra.mxu0 0.0
      %6413 = vmatprep.subr.mxu0 0.0
      %6414 = vmatpush1.msra.mxu0 0.0
      %6415 = vmatprep.subr.mxu0 0.0
      %6416 = vmatpush1.msra.mxu0 0.0
      %6417 = vmatprep.subr.mxu0 0.0
      %6418 = vmatpush1.msra.mxu0 0.0
      %6419 = vmatprep.subr.mxu0 0.0
      %6420 = vmatpush1.msra.mxu0 0.0
      %6421 = vmatprep.subr.mxu0 0.0
      %6422 = vmatpush1.msra.mxu0 0.0
      %6423 = vmatprep.subr.mxu0 0.0
      %6424 = vmatpush1.msra.mxu0 0.0
      %6425 = vmatprep.subr.mxu0 0.0
      %6426 = vmatpush1.msra.mxu0 0.0
      %6427 = vmatprep.subr.mxu0 0.0
      %6428 = vmatpush1.msra.mxu0 0.0
      %6429 = vmatprep.subr.mxu0 0.0
      %6430 = vmatpush1.msra.mxu0 0.0
      %6431 = vmatprep.subr.mxu0 0.0
      %6432 = vmatpush1.msra.mxu0 0.0
      %6433 = vmatprep.subr.mxu0 0.0
      %6434 = vmatpush1.msra.mxu0 0.0
      %6435 = vmatprep.subr.mxu0 0.0
      %6436 = vmatpush1.msra.mxu0 0.0
      %6437 = vmatprep.subr.mxu0 0.0
      %6438 = vmatpush1.msra.mxu0 0.0
      %6439 = vmatprep.subr.mxu0 0.0
      %6440 = vmatpush1.msra.mxu0 0.0
      %6441 = vmatprep.subr.mxu0 0.0
      %6442 = vmatpush1.msra.mxu0 0.0
      %6443 = vmatprep.subr.mxu0 0.0
      %6444 = vmatpush1.msra.mxu0 0.0
      %6445 = vmatprep.subr.mxu0 0.0
      %6446 = vmatpush1.msra.mxu0 0.0
      %6447 = vmatprep.subr.mxu0 0.0
      %6448 = vmatpush1.msra.mxu0 0.0
      %6449 = vmatprep.subr.mxu0 0.0
      %6450 = vmatpush1.msra.mxu0 0.0
      %6451 = vmatprep.subr.mxu0 0.0
      %6452 = vmatpush1.msra.mxu0 0.0
      %6453 = vmatprep.subr.mxu0 0.0
      %6454 = vmatpush1.msra.mxu0 0.0
      %6455 = vmatprep.subr.mxu0 0.0
      %6456 = vmatpush1.msra.mxu0 0.0
      %6457 = vmatprep.subr.mxu0 0.0
      %6458 = vmatpush1.msra.mxu0 0.0
      %6459 = vmatprep.subr.mxu0 0.0
      %6460 = vmatpush1.msra.mxu0 0.0
      %6461 = vmatprep.subr.mxu0 0.0
      %6462 = vmatpush1.msra.mxu0 0.0
      %6463 = vmatprep.mubr.f32.mxu0 0.0
      %6464 = vmatmul.mubr.f32.gmra.mrb[0].mxu0 %v6394
      %v6465 = vpop.f32.mrb[0].mxu0
      %v6466 = vadd.f32 0.0, %v6465
      %v6467 = vpop.f32.mrb[0].mxu0
      %v6468 = vadd.f32 0.0, %v6467
      %6469 = vmatprep.mubr.f32.mxu0 0.0
      %6470 = vmatmul.mubr.f32.gmra.mrb[0].mxu0 %v6397
      %v6471 = vpop.f32.mrb[0].mxu0
      %v6472 = vadd.f32 0.0, %v6471
      %v6473 = vpop.f32.mrb[0].mxu0
      %v6474 = vadd.f32 0.0, %v6473
      %6475 = vdwg.mxu0
      %v6476 = vadd.f32 %v6376, %v6466
      %v6477 = vadd.f32 %v6377, %v6468
      %v6478 = vadd.f32 %v6378, %v6472
      %v6479 = vadd.f32 %v6379, %v6474
      %s6480 = scalar_lea.vmem %s1, 1008
      %v6481 = vld [vmem:[%s6480] sm:$0xff]
      %v6482 = vld [vmem:[%s6480 + $0x8] sm:$0xff]
      %6483 = vrot.lane.b32.xlu0 %v5781, 85
      %v6484 = vpop.permute.xlu0 %6483
      %6485 = vrot.lane.b32.xlu0 %v5782, 85
      %v6486 = vpop.permute.xlu0 %6485
      %6487 = vrot.lane.b32.xlu0 %v5783, 85
      %v6488 = vpop.permute.xlu0 %6487
      %v6489 = vsel %vm256, %v6484, %v6486
      %v6490 = vsel %vm256, %v6486, %v6488
      %v6494 = vsel %vm166, %v6481, 0
      %v6497 = vsel %vm166, %v6482, 0
      %6499 = vmatprep.subr.mxu0 %v6490
      %6500 = vmatpush1.msra.mxu0 %v6489
      %6501 = vmatprep.subr.mxu0 0.0
      %6502 = vmatpush1.msra.mxu0 0.0
      %6503 = vmatprep.subr.mxu0 0.0
      %6504 = vmatpush1.msra.mxu0 0.0
      %6505 = vmatprep.subr.mxu0 0.0
      %6506 = vmatpush1.msra.mxu0 0.0
      %6507 = vmatprep.subr.mxu0 0.0
      %6508 = vmatpush1.msra.mxu0 0.0
      %6509 = vmatprep.subr.mxu0 0.0
      %6510 = vmatpush1.msra.mxu0 0.0
      %6511 = vmatprep.subr.mxu0 0.0
      %6512 = vmatpush1.msra.mxu0 0.0
      %6513 = vmatprep.subr.mxu0 0.0
      %6514 = vmatpush1.msra.mxu0 0.0
      %6515 = vmatprep.subr.mxu0 0.0
      %6516 = vmatpush1.msra.mxu0 0.0
      %6517 = vmatprep.subr.mxu0 0.0
      %6518 = vmatpush1.msra.mxu0 0.0
      %6519 = vmatprep.subr.mxu0 0.0
      %6520 = vmatpush1.msra.mxu0 0.0
      %6521 = vmatprep.subr.mxu0 0.0
      %6522 = vmatpush1.msra.mxu0 0.0
      %6523 = vmatprep.subr.mxu0 0.0
      %6524 = vmatpush1.msra.mxu0 0.0
      %6525 = vmatprep.subr.mxu0 0.0
      %6526 = vmatpush1.msra.mxu0 0.0
      %6527 = vmatprep.subr.mxu0 0.0
      %6528 = vmatpush1.msra.mxu0 0.0
      %6529 = vmatprep.subr.mxu0 0.0
      %6530 = vmatpush1.msra.mxu0 0.0
      %6531 = vmatprep.subr.mxu0 0.0
      %6532 = vmatpush1.msra.mxu0 0.0
      %6533 = vmatprep.subr.mxu0 0.0
      %6534 = vmatpush1.msra.mxu0 0.0
      %6535 = vmatprep.subr.mxu0 0.0
      %6536 = vmatpush1.msra.mxu0 0.0
      %6537 = vmatprep.subr.mxu0 0.0
      %6538 = vmatpush1.msra.mxu0 0.0
      %6539 = vmatprep.subr.mxu0 0.0
      %6540 = vmatpush1.msra.mxu0 0.0
      %6541 = vmatprep.subr.mxu0 0.0
      %6542 = vmatpush1.msra.mxu0 0.0
      %6543 = vmatprep.subr.mxu0 0.0
      %6544 = vmatpush1.msra.mxu0 0.0
      %6545 = vmatprep.subr.mxu0 0.0
      %6546 = vmatpush1.msra.mxu0 0.0
      %6547 = vmatprep.subr.mxu0 0.0
      %6548 = vmatpush1.msra.mxu0 0.0
      %6549 = vmatprep.subr.mxu0 0.0
      %6550 = vmatpush1.msra.mxu0 0.0
      %6551 = vmatprep.subr.mxu0 0.0
      %6552 = vmatpush1.msra.mxu0 0.0
      %6553 = vmatprep.subr.mxu0 0.0
      %6554 = vmatpush1.msra.mxu0 0.0
      %6555 = vmatprep.subr.mxu0 0.0
      %6556 = vmatpush1.msra.mxu0 0.0
      %6557 = vmatprep.subr.mxu0 0.0
      %6558 = vmatpush1.msra.mxu0 0.0
      %6559 = vmatprep.subr.mxu0 0.0
      %6560 = vmatpush1.msra.mxu0 0.0
      %6561 = vmatprep.subr.mxu0 0.0
      %6562 = vmatpush1.msra.mxu0 0.0
      %6563 = vmatprep.mubr.f32.mxu0 0.0
      %6564 = vmatmul.mubr.f32.gmra.mrb[0].mxu0 %v6494
      %v6565 = vpop.f32.mrb[0].mxu0
      %v6566 = vadd.f32 0.0, %v6565
      %v6567 = vpop.f32.mrb[0].mxu0
      %v6568 = vadd.f32 0.0, %v6567
      %6569 = vmatprep.mubr.f32.mxu0 0.0
      %6570 = vmatmul.mubr.f32.gmra.mrb[0].mxu0 %v6497
      %v6571 = vpop.f32.mrb[0].mxu0
      %v6572 = vadd.f32 0.0, %v6571
      %v6573 = vpop.f32.mrb[0].mxu0
      %v6574 = vadd.f32 0.0, %v6573
      %6575 = vdwg.mxu0
      %v6576 = vadd.f32 %v6476, %v6566
      %v6577 = vadd.f32 %v6477, %v6568
      %v6578 = vadd.f32 %v6478, %v6572
      %v6579 = vadd.f32 %v6479, %v6574
      %s6580 = scalar_lea.vmem %s143, 224
      %6581 = vst [vmem:[%s6580] sm:$0xff] %v6576
      %6582 = vst [vmem:[%s6580 + $0x8] sm:$0xff] %v6577
      %6583 = vst [vmem:[%s6580 + $0x10] sm:$0xff] %v6578
      %6584 = vst [vmem:[%s6580 + $0x18] sm:$0xff] %v6579
      %p6585 = scmp.lt.s32.totalorder %s13, 1
      %s6586 = scalar_select %p6585, %s13, 1
      %s6587 = smul.addr %s6586, 32
      %s6588 = smul.addr %s6587, 8
      %s6589 = scalar_lea.vmem %s2, %s6588
      // Predicated region
      $region29: #{trans_conv3d_for_g.5} parent=27 // pred_check
        %p6590 = pneg %p78
      $region30: #{trans_conv3d_for_g.5} parent=27 // pred_check_branch
        %6592 = sbr.rel (%p6590) target = $region32
      $region31: #{trans_conv3d_for_g.5} parent=27 // pred_region
        _
      $region32: #{trans_conv3d_for_g.5} parent=27 // pred_fallthru
        _
    $region28: #{trans_conv3d_for_g.5} parent=5 // pred_fallthru
      _
    %p6593 = scmp.le.s32.totalorder 2, %s8
    // Predicated region
    $region33: #{trans_conv3d_for_g.5} parent=5 // pred_check
      %p6594 = pneg %p6593
    $region34: #{trans_conv3d_for_g.5} parent=5 // pred_check_branch
      %6596 = sbr.rel (%p6594) target = $region36
    $region35: #{trans_conv3d_for_g.5} parent=5 // pred_region
      %s6597 = ssub.s32 %s8, 2
      // Predicated region
      $region37: #{trans_conv3d_for_g.5} parent=35 // pred_check
        %p6598 = pneg %p84
      $region38: #{trans_conv3d_for_g.5} parent=35 // pred_check_branch
        %6600 = sbr.rel (%p6598) target = $region40
      $region39: #{trans_conv3d_for_g.5} parent=35 // pred_region
        %p6601 = scmp.lt.s32.totalorder %s14, 1
        %s6602 = scalar_select %p6601, %s14, 1
        %s6603 = smul.addr %s6602, 32
        %s6604 = smul.addr %s6603, 8
        %s6605 = scalar_lea.vmem %s2, %s6604
      $region40: #{trans_conv3d_for_g.5} parent=35 // pred_fallthru
        _
    $region36: #{trans_conv3d_for_g.5} parent=5 // pred_fallthru
      _
  $region6: #{trans_conv3d_for_g.5} parent=0 // loop_footer
    %s12 = sadd.s32 1, %s8
  $region7: #{trans_conv3d_for_g.5} parent=0 // loop_footer_branch
    %7 = sbr.rel target = $region3
  $region8: #{trans_conv3d_for_g.5} parent=0 // loop_exit
    _

</llo_original>
